<compile_context>
chip_gen: v7x
topology: tpu7x:2x2x1
jax: 0.10.0
libtpu: 0.0.40
codegen_flags: <defaults>
</compile_context>

<pallas_src>
import numpy as np
import jax
import jax.numpy as jnp
from jax.experimental import pallas as pl
from jax.experimental.pallas import tpu as pltpu

# ---------------- hyperparameters (small but consistent with the module) ----
B = 2               # batch
T = 8               # sequence length
E = 32              # word_embedding_size
C = 32              # context_embedding_size (LSTM hidden per direction)
H = 64              # hidden_size_linear (becomes the conv-path sequence length)
NUM_CLASSES = 4
F_CAT = E + 2 * C   # 96 = word_embedding_size + 2 * context_embedding_size
CH1 = 96            # ConvBlock1 out channels
CM = 384            # ConvBlock3 intermediate channels (already 3*128)
CP = 128            # 96-channel convs zero-padded to a full 128-lane tile

# conv-path geometry (floor-mode pooling, as in PyTorch)
CONV1_K, CONV1_S = 11, 4
POOL_K, POOL_S = 3, 2
L_CONV1 = (H - CONV1_K) // CONV1_S + 1        # 14
L_POOL1 = (L_CONV1 - POOL_K) // POOL_S + 1    # 6
L_POOL2 = (L_POOL1 - POOL_K) // POOL_S + 1    # 2


# ---------------- the single fused kernel ------------------------------------
def text_rcnn_kernel(x_ref, wih_ref, bg_ref, whh_ref, wlf_ref, wlb_ref,
                     wx_ref, blin_ref,
                     w1_ref, b1_ref, w2_ref, b2_ref,
                     w3a_ref, b3a_ref, w3b_ref, b3b_ref, w3c_ref, b3c_ref,
                     wo_ref, bo_ref, out_ref, hf_scr, hb_scr):
    f32 = jnp.float32
    bf16 = jnp.bfloat16

    # ---- bidirectional LSTM (time-major, input projection hoisted) -----------
    x2 = x_ref[...]                                                   # (T*B, E)
    gx = (jnp.dot(x2, wih_ref[...], preferred_element_type=f32)
          + bg_ref[...])                                              # (T*B, 8C)
    xw = jnp.dot(x2, wx_ref[...], preferred_element_type=f32)         # (T*B, H)

    whh = whh_ref[...]                                                # (2C, 8C) block-diag
    # gate layout (interleaved per direction): [i_f,i_b,f_f,f_b,g_f,g_b,o_f,o_b]
    lane = jax.lax.broadcasted_iota(jnp.int32, (B, 8 * C), 1)
    fwd_mask = (lane % (2 * C)) < C          # forward-direction lanes per gate slab

    h_cat = jnp.zeros((B, 2 * C), f32)       # [h_fwd | h_bwd]
    c_cat = jnp.zeros((B, 2 * C), f32)
    for t in range(T):                       # T static & tiny -> fully unrolled
        gt = gx[t * B:(t + 1) * B, :]                  # fwd input gates: x_t
        gr = gx[(T - 1 - t) * B:(T - t) * B, :]        # bwd input gates: x_{T-1-t}
        g_in = jnp.where(fwd_mask, gt, gr)
        # one fused recurrence matmul for both directions (block-diag whh)
        gates = g_in + jnp.dot(h_cat, whh, preferred_element_type=f32)   # (B, 8C)
        # i/f/o columns pre-scaled by 0.5 at pack time:
        # single tanh over the whole gate vector; sigmoid(z) = 0.5*tanh(0.5z)+0.5
        tg = jnp.tanh(gates)
        i = 0.5 * tg[:, 0:2 * C] + 0.5
        f = 0.5 * tg[:, 2 * C:4 * C] + 0.5
        g = tg[:, 4 * C:6 * C]
        o = 0.5 * tg[:, 6 * C:8 * C] + 0.5
        c_cat = f * c_cat + i * g
        h_cat = o * jnp.tanh(c_cat)
        # write back in ORIGINAL time order (backward direction reversed)
        hf_scr[t * B:(t + 1) * B, :] = h_cat[:, 0:C]
        hb_scr[(T - 1 - t) * B:(T - t) * B, :] = h_cat[:, C:2 * C]
    # note: nn.LSTM(dropout=0.5) is a no-op for a single-layer LSTM.

    # ---- Linear(cat([lstm_out, x])) + tanh + max over time -------------------
    y = jnp.tanh(jnp.dot(hf_scr[...], wlf_ref[...], preferred_element_type=f32)
                 + jnp.dot(hb_scr[...], wlb_ref[...], preferred_element_type=f32)
                 + xw + blin_ref[...])                                 # (T*B, H)
    v = y[0:B, :]
    for t in range(1, T):
        v = jnp.maximum(v, y[t * B:(t + 1) * B, :])                    # (B, H)

    # ---- conv stack: pre-folded dense bf16 weights, 128-lane-aligned taps ----
    # (bias-add and ReLU commute with the window max, so they are applied once
    #  after the pooling max -- exactly equivalent to conv+bias+ReLU+maxpool)
    def conv_pool3(act, w_ref, b_ref):
        # Conv1d == one MXU matmul; MaxPool1d(3,2) == max of 3 aligned lane slabs
        yc = jnp.dot(act.astype(bf16), w_ref[...], preferred_element_type=f32)
        s = w_ref.shape[1] // POOL_K
        m = jnp.maximum(jnp.maximum(yc[:, 0:s], yc[:, s:2 * s]), yc[:, 2 * s:3 * s])
        return jnp.maximum(m + b_ref[...], 0.0)

    def conv_relu(act, w_ref, b_ref):
        yc = jnp.dot(act.astype(bf16), w_ref[...], preferred_element_type=f32)
        return jnp.maximum(yc + b_ref[...], 0.0)

    p1 = conv_pool3(v, w1_ref, b1_ref)          # ConvBlock1 -> (B, L_POOL1*CP)
    p2 = conv_pool3(p1, w2_ref, b2_ref)         # ConvBlock2 -> (B, L_POOL2*CP)
    y3 = conv_relu(conv_relu(conv_relu(p2, w3a_ref, b3a_ref),
                             w3b_ref, b3b_ref),
                   w3c_ref, b3c_ref)            # ConvBlock3 -> (B, 2*CP)

    # global max-pool over the (length == 2) axis: two 128-lane-aligned slabs
    feat = jnp.maximum(y3[:, 0:CP], y3[:, CP:2 * CP])                  # (B, CP)

    # TODO(synk): nn.Dropout(p=0.5) implemented as identity (eval mode); no stochastic mask.
    out_ref[...] = (jnp.dot(feat, wo_ref[...], preferred_element_type=f32)
                    + bo_ref[...])


# ---------------- forward wrapper: exactly one pallas_call --------------------
def text_rcnn_forward(x, q):
    # time-major reshape done by XLA outside the kernel (tiny, free)
    x_tm = jnp.swapaxes(x, 0, 1).reshape(T * B, E)
    args = (x_tm, q['wih'], q['bg'], q['whh'], q['wl_f'], q['wl_b'],
            q['wx'], q['b_lin'],
            q['w1d'], q['b1t'], q['w2d'], q['b2t'],
            q['w3ad'], q['b3at'], q['w3bd'], q['b3bt'], q['w3cd'], q['b3ct'],
            q['wo'], q['bo'])
    return pl.pallas_call(
        text_rcnn_kernel,
        out_shape=jax.ShapeDtypeStruct((B, NUM_CLASSES), jnp.float32),
        in_specs=[pl.BlockSpec(memory_space=pltpu.MemorySpace.VMEM)] * len(args),
        out_specs=pl.BlockSpec(memory_space=pltpu.MemorySpace.VMEM),
        scratch_shapes=[pltpu.VMEM((T * B, C), jnp.float32),   # fwd hidden states
                        pltpu.VMEM((T * B, C), jnp.float32)],  # bwd hidden states
    )(*args)


# ---------------- one-time weight repacking (outside jit) ---------------------
def pack_params(p):
    """Repack torch-style weights for the fused kernel (done once, in numpy).

    - LSTM gates of both directions are interleaved per gate slab
      [i_f,i_b,f_f,f_b,g_f,g_b,o_f,o_b]; the 0.5 of sigmoid(z)=0.5*tanh(0.5z)+0.5
      is folded into the i/f/o columns; whh is a block-diagonal (2C, 8C) so both
      directions share a single recurrence matmul per step.
    - Each Conv1d is folded into a dense matrix whose column blocks follow the
      pooling-window taps; output channels are zero-padded 96->128 for 128-lane
      alignment; conv matrices are stored in bfloat16 (halves the weight DMA).
    """
    f32 = np.float32

    def n(a):
        return np.asarray(a, f32)

    # --- LSTM packing ----------------------------------------------------------
    def interleave_gates(wf, wb):
        parts = []
        for gi in range(4):                      # gate order (i, f, g, o)
            parts.append(wf[:, gi * C:(gi + 1) * C])
            parts.append(wb[:, gi * C:(gi + 1) * C])
        return np.concatenate(parts, axis=1)

    wih = interleave_gates(n(p['wih_f']), n(p['wih_b']))          # (E, 8C)
    bg = interleave_gates(n(p['b_f']), n(p['b_b']))               # (1, 8C)
    whh = np.zeros((2 * C, 8 * C), f32)
    whh_f, whh_b = n(p['whh_f']), n(p['whh_b'])
    for gi in range(4):
        whh[0:C, gi * 2 * C:gi * 2 * C + C] = whh_f[:, gi * C:(gi + 1) * C]
        whh[C:2 * C, gi * 2 * C + C:(gi + 1) * 2 * C] = whh_b[:, gi * C:(gi + 1) * C]
    scale = np.ones((1, 8 * C), f32)
    for gi in (0, 1, 3):                         # i, f, o gates get the 0.5 fold
        scale[:, gi * 2 * C:(gi + 1) * 2 * C] = 0.5
    wih *= scale
    whh *= scale
    bg *= scale

    # --- conv folding ----------------------------------------------------------
    def conv_dense(w, l_in, cin_pad, stride, pad, out_positions, cout_pad):
        # w: (K, Cin, Cout); rows = (pos_in, c_in padded), cols = (tap-block, c_out padded)
        K, cin, cout = w.shape
        m = np.zeros((l_in * cin_pad, len(out_positions) * cout_pad), f32)
        for blk, l in enumerate(out_positions):
            for k in range(K):
                li = l * stride + k - pad
                if 0 <= li < l_in:
                    m[li * cin_pad:li * cin_pad + cin,
                      blk * cout_pad:blk * cout_pad + cout] = w[k]
        return m

    def pad_bias(b, cout_pad, reps):
        bp = np.zeros((1, cout_pad), f32)
        bp[:, :b.shape[1]] = b
        return np.tile(bp, (1, reps))

    # block order (tap i, window j) -> conv output position 2*j + i
    pos1 = [POOL_S * j + i for i in range(POOL_K) for j in range(L_POOL1)]
    pos2 = [POOL_S * j + i for i in range(POOL_K) for j in range(L_POOL2)]
    pos3 = list(range(L_POOL2))     # ConvBlock3 keeps length 2 (k=3, p=1)

    w1d = conv_dense(n(p['w1']).reshape(CONV1_K, 1, CH1), H, 1, CONV1_S, 0, pos1, CP)
    w2d = conv_dense(n(p['w2']), L_POOL1, CP, 1, 2, pos2, CP)
    w3ad = conv_dense(n(p['w3a']), L_POOL2, CP, 1, 1, pos3, CM)
    w3bd = conv_dense(n(p['w3b']), L_POOL2, CM, 1, 1, pos3, CM)
    w3cd = conv_dense(n(p['w3c']), L_POOL2, CM, 1, 1, pos3, CP)

    wo_p = np.zeros((CP, NUM_CLASSES), f32)
    wo_p[:F_CAT, :] = n(p['wo'])

    ja = jnp.asarray
    bf = lambda a: jnp.asarray(a, jnp.bfloat16)
    return {
        'wih': ja(wih), 'bg': ja(bg), 'whh': ja(whh),
        'wl_f': ja(n(p['wl_f'])), 'wl_b': ja(n(p['wl_b'])),
        'wx': ja(n(p['wx'])), 'b_lin': ja(n(p['b_lin'])),
        'w1d': bf(w1d), 'b1t': ja(pad_bias(n(p['b1']), CP, L_POOL1)),
        'w2d': bf(w2d), 'b2t': ja(pad_bias(n(p['b2']), CP, L_POOL2)),
        'w3ad': bf(w3ad), 'b3at': ja(pad_bias(n(p['b3a']), CM, L_POOL2)),
        'w3bd': bf(w3bd), 'b3bt': ja(pad_bias(n(p['b3b']), CM, L_POOL2)),
        'w3cd': bf(w3cd), 'b3ct': ja(pad_bias(n(p['b3c']), CP, L_POOL2)),
        'wo': ja(wo_p), 'bo': ja(n(p['bo'])),
    }


# ---------------- deterministic parameter init --------------------------------
def init_params(key):
    ks = iter(jax.random.split(key, 24))

    def rnd(shape, fan_in):
        return jax.random.normal(next(ks), shape, jnp.float32) / jnp.sqrt(
            jnp.float32(fan_in))

    return {
        # bidirectional LSTM (gate order i, f, g, o; b = b_ih + b_hh pre-summed)
        'wih_f': rnd((E, 4 * C), E), 'whh_f': rnd((C, 4 * C), C), 'b_f': rnd((1, 4 * C), C),
        'wih_b': rnd((E, 4 * C), E), 'whh_b': rnd((C, 4 * C), C), 'b_b': rnd((1, 4 * C), C),
        # Linear(2C + E -> H), split into the sections of cat([h_fwd, h_bwd, x])
        'wl_f': rnd((C, H), F_CAT), 'wl_b': rnd((C, H), F_CAT),
        'wx': rnd((E, H), F_CAT), 'b_lin': rnd((1, H), F_CAT),
        # ConvBlock1: Conv1d(1, 96, k=11, s=4); weight stored (K, Cout) since Cin=1
        'w1': rnd((CONV1_K, CH1), CONV1_K), 'b1': rnd((1, CH1), CONV1_K),
        # ConvBlock2: Conv1d(96, 96, k=5, p=2); (K, Cin, Cout)
        'w2': rnd((5, CH1, F_CAT), 5 * CH1), 'b2': rnd((1, F_CAT), 5 * CH1),
        # ConvBlock3: 96 -> 384 -> 384 -> 96, k=3, p=1
        'w3a': rnd((3, F_CAT, CM), 3 * F_CAT), 'b3a': rnd((1, CM), 3 * F_CAT),
        'w3b': rnd((3, CM, CM), 3 * CM), 'b3b': rnd((1, CM), 3 * CM),
        'w3c': rnd((3, CM, F_CAT), 3 * CM), 'b3c': rnd((1, F_CAT), 3 * CM),
        # output Linear(96 -> num_classes)
        'wo': rnd((F_CAT, NUM_CLASSES), F_CAT), 'bo': rnd((1, NUM_CLASSES), F_CAT),
    }


if __name__ == "__main__":
    key = jax.random.PRNGKey(0)
    kx, kp = jax.random.split(key)
    x = jax.random.normal(kx, (B, T, E), jnp.float32)

    raw = init_params(kp)
    packed = pack_params(raw)          # one-time repacking, outside jit

    fwd = jax.jit(text_rcnn_forward)
    out = jax.block_until_ready(fwd(x, packed))

    assert out.shape == (B, NUM_CLASSES), out.shape
    assert bool(jnp.all(jnp.isfinite(out)))
    print("KERNEL_OK")
</pallas_src>

<mosaic_0001>
module attributes {stable_mosaic.version = 11 : i64} {
  func.func @text_rcnn_kernel(%arg0: memref<16x32xf32, #tpu.memory_space<vmem>>, %arg1: memref<32x256xf32, #tpu.memory_space<vmem>>, %arg2: memref<1x256xf32, #tpu.memory_space<vmem>>, %arg3: memref<64x256xf32, #tpu.memory_space<vmem>>, %arg4: memref<32x64xf32, #tpu.memory_space<vmem>>, %arg5: memref<32x64xf32, #tpu.memory_space<vmem>>, %arg6: memref<32x64xf32, #tpu.memory_space<vmem>>, %arg7: memref<1x64xf32, #tpu.memory_space<vmem>>, %arg8: memref<64x2304xbf16, #tpu.memory_space<vmem>>, %arg9: memref<1x768xf32, #tpu.memory_space<vmem>>, %arg10: memref<768x768xbf16, #tpu.memory_space<vmem>>, %arg11: memref<1x256xf32, #tpu.memory_space<vmem>>, %arg12: memref<256x768xbf16, #tpu.memory_space<vmem>>, %arg13: memref<1x768xf32, #tpu.memory_space<vmem>>, %arg14: memref<768x768xbf16, #tpu.memory_space<vmem>>, %arg15: memref<1x768xf32, #tpu.memory_space<vmem>>, %arg16: memref<768x256xbf16, #tpu.memory_space<vmem>>, %arg17: memref<1x256xf32, #tpu.memory_space<vmem>>, %arg18: memref<128x4xf32, #tpu.memory_space<vmem>>, %arg19: memref<1x4xf32, #tpu.memory_space<vmem>>, %arg20: memref<2x4xf32, #tpu.memory_space<vmem>>, %arg21: memref<16x32xf32, #tpu.memory_space<vmem>>, %arg22: memref<16x32xf32, #tpu.memory_space<vmem>>) attributes {dimension_semantics = [], scalar_prefetch = 0 : i64, scratch_operands = 2 : i64, tpu.core_type = #tpu.core_type<tc>} {
    %c0 = arith.constant 0 : index
    %c0_0 = arith.constant 0 : index
    %0 = vector.load %arg0[%c0, %c0_0] : memref<16x32xf32, #tpu.memory_space<vmem>>, vector<16x32xf32>
    %c0_1 = arith.constant 0 : index
    %c0_2 = arith.constant 0 : index
    %1 = vector.load %arg1[%c0_1, %c0_2] : memref<32x256xf32, #tpu.memory_space<vmem>>, vector<32x256xf32>
    %cst = arith.constant dense<0.000000e+00> : vector<16x256xf32>
    %2 = tpu.matmul %0, %1, %cst {dimension_numbers = #tpu.dot_dimension_numbers<[1], [0], [0], [1], [0, 0, 1, 1], [], []>} : vector<16x32xf32>, vector<32x256xf32>, vector<16x256xf32> -> vector<16x256xf32>
    %c0_3 = arith.constant 0 : index
    %c0_4 = arith.constant 0 : index
    %3 = vector.load %arg2[%c0_3, %c0_4] : memref<1x256xf32, #tpu.memory_space<vmem>>, vector<1x256xf32>
    %4 = vector.broadcast %3 : vector<1x256xf32> to vector<16x256xf32>
    %5 = arith.addf %2, %4 : vector<16x256xf32>
    %c0_5 = arith.constant 0 : index
    %c0_6 = arith.constant 0 : index
    %6 = vector.load %arg6[%c0_5, %c0_6] : memref<32x64xf32, #tpu.memory_space<vmem>>, vector<32x64xf32>
    %cst_7 = arith.constant dense<0.000000e+00> : vector<16x64xf32>
    %7 = tpu.matmul %0, %6, %cst_7 {dimension_numbers = #tpu.dot_dimension_numbers<[1], [0], [0], [1], [0, 0, 1, 1], [], []>} : vector<16x32xf32>, vector<32x64xf32>, vector<16x64xf32> -> vector<16x64xf32>
    %c0_8 = arith.constant 0 : index
    %c0_9 = arith.constant 0 : index
    %8 = vector.load %arg3[%c0_8, %c0_9] : memref<64x256xf32, #tpu.memory_space<vmem>>, vector<64x256xf32>
    %9 = tpu.iota {dimensions = array<i32: 1>} : vector<2x256xi32>
    %c64_i32 = arith.constant 64 : i32
    %c0_i32 = arith.constant 0 : i32
    %10 = arith.cmpi eq, %c64_i32, %c0_i32 : i32
    %c1_i32 = arith.constant 1 : i32
    %11 = arith.select %10, %c1_i32, %c64_i32 : i32
    %12 = vector.broadcast %11 : i32 to vector<2x256xi32>
    %13 = arith.remsi %9, %12 : vector<2x256xi32>
    %c0_i32_10 = arith.constant 0 : i32
    %14 = vector.broadcast %c0_i32_10 : i32 to vector<2x256xi32>
    %15 = arith.cmpi ne, %13, %14 : vector<2x256xi32>
    %c0_i32_11 = arith.constant 0 : i32
    %16 = vector.broadcast %c0_i32_11 : i32 to vector<2x256xi32>
    %17 = arith.cmpi slt, %13, %16 : vector<2x256xi32>
    %c0_i32_12 = arith.constant 0 : i32
    %18 = arith.cmpi slt, %11, %c0_i32_12 : i32
    %19 = vector.broadcast %18 : i1 to vector<2x256xi1>
    %20 = vector.broadcast %19 : vector<2x256xi1> to vector<2x256xi1>
    %21 = arith.xori %17, %20 : vector<2x256xi1>
    %22 = arith.andi %21, %15 : vector<2x256xi1>
    %23 = vector.broadcast %11 : i32 to vector<2x256xi32>
    %24 = arith.addi %13, %23 : vector<2x256xi32>
    %25 = arith.select %22, %24, %13 : vector<2x256xi1>, vector<2x256xi32>
    %c32_i32 = arith.constant 32 : i32
    %26 = vector.broadcast %c32_i32 : i32 to vector<2x256xi32>
    %27 = arith.cmpi slt, %25, %26 : vector<2x256xi32>
    %cst_13 = arith.constant 0.000000e+00 : f32
    %28 = vector.broadcast %cst_13 : f32 to vector<2x64xf32>
    %cst_14 = arith.constant 0.000000e+00 : f32
    %29 = vector.broadcast %cst_14 : f32 to vector<2x64xf32>
    %30 = vector.extract_strided_slice %5 {offsets = [0, 0], sizes = [2, 256], strides = [1, 1]} : vector<16x256xf32> to vector<2x256xf32>
    %31 = vector.extract_strided_slice %5 {offsets = [14, 0], sizes = [2, 256], strides = [1, 1]} : vector<16x256xf32> to vector<2x256xf32>
    %32 = arith.select %27, %30, %31 : vector<2x256xi1>, vector<2x256xf32>
    %cst_15 = arith.constant dense<0.000000e+00> : vector<2x256xf32>
    %33 = tpu.matmul %28, %8, %cst_15 {dimension_numbers = #tpu.dot_dimension_numbers<[1], [0], [0], [1], [0, 0, 1, 1], [], []>} : vector<2x64xf32>, vector<64x256xf32>, vector<2x256xf32> -> vector<2x256xf32>
    %34 = arith.addf %32, %33 : vector<2x256xf32>
    %35 = math.tanh %34 : vector<2x256xf32>
    %36 = vector.extract_strided_slice %35 {offsets = [0, 0], sizes = [2, 64], strides = [1, 1]} : vector<2x256xf32> to vector<2x64xf32>
    %cst_16 = arith.constant 5.000000e-01 : f32
    %37 = vector.broadcast %cst_16 : f32 to vector<2x64xf32>
    %38 = arith.mulf %37, %36 : vector<2x64xf32>
    %cst_17 = arith.constant 5.000000e-01 : f32
    %39 = vector.broadcast %cst_17 : f32 to vector<2x64xf32>
    %40 = arith.addf %38, %39 : vector<2x64xf32>
    %41 = vector.extract_strided_slice %35 {offsets = [0, 64], sizes = [2, 64], strides = [1, 1]} : vector<2x256xf32> to vector<2x64xf32>
    %cst_18 = arith.constant 5.000000e-01 : f32
    %42 = vector.broadcast %cst_18 : f32 to vector<2x64xf32>
    %43 = arith.mulf %42, %41 : vector<2x64xf32>
    %cst_19 = arith.constant 5.000000e-01 : f32
    %44 = vector.broadcast %cst_19 : f32 to vector<2x64xf32>
    %45 = arith.addf %43, %44 : vector<2x64xf32>
    %46 = vector.extract_strided_slice %35 {offsets = [0, 128], sizes = [2, 64], strides = [1, 1]} : vector<2x256xf32> to vector<2x64xf32>
    %47 = vector.extract_strided_slice %35 {offsets = [0, 192], sizes = [2, 64], strides = [1, 1]} : vector<2x256xf32> to vector<2x64xf32>
    %cst_20 = arith.constant 5.000000e-01 : f32
    %48 = vector.broadcast %cst_20 : f32 to vector<2x64xf32>
    %49 = arith.mulf %48, %47 : vector<2x64xf32>
    %cst_21 = arith.constant 5.000000e-01 : f32
    %50 = vector.broadcast %cst_21 : f32 to vector<2x64xf32>
    %51 = arith.addf %49, %50 : vector<2x64xf32>
    %52 = arith.mulf %45, %29 : vector<2x64xf32>
    %53 = arith.mulf %40, %46 : vector<2x64xf32>
    %54 = arith.addf %52, %53 : vector<2x64xf32>
    %55 = math.tanh %54 : vector<2x64xf32>
    %56 = arith.mulf %51, %55 : vector<2x64xf32>
    %57 = vector.extract_strided_slice %56 {offsets = [0, 0], sizes = [2, 32], strides = [1, 1]} : vector<2x64xf32> to vector<2x32xf32>
    %c0_22 = arith.constant 0 : index
    %c0_23 = arith.constant 0 : index
    %58 = vector.load %arg21[%c0_22, %c0_23] : memref<16x32xf32, #tpu.memory_space<vmem>>, vector<2x32xf32>
    tpu.vector_store %arg21[%c0_22, %c0_23], %57 {strides = array<i32>} : memref<16x32xf32, #tpu.memory_space<vmem>>, vector<2x32xf32>,
    %59 = vector.extract_strided_slice %56 {offsets = [0, 32], sizes = [2, 32], strides = [1, 1]} : vector<2x64xf32> to vector<2x32xf32>
    %c14 = arith.constant 14 : index
    %c0_24 = arith.constant 0 : index
    %60 = vector.load %arg22[%c14, %c0_24] : memref<16x32xf32, #tpu.memory_space<vmem>>, vector<2x32xf32>
    tpu.vector_store %arg22[%c14, %c0_24], %59 {strides = array<i32>} : memref<16x32xf32, #tpu.memory_space<vmem>>, vector<2x32xf32>,
    %61 = vector.extract_strided_slice %5 {offsets = [2, 0], sizes = [2, 256], strides = [1, 1]} : vector<16x256xf32> to vector<2x256xf32>
    %62 = vector.extract_strided_slice %5 {offsets = [12, 0], sizes = [2, 256], strides = [1, 1]} : vector<16x256xf32> to vector<2x256xf32>
    %63 = arith.select %27, %61, %62 : vector<2x256xi1>, vector<2x256xf32>
    %cst_25 = arith.constant dense<0.000000e+00> : vector<2x256xf32>
    %64 = tpu.matmul %56, %8, %cst_25 {dimension_numbers = #tpu.dot_dimension_numbers<[1], [0], [0], [1], [0, 0, 1, 1], [], []>} : vector<2x64xf32>, vector<64x256xf32>, vector<2x256xf32> -> vector<2x256xf32>
    %65 = arith.addf %63, %64 : vector<2x256xf32>
    %66 = math.tanh %65 : vector<2x256xf32>
    %67 = vector.extract_strided_slice %66 {offsets = [0, 0], sizes = [2, 64], strides = [1, 1]} : vector<2x256xf32> to vector<2x64xf32>
    %cst_26 = arith.constant 5.000000e-01 : f32
    %68 = vector.broadcast %cst_26 : f32 to vector<2x64xf32>
    %69 = arith.mulf %68, %67 : vector<2x64xf32>
    %cst_27 = arith.constant 5.000000e-01 : f32
    %70 = vector.broadcast %cst_27 : f32 to vector<2x64xf32>
    %71 = arith.addf %69, %70 : vector<2x64xf32>
    %72 = vector.extract_strided_slice %66 {offsets = [0, 64], sizes = [2, 64], strides = [1, 1]} : vector<2x256xf32> to vector<2x64xf32>
    %cst_28 = arith.constant 5.000000e-01 : f32
    %73 = vector.broadcast %cst_28 : f32 to vector<2x64xf32>
    %74 = arith.mulf %73, %72 : vector<2x64xf32>
    %cst_29 = arith.constant 5.000000e-01 : f32
    %75 = vector.broadcast %cst_29 : f32 to vector<2x64xf32>
    %76 = arith.addf %74, %75 : vector<2x64xf32>
    %77 = vector.extract_strided_slice %66 {offsets = [0, 128], sizes = [2, 64], strides = [1, 1]} : vector<2x256xf32> to vector<2x64xf32>
    %78 = vector.extract_strided_slice %66 {offsets = [0, 192], sizes = [2, 64], strides = [1, 1]} : vector<2x256xf32> to vector<2x64xf32>
    %cst_30 = arith.constant 5.000000e-01 : f32
    %79 = vector.broadcast %cst_30 : f32 to vector<2x64xf32>
    %80 = arith.mulf %79, %78 : vector<2x64xf32>
    %cst_31 = arith.constant 5.000000e-01 : f32
    %81 = vector.broadcast %cst_31 : f32 to vector<2x64xf32>
    %82 = arith.addf %80, %81 : vector<2x64xf32>
    %83 = arith.mulf %76, %54 : vector<2x64xf32>
    %84 = arith.mulf %71, %77 : vector<2x64xf32>
    %85 = arith.addf %83, %84 : vector<2x64xf32>
    %86 = math.tanh %85 : vector<2x64xf32>
    %87 = arith.mulf %82, %86 : vector<2x64xf32>
    %88 = vector.extract_strided_slice %87 {offsets = [0, 0], sizes = [2, 32], strides = [1, 1]} : vector<2x64xf32> to vector<2x32xf32>
    %c2 = arith.constant 2 : index
    %c0_32 = arith.constant 0 : index
    %89 = vector.load %arg21[%c2, %c0_32] : memref<16x32xf32, #tpu.memory_space<vmem>>, vector<2x32xf32>
    tpu.vector_store %arg21[%c2, %c0_32], %88 {strides = array<i32>} : memref<16x32xf32, #tpu.memory_space<vmem>>, vector<2x32xf32>,
    %90 = vector.extract_strided_slice %87 {offsets = [0, 32], sizes = [2, 32], strides = [1, 1]} : vector<2x64xf32> to vector<2x32xf32>
    %c12 = arith.constant 12 : index
    %c0_33 = arith.constant 0 : index
    %91 = vector.load %arg22[%c12, %c0_33] : memref<16x32xf32, #tpu.memory_space<vmem>>, vector<2x32xf32>
    tpu.vector_store %arg22[%c12, %c0_33], %90 {strides = array<i32>} : memref<16x32xf32, #tpu.memory_space<vmem>>, vector<2x32xf32>,
    %92 = vector.extract_strided_slice %5 {offsets = [4, 0], sizes = [2, 256], strides = [1, 1]} : vector<16x256xf32> to vector<2x256xf32>
    %93 = vector.extract_strided_slice %5 {offsets = [10, 0], sizes = [2, 256], strides = [1, 1]} : vector<16x256xf32> to vector<2x256xf32>
    %94 = arith.select %27, %92, %93 : vector<2x256xi1>, vector<2x256xf32>
    %cst_34 = arith.constant dense<0.000000e+00> : vector<2x256xf32>
    %95 = tpu.matmul %87, %8, %cst_34 {dimension_numbers = #tpu.dot_dimension_numbers<[1], [0], [0], [1], [0, 0, 1, 1], [], []>} : vector<2x64xf32>, vector<64x256xf32>, vector<2x256xf32> -> vector<2x256xf32>
    %96 = arith.addf %94, %95 : vector<2x256xf32>
    %97 = math.tanh %96 : vector<2x256xf32>
    %98 = vector.extract_strided_slice %97 {offsets = [0, 0], sizes = [2, 64], strides = [1, 1]} : vector<2x256xf32> to vector<2x64xf32>
    %cst_35 = arith.constant 5.000000e-01 : f32
    %99 = vector.broadcast %cst_35 : f32 to vector<2x64xf32>
    %100 = arith.mulf %99, %98 : vector<2x64xf32>
    %cst_36 = arith.constant 5.000000e-01 : f32
    %101 = vector.broadcast %cst_36 : f32 to vector<2x64xf32>
    %102 = arith.addf %100, %101 : vector<2x64xf32>
    %103 = vector.extract_strided_slice %97 {offsets = [0, 64], sizes = [2, 64], strides = [1, 1]} : vector<2x256xf32> to vector<2x64xf32>
    %cst_37 = arith.constant 5.000000e-01 : f32
    %104 = vector.broadcast %cst_37 : f32 to vector<2x64xf32>
    %105 = arith.mulf %104, %103 : vector<2x64xf32>
    %cst_38 = arith.constant 5.000000e-01 : f32
    %106 = vector.broadcast %cst_38 : f32 to vector<2x64xf32>
    %107 = arith.addf %105, %106 : vector<2x64xf32>
    %108 = vector.extract_strided_slice %97 {offsets = [0, 128], sizes = [2, 64], strides = [1, 1]} : vector<2x256xf32> to vector<2x64xf32>
    %109 = vector.extract_strided_slice %97 {offsets = [0, 192], sizes = [2, 64], strides = [1, 1]} : vector<2x256xf32> to vector<2x64xf32>
    %cst_39 = arith.constant 5.000000e-01 : f32
    %110 = vector.broadcast %cst_39 : f32 to vector<2x64xf32>
    %111 = arith.mulf %110, %109 : vector<2x64xf32>
    %cst_40 = arith.constant 5.000000e-01 : f32
    %112 = vector.broadcast %cst_40 : f32 to vector<2x64xf32>
    %113 = arith.addf %111, %112 : vector<2x64xf32>
    %114 = arith.mulf %107, %85 : vector<2x64xf32>
    %115 = arith.mulf %102, %108 : vector<2x64xf32>
    %116 = arith.addf %114, %115 : vector<2x64xf32>
    %117 = math.tanh %116 : vector<2x64xf32>
    %118 = arith.mulf %113, %117 : vector<2x64xf32>
    %119 = vector.extract_strided_slice %118 {offsets = [0, 0], sizes = [2, 32], strides = [1, 1]} : vector<2x64xf32> to vector<2x32xf32>
    %c4 = arith.constant 4 : index
    %c0_41 = arith.constant 0 : index
    %120 = vector.load %arg21[%c4, %c0_41] : memref<16x32xf32, #tpu.memory_space<vmem>>, vector<2x32xf32>
    tpu.vector_store %arg21[%c4, %c0_41], %119 {strides = array<i32>} : memref<16x32xf32, #tpu.memory_space<vmem>>, vector<2x32xf32>,
    %121 = vector.extract_strided_slice %118 {offsets = [0, 32], sizes = [2, 32], strides = [1, 1]} : vector<2x64xf32> to vector<2x32xf32>
    %c10 = arith.constant 10 : index
    %c0_42 = arith.constant 0 : index
    %122 = vector.load %arg22[%c10, %c0_42] : memref<16x32xf32, #tpu.memory_space<vmem>>, vector<2x32xf32>
    tpu.vector_store %arg22[%c10, %c0_42], %121 {strides = array<i32>} : memref<16x32xf32, #tpu.memory_space<vmem>>, vector<2x32xf32>,
    %123 = vector.extract_strided_slice %5 {offsets = [6, 0], sizes = [2, 256], strides = [1, 1]} : vector<16x256xf32> to vector<2x256xf32>
    %124 = vector.extract_strided_slice %5 {offsets = [8, 0], sizes = [2, 256], strides = [1, 1]} : vector<16x256xf32> to vector<2x256xf32>
    %125 = arith.select %27, %123, %124 : vector<2x256xi1>, vector<2x256xf32>
    %cst_43 = arith.constant dense<0.000000e+00> : vector<2x256xf32>
    %126 = tpu.matmul %118, %8, %cst_43 {dimension_numbers = #tpu.dot_dimension_numbers<[1], [0], [0], [1], [0, 0, 1, 1], [], []>} : vector<2x64xf32>, vector<64x256xf32>, vector<2x256xf32> -> vector<2x256xf32>
    %127 = arith.addf %125, %126 : vector<2x256xf32>
    %128 = math.tanh %127 : vector<2x256xf32>
    %129 = vector.extract_strided_slice %128 {offsets = [0, 0], sizes = [2, 64], strides = [1, 1]} : vector<2x256xf32> to vector<2x64xf32>
    %cst_44 = arith.constant 5.000000e-01 : f32
    %130 = vector.broadcast %cst_44 : f32 to vector<2x64xf32>
    %131 = arith.mulf %130, %129 : vector<2x64xf32>
    %cst_45 = arith.constant 5.000000e-01 : f32
    %132 = vector.broadcast %cst_45 : f32 to vector<2x64xf32>
    %133 = arith.addf %131, %132 : vector<2x64xf32>
    %134 = vector.extract_strided_slice %128 {offsets = [0, 64], sizes = [2, 64], strides = [1, 1]} : vector<2x256xf32> to vector<2x64xf32>
    %cst_46 = arith.constant 5.000000e-01 : f32
    %135 = vector.broadcast %cst_46 : f32 to vector<2x64xf32>
    %136 = arith.mulf %135, %134 : vector<2x64xf32>
    %cst_47 = arith.constant 5.000000e-01 : f32
    %137 = vector.broadcast %cst_47 : f32 to vector<2x64xf32>
    %138 = arith.addf %136, %137 : vector<2x64xf32>
    %139 = vector.extract_strided_slice %128 {offsets = [0, 128], sizes = [2, 64], strides = [1, 1]} : vector<2x256xf32> to vector<2x64xf32>
    %140 = vector.extract_strided_slice %128 {offsets = [0, 192], sizes = [2, 64], strides = [1, 1]} : vector<2x256xf32> to vector<2x64xf32>
    %cst_48 = arith.constant 5.000000e-01 : f32
    %141 = vector.broadcast %cst_48 : f32 to vector<2x64xf32>
    %142 = arith.mulf %141, %140 : vector<2x64xf32>
    %cst_49 = arith.constant 5.000000e-01 : f32
    %143 = vector.broadcast %cst_49 : f32 to vector<2x64xf32>
    %144 = arith.addf %142, %143 : vector<2x64xf32>
    %145 = arith.mulf %138, %116 : vector<2x64xf32>
    %146 = arith.mulf %133, %139 : vector<2x64xf32>
    %147 = arith.addf %145, %146 : vector<2x64xf32>
    %148 = math.tanh %147 : vector<2x64xf32>
    %149 = arith.mulf %144, %148 : vector<2x64xf32>
    %150 = vector.extract_strided_slice %149 {offsets = [0, 0], sizes = [2, 32], strides = [1, 1]} : vector<2x64xf32> to vector<2x32xf32>
    %c6 = arith.constant 6 : index
    %c0_50 = arith.constant 0 : index
    %151 = vector.load %arg21[%c6, %c0_50] : memref<16x32xf32, #tpu.memory_space<vmem>>, vector<2x32xf32>
    tpu.vector_store %arg21[%c6, %c0_50], %150 {strides = array<i32>} : memref<16x32xf32, #tpu.memory_space<vmem>>, vector<2x32xf32>,
    %152 = vector.extract_strided_slice %149 {offsets = [0, 32], sizes = [2, 32], strides = [1, 1]} : vector<2x64xf32> to vector<2x32xf32>
    %c8 = arith.constant 8 : index
    %c0_51 = arith.constant 0 : index
    %153 = vector.load %arg22[%c8, %c0_51] : memref<16x32xf32, #tpu.memory_space<vmem>>, vector<2x32xf32>
    tpu.vector_store %arg22[%c8, %c0_51], %152 {strides = array<i32>} : memref<16x32xf32, #tpu.memory_space<vmem>>, vector<2x32xf32>,
    %154 = vector.extract_strided_slice %5 {offsets = [8, 0], sizes = [2, 256], strides = [1, 1]} : vector<16x256xf32> to vector<2x256xf32>
    %155 = vector.extract_strided_slice %5 {offsets = [6, 0], sizes = [2, 256], strides = [1, 1]} : vector<16x256xf32> to vector<2x256xf32>
    %156 = arith.select %27, %154, %155 : vector<2x256xi1>, vector<2x256xf32>
    %cst_52 = arith.constant dense<0.000000e+00> : vector<2x256xf32>
    %157 = tpu.matmul %149, %8, %cst_52 {dimension_numbers = #tpu.dot_dimension_numbers<[1], [0], [0], [1], [0, 0, 1, 1], [], []>} : vector<2x64xf32>, vector<64x256xf32>, vector<2x256xf32> -> vector<2x256xf32>
    %158 = arith.addf %156, %157 : vector<2x256xf32>
    %159 = math.tanh %158 : vector<2x256xf32>
    %160 = vector.extract_strided_slice %159 {offsets = [0, 0], sizes = [2, 64], strides = [1, 1]} : vector<2x256xf32> to vector<2x64xf32>
    %cst_53 = arith.constant 5.000000e-01 : f32
    %161 = vector.broadcast %cst_53 : f32 to vector<2x64xf32>
    %162 = arith.mulf %161, %160 : vector<2x64xf32>
    %cst_54 = arith.constant 5.000000e-01 : f32
    %163 = vector.broadcast %cst_54 : f32 to vector<2x64xf32>
    %164 = arith.addf %162, %163 : vector<2x64xf32>
    %165 = vector.extract_strided_slice %159 {offsets = [0, 64], sizes = [2, 64], strides = [1, 1]} : vector<2x256xf32> to vector<2x64xf32>
    %cst_55 = arith.constant 5.000000e-01 : f32
    %166 = vector.broadcast %cst_55 : f32 to vector<2x64xf32>
    %167 = arith.mulf %166, %165 : vector<2x64xf32>
    %cst_56 = arith.constant 5.000000e-01 : f32
    %168 = vector.broadcast %cst_56 : f32 to vector<2x64xf32>
    %169 = arith.addf %167, %168 : vector<2x64xf32>
    %170 = vector.extract_strided_slice %159 {offsets = [0, 128], sizes = [2, 64], strides = [1, 1]} : vector<2x256xf32> to vector<2x64xf32>
    %171 = vector.extract_strided_slice %159 {offsets = [0, 192], sizes = [2, 64], strides = [1, 1]} : vector<2x256xf32> to vector<2x64xf32>
    %cst_57 = arith.constant 5.000000e-01 : f32
    %172 = vector.broadcast %cst_57 : f32 to vector<2x64xf32>
    %173 = arith.mulf %172, %171 : vector<2x64xf32>
    %cst_58 = arith.constant 5.000000e-01 : f32
    %174 = vector.broadcast %cst_58 : f32 to vector<2x64xf32>
    %175 = arith.addf %173, %174 : vector<2x64xf32>
    %176 = arith.mulf %169, %147 : vector<2x64xf32>
    %177 = arith.mulf %164, %170 : vector<2x64xf32>
    %178 = arith.addf %176, %177 : vector<2x64xf32>
    %179 = math.tanh %178 : vector<2x64xf32>
    %180 = arith.mulf %175, %179 : vector<2x64xf32>
    %181 = vector.extract_strided_slice %180 {offsets = [0, 0], sizes = [2, 32], strides = [1, 1]} : vector<2x64xf32> to vector<2x32xf32>
    %c8_59 = arith.constant 8 : index
    %c0_60 = arith.constant 0 : index
    %182 = vector.load %arg21[%c8_59, %c0_60] : memref<16x32xf32, #tpu.memory_space<vmem>>, vector<2x32xf32>
    tpu.vector_store %arg21[%c8_59, %c0_60], %181 {strides = array<i32>} : memref<16x32xf32, #tpu.memory_space<vmem>>, vector<2x32xf32>,
    %183 = vector.extract_strided_slice %180 {offsets = [0, 32], sizes = [2, 32], strides = [1, 1]} : vector<2x64xf32> to vector<2x32xf32>
    %c6_61 = arith.constant 6 : index
    %c0_62 = arith.constant 0 : index
    %184 = vector.load %arg22[%c6_61, %c0_62] : memref<16x32xf32, #tpu.memory_space<vmem>>, vector<2x32xf32>
    tpu.vector_store %arg22[%c6_61, %c0_62], %183 {strides = array<i32>} : memref<16x32xf32, #tpu.memory_space<vmem>>, vector<2x32xf32>,
    %185 = vector.extract_strided_slice %5 {offsets = [10, 0], sizes = [2, 256], strides = [1, 1]} : vector<16x256xf32> to vector<2x256xf32>
    %186 = vector.extract_strided_slice %5 {offsets = [4, 0], sizes = [2, 256], strides = [1, 1]} : vector<16x256xf32> to vector<2x256xf32>
    %187 = arith.select %27, %185, %186 : vector<2x256xi1>, vector<2x256xf32>
    %cst_63 = arith.constant dense<0.000000e+00> : vector<2x256xf32>
    %188 = tpu.matmul %180, %8, %cst_63 {dimension_numbers = #tpu.dot_dimension_numbers<[1], [0], [0], [1], [0, 0, 1, 1], [], []>} : vector<2x64xf32>, vector<64x256xf32>, vector<2x256xf32> -> vector<2x256xf32>
    %189 = arith.addf %187, %188 : vector<2x256xf32>
    %190 = math.tanh %189 : vector<2x256xf32>
    %191 = vector.extract_strided_slice %190 {offsets = [0, 0], sizes = [2, 64], strides = [1, 1]} : vector<2x256xf32> to vector<2x64xf32>
    %cst_64 = arith.constant 5.000000e-01 : f32
    %192 = vector.broadcast %cst_64 : f32 to vector<2x64xf32>
    %193 = arith.mulf %192, %191 : vector<2x64xf32>
    %cst_65 = arith.constant 5.000000e-01 : f32
    %194 = vector.broadcast %cst_65 : f32 to vector<2x64xf32>
    %195 = arith.addf %193, %194 : vector<2x64xf32>
    %196 = vector.extract_strided_slice %190 {offsets = [0, 64], sizes = [2, 64], strides = [1, 1]} : vector<2x256xf32> to vector<2x64xf32>
    %cst_66 = arith.constant 5.000000e-01 : f32
    %197 = vector.broadcast %cst_66 : f32 to vector<2x64xf32>
    %198 = arith.mulf %197, %196 : vector<2x64xf32>
    %cst_67 = arith.constant 5.000000e-01 : f32
    %199 = vector.broadcast %cst_67 : f32 to vector<2x64xf32>
    %200 = arith.addf %198, %199 : vector<2x64xf32>
    %201 = vector.extract_strided_slice %190 {offsets = [0, 128], sizes = [2, 64], strides = [1, 1]} : vector<2x256xf32> to vector<2x64xf32>
    %202 = vector.extract_strided_slice %190 {offsets = [0, 192], sizes = [2, 64], strides = [1, 1]} : vector<2x256xf32> to vector<2x64xf32>
    %cst_68 = arith.constant 5.000000e-01 : f32
    %203 = vector.broadcast %cst_68 : f32 to vector<2x64xf32>
    %204 = arith.mulf %203, %202 : vector<2x64xf32>
    %cst_69 = arith.constant 5.000000e-01 : f32
    %205 = vector.broadcast %cst_69 : f32 to vector<2x64xf32>
    %206 = arith.addf %204, %205 : vector<2x64xf32>
    %207 = arith.mulf %200, %178 : vector<2x64xf32>
    %208 = arith.mulf %195, %201 : vector<2x64xf32>
    %209 = arith.addf %207, %208 : vector<2x64xf32>
    %210 = math.tanh %209 : vector<2x64xf32>
    %211 = arith.mulf %206, %210 : vector<2x64xf32>
    %212 = vector.extract_strided_slice %211 {offsets = [0, 0], sizes = [2, 32], strides = [1, 1]} : vector<2x64xf32> to vector<2x32xf32>
    %c10_70 = arith.constant 10 : index
    %c0_71 = arith.constant 0 : index
    %213 = vector.load %arg21[%c10_70, %c0_71] : memref<16x32xf32, #tpu.memory_space<vmem>>, vector<2x32xf32>
    tpu.vector_store %arg21[%c10_70, %c0_71], %212 {strides = array<i32>} : memref<16x32xf32, #tpu.memory_space<vmem>>, vector<2x32xf32>,
    %214 = vector.extract_strided_slice %211 {offsets = [0, 32], sizes = [2, 32], strides = [1, 1]} : vector<2x64xf32> to vector<2x32xf32>
    %c4_72 = arith.constant 4 : index
    %c0_73 = arith.constant 0 : index
    %215 = vector.load %arg22[%c4_72, %c0_73] : memref<16x32xf32, #tpu.memory_space<vmem>>, vector<2x32xf32>
    tpu.vector_store %arg22[%c4_72, %c0_73], %214 {strides = array<i32>} : memref<16x32xf32, #tpu.memory_space<vmem>>, vector<2x32xf32>,
    %216 = vector.extract_strided_slice %5 {offsets = [12, 0], sizes = [2, 256], strides = [1, 1]} : vector<16x256xf32> to vector<2x256xf32>
    %217 = vector.extract_strided_slice %5 {offsets = [2, 0], sizes = [2, 256], strides = [1, 1]} : vector<16x256xf32> to vector<2x256xf32>
    %218 = arith.select %27, %216, %217 : vector<2x256xi1>, vector<2x256xf32>
    %cst_74 = arith.constant dense<0.000000e+00> : vector<2x256xf32>
    %219 = tpu.matmul %211, %8, %cst_74 {dimension_numbers = #tpu.dot_dimension_numbers<[1], [0], [0], [1], [0, 0, 1, 1], [], []>} : vector<2x64xf32>, vector<64x256xf32>, vector<2x256xf32> -> vector<2x256xf32>
    %220 = arith.addf %218, %219 : vector<2x256xf32>
    %221 = math.tanh %220 : vector<2x256xf32>
    %222 = vector.extract_strided_slice %221 {offsets = [0, 0], sizes = [2, 64], strides = [1, 1]} : vector<2x256xf32> to vector<2x64xf32>
    %cst_75 = arith.constant 5.000000e-01 : f32
    %223 = vector.broadcast %cst_75 : f32 to vector<2x64xf32>
    %224 = arith.mulf %223, %222 : vector<2x64xf32>
    %cst_76 = arith.constant 5.000000e-01 : f32
    %225 = vector.broadcast %cst_76 : f32 to vector<2x64xf32>
    %226 = arith.addf %224, %225 : vector<2x64xf32>
    %227 = vector.extract_strided_slice %221 {offsets = [0, 64], sizes = [2, 64], strides = [1, 1]} : vector<2x256xf32> to vector<2x64xf32>
    %cst_77 = arith.constant 5.000000e-01 : f32
    %228 = vector.broadcast %cst_77 : f32 to vector<2x64xf32>
    %229 = arith.mulf %228, %227 : vector<2x64xf32>
    %cst_78 = arith.constant 5.000000e-01 : f32
    %230 = vector.broadcast %cst_78 : f32 to vector<2x64xf32>
    %231 = arith.addf %229, %230 : vector<2x64xf32>
    %232 = vector.extract_strided_slice %221 {offsets = [0, 128], sizes = [2, 64], strides = [1, 1]} : vector<2x256xf32> to vector<2x64xf32>
    %233 = vector.extract_strided_slice %221 {offsets = [0, 192], sizes = [2, 64], strides = [1, 1]} : vector<2x256xf32> to vector<2x64xf32>
    %cst_79 = arith.constant 5.000000e-01 : f32
    %234 = vector.broadcast %cst_79 : f32 to vector<2x64xf32>
    %235 = arith.mulf %234, %233 : vector<2x64xf32>
    %cst_80 = arith.constant 5.000000e-01 : f32
    %236 = vector.broadcast %cst_80 : f32 to vector<2x64xf32>
    %237 = arith.addf %235, %236 : vector<2x64xf32>
    %238 = arith.mulf %231, %209 : vector<2x64xf32>
    %239 = arith.mulf %226, %232 : vector<2x64xf32>
    %240 = arith.addf %238, %239 : vector<2x64xf32>
    %241 = math.tanh %240 : vector<2x64xf32>
    %242 = arith.mulf %237, %241 : vector<2x64xf32>
    %243 = vector.extract_strided_slice %242 {offsets = [0, 0], sizes = [2, 32], strides = [1, 1]} : vector<2x64xf32> to vector<2x32xf32>
    %c12_81 = arith.constant 12 : index
    %c0_82 = arith.constant 0 : index
    %244 = vector.load %arg21[%c12_81, %c0_82] : memref<16x32xf32, #tpu.memory_space<vmem>>, vector<2x32xf32>
    tpu.vector_store %arg21[%c12_81, %c0_82], %243 {strides = array<i32>} : memref<16x32xf32, #tpu.memory_space<vmem>>, vector<2x32xf32>,
    %245 = vector.extract_strided_slice %242 {offsets = [0, 32], sizes = [2, 32], strides = [1, 1]} : vector<2x64xf32> to vector<2x32xf32>
    %c2_83 = arith.constant 2 : index
    %c0_84 = arith.constant 0 : index
    %246 = vector.load %arg22[%c2_83, %c0_84] : memref<16x32xf32, #tpu.memory_space<vmem>>, vector<2x32xf32>
    tpu.vector_store %arg22[%c2_83, %c0_84], %245 {strides = array<i32>} : memref<16x32xf32, #tpu.memory_space<vmem>>, vector<2x32xf32>,
    %247 = vector.extract_strided_slice %5 {offsets = [14, 0], sizes = [2, 256], strides = [1, 1]} : vector<16x256xf32> to vector<2x256xf32>
    %248 = vector.extract_strided_slice %5 {offsets = [0, 0], sizes = [2, 256], strides = [1, 1]} : vector<16x256xf32> to vector<2x256xf32>
    %249 = arith.select %27, %247, %248 : vector<2x256xi1>, vector<2x256xf32>
    %cst_85 = arith.constant dense<0.000000e+00> : vector<2x256xf32>
    %250 = tpu.matmul %242, %8, %cst_85 {dimension_numbers = #tpu.dot_dimension_numbers<[1], [0], [0], [1], [0, 0, 1, 1], [], []>} : vector<2x64xf32>, vector<64x256xf32>, vector<2x256xf32> -> vector<2x256xf32>
    %251 = arith.addf %249, %250 : vector<2x256xf32>
    %252 = math.tanh %251 : vector<2x256xf32>
    %253 = vector.extract_strided_slice %252 {offsets = [0, 0], sizes = [2, 64], strides = [1, 1]} : vector<2x256xf32> to vector<2x64xf32>
    %cst_86 = arith.constant 5.000000e-01 : f32
    %254 = vector.broadcast %cst_86 : f32 to vector<2x64xf32>
    %255 = arith.mulf %254, %253 : vector<2x64xf32>
    %cst_87 = arith.constant 5.000000e-01 : f32
    %256 = vector.broadcast %cst_87 : f32 to vector<2x64xf32>
    %257 = arith.addf %255, %256 : vector<2x64xf32>
    %258 = vector.extract_strided_slice %252 {offsets = [0, 64], sizes = [2, 64], strides = [1, 1]} : vector<2x256xf32> to vector<2x64xf32>
    %cst_88 = arith.constant 5.000000e-01 : f32
    %259 = vector.broadcast %cst_88 : f32 to vector<2x64xf32>
    %260 = arith.mulf %259, %258 : vector<2x64xf32>
    %cst_89 = arith.constant 5.000000e-01 : f32
    %261 = vector.broadcast %cst_89 : f32 to vector<2x64xf32>
    %262 = arith.addf %260, %261 : vector<2x64xf32>
    %263 = vector.extract_strided_slice %252 {offsets = [0, 128], sizes = [2, 64], strides = [1, 1]} : vector<2x256xf32> to vector<2x64xf32>
    %264 = vector.extract_strided_slice %252 {offsets = [0, 192], sizes = [2, 64], strides = [1, 1]} : vector<2x256xf32> to vector<2x64xf32>
    %cst_90 = arith.constant 5.000000e-01 : f32
    %265 = vector.broadcast %cst_90 : f32 to vector<2x64xf32>
    %266 = arith.mulf %265, %264 : vector<2x64xf32>
    %cst_91 = arith.constant 5.000000e-01 : f32
    %267 = vector.broadcast %cst_91 : f32 to vector<2x64xf32>
    %268 = arith.addf %266, %267 : vector<2x64xf32>
    %269 = arith.mulf %262, %240 : vector<2x64xf32>
    %270 = arith.mulf %257, %263 : vector<2x64xf32>
    %271 = arith.addf %269, %270 : vector<2x64xf32>
    %272 = math.tanh %271 : vector<2x64xf32>
    %273 = arith.mulf %268, %272 : vector<2x64xf32>
    %274 = vector.extract_strided_slice %273 {offsets = [0, 0], sizes = [2, 32], strides = [1, 1]} : vector<2x64xf32> to vector<2x32xf32>
    %c14_92 = arith.constant 14 : index
    %c0_93 = arith.constant 0 : index
    %275 = vector.load %arg21[%c14_92, %c0_93] : memref<16x32xf32, #tpu.memory_space<vmem>>, vector<2x32xf32>
    tpu.vector_store %arg21[%c14_92, %c0_93], %274 {strides = array<i32>} : memref<16x32xf32, #tpu.memory_space<vmem>>, vector<2x32xf32>,
    %276 = vector.extract_strided_slice %273 {offsets = [0, 32], sizes = [2, 32], strides = [1, 1]} : vector<2x64xf32> to vector<2x32xf32>
    %c0_94 = arith.constant 0 : index
    %c0_95 = arith.constant 0 : index
    %277 = vector.load %arg22[%c0_94, %c0_95] : memref<16x32xf32, #tpu.memory_space<vmem>>, vector<2x32xf32>
    tpu.vector_store %arg22[%c0_94, %c0_95], %276 {strides = array<i32>} : memref<16x32xf32, #tpu.memory_space<vmem>>, vector<2x32xf32>,
    %c0_96 = arith.constant 0 : index
    %c0_97 = arith.constant 0 : index
    %278 = vector.load %arg21[%c0_96, %c0_97] : memref<16x32xf32, #tpu.memory_space<vmem>>, vector<16x32xf32>
    %c0_98 = arith.constant 0 : index
    %c0_99 = arith.constant 0 : index
    %279 = vector.load %arg4[%c0_98, %c0_99] : memref<32x64xf32, #tpu.memory_space<vmem>>, vector<32x64xf32>
    %cst_100 = arith.constant dense<0.000000e+00> : vector<16x64xf32>
    %280 = tpu.matmul %278, %279, %cst_100 {dimension_numbers = #tpu.dot_dimension_numbers<[1], [0], [0], [1], [0, 0, 1, 1], [], []>} : vector<16x32xf32>, vector<32x64xf32>, vector<16x64xf32> -> vector<16x64xf32>
    %c0_101 = arith.constant 0 : index
    %c0_102 = arith.constant 0 : index
    %281 = vector.load %arg22[%c0_101, %c0_102] : memref<16x32xf32, #tpu.memory_space<vmem>>, vector<16x32xf32>
    %c0_103 = arith.constant 0 : index
    %c0_104 = arith.constant 0 : index
    %282 = vector.load %arg5[%c0_103, %c0_104] : memref<32x64xf32, #tpu.memory_space<vmem>>, vector<32x64xf32>
    %cst_105 = arith.constant dense<0.000000e+00> : vector<16x64xf32>
    %283 = tpu.matmul %281, %282, %cst_105 {dimension_numbers = #tpu.dot_dimension_numbers<[1], [0], [0], [1], [0, 0, 1, 1], [], []>} : vector<16x32xf32>, vector<32x64xf32>, vector<16x64xf32> -> vector<16x64xf32>
    %284 = arith.addf %280, %283 : vector<16x64xf32>
    %285 = arith.addf %284, %7 : vector<16x64xf32>
    %c0_106 = arith.constant 0 : index
    %c0_107 = arith.constant 0 : index
    %286 = vector.load %arg7[%c0_106, %c0_107] : memref<1x64xf32, #tpu.memory_space<vmem>>, vector<1x64xf32>
    %287 = vector.broadcast %286 : vector<1x64xf32> to vector<16x64xf32>
    %288 = arith.addf %285, %287 : vector<16x64xf32>
    %289 = math.tanh %288 : vector<16x64xf32>
    %290 = vector.extract_strided_slice %289 {offsets = [0, 0], sizes = [2, 64], strides = [1, 1]} : vector<16x64xf32> to vector<2x64xf32>
    %291 = vector.extract_strided_slice %289 {offsets = [2, 0], sizes = [2, 64], strides = [1, 1]} : vector<16x64xf32> to vector<2x64xf32>
    %292 = arith.maximumf %290, %291 : vector<2x64xf32>
    %293 = vector.extract_strided_slice %289 {offsets = [4, 0], sizes = [2, 64], strides = [1, 1]} : vector<16x64xf32> to vector<2x64xf32>
    %294 = arith.maximumf %292, %293 : vector<2x64xf32>
    %295 = vector.extract_strided_slice %289 {offsets = [6, 0], sizes = [2, 64], strides = [1, 1]} : vector<16x64xf32> to vector<2x64xf32>
    %296 = arith.maximumf %294, %295 : vector<2x64xf32>
    %297 = vector.extract_strided_slice %289 {offsets = [8, 0], sizes = [2, 64], strides = [1, 1]} : vector<16x64xf32> to vector<2x64xf32>
    %298 = arith.maximumf %296, %297 : vector<2x64xf32>
    %299 = vector.extract_strided_slice %289 {offsets = [10, 0], sizes = [2, 64], strides = [1, 1]} : vector<16x64xf32> to vector<2x64xf32>
    %300 = arith.maximumf %298, %299 : vector<2x64xf32>
    %301 = vector.extract_strided_slice %289 {offsets = [12, 0], sizes = [2, 64], strides = [1, 1]} : vector<16x64xf32> to vector<2x64xf32>
    %302 = arith.maximumf %300, %301 : vector<2x64xf32>
    %303 = vector.extract_strided_slice %289 {offsets = [14, 0], sizes = [2, 64], strides = [1, 1]} : vector<16x64xf32> to vector<2x64xf32>
    %304 = arith.maximumf %302, %303 : vector<2x64xf32>
    %305 = arith.truncf %304 : vector<2x64xf32> to vector<2x64xbf16>
    %c0_108 = arith.constant 0 : index
    %c0_109 = arith.constant 0 : index
    %306 = vector.load %arg8[%c0_108, %c0_109] : memref<64x2304xbf16, #tpu.memory_space<vmem>>, vector<64x2304xbf16>
    %cst_110 = arith.constant dense<0.000000e+00> : vector<2x2304xf32>
    %307 = tpu.matmul %305, %306, %cst_110 {dimension_numbers = #tpu.dot_dimension_numbers<[1], [0], [0], [1], [0, 0, 1, 1], [], []>} : vector<2x64xbf16>, vector<64x2304xbf16>, vector<2x2304xf32> -> vector<2x2304xf32>
    %308 = vector.extract_strided_slice %307 {offsets = [0, 0], sizes = [2, 768], strides = [1, 1]} : vector<2x2304xf32> to vector<2x768xf32>
    %309 = vector.extract_strided_slice %307 {offsets = [0, 768], sizes = [2, 768], strides = [1, 1]} : vector<2x2304xf32> to vector<2x768xf32>
    %310 = arith.maximumf %308, %309 : vector<2x768xf32>
    %311 = vector.extract_strided_slice %307 {offsets = [0, 1536], sizes = [2, 768], strides = [1, 1]} : vector<2x2304xf32> to vector<2x768xf32>
    %312 = arith.maximumf %310, %311 : vector<2x768xf32>
    %c0_111 = arith.constant 0 : index
    %c0_112 = arith.constant 0 : index
    %313 = vector.load %arg9[%c0_111, %c0_112] : memref<1x768xf32, #tpu.memory_space<vmem>>, vector<1x768xf32>
    %314 = vector.broadcast %313 : vector<1x768xf32> to vector<2x768xf32>
    %315 = arith.addf %312, %314 : vector<2x768xf32>
    %cst_113 = arith.constant 0.000000e+00 : f32
    %316 = vector.broadcast %cst_113 : f32 to vector<2x768xf32>
    %317 = arith.maximumf %315, %316 : vector<2x768xf32>
    %318 = arith.truncf %317 : vector<2x768xf32> to vector<2x768xbf16>
    %c0_114 = arith.constant 0 : index
    %c0_115 = arith.constant 0 : index
    %319 = vector.load %arg10[%c0_114, %c0_115] : memref<768x768xbf16, #tpu.memory_space<vmem>>, vector<768x768xbf16>
    %cst_116 = arith.constant dense<0.000000e+00> : vector<2x768xf32>
    %320 = tpu.matmul %318, %319, %cst_116 {dimension_numbers = #tpu.dot_dimension_numbers<[1], [0], [0], [1], [0, 0, 1, 1], [], []>} : vector<2x768xbf16>, vector<768x768xbf16>, vector<2x768xf32> -> vector<2x768xf32>
    %321 = vector.extract_strided_slice %320 {offsets = [0, 0], sizes = [2, 256], strides = [1, 1]} : vector<2x768xf32> to vector<2x256xf32>
    %322 = vector.extract_strided_slice %320 {offsets = [0, 256], sizes = [2, 256], strides = [1, 1]} : vector<2x768xf32> to vector<2x256xf32>
    %323 = arith.maximumf %321, %322 : vector<2x256xf32>
    %324 = vector.extract_strided_slice %320 {offsets = [0, 512], sizes = [2, 256], strides = [1, 1]} : vector<2x768xf32> to vector<2x256xf32>
    %325 = arith.maximumf %323, %324 : vector<2x256xf32>
    %c0_117 = arith.constant 0 : index
    %c0_118 = arith.constant 0 : index
    %326 = vector.load %arg11[%c0_117, %c0_118] : memref<1x256xf32, #tpu.memory_space<vmem>>, vector<1x256xf32>
    %327 = vector.broadcast %326 : vector<1x256xf32> to vector<2x256xf32>
    %328 = arith.addf %325, %327 : vector<2x256xf32>
    %cst_119 = arith.constant 0.000000e+00 : f32
    %329 = vector.broadcast %cst_119 : f32 to vector<2x256xf32>
    %330 = arith.maximumf %328, %329 : vector<2x256xf32>
    %331 = arith.truncf %330 : vector<2x256xf32> to vector<2x256xbf16>
    %c0_120 = arith.constant 0 : index
    %c0_121 = arith.constant 0 : index
    %332 = vector.load %arg12[%c0_120, %c0_121] : memref<256x768xbf16, #tpu.memory_space<vmem>>, vector<256x768xbf16>
    %cst_122 = arith.constant dense<0.000000e+00> : vector<2x768xf32>
    %333 = tpu.matmul %331, %332, %cst_122 {dimension_numbers = #tpu.dot_dimension_numbers<[1], [0], [0], [1], [0, 0, 1, 1], [], []>} : vector<2x256xbf16>, vector<256x768xbf16>, vector<2x768xf32> -> vector<2x768xf32>
    %c0_123 = arith.constant 0 : index
    %c0_124 = arith.constant 0 : index
    %334 = vector.load %arg13[%c0_123, %c0_124] : memref<1x768xf32, #tpu.memory_space<vmem>>, vector<1x768xf32>
    %335 = vector.broadcast %334 : vector<1x768xf32> to vector<2x768xf32>
    %336 = arith.addf %333, %335 : vector<2x768xf32>
    %cst_125 = arith.constant 0.000000e+00 : f32
    %337 = vector.broadcast %cst_125 : f32 to vector<2x768xf32>
    %338 = arith.maximumf %336, %337 : vector<2x768xf32>
    %339 = arith.truncf %338 : vector<2x768xf32> to vector<2x768xbf16>
    %c0_126 = arith.constant 0 : index
    %c0_127 = arith.constant 0 : index
    %340 = vector.load %arg14[%c0_126, %c0_127] : memref<768x768xbf16, #tpu.memory_space<vmem>>, vector<768x768xbf16>
    %cst_128 = arith.constant dense<0.000000e+00> : vector<2x768xf32>
    %341 = tpu.matmul %339, %340, %cst_128 {dimension_numbers = #tpu.dot_dimension_numbers<[1], [0], [0], [1], [0, 0, 1, 1], [], []>} : vector<2x768xbf16>, vector<768x768xbf16>, vector<2x768xf32> -> vector<2x768xf32>
    %c0_129 = arith.constant 0 : index
    %c0_130 = arith.constant 0 : index
    %342 = vector.load %arg15[%c0_129, %c0_130] : memref<1x768xf32, #tpu.memory_space<vmem>>, vector<1x768xf32>
    %343 = vector.broadcast %342 : vector<1x768xf32> to vector<2x768xf32>
    %344 = arith.addf %341, %343 : vector<2x768xf32>
    %cst_131 = arith.constant 0.000000e+00 : f32
    %345 = vector.broadcast %cst_131 : f32 to vector<2x768xf32>
    %346 = arith.maximumf %344, %345 : vector<2x768xf32>
    %347 = arith.truncf %346 : vector<2x768xf32> to vector<2x768xbf16>
    %c0_132 = arith.constant 0 : index
    %c0_133 = arith.constant 0 : index
    %348 = vector.load %arg16[%c0_132, %c0_133] : memref<768x256xbf16, #tpu.memory_space<vmem>>, vector<768x256xbf16>
    %cst_134 = arith.constant dense<0.000000e+00> : vector<2x256xf32>
    %349 = tpu.matmul %347, %348, %cst_134 {dimension_numbers = #tpu.dot_dimension_numbers<[1], [0], [0], [1], [0, 0, 1, 1], [], []>} : vector<2x768xbf16>, vector<768x256xbf16>, vector<2x256xf32> -> vector<2x256xf32>
    %c0_135 = arith.constant 0 : index
    %c0_136 = arith.constant 0 : index
    %350 = vector.load %arg17[%c0_135, %c0_136] : memref<1x256xf32, #tpu.memory_space<vmem>>, vector<1x256xf32>
    %351 = vector.broadcast %350 : vector<1x256xf32> to vector<2x256xf32>
    %352 = arith.addf %349, %351 : vector<2x256xf32>
    %cst_137 = arith.constant 0.000000e+00 : f32
    %353 = vector.broadcast %cst_137 : f32 to vector<2x256xf32>
    %354 = arith.maximumf %352, %353 : vector<2x256xf32>
    %355 = vector.extract_strided_slice %354 {offsets = [0, 0], sizes = [2, 128], strides = [1, 1]} : vector<2x256xf32> to vector<2x128xf32>
    %356 = vector.extract_strided_slice %354 {offsets = [0, 128], sizes = [2, 128], strides = [1, 1]} : vector<2x256xf32> to vector<2x128xf32>
    %357 = arith.maximumf %355, %356 : vector<2x128xf32>
    %c0_138 = arith.constant 0 : index
    %c0_139 = arith.constant 0 : index
    %358 = vector.load %arg18[%c0_138, %c0_139] : memref<128x4xf32, #tpu.memory_space<vmem>>, vector<128x4xf32>
    %cst_140 = arith.constant dense<0.000000e+00> : vector<2x4xf32>
    %359 = tpu.matmul %357, %358, %cst_140 {dimension_numbers = #tpu.dot_dimension_numbers<[1], [0], [0], [1], [0, 0, 1, 1], [], []>} : vector<2x128xf32>, vector<128x4xf32>, vector<2x4xf32> -> vector<2x4xf32>
    %c0_141 = arith.constant 0 : index
    %c0_142 = arith.constant 0 : index
    %360 = vector.load %arg19[%c0_141, %c0_142] : memref<1x4xf32, #tpu.memory_space<vmem>>, vector<1x4xf32>
    %361 = vector.broadcast %360 : vector<1x4xf32> to vector<2x4xf32>
    %362 = arith.addf %359, %361 : vector<2x4xf32>
    %c0_143 = arith.constant 0 : index
    %c0_144 = arith.constant 0 : index
    %363 = vector.load %arg20[%c0_143, %c0_144] : memref<2x4xf32, #tpu.memory_space<vmem>>, vector<2x4xf32>
    tpu.vector_store %arg20[%c0_143, %c0_144], %362 {strides = array<i32>} : memref<2x4xf32, #tpu.memory_space<vmem>>, vector<2x4xf32>,
    return
  }
}

</mosaic_0001>

<llo_original>
// kernel: text_rcnn_forward.1
$region0: #{text_rcnn_forward.1}
  #allocation0 [shape = 'u32[]', space=smem, size = 0x4, offset = 0x4, fixed_abs, tag = 'smem constant byte address 0x4 - core index']
  #allocation1 [shape = 'u32[144,128]{1,0:T(1,128)}', space=vmem, size = 0x12000, scoped, tag = 'internal scratch']
  #allocation2 [shape = 'f32[16,32]{1,0:T(8,128)}', space=vmem, size = 0x2000, scoped, tag = 'scratch operand']
  #allocation3 [shape = 'f32[16,32]{1,0:T(8,128)}', space=vmem, size = 0x2000, scoped, tag = 'scratch operand']
  %s0 = inlined_call_operand.vmem [shape: f32[16,32], index: 0, kind: input, shape index: {}]
  %s1 = inlined_call_operand.hbm [shape: f32[32,256], index: 1, kind: input, shape index: {}]
  %s2 = inlined_call_operand.hbm [shape: f32[1,256], index: 2, kind: input, shape index: {}]
  %s3 = inlined_call_operand.hbm [shape: f32[64,256], index: 3, kind: input, shape index: {}]
  %s4 = inlined_call_operand.hbm [shape: f32[32,64], index: 4, kind: input, shape index: {}]
  %s5 = inlined_call_operand.hbm [shape: f32[32,64], index: 5, kind: input, shape index: {}]
  %s6 = inlined_call_operand.hbm [shape: f32[32,64], index: 6, kind: input, shape index: {}]
  %s7 = inlined_call_operand.hbm [shape: f32[1,64], index: 7, kind: input, shape index: {}]
  %s8 = inlined_call_operand.hbm [shape: bf16[64,2304], index: 8, kind: input, shape index: {}]
  %s9 = inlined_call_operand.hbm [shape: f32[1,768], index: 9, kind: input, shape index: {}]
  %s10 = inlined_call_operand.hbm [shape: bf16[768,768], index: 10, kind: input, shape index: {}]
  %s11 = inlined_call_operand.hbm [shape: f32[1,256], index: 11, kind: input, shape index: {}]
  %s12 = inlined_call_operand.hbm [shape: bf16[256,768], index: 12, kind: input, shape index: {}]
  %s13 = inlined_call_operand.hbm [shape: f32[1,768], index: 13, kind: input, shape index: {}]
  %s14 = inlined_call_operand.hbm [shape: bf16[768,768], index: 14, kind: input, shape index: {}]
  %s15 = inlined_call_operand.hbm [shape: f32[1,768], index: 15, kind: input, shape index: {}]
  %s16 = inlined_call_operand.hbm [shape: bf16[768,256], index: 16, kind: input, shape index: {}]
  %s17 = inlined_call_operand.hbm [shape: f32[1,256], index: 17, kind: input, shape index: {}]
  %s18 = inlined_call_operand.vmem [shape: f32[128,4], index: 18, kind: input, shape index: {}]
  %s19 = inlined_call_operand.hbm [shape: f32[1,4], index: 19, kind: input, shape index: {}]
  %s20 = inlined_call_operand.hbm [shape: f32[2,4], index: 20, kind: output, shape index: {}]
  %s21 = sld [smem:[#allocation0]]
  $region162: #{text_rcnn_forward.1} parent=0
    _
  %s23 = ssub.s32 1, %s21
  %s24 = scalar_select 0, %s23, %s21
  $region1: #{text_rcnn_forward.1} parent=0
    #allocation4 [shape = 'u8[32768]{0}', space=vmem, size = 0x8000, scoped, tag = 'input window, operand 1, single buffered']
    #allocation5 [shape = 's32[1]{0}', space=sflag, size = 0x4, scoped, tag = 'scoped memory for text_rcnn_forward.1']
    #allocation6 [shape = 's32[1]{0}', space=sflag, size = 0x4, scoped, tag = 'scoped memory for text_rcnn_forward.1']
    #allocation7 [shape = 'u8[1024]{0}', space=vmem, size = 0x400, scoped, tag = 'input window, operand 2, single buffered']
    #allocation8 [shape = 's32[1]{0}', space=sflag, size = 0x4, scoped, tag = 'scoped memory for text_rcnn_forward.1']
    #allocation9 [shape = 'u8[65536]{0}', space=vmem, size = 0x10000, scoped, tag = 'input window, operand 3, single buffered']
    #allocation10 [shape = 'u8[16384]{0}', space=vmem, size = 0x4000, scoped, tag = 'input window, operand 4, single buffered']
    #allocation11 [shape = 's32[1]{0}', space=sflag, size = 0x4, scoped, tag = 'scoped memory for text_rcnn_forward.1']
    #allocation12 [shape = 'u8[16384]{0}', space=vmem, size = 0x4000, scoped, tag = 'input window, operand 5, single buffered']
    #allocation13 [shape = 'u8[16384]{0}', space=vmem, size = 0x4000, scoped, tag = 'input window, operand 6, single buffered']
    #allocation14 [shape = 's32[1]{0}', space=sflag, size = 0x4, scoped, tag = 'scoped memory for text_rcnn_forward.1']
    #allocation15 [shape = 'u8[512]{0}', space=vmem, size = 0x400, scoped, tag = 'input window, operand 7, single buffered']
    #allocation16 [shape = 'u8[294912]{0}', space=vmem, size = 0x48000, scoped, tag = 'input window, operand 8, single buffered']
    #allocation17 [shape = 's32[1]{0}', space=sflag, size = 0x4, scoped, tag = 'scoped memory for text_rcnn_forward.1']
    #allocation18 [shape = 'u8[3072]{0}', space=vmem, size = 0xc00, scoped, tag = 'input window, operand 9, single buffered']
    #allocation19 [shape = 'u8[1179648]{0}', space=vmem, size = 0x120000, scoped, tag = 'input window, operand 10, single buffered']
    #allocation20 [shape = 's32[1]{0}', space=sflag, size = 0x4, scoped, tag = 'scoped memory for text_rcnn_forward.1']
    #allocation21 [shape = 'u8[1024]{0}', space=vmem, size = 0x400, scoped, tag = 'input window, operand 11, single buffered']
    #allocation22 [shape = 'u8[393216]{0}', space=vmem, size = 0x60000, scoped, tag = 'input window, operand 12, single buffered']
    #allocation23 [shape = 's32[1]{0}', space=sflag, size = 0x4, scoped, tag = 'scoped memory for text_rcnn_forward.1']
    #allocation24 [shape = 'u8[3072]{0}', space=vmem, size = 0xc00, scoped, tag = 'input window, operand 13, single buffered']
    #allocation25 [shape = 'u8[1179648]{0}', space=vmem, size = 0x120000, scoped, tag = 'input window, operand 14, single buffered']
    #allocation26 [shape = 's32[1]{0}', space=sflag, size = 0x4, scoped, tag = 'scoped memory for text_rcnn_forward.1']
    #allocation27 [shape = 'u8[3072]{0}', space=vmem, size = 0xc00, scoped, tag = 'input window, operand 15, single buffered']
    #allocation28 [shape = 'u8[393216]{0}', space=vmem, size = 0x60000, scoped, tag = 'input window, operand 16, single buffered']
    #allocation29 [shape = 's32[1]{0}', space=sflag, size = 0x4, scoped, tag = 'scoped memory for text_rcnn_forward.1']
    #allocation30 [shape = 'u8[1024]{0}', space=vmem, size = 0x400, scoped, tag = 'input window, operand 17, single buffered']
    #allocation31 [shape = 'u8[512]{0}', space=vmem, size = 0x400, scoped, tag = 'input window, operand 19, single buffered']
    #allocation32 [shape = 's32[1]{0}', space=sflag, size = 0x4, scoped, tag = 'scoped memory for text_rcnn_forward.1']
    #allocation33 [shape = 'u8[1024]{0}', space=vmem, size = 0x400, scoped, tag = 'output window, operand 0, single buffered']
    %25 = vsyncpa [#allocation5], 0
    %26 = vsyncpa [#allocation8], 0
    %27 = vsyncpa [#allocation11], 0
    %28 = vsyncpa [#allocation14], 0
    %29 = vsyncpa [#allocation17], 0
    %30 = vsyncpa [#allocation20], 0
    %31 = vsyncpa [#allocation23], 0
    %32 = vsyncpa [#allocation26], 0
    %33 = vsyncpa [#allocation29], 0
    %34 = vsyncpa [#allocation32], 0
    %35 = vsyncpa [#allocation6], 0
    // Predicated region
    $region2: #{text_rcnn_forward.1} parent=1 // pred_check
      _
    $region3: #{text_rcnn_forward.1} parent=1 // pred_check_branch
      %37 = sbr.rel (0) target = $region5
    $region4: #{text_rcnn_forward.1} parent=1 // pred_region
      _
    $region5: #{text_rcnn_forward.1} parent=1 // pred_fallthru
      _
    // Predicated region
    $region6: #{text_rcnn_forward.1} parent=1 // pred_check
      _
    $region7: #{text_rcnn_forward.1} parent=1 // pred_check_branch
      %39 = sbr.rel (0) target = $region9
    $region8: #{text_rcnn_forward.1} parent=1 // pred_region
      %s41 = ssub.s32 1024, 1024
      %42 = vsyncadd [#allocation5], %s41
      %s43 = sshll.u32 [#allocation4], 4
      %s44 = int_to_ptr.vmem [resolvable:$true] %s43
      %49 = dma.hbm_to_vmem [thread:$0]  %s1, 1024, %s44, [#allocation5], 256, 256, 16
    $region9: #{text_rcnn_forward.1} parent=1 // pred_fallthru
      _
    // Predicated region
    $region10: #{text_rcnn_forward.1} parent=1 // pred_check
      _
    $region11: #{text_rcnn_forward.1} parent=1 // pred_check_branch
      %51 = sbr.rel (0) target = $region13
    $region12: #{text_rcnn_forward.1} parent=1 // pred_region
      %s53 = ssub.s32 32, 32
      %54 = vsyncadd [#allocation8], %s53
      %s56 = sshll.u32 [#allocation7], 4
      %s57 = int_to_ptr.vmem [resolvable:$true] %s56
      %59 = dma.hbm_to_vmem [thread:$0]  %s2, 32, %s57, [#allocation8]
    $region13: #{text_rcnn_forward.1} parent=1 // pred_fallthru
      _
    // Predicated region
    $region14: #{text_rcnn_forward.1} parent=1 // pred_check
      _
    $region15: #{text_rcnn_forward.1} parent=1 // pred_check_branch
      %61 = sbr.rel (0) target = $region17
    $region16: #{text_rcnn_forward.1} parent=1 // pred_region
      %s63 = ssub.s32 2048, 2048
      %64 = vsyncadd [#allocation8], %s63
      %s65 = sshll.u32 [#allocation9], 4
      %s66 = int_to_ptr.vmem [resolvable:$true] %s65
      %71 = dma.hbm_to_vmem [thread:$0]  %s3, 2048, %s66, [#allocation8], 256, 256, 16
    $region17: #{text_rcnn_forward.1} parent=1 // pred_fallthru
      _
    // Predicated region
    $region18: #{text_rcnn_forward.1} parent=1 // pred_check
      _
    $region19: #{text_rcnn_forward.1} parent=1 // pred_check_branch
      %73 = sbr.rel (0) target = $region21
    $region20: #{text_rcnn_forward.1} parent=1 // pred_region
      %s75 = ssub.s32 512, 512
      %76 = vsyncadd [#allocation11], %s75
      %s77 = sshll.u32 [#allocation10], 4
      %s78 = int_to_ptr.vmem [resolvable:$true] %s77
      %83 = dma.hbm_to_vmem [thread:$0]  %s4, 512, %s78, [#allocation11], 128, 128, 8
    $region21: #{text_rcnn_forward.1} parent=1 // pred_fallthru
      _
    // Predicated region
    $region22: #{text_rcnn_forward.1} parent=1 // pred_check
      _
    $region23: #{text_rcnn_forward.1} parent=1 // pred_check_branch
      %85 = sbr.rel (0) target = $region25
    $region24: #{text_rcnn_forward.1} parent=1 // pred_region
      %s87 = ssub.s32 512, 512
      %88 = vsyncadd [#allocation11], %s87
      %s89 = sshll.u32 [#allocation12], 4
      %s90 = int_to_ptr.vmem [resolvable:$true] %s89
      %95 = dma.hbm_to_vmem [thread:$0]  %s5, 512, %s90, [#allocation11], 128, 128, 8
    $region25: #{text_rcnn_forward.1} parent=1 // pred_fallthru
      _
    // Predicated region
    $region26: #{text_rcnn_forward.1} parent=1 // pred_check
      _
    $region27: #{text_rcnn_forward.1} parent=1 // pred_check_branch
      %97 = sbr.rel (0) target = $region29
    $region28: #{text_rcnn_forward.1} parent=1 // pred_region
      %s99 = ssub.s32 512, 512
      %100 = vsyncadd [#allocation14], %s99
      %s101 = sshll.u32 [#allocation13], 4
      %s102 = int_to_ptr.vmem [resolvable:$true] %s101
      %107 = dma.hbm_to_vmem [thread:$0]  %s6, 512, %s102, [#allocation14], 128, 128, 8
    $region29: #{text_rcnn_forward.1} parent=1 // pred_fallthru
      _
    // Predicated region
    $region30: #{text_rcnn_forward.1} parent=1 // pred_check
      _
    $region31: #{text_rcnn_forward.1} parent=1 // pred_check_branch
      %109 = sbr.rel (0) target = $region33
    $region32: #{text_rcnn_forward.1} parent=1 // pred_region
      %s111 = ssub.s32 16, 16
      %112 = vsyncadd [#allocation14], %s111
      %s114 = sshll.u32 [#allocation15], 4
      %s115 = int_to_ptr.vmem [resolvable:$true] %s114
      %117 = dma.hbm_to_vmem [thread:$0]  %s7, 16, %s115, [#allocation14]
    $region33: #{text_rcnn_forward.1} parent=1 // pred_fallthru
      _
    // Predicated region
    $region34: #{text_rcnn_forward.1} parent=1 // pred_check
      _
    $region35: #{text_rcnn_forward.1} parent=1 // pred_check_branch
      %119 = sbr.rel (0) target = $region37
    $region36: #{text_rcnn_forward.1} parent=1 // pred_region
      %s121 = ssub.s32 9216, 9216
      %122 = vsyncadd [#allocation17], %s121
      %s123 = sshll.u32 [#allocation16], 4
      %s124 = int_to_ptr.vmem [resolvable:$true] %s123
      %129 = dma.hbm_to_vmem [thread:$0]  %s8, 9216, %s124, [#allocation17], 1152, 1152, 72
    $region37: #{text_rcnn_forward.1} parent=1 // pred_fallthru
      _
    // Predicated region
    $region38: #{text_rcnn_forward.1} parent=1 // pred_check
      _
    $region39: #{text_rcnn_forward.1} parent=1 // pred_check_branch
      %131 = sbr.rel (0) target = $region41
    $region40: #{text_rcnn_forward.1} parent=1 // pred_region
      %s133 = ssub.s32 96, 96
      %134 = vsyncadd [#allocation17], %s133
      %s136 = sshll.u32 [#allocation18], 4
      %s137 = int_to_ptr.vmem [resolvable:$true] %s136
      %139 = dma.hbm_to_vmem [thread:$0]  %s9, 96, %s137, [#allocation17]
    $region41: #{text_rcnn_forward.1} parent=1 // pred_fallthru
      _
    // Predicated region
    $region42: #{text_rcnn_forward.1} parent=1 // pred_check
      _
    $region43: #{text_rcnn_forward.1} parent=1 // pred_check_branch
      %141 = sbr.rel (0) target = $region45
    $region44: #{text_rcnn_forward.1} parent=1 // pred_region
      %s143 = ssub.s32 36864, 36864
      %144 = vsyncadd [#allocation20], %s143
      %s145 = sshll.u32 [#allocation19], 4
      %s146 = int_to_ptr.vmem [resolvable:$true] %s145
      %151 = dma.hbm_to_vmem [thread:$0]  %s10, 36864, %s146, [#allocation20], 384, 384, 24
    $region45: #{text_rcnn_forward.1} parent=1 // pred_fallthru
      _
    // Predicated region
    $region46: #{text_rcnn_forward.1} parent=1 // pred_check
      _
    $region47: #{text_rcnn_forward.1} parent=1 // pred_check_branch
      %153 = sbr.rel (0) target = $region49
    $region48: #{text_rcnn_forward.1} parent=1 // pred_region
      %s155 = ssub.s32 32, 32
      %156 = vsyncadd [#allocation20], %s155
      %s158 = sshll.u32 [#allocation21], 4
      %s159 = int_to_ptr.vmem [resolvable:$true] %s158
      %161 = dma.hbm_to_vmem [thread:$0]  %s11, 32, %s159, [#allocation20]
    $region49: #{text_rcnn_forward.1} parent=1 // pred_fallthru
      _
    // Predicated region
    $region50: #{text_rcnn_forward.1} parent=1 // pred_check
      _
    $region51: #{text_rcnn_forward.1} parent=1 // pred_check_branch
      %163 = sbr.rel (0) target = $region53
    $region52: #{text_rcnn_forward.1} parent=1 // pred_region
      %s165 = ssub.s32 12288, 12288
      %166 = vsyncadd [#allocation23], %s165
      %s167 = sshll.u32 [#allocation22], 4
      %s168 = int_to_ptr.vmem [resolvable:$true] %s167
      %173 = dma.hbm_to_vmem [thread:$0]  %s12, 12288, %s168, [#allocation23], 384, 384, 24
    $region53: #{text_rcnn_forward.1} parent=1 // pred_fallthru
      _
    // Predicated region
    $region54: #{text_rcnn_forward.1} parent=1 // pred_check
      _
    $region55: #{text_rcnn_forward.1} parent=1 // pred_check_branch
      %175 = sbr.rel (0) target = $region57
    $region56: #{text_rcnn_forward.1} parent=1 // pred_region
      %s177 = ssub.s32 96, 96
      %178 = vsyncadd [#allocation23], %s177
      %s180 = sshll.u32 [#allocation24], 4
      %s181 = int_to_ptr.vmem [resolvable:$true] %s180
      %183 = dma.hbm_to_vmem [thread:$0]  %s13, 96, %s181, [#allocation23]
    $region57: #{text_rcnn_forward.1} parent=1 // pred_fallthru
      _
    // Predicated region
    $region58: #{text_rcnn_forward.1} parent=1 // pred_check
      _
    $region59: #{text_rcnn_forward.1} parent=1 // pred_check_branch
      %185 = sbr.rel (0) target = $region61
    $region60: #{text_rcnn_forward.1} parent=1 // pred_region
      %s187 = ssub.s32 36864, 36864
      %188 = vsyncadd [#allocation26], %s187
      %s189 = sshll.u32 [#allocation25], 4
      %s190 = int_to_ptr.vmem [resolvable:$true] %s189
      %195 = dma.hbm_to_vmem [thread:$0]  %s14, 36864, %s190, [#allocation26], 384, 384, 24
    $region61: #{text_rcnn_forward.1} parent=1 // pred_fallthru
      _
    // Predicated region
    $region62: #{text_rcnn_forward.1} parent=1 // pred_check
      _
    $region63: #{text_rcnn_forward.1} parent=1 // pred_check_branch
      %197 = sbr.rel (0) target = $region65
    $region64: #{text_rcnn_forward.1} parent=1 // pred_region
      %s199 = ssub.s32 96, 96
      %200 = vsyncadd [#allocation26], %s199
      %s202 = sshll.u32 [#allocation27], 4
      %s203 = int_to_ptr.vmem [resolvable:$true] %s202
      %205 = dma.hbm_to_vmem [thread:$0]  %s15, 96, %s203, [#allocation26]
    $region65: #{text_rcnn_forward.1} parent=1 // pred_fallthru
      _
    // Predicated region
    $region66: #{text_rcnn_forward.1} parent=1 // pred_check
      _
    $region67: #{text_rcnn_forward.1} parent=1 // pred_check_branch
      %207 = sbr.rel (0) target = $region69
    $region68: #{text_rcnn_forward.1} parent=1 // pred_region
      %s209 = ssub.s32 12288, 12288
      %210 = vsyncadd [#allocation29], %s209
      %s211 = sshll.u32 [#allocation28], 4
      %s212 = int_to_ptr.vmem [resolvable:$true] %s211
      %217 = dma.hbm_to_vmem [thread:$0]  %s16, 12288, %s212, [#allocation29], 128, 128, 8
    $region69: #{text_rcnn_forward.1} parent=1 // pred_fallthru
      _
    // Predicated region
    $region70: #{text_rcnn_forward.1} parent=1 // pred_check
      _
    $region71: #{text_rcnn_forward.1} parent=1 // pred_check_branch
      %219 = sbr.rel (0) target = $region73
    $region72: #{text_rcnn_forward.1} parent=1 // pred_region
      %s221 = ssub.s32 32, 32
      %222 = vsyncadd [#allocation29], %s221
      %s224 = sshll.u32 [#allocation30], 4
      %s225 = int_to_ptr.vmem [resolvable:$true] %s224
      %227 = dma.hbm_to_vmem [thread:$0]  %s17, 32, %s225, [#allocation29]
    $region73: #{text_rcnn_forward.1} parent=1 // pred_fallthru
      _
    // Predicated region
    $region74: #{text_rcnn_forward.1} parent=1 // pred_check
      _
    $region75: #{text_rcnn_forward.1} parent=1 // pred_check_branch
      %229 = sbr.rel (0) target = $region77
    $region76: #{text_rcnn_forward.1} parent=1 // pred_region
      _
    $region77: #{text_rcnn_forward.1} parent=1 // pred_fallthru
      _
    // Predicated region
    $region78: #{text_rcnn_forward.1} parent=1 // pred_check
      _
    $region79: #{text_rcnn_forward.1} parent=1 // pred_check_branch
      %231 = sbr.rel (0) target = $region81
    $region80: #{text_rcnn_forward.1} parent=1 // pred_region
      %s233 = ssub.s32 16, 16
      %234 = vsyncadd [#allocation32], %s233
      %s236 = sshll.u32 [#allocation31], 4
      %s237 = int_to_ptr.vmem [resolvable:$true] %s236
      %239 = dma.hbm_to_vmem [thread:$0]  %s19, 16, %s237, [#allocation32]
    $region81: #{text_rcnn_forward.1} parent=1 // pred_fallthru
      _
    // Predicated region
    $region82: #{text_rcnn_forward.1} parent=1 // pred_check
      _
    $region83: #{text_rcnn_forward.1} parent=1 // pred_check_branch
      %241 = sbr.rel (0) target = $region85
    $region84: #{text_rcnn_forward.1} parent=1 // pred_region
      %242 = dma.done [#allocation5], 1024
    $region85: #{text_rcnn_forward.1} parent=1 // pred_fallthru
      _
    // Predicated region
    $region86: #{text_rcnn_forward.1} parent=1 // pred_check
      _
    $region87: #{text_rcnn_forward.1} parent=1 // pred_check_branch
      %244 = sbr.rel (0) target = $region89
    $region88: #{text_rcnn_forward.1} parent=1 // pred_region
      %245 = dma.done [#allocation8], 32
    $region89: #{text_rcnn_forward.1} parent=1 // pred_fallthru
      _
    // Predicated region
    $region90: #{text_rcnn_forward.1} parent=1 // pred_check
      _
    $region91: #{text_rcnn_forward.1} parent=1 // pred_check_branch
      %247 = sbr.rel (0) target = $region93
    $region92: #{text_rcnn_forward.1} parent=1 // pred_region
      %248 = dma.done [#allocation8], 2048
    $region93: #{text_rcnn_forward.1} parent=1 // pred_fallthru
      _
    // Predicated region
    $region94: #{text_rcnn_forward.1} parent=1 // pred_check
      _
    $region95: #{text_rcnn_forward.1} parent=1 // pred_check_branch
      %250 = sbr.rel (0) target = $region97
    $region96: #{text_rcnn_forward.1} parent=1 // pred_region
      %251 = dma.done [#allocation11], 512
    $region97: #{text_rcnn_forward.1} parent=1 // pred_fallthru
      _
    // Predicated region
    $region98: #{text_rcnn_forward.1} parent=1 // pred_check
      _
    $region99: #{text_rcnn_forward.1} parent=1 // pred_check_branch
      %253 = sbr.rel (0) target = $region101
    $region100: #{text_rcnn_forward.1} parent=1 // pred_region
      %254 = dma.done [#allocation11], 512
    $region101: #{text_rcnn_forward.1} parent=1 // pred_fallthru
      _
    // Predicated region
    $region102: #{text_rcnn_forward.1} parent=1 // pred_check
      _
    $region103: #{text_rcnn_forward.1} parent=1 // pred_check_branch
      %256 = sbr.rel (0) target = $region105
    $region104: #{text_rcnn_forward.1} parent=1 // pred_region
      %257 = dma.done [#allocation14], 512
    $region105: #{text_rcnn_forward.1} parent=1 // pred_fallthru
      _
    // Predicated region
    $region106: #{text_rcnn_forward.1} parent=1 // pred_check
      _
    $region107: #{text_rcnn_forward.1} parent=1 // pred_check_branch
      %259 = sbr.rel (0) target = $region109
    $region108: #{text_rcnn_forward.1} parent=1 // pred_region
      %260 = dma.done [#allocation14], 16
    $region109: #{text_rcnn_forward.1} parent=1 // pred_fallthru
      _
    // Predicated region
    $region110: #{text_rcnn_forward.1} parent=1 // pred_check
      _
    $region111: #{text_rcnn_forward.1} parent=1 // pred_check_branch
      %262 = sbr.rel (0) target = $region113
    $region112: #{text_rcnn_forward.1} parent=1 // pred_region
      %263 = dma.done [#allocation17], 9216
    $region113: #{text_rcnn_forward.1} parent=1 // pred_fallthru
      _
    // Predicated region
    $region114: #{text_rcnn_forward.1} parent=1 // pred_check
      _
    $region115: #{text_rcnn_forward.1} parent=1 // pred_check_branch
      %265 = sbr.rel (0) target = $region117
    $region116: #{text_rcnn_forward.1} parent=1 // pred_region
      %266 = dma.done [#allocation17], 96
    $region117: #{text_rcnn_forward.1} parent=1 // pred_fallthru
      _
    // Predicated region
    $region118: #{text_rcnn_forward.1} parent=1 // pred_check
      _
    $region119: #{text_rcnn_forward.1} parent=1 // pred_check_branch
      %268 = sbr.rel (0) target = $region121
    $region120: #{text_rcnn_forward.1} parent=1 // pred_region
      %269 = dma.done [#allocation20], 36864
    $region121: #{text_rcnn_forward.1} parent=1 // pred_fallthru
      _
    // Predicated region
    $region122: #{text_rcnn_forward.1} parent=1 // pred_check
      _
    $region123: #{text_rcnn_forward.1} parent=1 // pred_check_branch
      %271 = sbr.rel (0) target = $region125
    $region124: #{text_rcnn_forward.1} parent=1 // pred_region
      %272 = dma.done [#allocation20], 32
    $region125: #{text_rcnn_forward.1} parent=1 // pred_fallthru
      _
    // Predicated region
    $region126: #{text_rcnn_forward.1} parent=1 // pred_check
      _
    $region127: #{text_rcnn_forward.1} parent=1 // pred_check_branch
      %274 = sbr.rel (0) target = $region129
    $region128: #{text_rcnn_forward.1} parent=1 // pred_region
      %275 = dma.done [#allocation23], 12288
    $region129: #{text_rcnn_forward.1} parent=1 // pred_fallthru
      _
    // Predicated region
    $region130: #{text_rcnn_forward.1} parent=1 // pred_check
      _
    $region131: #{text_rcnn_forward.1} parent=1 // pred_check_branch
      %277 = sbr.rel (0) target = $region133
    $region132: #{text_rcnn_forward.1} parent=1 // pred_region
      %278 = dma.done [#allocation23], 96
    $region133: #{text_rcnn_forward.1} parent=1 // pred_fallthru
      _
    // Predicated region
    $region134: #{text_rcnn_forward.1} parent=1 // pred_check
      _
    $region135: #{text_rcnn_forward.1} parent=1 // pred_check_branch
      %280 = sbr.rel (0) target = $region137
    $region136: #{text_rcnn_forward.1} parent=1 // pred_region
      %281 = dma.done [#allocation26], 36864
    $region137: #{text_rcnn_forward.1} parent=1 // pred_fallthru
      _
    // Predicated region
    $region138: #{text_rcnn_forward.1} parent=1 // pred_check
      _
    $region139: #{text_rcnn_forward.1} parent=1 // pred_check_branch
      %283 = sbr.rel (0) target = $region141
    $region140: #{text_rcnn_forward.1} parent=1 // pred_region
      %284 = dma.done [#allocation26], 96
    $region141: #{text_rcnn_forward.1} parent=1 // pred_fallthru
      _
    // Predicated region
    $region142: #{text_rcnn_forward.1} parent=1 // pred_check
      _
    $region143: #{text_rcnn_forward.1} parent=1 // pred_check_branch
      %286 = sbr.rel (0) target = $region145
    $region144: #{text_rcnn_forward.1} parent=1 // pred_region
      %287 = dma.done [#allocation29], 12288
    $region145: #{text_rcnn_forward.1} parent=1 // pred_fallthru
      _
    // Predicated region
    $region146: #{text_rcnn_forward.1} parent=1 // pred_check
      _
    $region147: #{text_rcnn_forward.1} parent=1 // pred_check_branch
      %289 = sbr.rel (0) target = $region149
    $region148: #{text_rcnn_forward.1} parent=1 // pred_region
      %290 = dma.done [#allocation29], 32
    $region149: #{text_rcnn_forward.1} parent=1 // pred_fallthru
      _
    // Predicated region
    $region150: #{text_rcnn_forward.1} parent=1 // pred_check
      _
    $region151: #{text_rcnn_forward.1} parent=1 // pred_check_branch
      %292 = sbr.rel (0) target = $region153
    $region152: #{text_rcnn_forward.1} parent=1 // pred_region
      %293 = dma.done [#allocation32], 16
    $region153: #{text_rcnn_forward.1} parent=1 // pred_fallthru
      _
    %v295 = vld [vmem:[%s0] sm:$0xff]
    %v296 = vld [vmem:[%s0 + $0x8] sm:$0xff]
    %v297 = vld [vmem:[#allocation4] sm:$0xff]
    %v298 = vld [vmem:[#allocation4 + $0x8] sm:$0xff]
    %v299 = vld [vmem:[#allocation4 + $0x10] sm:$0xff]
    %v300 = vld [vmem:[#allocation4 + $0x18] sm:$0xff]
    %v301 = vld [vmem:[#allocation4 + $0x20] sm:$0xff]
    %v302 = vld [vmem:[#allocation4 + $0x28] sm:$0xff]
    %v303 = vld [vmem:[#allocation4 + $0x30] sm:$0xff]
    %v304 = vld [vmem:[#allocation4 + $0x38] sm:$0xff]
    %v305 = vld [vmem:[#allocation7] sm:$0x3]
    %v307 = vlaneseq
    %v308 = vshrl.u32 %v307, 7
    %v309 = vsub.s32 0, %v308
    %v310 = vrot.slane %v305, %v309
    %v311 = vlaneseq
    %v312 = vshrl.u32 %v311, 7
    %v313 = vsub.s32 1, %v312
    %v314 = vrot.slane %v305, %v313
    %vm317 = vcmask 261120
    %v319 = vsel %vm317, %v295, 0
    %v322 = vsel %vm317, %v296, 0
    %324 = vmatprep.subr.mxu0 %v298
    %325 = vmatpush1.msra.mxu0 %v297
    %326 = vmatprep.subr.mxu0 %v300
    %327 = vmatpush1.msra.mxu0 %v299
    %328 = vmatprep.subr.mxu0 %v302
    %329 = vmatpush1.msra.mxu0 %v301
    %330 = vmatprep.subr.mxu0 %v304
    %331 = vmatpush1.msra.mxu0 %v303
    %332 = vmatprep.subr.mxu0 0.0
    %333 = vmatpush1.msra.mxu0 0.0
    %334 = vmatprep.subr.mxu0 0.0
    %335 = vmatpush1.msra.mxu0 0.0
    %336 = vmatprep.subr.mxu0 0.0
    %337 = vmatpush1.msra.mxu0 0.0
    %338 = vmatprep.subr.mxu0 0.0
    %339 = vmatpush1.msra.mxu0 0.0
    %340 = vmatprep.subr.mxu0 0.0
    %341 = vmatpush1.msra.mxu0 0.0
    %342 = vmatprep.subr.mxu0 0.0
    %343 = vmatpush1.msra.mxu0 0.0
    %344 = vmatprep.subr.mxu0 0.0
    %345 = vmatpush1.msra.mxu0 0.0
    %346 = vmatprep.subr.mxu0 0.0
    %347 = vmatpush1.msra.mxu0 0.0
    %348 = vmatprep.subr.mxu0 0.0
    %349 = vmatpush1.msra.mxu0 0.0
    %350 = vmatprep.subr.mxu0 0.0
    %351 = vmatpush1.msra.mxu0 0.0
    %352 = vmatprep.subr.mxu0 0.0
    %353 = vmatpush1.msra.mxu0 0.0
    %354 = vmatprep.subr.mxu0 0.0
    %355 = vmatpush1.msra.mxu0 0.0
    %356 = vmatprep.subr.mxu0 0.0
    %357 = vmatpush1.msra.mxu0 0.0
    %358 = vmatprep.subr.mxu0 0.0
    %359 = vmatpush1.msra.mxu0 0.0
    %360 = vmatprep.subr.mxu0 0.0
    %361 = vmatpush1.msra.mxu0 0.0
    %362 = vmatprep.subr.mxu0 0.0
    %363 = vmatpush1.msra.mxu0 0.0
    %364 = vmatprep.subr.mxu0 0.0
    %365 = vmatpush1.msra.mxu0 0.0
    %366 = vmatprep.subr.mxu0 0.0
    %367 = vmatpush1.msra.mxu0 0.0
    %368 = vmatprep.subr.mxu0 0.0
    %369 = vmatpush1.msra.mxu0 0.0
    %370 = vmatprep.subr.mxu0 0.0
    %371 = vmatpush1.msra.mxu0 0.0
    %372 = vmatprep.subr.mxu0 0.0
    %373 = vmatpush1.msra.mxu0 0.0
    %374 = vmatprep.subr.mxu0 0.0
    %375 = vmatpush1.msra.mxu0 0.0
    %376 = vmatprep.subr.mxu0 0.0
    %377 = vmatpush1.msra.mxu0 0.0
    %378 = vmatprep.subr.mxu0 0.0
    %379 = vmatpush1.msra.mxu0 0.0
    %380 = vmatprep.subr.mxu0 0.0
    %381 = vmatpush1.msra.mxu0 0.0
    %382 = vmatprep.subr.mxu0 0.0
    %383 = vmatpush1.msra.mxu0 0.0
    %384 = vmatprep.subr.mxu0 0.0
    %385 = vmatpush1.msra.mxu0 0.0
    %386 = vmatprep.subr.mxu0 0.0
    %387 = vmatpush1.msra.mxu0 0.0
    %388 = vmatprep.mubr.f32.mxu0 0.0
    %389 = vmatmul.mubr.f32.gmra.mrb[0].mxu0 %v319
    %v390 = vpop.f32.mrb[0].mxu0
    %v391 = vadd.f32 %v310, %v390
    %v392 = vpop.f32.mrb[0].mxu0
    %v393 = vadd.f32 %v314, %v392
    %394 = vmatprep.mubr.f32.mxu0 0.0
    %395 = vmatmul.mubr.f32.gmra.mrb[0].mxu0 %v322
    %v396 = vpop.f32.mrb[0].mxu0
    %v397 = vadd.f32 %v310, %v396
    %v398 = vpop.f32.mrb[0].mxu0
    %v399 = vadd.f32 %v314, %v398
    %400 = vdwg.mxu0
    %v401 = vld [vmem:[#allocation13] sm:$0xff]
    %v402 = vld [vmem:[#allocation13 + $0x8] sm:$0xff]
    %v403 = vld [vmem:[#allocation13 + $0x10] sm:$0xff]
    %v404 = vld [vmem:[#allocation13 + $0x18] sm:$0xff]
    %405 = vmatprep.subr.mxu0 0.0
    %406 = vmatpush1.msra.mxu0 %v401
    %407 = vmatprep.subr.mxu0 0.0
    %408 = vmatpush1.msra.mxu0 %v402
    %409 = vmatprep.subr.mxu0 0.0
    %410 = vmatpush1.msra.mxu0 %v403
    %411 = vmatprep.subr.mxu0 0.0
    %412 = vmatpush1.msra.mxu0 %v404
    %413 = vmatprep.subr.mxu0 0.0
    %414 = vmatpush1.msra.mxu0 0.0
    %415 = vmatprep.subr.mxu0 0.0
    %416 = vmatpush1.msra.mxu0 0.0
    %417 = vmatprep.subr.mxu0 0.0
    %418 = vmatpush1.msra.mxu0 0.0
    %419 = vmatprep.subr.mxu0 0.0
    %420 = vmatpush1.msra.mxu0 0.0
    %421 = vmatprep.subr.mxu0 0.0
    %422 = vmatpush1.msra.mxu0 0.0
    %423 = vmatprep.subr.mxu0 0.0
    %424 = vmatpush1.msra.mxu0 0.0
    %425 = vmatprep.subr.mxu0 0.0
    %426 = vmatpush1.msra.mxu0 0.0
    %427 = vmatprep.subr.mxu0 0.0
    %428 = vmatpush1.msra.mxu0 0.0
    %429 = vmatprep.subr.mxu0 0.0
    %430 = vmatpush1.msra.mxu0 0.0
    %431 = vmatprep.subr.mxu0 0.0
    %432 = vmatpush1.msra.mxu0 0.0
    %433 = vmatprep.subr.mxu0 0.0
    %434 = vmatpush1.msra.mxu0 0.0
    %435 = vmatprep.subr.mxu0 0.0
    %436 = vmatpush1.msra.mxu0 0.0
    %437 = vmatprep.subr.mxu0 0.0
    %438 = vmatpush1.msra.mxu0 0.0
    %439 = vmatprep.subr.mxu0 0.0
    %440 = vmatpush1.msra.mxu0 0.0
    %441 = vmatprep.subr.mxu0 0.0
    %442 = vmatpush1.msra.mxu0 0.0
    %443 = vmatprep.subr.mxu0 0.0
    %444 = vmatpush1.msra.mxu0 0.0
    %445 = vmatprep.subr.mxu0 0.0
    %446 = vmatpush1.msra.mxu0 0.0
    %447 = vmatprep.subr.mxu0 0.0
    %448 = vmatpush1.msra.mxu0 0.0
    %449 = vmatprep.subr.mxu0 0.0
    %450 = vmatpush1.msra.mxu0 0.0
    %451 = vmatprep.subr.mxu0 0.0
    %452 = vmatpush1.msra.mxu0 0.0
    %453 = vmatprep.subr.mxu0 0.0
    %454 = vmatpush1.msra.mxu0 0.0
    %455 = vmatprep.subr.mxu0 0.0
    %456 = vmatpush1.msra.mxu0 0.0
    %457 = vmatprep.subr.mxu0 0.0
    %458 = vmatpush1.msra.mxu0 0.0
    %459 = vmatprep.subr.mxu0 0.0
    %460 = vmatpush1.msra.mxu0 0.0
    %461 = vmatprep.subr.mxu0 0.0
    %462 = vmatpush1.msra.mxu0 0.0
    %463 = vmatprep.subr.mxu0 0.0
    %464 = vmatpush1.msra.mxu0 0.0
    %465 = vmatprep.subr.mxu0 0.0
    %466 = vmatpush1.msra.mxu0 0.0
    %467 = vmatprep.subr.mxu0 0.0
    %468 = vmatpush1.msra.mxu0 0.0
    %469 = vmatprep.mubr.f32.mxu0 0.0
    %470 = vmatmul.mubr.f32.gmra.mrb[0].mxu0 %v319
    %v471 = vpop.f32.mrb[0].mxu0
    %v472 = vadd.f32 0.0, %v471
    %v473 = vpop.f32.mrb[0].mxu0
    %474 = vmatprep.mubr.f32.mxu0 0.0
    %475 = vmatmul.mubr.f32.gmra.mrb[0].mxu0 %v322
    %v476 = vpop.f32.mrb[0].mxu0
    %v477 = vadd.f32 0.0, %v476
    %v478 = vpop.f32.mrb[0].mxu0
    %479 = vdwg.mxu0
    %v480 = vld [vmem:[#allocation9] sm:$0xff]
    %v481 = vld [vmem:[#allocation9 + $0x8] sm:$0xff]
    %v482 = vld [vmem:[#allocation9 + $0x10] sm:$0xff]
    %v483 = vld [vmem:[#allocation9 + $0x18] sm:$0xff]
    %v484 = vld [vmem:[#allocation9 + $0x20] sm:$0xff]
    %v485 = vld [vmem:[#allocation9 + $0x28] sm:$0xff]
    %v486 = vld [vmem:[#allocation9 + $0x30] sm:$0xff]
    %v487 = vld [vmem:[#allocation9 + $0x38] sm:$0xff]
    %v488 = vld [vmem:[#allocation9 + $0x40] sm:$0xff]
    %v489 = vld [vmem:[#allocation9 + $0x48] sm:$0xff]
    %v490 = vld [vmem:[#allocation9 + $0x50] sm:$0xff]
    %v491 = vld [vmem:[#allocation9 + $0x58] sm:$0xff]
    %v492 = vld [vmem:[#allocation9 + $0x60] sm:$0xff]
    %v493 = vld [vmem:[#allocation9 + $0x68] sm:$0xff]
    %v494 = vld [vmem:[#allocation9 + $0x70] sm:$0xff]
    %v495 = vld [vmem:[#allocation9 + $0x78] sm:$0xff]
    %v496 = vlaneseq
    %v497 = vand.u32 %v496, 127
    %v498 = vadd.s32 %v497, 128
    %vm499 = vcmp.lt.s32.totalorder %v497, 0
    %v500 = vsub.s32 0, %v497
    %v501 = vsel %vm499, %v500, %v497
    %v502 = vshrl.u32 %v501, 6
    %v503 = vand.u32 %v501, 63
    %v504 = vsub.s32 0, %v503
    %v505 = vsel %vm499, %v504, %v503
    %vm506 = vcmp.lt.s32.totalorder %v498, 0
    %v507 = vsub.s32 0, %v498
    %v508 = vsel %vm506, %v507, %v498
    %v509 = vshrl.u32 %v508, 6
    %v510 = vand.u32 %v508, 63
    %v511 = vsub.s32 0, %v510
    %v512 = vsel %vm506, %v511, %v510
    %vm513 = vcmp.ne.s32.totalorder %v505, 0
    %vm514 = vcmp.ne.s32.totalorder %v512, 0
    %vm515 = vcmp.lt.s32.totalorder %v505, 0
    %vm516 = vcmp.lt.s32.totalorder %v512, 0
    %vm517 = vmand %vm515, %vm513
    %vm518 = vmand %vm516, %vm514
    %v519 = vadd.s32 %v505, 64
    %v520 = vadd.s32 %v512, 64
    %v521 = vsel %vm517, %v519, %v505
    %v522 = vsel %vm518, %v520, %v512
    %vm523 = vcmp.lt.s32.totalorder %v521, 32
    %vm524 = vcmp.lt.s32.totalorder %v522, 32
    %v527 = vrot.slane %v397, 6
    %v528 = vrot.slane %v399, 6
    %v531 = vsel %vm523, %v391, %v527
    %v532 = vsel %vm524, %v393, %v528
    %vm533 = vcmask 523264
    %v535 = vsel %vm533, 0.0, 0
    %537 = vmatprep.subr.mxu0 %v481
    %538 = vmatpush1.msra.mxu0 %v480
    %539 = vmatprep.subr.mxu0 %v483
    %540 = vmatpush1.msra.mxu0 %v482
    %541 = vmatprep.subr.mxu0 %v485
    %542 = vmatpush1.msra.mxu0 %v484
    %543 = vmatprep.subr.mxu0 %v487
    %544 = vmatpush1.msra.mxu0 %v486
    %545 = vmatprep.subr.mxu0 %v489
    %546 = vmatpush1.msra.mxu0 %v488
    %547 = vmatprep.subr.mxu0 %v491
    %548 = vmatpush1.msra.mxu0 %v490
    %549 = vmatprep.subr.mxu0 %v493
    %550 = vmatpush1.msra.mxu0 %v492
    %551 = vmatprep.subr.mxu0 %v495
    %552 = vmatpush1.msra.mxu0 %v494
    %553 = vmatprep.subr.mxu0 0.0
    %554 = vmatpush1.msra.mxu0 0.0
    %555 = vmatprep.subr.mxu0 0.0
    %556 = vmatpush1.msra.mxu0 0.0
    %557 = vmatprep.subr.mxu0 0.0
    %558 = vmatpush1.msra.mxu0 0.0
    %559 = vmatprep.subr.mxu0 0.0
    %560 = vmatpush1.msra.mxu0 0.0
    %561 = vmatprep.subr.mxu0 0.0
    %562 = vmatpush1.msra.mxu0 0.0
    %563 = vmatprep.subr.mxu0 0.0
    %564 = vmatpush1.msra.mxu0 0.0
    %565 = vmatprep.subr.mxu0 0.0
    %566 = vmatpush1.msra.mxu0 0.0
    %567 = vmatprep.subr.mxu0 0.0
    %568 = vmatpush1.msra.mxu0 0.0
    %569 = vmatprep.subr.mxu0 0.0
    %570 = vmatpush1.msra.mxu0 0.0
    %571 = vmatprep.subr.mxu0 0.0
    %572 = vmatpush1.msra.mxu0 0.0
    %573 = vmatprep.subr.mxu0 0.0
    %574 = vmatpush1.msra.mxu0 0.0
    %575 = vmatprep.subr.mxu0 0.0
    %576 = vmatpush1.msra.mxu0 0.0
    %577 = vmatprep.subr.mxu0 0.0
    %578 = vmatpush1.msra.mxu0 0.0
    %579 = vmatprep.subr.mxu0 0.0
    %580 = vmatpush1.msra.mxu0 0.0
    %581 = vmatprep.subr.mxu0 0.0
    %582 = vmatpush1.msra.mxu0 0.0
    %583 = vmatprep.subr.mxu0 0.0
    %584 = vmatpush1.msra.mxu0 0.0
    %585 = vmatprep.subr.mxu0 0.0
    %586 = vmatpush1.msra.mxu0 0.0
    %587 = vmatprep.subr.mxu0 0.0
    %588 = vmatpush1.msra.mxu0 0.0
    %589 = vmatprep.subr.mxu0 0.0
    %590 = vmatpush1.msra.mxu0 0.0
    %591 = vmatprep.subr.mxu0 0.0
    %592 = vmatpush1.msra.mxu0 0.0
    %593 = vmatprep.subr.mxu0 0.0
    %594 = vmatpush1.msra.mxu0 0.0
    %595 = vmatprep.subr.mxu0 0.0
    %596 = vmatpush1.msra.mxu0 0.0
    %597 = vmatprep.subr.mxu0 0.0
    %598 = vmatpush1.msra.mxu0 0.0
    %599 = vmatprep.subr.mxu0 0.0
    %600 = vmatpush1.msra.mxu0 0.0
    %601 = vmatprep.mubr.f32.mxu0 0.0
    %602 = vmatmul.mubr.f32.gmra.mrb[0].mxu0 %v535
    %v603 = vpop.f32.mrb[0].mxu0
    %v604 = vadd.f32 0.0, %v603
    %v605 = vpop.f32.mrb[0].mxu0
    %v606 = vadd.f32 0.0, %v605
    %607 = vdwg.mxu0
    %v608 = vadd.f32 %v531, %v604
    %v609 = vadd.f32 %v532, %v606
    %v610 = vtanh.pop %v608
    %v611 = vtanh.pop %v609
    %v612 = vmul.f32 %v610, 0.5
    %v613 = vadd.f32 %v612, 0.5
    %v614 = vmul.f32 %v611, 0.5
    %v615 = vadd.f32 %v614, 0.5
    %v616 = vmul.f32 %v613, 0.0
    %v617 = vmul.f32 %v613, %v611
    %619 = vrot.lane.b32.xlu0 %v617, 64
    %v620 = vpop.permute.xlu0 %619
    %v622 = vadd.f32 %v616, %v620
    %v623 = vtanh.pop %v622
    %v624 = vmul.f32 %v615, %v623
    %626 = vrot.lane.b32.xlu0 %v624, 64
    %v627 = vpop.permute.xlu0 %626
    %vm629 = vcmask 254976
    %630 = vst.msk [vmem:[#allocation2] sm:$0x3] %vm629, %v627
    %631 = vrot.lane.b32.xlu0 %v624, 32
    %v632 = vpop.permute.xlu0 %631
    %634 = vst.msk [vmem:[#allocation3 + $0xe] sm:$0x3] %vm629, %v632
    %v635 = vrot.slane %v397, 2
    %v636 = vrot.slane %v399, 2
    %v639 = vsel %vm523, %v391, %v635
    %v640 = vsel %vm524, %v393, %v636
    %v641 = vsel %vm533, %v627, 0
    %643 = vmatprep.subr.mxu0 %v481
    %644 = vmatpush1.msra.mxu0 %v480
    %645 = vmatprep.subr.mxu0 %v483
    %646 = vmatpush1.msra.mxu0 %v482
    %647 = vmatprep.subr.mxu0 %v485
    %648 = vmatpush1.msra.mxu0 %v484
    %649 = vmatprep.subr.mxu0 %v487
    %650 = vmatpush1.msra.mxu0 %v486
    %651 = vmatprep.subr.mxu0 %v489
    %652 = vmatpush1.msra.mxu0 %v488
    %653 = vmatprep.subr.mxu0 %v491
    %654 = vmatpush1.msra.mxu0 %v490
    %655 = vmatprep.subr.mxu0 %v493
    %656 = vmatpush1.msra.mxu0 %v492
    %657 = vmatprep.subr.mxu0 %v495
    %658 = vmatpush1.msra.mxu0 %v494
    %659 = vmatprep.subr.mxu0 0.0
    %660 = vmatpush1.msra.mxu0 0.0
    %661 = vmatprep.subr.mxu0 0.0
    %662 = vmatpush1.msra.mxu0 0.0
    %663 = vmatprep.subr.mxu0 0.0
    %664 = vmatpush1.msra.mxu0 0.0
    %665 = vmatprep.subr.mxu0 0.0
    %666 = vmatpush1.msra.mxu0 0.0
    %667 = vmatprep.subr.mxu0 0.0
    %668 = vmatpush1.msra.mxu0 0.0
    %669 = vmatprep.subr.mxu0 0.0
    %670 = vmatpush1.msra.mxu0 0.0
    %671 = vmatprep.subr.mxu0 0.0
    %672 = vmatpush1.msra.mxu0 0.0
    %673 = vmatprep.subr.mxu0 0.0
    %674 = vmatpush1.msra.mxu0 0.0
    %675 = vmatprep.subr.mxu0 0.0
    %676 = vmatpush1.msra.mxu0 0.0
    %677 = vmatprep.subr.mxu0 0.0
    %678 = vmatpush1.msra.mxu0 0.0
    %679 = vmatprep.subr.mxu0 0.0
    %680 = vmatpush1.msra.mxu0 0.0
    %681 = vmatprep.subr.mxu0 0.0
    %682 = vmatpush1.msra.mxu0 0.0
    %683 = vmatprep.subr.mxu0 0.0
    %684 = vmatpush1.msra.mxu0 0.0
    %685 = vmatprep.subr.mxu0 0.0
    %686 = vmatpush1.msra.mxu0 0.0
    %687 = vmatprep.subr.mxu0 0.0
    %688 = vmatpush1.msra.mxu0 0.0
    %689 = vmatprep.subr.mxu0 0.0
    %690 = vmatpush1.msra.mxu0 0.0
    %691 = vmatprep.subr.mxu0 0.0
    %692 = vmatpush1.msra.mxu0 0.0
    %693 = vmatprep.subr.mxu0 0.0
    %694 = vmatpush1.msra.mxu0 0.0
    %695 = vmatprep.subr.mxu0 0.0
    %696 = vmatpush1.msra.mxu0 0.0
    %697 = vmatprep.subr.mxu0 0.0
    %698 = vmatpush1.msra.mxu0 0.0
    %699 = vmatprep.subr.mxu0 0.0
    %700 = vmatpush1.msra.mxu0 0.0
    %701 = vmatprep.subr.mxu0 0.0
    %702 = vmatpush1.msra.mxu0 0.0
    %703 = vmatprep.subr.mxu0 0.0
    %704 = vmatpush1.msra.mxu0 0.0
    %705 = vmatprep.subr.mxu0 0.0
    %706 = vmatpush1.msra.mxu0 0.0
    %707 = vmatprep.mubr.f32.mxu0 0.0
    %708 = vmatmul.mubr.f32.gmra.mrb[0].mxu0 %v641
    %v709 = vpop.f32.mrb[0].mxu0
    %v710 = vadd.f32 0.0, %v709
    %v711 = vpop.f32.mrb[0].mxu0
    %v712 = vadd.f32 0.0, %v711
    %713 = vdwg.mxu0
    %v716 = vrot.slane %v710, 6
    %v717 = vrot.slane %v712, 6
    %v720 = vadd.f32 %v639, %v716
    %v721 = vadd.f32 %v640, %v717
    %v722 = vtanh.pop %v720
    %v723 = vtanh.pop %v721
    %v724 = vmul.f32 %v722, 0.5
    %v725 = vadd.f32 %v724, 0.5
    %v726 = vmul.f32 %v723, 0.5
    %v727 = vadd.f32 %v726, 0.5
    %v729 = vrot.slane %v622, 6
    %v731 = vmul.f32 %v725, %v729
    %v732 = vmul.f32 %v725, %v723
    %734 = vrot.lane.b32.xlu0 %v732, 64
    %v735 = vpop.permute.xlu0 %734
    %v737 = vadd.f32 %v731, %v735
    %v738 = vtanh.pop %v737
    %v739 = vmul.f32 %v727, %v738
    %741 = vrot.lane.b32.xlu0 %v739, 64
    %v742 = vpop.permute.xlu0 %741
    %vm744 = vcmask 257026
    %745 = vst.msk [vmem:[#allocation2] sm:$0xc] %vm744, %v742
    %746 = vrot.lane.b32.xlu0 %v739, 32
    %v747 = vpop.permute.xlu0 %746
    %749 = vst.msk [vmem:[#allocation3 + $0xa] sm:$0xc] %vm744, %v747
    %v750 = vrot.slane %v739, 2
    %751 = vrot.lane.b32.xlu0 %v750, 64
    %v752 = vpop.permute.xlu0 %751
    %v753 = vsel %vm533, %v752, 0
    %755 = vmatprep.subr.mxu0 %v481
    %756 = vmatpush1.msra.mxu0 %v480
    %757 = vmatprep.subr.mxu0 %v483
    %758 = vmatpush1.msra.mxu0 %v482
    %759 = vmatprep.subr.mxu0 %v485
    %760 = vmatpush1.msra.mxu0 %v484
    %761 = vmatprep.subr.mxu0 %v487
    %762 = vmatpush1.msra.mxu0 %v486
    %763 = vmatprep.subr.mxu0 %v489
    %764 = vmatpush1.msra.mxu0 %v488
    %765 = vmatprep.subr.mxu0 %v491
    %766 = vmatpush1.msra.mxu0 %v490
    %767 = vmatprep.subr.mxu0 %v493
    %768 = vmatpush1.msra.mxu0 %v492
    %769 = vmatprep.subr.mxu0 %v495
    %770 = vmatpush1.msra.mxu0 %v494
    %771 = vmatprep.subr.mxu0 0.0
    %772 = vmatpush1.msra.mxu0 0.0
    %773 = vmatprep.subr.mxu0 0.0
    %774 = vmatpush1.msra.mxu0 0.0
    %775 = vmatprep.subr.mxu0 0.0
    %776 = vmatpush1.msra.mxu0 0.0
    %777 = vmatprep.subr.mxu0 0.0
    %778 = vmatpush1.msra.mxu0 0.0
    %779 = vmatprep.subr.mxu0 0.0
    %780 = vmatpush1.msra.mxu0 0.0
    %781 = vmatprep.subr.mxu0 0.0
    %782 = vmatpush1.msra.mxu0 0.0
    %783 = vmatprep.subr.mxu0 0.0
    %784 = vmatpush1.msra.mxu0 0.0
    %785 = vmatprep.subr.mxu0 0.0
    %786 = vmatpush1.msra.mxu0 0.0
    %787 = vmatprep.subr.mxu0 0.0
    %788 = vmatpush1.msra.mxu0 0.0
    %789 = vmatprep.subr.mxu0 0.0
    %790 = vmatpush1.msra.mxu0 0.0
    %791 = vmatprep.subr.mxu0 0.0
    %792 = vmatpush1.msra.mxu0 0.0
    %793 = vmatprep.subr.mxu0 0.0
    %794 = vmatpush1.msra.mxu0 0.0
    %795 = vmatprep.subr.mxu0 0.0
    %796 = vmatpush1.msra.mxu0 0.0
    %797 = vmatprep.subr.mxu0 0.0
    %798 = vmatpush1.msra.mxu0 0.0
    %799 = vmatprep.subr.mxu0 0.0
    %800 = vmatpush1.msra.mxu0 0.0
    %801 = vmatprep.subr.mxu0 0.0
    %802 = vmatpush1.msra.mxu0 0.0
    %803 = vmatprep.subr.mxu0 0.0
    %804 = vmatpush1.msra.mxu0 0.0
    %805 = vmatprep.subr.mxu0 0.0
    %806 = vmatpush1.msra.mxu0 0.0
    %807 = vmatprep.subr.mxu0 0.0
    %808 = vmatpush1.msra.mxu0 0.0
    %809 = vmatprep.subr.mxu0 0.0
    %810 = vmatpush1.msra.mxu0 0.0
    %811 = vmatprep.subr.mxu0 0.0
    %812 = vmatpush1.msra.mxu0 0.0
    %813 = vmatprep.subr.mxu0 0.0
    %814 = vmatpush1.msra.mxu0 0.0
    %815 = vmatprep.subr.mxu0 0.0
    %816 = vmatpush1.msra.mxu0 0.0
    %817 = vmatprep.subr.mxu0 0.0
    %818 = vmatpush1.msra.mxu0 0.0
    %819 = vmatprep.mubr.f32.mxu0 0.0
    %820 = vmatmul.mubr.f32.gmra.mrb[0].mxu0 %v753
    %v821 = vpop.f32.mrb[0].mxu0
    %v822 = vadd.f32 0.0, %v821
    %v823 = vpop.f32.mrb[0].mxu0
    %v824 = vadd.f32 0.0, %v823
    %825 = vdwg.mxu0
    %v828 = vrot.slane %v822, 4
    %v829 = vrot.slane %v824, 4
    %v832 = vadd.f32 %v531, %v828
    %v833 = vadd.f32 %v532, %v829
    %v834 = vtanh.pop %v832
    %v835 = vtanh.pop %v833
    %v836 = vmul.f32 %v834, 0.5
    %v837 = vadd.f32 %v836, 0.5
    %v838 = vmul.f32 %v835, 0.5
    %v839 = vadd.f32 %v838, 0.5
    %v841 = vrot.slane %v737, 6
    %v843 = vmul.f32 %v837, %v841
    %v844 = vmul.f32 %v837, %v835
    %846 = vrot.lane.b32.xlu0 %v844, 64
    %v847 = vpop.permute.xlu0 %846
    %v849 = vadd.f32 %v843, %v847
    %v850 = vtanh.pop %v849
    %v851 = vmul.f32 %v839, %v850
    %853 = vrot.lane.b32.xlu0 %v851, 64
    %v854 = vpop.permute.xlu0 %853
    %vm856 = vcmask 259076
    %857 = vst.msk [vmem:[#allocation2] sm:$0x30] %vm856, %v854
    %858 = vrot.lane.b32.xlu0 %v851, 32
    %v859 = vpop.permute.xlu0 %858
    %861 = vst.msk [vmem:[#allocation3 + $0x6] sm:$0x30] %vm856, %v859
    %v862 = vrot.slane %v851, 4
    %863 = vrot.lane.b32.xlu0 %v862, 64
    %v864 = vpop.permute.xlu0 %863
    %v865 = vsel %vm533, %v864, 0
    %867 = vmatprep.subr.mxu0 %v481
    %868 = vmatpush1.msra.mxu0 %v480
    %869 = vmatprep.subr.mxu0 %v483
    %870 = vmatpush1.msra.mxu0 %v482
    %871 = vmatprep.subr.mxu0 %v485
    %872 = vmatpush1.msra.mxu0 %v484
    %873 = vmatprep.subr.mxu0 %v487
    %874 = vmatpush1.msra.mxu0 %v486
    %875 = vmatprep.subr.mxu0 %v489
    %876 = vmatpush1.msra.mxu0 %v488
    %877 = vmatprep.subr.mxu0 %v491
    %878 = vmatpush1.msra.mxu0 %v490
    %879 = vmatprep.subr.mxu0 %v493
    %880 = vmatpush1.msra.mxu0 %v492
    %881 = vmatprep.subr.mxu0 %v495
    %882 = vmatpush1.msra.mxu0 %v494
    %883 = vmatprep.subr.mxu0 0.0
    %884 = vmatpush1.msra.mxu0 0.0
    %885 = vmatprep.subr.mxu0 0.0
    %886 = vmatpush1.msra.mxu0 0.0
    %887 = vmatprep.subr.mxu0 0.0
    %888 = vmatpush1.msra.mxu0 0.0
    %889 = vmatprep.subr.mxu0 0.0
    %890 = vmatpush1.msra.mxu0 0.0
    %891 = vmatprep.subr.mxu0 0.0
    %892 = vmatpush1.msra.mxu0 0.0
    %893 = vmatprep.subr.mxu0 0.0
    %894 = vmatpush1.msra.mxu0 0.0
    %895 = vmatprep.subr.mxu0 0.0
    %896 = vmatpush1.msra.mxu0 0.0
    %897 = vmatprep.subr.mxu0 0.0
    %898 = vmatpush1.msra.mxu0 0.0
    %899 = vmatprep.subr.mxu0 0.0
    %900 = vmatpush1.msra.mxu0 0.0
    %901 = vmatprep.subr.mxu0 0.0
    %902 = vmatpush1.msra.mxu0 0.0
    %903 = vmatprep.subr.mxu0 0.0
    %904 = vmatpush1.msra.mxu0 0.0
    %905 = vmatprep.subr.mxu0 0.0
    %906 = vmatpush1.msra.mxu0 0.0
    %907 = vmatprep.subr.mxu0 0.0
    %908 = vmatpush1.msra.mxu0 0.0
    %909 = vmatprep.subr.mxu0 0.0
    %910 = vmatpush1.msra.mxu0 0.0
    %911 = vmatprep.subr.mxu0 0.0
    %912 = vmatpush1.msra.mxu0 0.0
    %913 = vmatprep.subr.mxu0 0.0
    %914 = vmatpush1.msra.mxu0 0.0
    %915 = vmatprep.subr.mxu0 0.0
    %916 = vmatpush1.msra.mxu0 0.0
    %917 = vmatprep.subr.mxu0 0.0
    %918 = vmatpush1.msra.mxu0 0.0
    %919 = vmatprep.subr.mxu0 0.0
    %920 = vmatpush1.msra.mxu0 0.0
    %921 = vmatprep.subr.mxu0 0.0
    %922 = vmatpush1.msra.mxu0 0.0
    %923 = vmatprep.subr.mxu0 0.0
    %924 = vmatpush1.msra.mxu0 0.0
    %925 = vmatprep.subr.mxu0 0.0
    %926 = vmatpush1.msra.mxu0 0.0
    %927 = vmatprep.subr.mxu0 0.0
    %928 = vmatpush1.msra.mxu0 0.0
    %929 = vmatprep.subr.mxu0 0.0
    %930 = vmatpush1.msra.mxu0 0.0
    %931 = vmatprep.mubr.f32.mxu0 0.0
    %932 = vmatmul.mubr.f32.gmra.mrb[0].mxu0 %v865
    %v933 = vpop.f32.mrb[0].mxu0
    %v934 = vadd.f32 0.0, %v933
    %v935 = vpop.f32.mrb[0].mxu0
    %v936 = vadd.f32 0.0, %v935
    %937 = vdwg.mxu0
    %v940 = vrot.slane %v934, 2
    %v941 = vrot.slane %v936, 2
    %v944 = vadd.f32 %v639, %v940
    %v945 = vadd.f32 %v640, %v941
    %v946 = vtanh.pop %v944
    %v947 = vtanh.pop %v945
    %v948 = vmul.f32 %v946, 0.5
    %v949 = vadd.f32 %v948, 0.5
    %v950 = vmul.f32 %v947, 0.5
    %v951 = vadd.f32 %v950, 0.5
    %v953 = vrot.slane %v849, 6
    %v955 = vmul.f32 %v949, %v953
    %v956 = vmul.f32 %v949, %v947
    %958 = vrot.lane.b32.xlu0 %v956, 64
    %v959 = vpop.permute.xlu0 %958
    %v961 = vadd.f32 %v955, %v959
    %v962 = vtanh.pop %v961
    %v963 = vmul.f32 %v951, %v962
    %965 = vrot.lane.b32.xlu0 %v963, 64
    %v966 = vpop.permute.xlu0 %965
    %vm968 = vcmask 261126
    %969 = vst.msk [vmem:[#allocation2] sm:$0xc0] %vm968, %v966
    %970 = vrot.lane.b32.xlu0 %v963, 32
    %v971 = vpop.permute.xlu0 %970
    %973 = vst.msk [vmem:[#allocation3 + $0x2] sm:$0xc0] %vm968, %v971
    %v976 = vrot.slane %v391, 6
    %v977 = vrot.slane %v393, 6
    %v980 = vsel %vm523, %v397, %v976
    %v981 = vsel %vm524, %v399, %v977
    %v982 = vrot.slane %v963, 6
    %983 = vrot.lane.b32.xlu0 %v982, 64
    %v984 = vpop.permute.xlu0 %983
    %v985 = vsel %vm533, %v984, 0
    %987 = vmatprep.subr.mxu0 %v481
    %988 = vmatpush1.msra.mxu0 %v480
    %989 = vmatprep.subr.mxu0 %v483
    %990 = vmatpush1.msra.mxu0 %v482
    %991 = vmatprep.subr.mxu0 %v485
    %992 = vmatpush1.msra.mxu0 %v484
    %993 = vmatprep.subr.mxu0 %v487
    %994 = vmatpush1.msra.mxu0 %v486
    %995 = vmatprep.subr.mxu0 %v489
    %996 = vmatpush1.msra.mxu0 %v488
    %997 = vmatprep.subr.mxu0 %v491
    %998 = vmatpush1.msra.mxu0 %v490
    %999 = vmatprep.subr.mxu0 %v493
    %1000 = vmatpush1.msra.mxu0 %v492
    %1001 = vmatprep.subr.mxu0 %v495
    %1002 = vmatpush1.msra.mxu0 %v494
    %1003 = vmatprep.subr.mxu0 0.0
    %1004 = vmatpush1.msra.mxu0 0.0
    %1005 = vmatprep.subr.mxu0 0.0
    %1006 = vmatpush1.msra.mxu0 0.0
    %1007 = vmatprep.subr.mxu0 0.0
    %1008 = vmatpush1.msra.mxu0 0.0
    %1009 = vmatprep.subr.mxu0 0.0
    %1010 = vmatpush1.msra.mxu0 0.0
    %1011 = vmatprep.subr.mxu0 0.0
    %1012 = vmatpush1.msra.mxu0 0.0
    %1013 = vmatprep.subr.mxu0 0.0
    %1014 = vmatpush1.msra.mxu0 0.0
    %1015 = vmatprep.subr.mxu0 0.0
    %1016 = vmatpush1.msra.mxu0 0.0
    %1017 = vmatprep.subr.mxu0 0.0
    %1018 = vmatpush1.msra.mxu0 0.0
    %1019 = vmatprep.subr.mxu0 0.0
    %1020 = vmatpush1.msra.mxu0 0.0
    %1021 = vmatprep.subr.mxu0 0.0
    %1022 = vmatpush1.msra.mxu0 0.0
    %1023 = vmatprep.subr.mxu0 0.0
    %1024 = vmatpush1.msra.mxu0 0.0
    %1025 = vmatprep.subr.mxu0 0.0
    %1026 = vmatpush1.msra.mxu0 0.0
    %1027 = vmatprep.subr.mxu0 0.0
    %1028 = vmatpush1.msra.mxu0 0.0
    %1029 = vmatprep.subr.mxu0 0.0
    %1030 = vmatpush1.msra.mxu0 0.0
    %1031 = vmatprep.subr.mxu0 0.0
    %1032 = vmatpush1.msra.mxu0 0.0
    %1033 = vmatprep.subr.mxu0 0.0
    %1034 = vmatpush1.msra.mxu0 0.0
    %1035 = vmatprep.subr.mxu0 0.0
    %1036 = vmatpush1.msra.mxu0 0.0
    %1037 = vmatprep.subr.mxu0 0.0
    %1038 = vmatpush1.msra.mxu0 0.0
    %1039 = vmatprep.subr.mxu0 0.0
    %1040 = vmatpush1.msra.mxu0 0.0
    %1041 = vmatprep.subr.mxu0 0.0
    %1042 = vmatpush1.msra.mxu0 0.0
    %1043 = vmatprep.subr.mxu0 0.0
    %1044 = vmatpush1.msra.mxu0 0.0
    %1045 = vmatprep.subr.mxu0 0.0
    %1046 = vmatpush1.msra.mxu0 0.0
    %1047 = vmatprep.subr.mxu0 0.0
    %1048 = vmatpush1.msra.mxu0 0.0
    %1049 = vmatprep.subr.mxu0 0.0
    %1050 = vmatpush1.msra.mxu0 0.0
    %1051 = vmatprep.mubr.f32.mxu0 0.0
    %1052 = vmatmul.mubr.f32.gmra.mrb[0].mxu0 %v985
    %v1053 = vpop.f32.mrb[0].mxu0
    %v1054 = vadd.f32 0.0, %v1053
    %v1055 = vpop.f32.mrb[0].mxu0
    %v1056 = vadd.f32 0.0, %v1055
    %1057 = vdwg.mxu0
    %v1058 = vadd.f32 %v980, %v1054
    %v1059 = vadd.f32 %v981, %v1056
    %v1060 = vtanh.pop %v1058
    %v1061 = vtanh.pop %v1059
    %v1062 = vmul.f32 %v1060, 0.5
    %v1063 = vadd.f32 %v1062, 0.5
    %v1064 = vmul.f32 %v1061, 0.5
    %v1065 = vadd.f32 %v1064, 0.5
    %v1067 = vrot.slane %v961, 6
    %v1069 = vmul.f32 %v1063, %v1067
    %v1070 = vmul.f32 %v1063, %v1061
    %1072 = vrot.lane.b32.xlu0 %v1070, 64
    %v1073 = vpop.permute.xlu0 %1072
    %v1075 = vadd.f32 %v1069, %v1073
    %v1076 = vtanh.pop %v1075
    %v1077 = vmul.f32 %v1065, %v1076
    %1079 = vrot.lane.b32.xlu0 %v1077, 64
    %v1080 = vpop.permute.xlu0 %1079
    %1082 = vst.msk [vmem:[#allocation2 + $0x8] sm:$0x3] %vm629, %v1080
    %1083 = vrot.lane.b32.xlu0 %v1077, 32
    %v1084 = vpop.permute.xlu0 %1083
    %1086 = vst.msk [vmem:[#allocation3 + $0x6] sm:$0x3] %vm629, %v1084
    %v1087 = vrot.slane %v391, 2
    %v1088 = vrot.slane %v393, 2
    %v1091 = vsel %vm523, %v397, %v1087
    %v1092 = vsel %vm524, %v399, %v1088
    %v1093 = vsel %vm533, %v1080, 0
    %1095 = vmatprep.subr.mxu0 %v481
    %1096 = vmatpush1.msra.mxu0 %v480
    %1097 = vmatprep.subr.mxu0 %v483
    %1098 = vmatpush1.msra.mxu0 %v482
    %1099 = vmatprep.subr.mxu0 %v485
    %1100 = vmatpush1.msra.mxu0 %v484
    %1101 = vmatprep.subr.mxu0 %v487
    %1102 = vmatpush1.msra.mxu0 %v486
    %1103 = vmatprep.subr.mxu0 %v489
    %1104 = vmatpush1.msra.mxu0 %v488
    %1105 = vmatprep.subr.mxu0 %v491
    %1106 = vmatpush1.msra.mxu0 %v490
    %1107 = vmatprep.subr.mxu0 %v493
    %1108 = vmatpush1.msra.mxu0 %v492
    %1109 = vmatprep.subr.mxu0 %v495
    %1110 = vmatpush1.msra.mxu0 %v494
    %1111 = vmatprep.subr.mxu0 0.0
    %1112 = vmatpush1.msra.mxu0 0.0
    %1113 = vmatprep.subr.mxu0 0.0
    %1114 = vmatpush1.msra.mxu0 0.0
    %1115 = vmatprep.subr.mxu0 0.0
    %1116 = vmatpush1.msra.mxu0 0.0
    %1117 = vmatprep.subr.mxu0 0.0
    %1118 = vmatpush1.msra.mxu0 0.0
    %1119 = vmatprep.subr.mxu0 0.0
    %1120 = vmatpush1.msra.mxu0 0.0
    %1121 = vmatprep.subr.mxu0 0.0
    %1122 = vmatpush1.msra.mxu0 0.0
    %1123 = vmatprep.subr.mxu0 0.0
    %1124 = vmatpush1.msra.mxu0 0.0
    %1125 = vmatprep.subr.mxu0 0.0
    %1126 = vmatpush1.msra.mxu0 0.0
    %1127 = vmatprep.subr.mxu0 0.0
    %1128 = vmatpush1.msra.mxu0 0.0
    %1129 = vmatprep.subr.mxu0 0.0
    %1130 = vmatpush1.msra.mxu0 0.0
    %1131 = vmatprep.subr.mxu0 0.0
    %1132 = vmatpush1.msra.mxu0 0.0
    %1133 = vmatprep.subr.mxu0 0.0
    %1134 = vmatpush1.msra.mxu0 0.0
    %1135 = vmatprep.subr.mxu0 0.0
    %1136 = vmatpush1.msra.mxu0 0.0
    %1137 = vmatprep.subr.mxu0 0.0
    %1138 = vmatpush1.msra.mxu0 0.0
    %1139 = vmatprep.subr.mxu0 0.0
    %1140 = vmatpush1.msra.mxu0 0.0
    %1141 = vmatprep.subr.mxu0 0.0
    %1142 = vmatpush1.msra.mxu0 0.0
    %1143 = vmatprep.subr.mxu0 0.0
    %1144 = vmatpush1.msra.mxu0 0.0
    %1145 = vmatprep.subr.mxu0 0.0
    %1146 = vmatpush1.msra.mxu0 0.0
    %1147 = vmatprep.subr.mxu0 0.0
    %1148 = vmatpush1.msra.mxu0 0.0
    %1149 = vmatprep.subr.mxu0 0.0
    %1150 = vmatpush1.msra.mxu0 0.0
    %1151 = vmatprep.subr.mxu0 0.0
    %1152 = vmatpush1.msra.mxu0 0.0
    %1153 = vmatprep.subr.mxu0 0.0
    %1154 = vmatpush1.msra.mxu0 0.0
    %1155 = vmatprep.subr.mxu0 0.0
    %1156 = vmatpush1.msra.mxu0 0.0
    %1157 = vmatprep.subr.mxu0 0.0
    %1158 = vmatpush1.msra.mxu0 0.0
    %1159 = vmatprep.mubr.f32.mxu0 0.0
    %1160 = vmatmul.mubr.f32.gmra.mrb[0].mxu0 %v1093
    %v1161 = vpop.f32.mrb[0].mxu0
    %v1162 = vadd.f32 0.0, %v1161
    %v1163 = vpop.f32.mrb[0].mxu0
    %v1164 = vadd.f32 0.0, %v1163
    %1165 = vdwg.mxu0
    %v1168 = vrot.slane %v1162, 6
    %v1169 = vrot.slane %v1164, 6
    %v1172 = vadd.f32 %v1091, %v1168
    %v1173 = vadd.f32 %v1092, %v1169
    %v1174 = vtanh.pop %v1172
    %v1175 = vtanh.pop %v1173
    %v1176 = vmul.f32 %v1174, 0.5
    %v1177 = vadd.f32 %v1176, 0.5
    %v1178 = vmul.f32 %v1175, 0.5
    %v1179 = vadd.f32 %v1178, 0.5
    %v1181 = vrot.slane %v1075, 6
    %v1183 = vmul.f32 %v1177, %v1181
    %v1184 = vmul.f32 %v1177, %v1175
    %1186 = vrot.lane.b32.xlu0 %v1184, 64
    %v1187 = vpop.permute.xlu0 %1186
    %v1189 = vadd.f32 %v1183, %v1187
    %v1190 = vtanh.pop %v1189
    %v1191 = vmul.f32 %v1179, %v1190
    %1193 = vrot.lane.b32.xlu0 %v1191, 64
    %v1194 = vpop.permute.xlu0 %1193
    %1196 = vst.msk [vmem:[#allocation2 + $0x8] sm:$0xc] %vm744, %v1194
    %1197 = vrot.lane.b32.xlu0 %v1191, 32
    %v1198 = vpop.permute.xlu0 %1197
    %1200 = vst.msk [vmem:[#allocation3 + $0x2] sm:$0xc] %vm744, %v1198
    %v1201 = vrot.slane %v1191, 2
    %1202 = vrot.lane.b32.xlu0 %v1201, 64
    %v1203 = vpop.permute.xlu0 %1202
    %v1204 = vsel %vm533, %v1203, 0
    %1206 = vmatprep.subr.mxu0 %v481
    %1207 = vmatpush1.msra.mxu0 %v480
    %1208 = vmatprep.subr.mxu0 %v483
    %1209 = vmatpush1.msra.mxu0 %v482
    %1210 = vmatprep.subr.mxu0 %v485
    %1211 = vmatpush1.msra.mxu0 %v484
    %1212 = vmatprep.subr.mxu0 %v487
    %1213 = vmatpush1.msra.mxu0 %v486
    %1214 = vmatprep.subr.mxu0 %v489
    %1215 = vmatpush1.msra.mxu0 %v488
    %1216 = vmatprep.subr.mxu0 %v491
    %1217 = vmatpush1.msra.mxu0 %v490
    %1218 = vmatprep.subr.mxu0 %v493
    %1219 = vmatpush1.msra.mxu0 %v492
    %1220 = vmatprep.subr.mxu0 %v495
    %1221 = vmatpush1.msra.mxu0 %v494
    %1222 = vmatprep.subr.mxu0 0.0
    %1223 = vmatpush1.msra.mxu0 0.0
    %1224 = vmatprep.subr.mxu0 0.0
    %1225 = vmatpush1.msra.mxu0 0.0
    %1226 = vmatprep.subr.mxu0 0.0
    %1227 = vmatpush1.msra.mxu0 0.0
    %1228 = vmatprep.subr.mxu0 0.0
    %1229 = vmatpush1.msra.mxu0 0.0
    %1230 = vmatprep.subr.mxu0 0.0
    %1231 = vmatpush1.msra.mxu0 0.0
    %1232 = vmatprep.subr.mxu0 0.0
    %1233 = vmatpush1.msra.mxu0 0.0
    %1234 = vmatprep.subr.mxu0 0.0
    %1235 = vmatpush1.msra.mxu0 0.0
    %1236 = vmatprep.subr.mxu0 0.0
    %1237 = vmatpush1.msra.mxu0 0.0
    %1238 = vmatprep.subr.mxu0 0.0
    %1239 = vmatpush1.msra.mxu0 0.0
    %1240 = vmatprep.subr.mxu0 0.0
    %1241 = vmatpush1.msra.mxu0 0.0
    %1242 = vmatprep.subr.mxu0 0.0
    %1243 = vmatpush1.msra.mxu0 0.0
    %1244 = vmatprep.subr.mxu0 0.0
    %1245 = vmatpush1.msra.mxu0 0.0
    %1246 = vmatprep.subr.mxu0 0.0
    %1247 = vmatpush1.msra.mxu0 0.0
    %1248 = vmatprep.subr.mxu0 0.0
    %1249 = vmatpush1.msra.mxu0 0.0
    %1250 = vmatprep.subr.mxu0 0.0
    %1251 = vmatpush1.msra.mxu0 0.0
    %1252 = vmatprep.subr.mxu0 0.0
    %1253 = vmatpush1.msra.mxu0 0.0
    %1254 = vmatprep.subr.mxu0 0.0
    %1255 = vmatpush1.msra.mxu0 0.0
    %1256 = vmatprep.subr.mxu0 0.0
    %1257 = vmatpush1.msra.mxu0 0.0
    %1258 = vmatprep.subr.mxu0 0.0
    %1259 = vmatpush1.msra.mxu0 0.0
    %1260 = vmatprep.subr.mxu0 0.0
    %1261 = vmatpush1.msra.mxu0 0.0
    %1262 = vmatprep.subr.mxu0 0.0
    %1263 = vmatpush1.msra.mxu0 0.0
    %1264 = vmatprep.subr.mxu0 0.0
    %1265 = vmatpush1.msra.mxu0 0.0
    %1266 = vmatprep.subr.mxu0 0.0
    %1267 = vmatpush1.msra.mxu0 0.0
    %1268 = vmatprep.subr.mxu0 0.0
    %1269 = vmatpush1.msra.mxu0 0.0
    %1270 = vmatprep.mubr.f32.mxu0 0.0
    %1271 = vmatmul.mubr.f32.gmra.mrb[0].mxu0 %v1204
    %v1272 = vpop.f32.mrb[0].mxu0
    %v1273 = vadd.f32 0.0, %v1272
    %v1274 = vpop.f32.mrb[0].mxu0
    %v1275 = vadd.f32 0.0, %v1274
    %1276 = vdwg.mxu0
    %v1279 = vrot.slane %v1273, 4
    %v1280 = vrot.slane %v1275, 4
    %v1283 = vadd.f32 %v980, %v1279
    %v1284 = vadd.f32 %v981, %v1280
    %v1285 = vtanh.pop %v1283
    %v1286 = vtanh.pop %v1284
    %v1287 = vmul.f32 %v1285, 0.5
    %v1288 = vadd.f32 %v1287, 0.5
    %v1289 = vmul.f32 %v1286, 0.5
    %v1290 = vadd.f32 %v1289, 0.5
    %v1292 = vrot.slane %v1189, 6
    %v1294 = vmul.f32 %v1288, %v1292
    %v1295 = vmul.f32 %v1288, %v1286
    %1297 = vrot.lane.b32.xlu0 %v1295, 64
    %v1298 = vpop.permute.xlu0 %1297
    %v1300 = vadd.f32 %v1294, %v1298
    %v1301 = vtanh.pop %v1300
    %v1302 = vmul.f32 %v1290, %v1301
    %1304 = vrot.lane.b32.xlu0 %v1302, 64
    %v1305 = vpop.permute.xlu0 %1304
    %1307 = vst.msk [vmem:[#allocation2 + $0x8] sm:$0x30] %vm856, %v1305
    %1308 = vrot.lane.b32.xlu0 %v1302, 32
    %v1309 = vpop.permute.xlu0 %1308
    %1311 = vst.msk [vmem:[#allocation3 - $0x2] sm:$0x30] %vm856, %v1309
    %v1312 = vrot.slane %v1302, 4
    %1313 = vrot.lane.b32.xlu0 %v1312, 64
    %v1314 = vpop.permute.xlu0 %1313
    %v1315 = vsel %vm533, %v1314, 0
    %1317 = vmatprep.subr.mxu0 %v481
    %1318 = vmatpush1.msra.mxu0 %v480
    %1319 = vmatprep.subr.mxu0 %v483
    %1320 = vmatpush1.msra.mxu0 %v482
    %1321 = vmatprep.subr.mxu0 %v485
    %1322 = vmatpush1.msra.mxu0 %v484
    %1323 = vmatprep.subr.mxu0 %v487
    %1324 = vmatpush1.msra.mxu0 %v486
    %1325 = vmatprep.subr.mxu0 %v489
    %1326 = vmatpush1.msra.mxu0 %v488
    %1327 = vmatprep.subr.mxu0 %v491
    %1328 = vmatpush1.msra.mxu0 %v490
    %1329 = vmatprep.subr.mxu0 %v493
    %1330 = vmatpush1.msra.mxu0 %v492
    %1331 = vmatprep.subr.mxu0 %v495
    %1332 = vmatpush1.msra.mxu0 %v494
    %1333 = vmatprep.subr.mxu0 0.0
    %1334 = vmatpush1.msra.mxu0 0.0
    %1335 = vmatprep.subr.mxu0 0.0
    %1336 = vmatpush1.msra.mxu0 0.0
    %1337 = vmatprep.subr.mxu0 0.0
    %1338 = vmatpush1.msra.mxu0 0.0
    %1339 = vmatprep.subr.mxu0 0.0
    %1340 = vmatpush1.msra.mxu0 0.0
    %1341 = vmatprep.subr.mxu0 0.0
    %1342 = vmatpush1.msra.mxu0 0.0
    %1343 = vmatprep.subr.mxu0 0.0
    %1344 = vmatpush1.msra.mxu0 0.0
    %1345 = vmatprep.subr.mxu0 0.0
    %1346 = vmatpush1.msra.mxu0 0.0
    %1347 = vmatprep.subr.mxu0 0.0
    %1348 = vmatpush1.msra.mxu0 0.0
    %1349 = vmatprep.subr.mxu0 0.0
    %1350 = vmatpush1.msra.mxu0 0.0
    %1351 = vmatprep.subr.mxu0 0.0
    %1352 = vmatpush1.msra.mxu0 0.0
    %1353 = vmatprep.subr.mxu0 0.0
    %1354 = vmatpush1.msra.mxu0 0.0
    %1355 = vmatprep.subr.mxu0 0.0
    %1356 = vmatpush1.msra.mxu0 0.0
    %1357 = vmatprep.subr.mxu0 0.0
    %1358 = vmatpush1.msra.mxu0 0.0
    %1359 = vmatprep.subr.mxu0 0.0
    %1360 = vmatpush1.msra.mxu0 0.0
    %1361 = vmatprep.subr.mxu0 0.0
    %1362 = vmatpush1.msra.mxu0 0.0
    %1363 = vmatprep.subr.mxu0 0.0
    %1364 = vmatpush1.msra.mxu0 0.0
    %1365 = vmatprep.subr.mxu0 0.0
    %1366 = vmatpush1.msra.mxu0 0.0
    %1367 = vmatprep.subr.mxu0 0.0
    %1368 = vmatpush1.msra.mxu0 0.0
    %1369 = vmatprep.subr.mxu0 0.0
    %1370 = vmatpush1.msra.mxu0 0.0
    %1371 = vmatprep.subr.mxu0 0.0
    %1372 = vmatpush1.msra.mxu0 0.0
    %1373 = vmatprep.subr.mxu0 0.0
    %1374 = vmatpush1.msra.mxu0 0.0
    %1375 = vmatprep.subr.mxu0 0.0
    %1376 = vmatpush1.msra.mxu0 0.0
    %1377 = vmatprep.subr.mxu0 0.0
    %1378 = vmatpush1.msra.mxu0 0.0
    %1379 = vmatprep.subr.mxu0 0.0
    %1380 = vmatpush1.msra.mxu0 0.0
    %1381 = vmatprep.mubr.f32.mxu0 0.0
    %1382 = vmatmul.mubr.f32.gmra.mrb[0].mxu0 %v1315
    %v1383 = vpop.f32.mrb[0].mxu0
    %v1384 = vadd.f32 0.0, %v1383
    %v1385 = vpop.f32.mrb[0].mxu0
    %v1386 = vadd.f32 0.0, %v1385
    %1387 = vdwg.mxu0
    %v1390 = vrot.slane %v1384, 2
    %v1391 = vrot.slane %v1386, 2
    %v1394 = vadd.f32 %v1091, %v1390
    %v1395 = vadd.f32 %v1092, %v1391
    %v1396 = vtanh.pop %v1394
    %v1397 = vtanh.pop %v1395
    %v1398 = vmul.f32 %v1396, 0.5
    %v1399 = vadd.f32 %v1398, 0.5
    %v1400 = vmul.f32 %v1397, 0.5
    %v1401 = vadd.f32 %v1400, 0.5
    %v1403 = vrot.slane %v1300, 6
    %v1405 = vmul.f32 %v1399, %v1403
    %v1406 = vmul.f32 %v1399, %v1397
    %1408 = vrot.lane.b32.xlu0 %v1406, 64
    %v1409 = vpop.permute.xlu0 %1408
    %v1411 = vadd.f32 %v1405, %v1409
    %v1412 = vtanh.pop %v1411
    %v1413 = vmul.f32 %v1401, %v1412
    %1415 = vrot.lane.b32.xlu0 %v1413, 64
    %v1416 = vpop.permute.xlu0 %1415
    %1418 = vst.msk [vmem:[#allocation2 + $0x8] sm:$0xc0] %vm968, %v1416
    %1419 = vrot.lane.b32.xlu0 %v1413, 32
    %v1420 = vpop.permute.xlu0 %1419
    %1422 = vst.msk [vmem:[#allocation3 - $0x6] sm:$0xc0] %vm968, %v1420
    %v1423 = vld [vmem:[#allocation2] sm:$0xff]
    %v1424 = vld [vmem:[#allocation2 + $0x8] sm:$0xff]
    %v1425 = vld [vmem:[#allocation10] sm:$0xff]
    %v1426 = vld [vmem:[#allocation10 + $0x8] sm:$0xff]
    %v1427 = vld [vmem:[#allocation10 + $0x10] sm:$0xff]
    %v1428 = vld [vmem:[#allocation10 + $0x18] sm:$0xff]
    %v1429 = vld [vmem:[#allocation3] sm:$0xff]
    %v1430 = vld [vmem:[#allocation3 + $0x8] sm:$0xff]
    %v1431 = vld [vmem:[#allocation12] sm:$0xff]
    %v1432 = vld [vmem:[#allocation12 + $0x8] sm:$0xff]
    %v1433 = vld [vmem:[#allocation12 + $0x10] sm:$0xff]
    %v1434 = vld [vmem:[#allocation12 + $0x18] sm:$0xff]
    %v1436 = vsel %vm317, %v1429, 0
    %v1439 = vsel %vm317, %v1430, 0
    %1441 = vmatprep.subr.mxu0 0.0
    %1442 = vmatpush1.msra.mxu0 %v1431
    %1443 = vmatprep.subr.mxu0 0.0
    %1444 = vmatpush1.msra.mxu0 %v1432
    %1445 = vmatprep.subr.mxu0 0.0
    %1446 = vmatpush1.msra.mxu0 %v1433
    %1447 = vmatprep.subr.mxu0 0.0
    %1448 = vmatpush1.msra.mxu0 %v1434
    %1449 = vmatprep.subr.mxu0 0.0
    %1450 = vmatpush1.msra.mxu0 0.0
    %1451 = vmatprep.subr.mxu0 0.0
    %1452 = vmatpush1.msra.mxu0 0.0
    %1453 = vmatprep.subr.mxu0 0.0
    %1454 = vmatpush1.msra.mxu0 0.0
    %1455 = vmatprep.subr.mxu0 0.0
    %1456 = vmatpush1.msra.mxu0 0.0
    %1457 = vmatprep.subr.mxu0 0.0
    %1458 = vmatpush1.msra.mxu0 0.0
    %1459 = vmatprep.subr.mxu0 0.0
    %1460 = vmatpush1.msra.mxu0 0.0
    %1461 = vmatprep.subr.mxu0 0.0
    %1462 = vmatpush1.msra.mxu0 0.0
    %1463 = vmatprep.subr.mxu0 0.0
    %1464 = vmatpush1.msra.mxu0 0.0
    %1465 = vmatprep.subr.mxu0 0.0
    %1466 = vmatpush1.msra.mxu0 0.0
    %1467 = vmatprep.subr.mxu0 0.0
    %1468 = vmatpush1.msra.mxu0 0.0
    %1469 = vmatprep.subr.mxu0 0.0
    %1470 = vmatpush1.msra.mxu0 0.0
    %1471 = vmatprep.subr.mxu0 0.0
    %1472 = vmatpush1.msra.mxu0 0.0
    %1473 = vmatprep.subr.mxu0 0.0
    %1474 = vmatpush1.msra.mxu0 0.0
    %1475 = vmatprep.subr.mxu0 0.0
    %1476 = vmatpush1.msra.mxu0 0.0
    %1477 = vmatprep.subr.mxu0 0.0
    %1478 = vmatpush1.msra.mxu0 0.0
    %1479 = vmatprep.subr.mxu0 0.0
    %1480 = vmatpush1.msra.mxu0 0.0
    %1481 = vmatprep.subr.mxu0 0.0
    %1482 = vmatpush1.msra.mxu0 0.0
    %1483 = vmatprep.subr.mxu0 0.0
    %1484 = vmatpush1.msra.mxu0 0.0
    %1485 = vmatprep.subr.mxu0 0.0
    %1486 = vmatpush1.msra.mxu0 0.0
    %1487 = vmatprep.subr.mxu0 0.0
    %1488 = vmatpush1.msra.mxu0 0.0
    %1489 = vmatprep.subr.mxu0 0.0
    %1490 = vmatpush1.msra.mxu0 0.0
    %1491 = vmatprep.subr.mxu0 0.0
    %1492 = vmatpush1.msra.mxu0 0.0
    %1493 = vmatprep.subr.mxu0 0.0
    %1494 = vmatpush1.msra.mxu0 0.0
    %1495 = vmatprep.subr.mxu0 0.0
    %1496 = vmatpush1.msra.mxu0 0.0
    %1497 = vmatprep.subr.mxu0 0.0
    %1498 = vmatpush1.msra.mxu0 0.0
    %1499 = vmatprep.subr.mxu0 0.0
    %1500 = vmatpush1.msra.mxu0 0.0
    %1501 = vmatprep.subr.mxu0 0.0
    %1502 = vmatpush1.msra.mxu0 0.0
    %1503 = vmatprep.subr.mxu0 0.0
    %1504 = vmatpush1.msra.mxu0 0.0
    %1505 = vmatprep.mubr.f32.mxu0 0.0
    %1506 = vmatmul.mubr.f32.gmra.mrb[0].mxu0 %v1436
    %v1507 = vpop.f32.mrb[0].mxu0
    %v1508 = vadd.f32 0.0, %v1507
    %v1509 = vpop.f32.mrb[0].mxu0
    %1510 = vmatprep.mubr.f32.mxu0 0.0
    %1511 = vmatmul.mubr.f32.gmra.mrb[0].mxu0 %v1439
    %v1512 = vpop.f32.mrb[0].mxu0
    %v1513 = vadd.f32 0.0, %v1512
    %v1514 = vpop.f32.mrb[0].mxu0
    %1515 = vdwg.mxu0
    %v1517 = vsel %vm317, %v1423, 0
    %v1520 = vsel %vm317, %v1424, 0
    %1522 = vmatprep.subr.mxu0 0.0
    %1523 = vmatpush1.msra.mxu0 %v1425
    %1524 = vmatprep.subr.mxu0 0.0
    %1525 = vmatpush1.msra.mxu0 %v1426
    %1526 = vmatprep.subr.mxu0 0.0
    %1527 = vmatpush1.msra.mxu0 %v1427
    %1528 = vmatprep.subr.mxu0 0.0
    %1529 = vmatpush1.msra.mxu0 %v1428
    %1530 = vmatprep.subr.mxu0 0.0
    %1531 = vmatpush1.msra.mxu0 0.0
    %1532 = vmatprep.subr.mxu0 0.0
    %1533 = vmatpush1.msra.mxu0 0.0
    %1534 = vmatprep.subr.mxu0 0.0
    %1535 = vmatpush1.msra.mxu0 0.0
    %1536 = vmatprep.subr.mxu0 0.0
    %1537 = vmatpush1.msra.mxu0 0.0
    %1538 = vmatprep.subr.mxu0 0.0
    %1539 = vmatpush1.msra.mxu0 0.0
    %1540 = vmatprep.subr.mxu0 0.0
    %1541 = vmatpush1.msra.mxu0 0.0
    %1542 = vmatprep.subr.mxu0 0.0
    %1543 = vmatpush1.msra.mxu0 0.0
    %1544 = vmatprep.subr.mxu0 0.0
    %1545 = vmatpush1.msra.mxu0 0.0
    %1546 = vmatprep.subr.mxu0 0.0
    %1547 = vmatpush1.msra.mxu0 0.0
    %1548 = vmatprep.subr.mxu0 0.0
    %1549 = vmatpush1.msra.mxu0 0.0
    %1550 = vmatprep.subr.mxu0 0.0
    %1551 = vmatpush1.msra.mxu0 0.0
    %1552 = vmatprep.subr.mxu0 0.0
    %1553 = vmatpush1.msra.mxu0 0.0
    %1554 = vmatprep.subr.mxu0 0.0
    %1555 = vmatpush1.msra.mxu0 0.0
    %1556 = vmatprep.subr.mxu0 0.0
    %1557 = vmatpush1.msra.mxu0 0.0
    %1558 = vmatprep.subr.mxu0 0.0
    %1559 = vmatpush1.msra.mxu0 0.0
    %1560 = vmatprep.subr.mxu0 0.0
    %1561 = vmatpush1.msra.mxu0 0.0
    %1562 = vmatprep.subr.mxu0 0.0
    %1563 = vmatpush1.msra.mxu0 0.0
    %1564 = vmatprep.subr.mxu0 0.0
    %1565 = vmatpush1.msra.mxu0 0.0
    %1566 = vmatprep.subr.mxu0 0.0
    %1567 = vmatpush1.msra.mxu0 0.0
    %1568 = vmatprep.subr.mxu0 0.0
    %1569 = vmatpush1.msra.mxu0 0.0
    %1570 = vmatprep.subr.mxu0 0.0
    %1571 = vmatpush1.msra.mxu0 0.0
    %1572 = vmatprep.subr.mxu0 0.0
    %1573 = vmatpush1.msra.mxu0 0.0
    %1574 = vmatprep.subr.mxu0 0.0
    %1575 = vmatpush1.msra.mxu0 0.0
    %1576 = vmatprep.subr.mxu0 0.0
    %1577 = vmatpush1.msra.mxu0 0.0
    %1578 = vmatprep.subr.mxu0 0.0
    %1579 = vmatpush1.msra.mxu0 0.0
    %1580 = vmatprep.subr.mxu0 0.0
    %1581 = vmatpush1.msra.mxu0 0.0
    %1582 = vmatprep.subr.mxu0 0.0
    %1583 = vmatpush1.msra.mxu0 0.0
    %1584 = vmatprep.subr.mxu0 0.0
    %1585 = vmatpush1.msra.mxu0 0.0
    %1586 = vmatprep.mubr.f32.mxu0 0.0
    %1587 = vmatmul.mubr.f32.gmra.mrb[0].mxu0 %v1517
    %v1588 = vpop.f32.mrb[0].mxu0
    %v1589 = vadd.f32 %v1508, %v1588
    %v1590 = vpop.f32.mrb[0].mxu0
    %1591 = vmatprep.mubr.f32.mxu0 0.0
    %1592 = vmatmul.mubr.f32.gmra.mrb[0].mxu0 %v1520
    %v1593 = vpop.f32.mrb[0].mxu0
    %v1594 = vadd.f32 %v1513, %v1593
    %v1595 = vpop.f32.mrb[0].mxu0
    %1596 = vdwg.mxu0
    %v1597 = vadd.f32 %v1589, %v472
    %v1598 = vadd.f32 %v1594, %v477
    %v1599 = vld [vmem:[#allocation15] sm:$0x1]
    %v1601 = vlaneseq
    %v1602 = vshrl.u32 %v1601, 7
    %v1603 = vsub.s32 0, %v1602
    %v1604 = vrot.slane %v1599, %v1603
    %v1606 = vadd.f32 %v1597, %v1604
    %v1607 = vadd.f32 %v1598, %v1604
    %v1608 = vtanh.pop %v1606
    %v1609 = vtanh.pop %v1607
    %v1611 = vrot.slane %v1608, 2
    %v1613 = vmax.f32 %v1608, %v1611
    %v1614 = vrot.slane %v1608, 4
    %v1616 = vmax.f32 %v1613, %v1614
    %v1617 = vrot.slane %v1608, 6
    %v1619 = vmax.f32 %v1616, %v1617
    %v1620 = vmax.f32 %v1619, %v1609
    %v1622 = vrot.slane %v1609, 2
    %v1624 = vmax.f32 %v1620, %v1622
    %v1625 = vrot.slane %v1609, 4
    %v1627 = vmax.f32 %v1624, %v1625
    %v1628 = vrot.slane %v1609, 6
    %v1630 = vmax.f32 %v1627, %v1628
    %v1631 = vpack.c.bf16 %v1630, %v1630
    %v1632 = vld [vmem:[#allocation16] sm:$0xff]
    %v1633 = vld [vmem:[#allocation16 + $0x8] sm:$0xff]
    %v1634 = vld [vmem:[#allocation16 + $0x10] sm:$0xff]
    %v1635 = vld [vmem:[#allocation16 + $0x18] sm:$0xff]
    %v1636 = vld [vmem:[#allocation16 + $0x20] sm:$0xff]
    %v1637 = vld [vmem:[#allocation16 + $0x28] sm:$0xff]
    %v1638 = vld [vmem:[#allocation16 + $0x30] sm:$0xff]
    %v1639 = vld [vmem:[#allocation16 + $0x38] sm:$0xff]
    %v1640 = vld [vmem:[#allocation16 + $0x40] sm:$0xff]
    %v1641 = vld [vmem:[#allocation16 + $0x48] sm:$0xff]
    %v1642 = vld [vmem:[#allocation16 + $0x50] sm:$0xff]
    %v1643 = vld [vmem:[#allocation16 + $0x58] sm:$0xff]
    %v1644 = vld [vmem:[#allocation16 + $0x60] sm:$0xff]
    %v1645 = vld [vmem:[#allocation16 + $0x68] sm:$0xff]
    %v1646 = vld [vmem:[#allocation16 + $0x70] sm:$0xff]
    %v1647 = vld [vmem:[#allocation16 + $0x78] sm:$0xff]
    %v1648 = vld [vmem:[#allocation16 + $0x80] sm:$0xff]
    %v1649 = vld [vmem:[#allocation16 + $0x88] sm:$0xff]
    %v1650 = vld [vmem:[#allocation16 + $0x90] sm:$0xff]
    %v1651 = vld [vmem:[#allocation16 + $0x98] sm:$0xff]
    %v1652 = vld [vmem:[#allocation16 + $0xa0] sm:$0xff]
    %v1653 = vld [vmem:[#allocation16 + $0xa8] sm:$0xff]
    %v1654 = vld [vmem:[#allocation16 + $0xb0] sm:$0xff]
    %v1655 = vld [vmem:[#allocation16 + $0xb8] sm:$0xff]
    %v1656 = vld [vmem:[#allocation16 + $0xc0] sm:$0xff]
    %v1657 = vld [vmem:[#allocation16 + $0xc8] sm:$0xff]
    %v1658 = vld [vmem:[#allocation16 + $0xd0] sm:$0xff]
    %v1659 = vld [vmem:[#allocation16 + $0xd8] sm:$0xff]
    %v1660 = vld [vmem:[#allocation16 + $0xe0] sm:$0xff]
    %v1661 = vld [vmem:[#allocation16 + $0xe8] sm:$0xff]
    %v1662 = vld [vmem:[#allocation16 + $0xf0] sm:$0xff]
    %v1663 = vld [vmem:[#allocation16 + $0xf8] sm:$0xff]
    %v1664 = vld [vmem:[#allocation16 + $0x100] sm:$0xff]
    %v1665 = vld [vmem:[#allocation16 + $0x108] sm:$0xff]
    %v1666 = vld [vmem:[#allocation16 + $0x110] sm:$0xff]
    %v1667 = vld [vmem:[#allocation16 + $0x118] sm:$0xff]
    %v1668 = vld [vmem:[#allocation16 + $0x120] sm:$0xff]
    %v1669 = vld [vmem:[#allocation16 + $0x128] sm:$0xff]
    %v1670 = vld [vmem:[#allocation16 + $0x130] sm:$0xff]
    %v1671 = vld [vmem:[#allocation16 + $0x138] sm:$0xff]
    %v1672 = vld [vmem:[#allocation16 + $0x140] sm:$0xff]
    %v1673 = vld [vmem:[#allocation16 + $0x148] sm:$0xff]
    %v1674 = vld [vmem:[#allocation16 + $0x150] sm:$0xff]
    %v1675 = vld [vmem:[#allocation16 + $0x158] sm:$0xff]
    %v1676 = vld [vmem:[#allocation16 + $0x160] sm:$0xff]
    %v1677 = vld [vmem:[#allocation16 + $0x168] sm:$0xff]
    %v1678 = vld [vmem:[#allocation16 + $0x170] sm:$0xff]
    %v1679 = vld [vmem:[#allocation16 + $0x178] sm:$0xff]
    %v1680 = vld [vmem:[#allocation16 + $0x180] sm:$0xff]
    %v1681 = vld [vmem:[#allocation16 + $0x188] sm:$0xff]
    %v1682 = vld [vmem:[#allocation16 + $0x190] sm:$0xff]
    %v1683 = vld [vmem:[#allocation16 + $0x198] sm:$0xff]
    %v1684 = vld [vmem:[#allocation16 + $0x1a0] sm:$0xff]
    %v1685 = vld [vmem:[#allocation16 + $0x1a8] sm:$0xff]
    %v1686 = vld [vmem:[#allocation16 + $0x1b0] sm:$0xff]
    %v1687 = vld [vmem:[#allocation16 + $0x1b8] sm:$0xff]
    %v1688 = vld [vmem:[#allocation16 + $0x1c0] sm:$0xff]
    %v1689 = vld [vmem:[#allocation16 + $0x1c8] sm:$0xff]
    %v1690 = vld [vmem:[#allocation16 + $0x1d0] sm:$0xff]
    %v1691 = vld [vmem:[#allocation16 + $0x1d8] sm:$0xff]
    %v1692 = vld [vmem:[#allocation16 + $0x1e0] sm:$0xff]
    %v1693 = vld [vmem:[#allocation16 + $0x1e8] sm:$0xff]
    %v1694 = vld [vmem:[#allocation16 + $0x1f0] sm:$0xff]
    %v1695 = vld [vmem:[#allocation16 + $0x1f8] sm:$0xff]
    %v1696 = vld [vmem:[#allocation16 + $0x200] sm:$0xff]
    %v1697 = vld [vmem:[#allocation16 + $0x208] sm:$0xff]
    %v1698 = vld [vmem:[#allocation16 + $0x210] sm:$0xff]
    %v1699 = vld [vmem:[#allocation16 + $0x218] sm:$0xff]
    %v1700 = vld [vmem:[#allocation16 + $0x220] sm:$0xff]
    %v1701 = vld [vmem:[#allocation16 + $0x228] sm:$0xff]
    %v1702 = vld [vmem:[#allocation16 + $0x230] sm:$0xff]
    %v1703 = vld [vmem:[#allocation16 + $0x238] sm:$0xff]
    %v1776 = vunpack.c.l.b16 %v1632
    %v1777 = vunpack.c.h.b16 %v1632
    %v1778 = vunpack.c.l.b16 %v1633
    %v1779 = vunpack.c.h.b16 %v1633
    %v1780 = vunpack.c.l.b16 %v1634
    %v1781 = vunpack.c.h.b16 %v1634
    %v1782 = vunpack.c.l.b16 %v1635
    %v1783 = vunpack.c.h.b16 %v1635
    %v1784 = vunpack.c.l.b16 %v1636
    %v1785 = vunpack.c.h.b16 %v1636
    %v1786 = vunpack.c.l.b16 %v1637
    %v1787 = vunpack.c.h.b16 %v1637
    %v1788 = vunpack.c.l.b16 %v1638
    %v1789 = vunpack.c.h.b16 %v1638
    %v1790 = vunpack.c.l.b16 %v1639
    %v1791 = vunpack.c.h.b16 %v1639
    %v1792 = vunpack.c.l.b16 %v1640
    %v1793 = vunpack.c.h.b16 %v1640
    %v1794 = vunpack.c.l.b16 %v1641
    %v1795 = vunpack.c.h.b16 %v1641
    %v1796 = vunpack.c.l.b16 %v1642
    %v1797 = vunpack.c.h.b16 %v1642
    %v1798 = vunpack.c.l.b16 %v1643
    %v1799 = vunpack.c.h.b16 %v1643
    %v1800 = vunpack.c.l.b16 %v1644
    %v1801 = vunpack.c.h.b16 %v1644
    %v1802 = vunpack.c.l.b16 %v1645
    %v1803 = vunpack.c.h.b16 %v1645
    %v1804 = vunpack.c.l.b16 %v1646
    %v1805 = vunpack.c.h.b16 %v1646
    %v1806 = vunpack.c.l.b16 %v1647
    %v1807 = vunpack.c.h.b16 %v1647
    %v1808 = vunpack.c.l.b16 %v1648
    %v1809 = vunpack.c.h.b16 %v1648
    %v1810 = vunpack.c.l.b16 %v1649
    %v1811 = vunpack.c.h.b16 %v1649
    %v1812 = vunpack.c.l.b16 %v1650
    %v1813 = vunpack.c.h.b16 %v1650
    %v1814 = vunpack.c.l.b16 %v1651
    %v1815 = vunpack.c.h.b16 %v1651
    %v1816 = vunpack.c.l.b16 %v1652
    %v1817 = vunpack.c.h.b16 %v1652
    %v1818 = vunpack.c.l.b16 %v1653
    %v1819 = vunpack.c.h.b16 %v1653
    %v1820 = vunpack.c.l.b16 %v1654
    %v1821 = vunpack.c.h.b16 %v1654
    %v1822 = vunpack.c.l.b16 %v1655
    %v1823 = vunpack.c.h.b16 %v1655
    %v1824 = vunpack.c.l.b16 %v1656
    %v1825 = vunpack.c.h.b16 %v1656
    %v1826 = vunpack.c.l.b16 %v1657
    %v1827 = vunpack.c.h.b16 %v1657
    %v1828 = vunpack.c.l.b16 %v1658
    %v1829 = vunpack.c.h.b16 %v1658
    %v1830 = vunpack.c.l.b16 %v1659
    %v1831 = vunpack.c.h.b16 %v1659
    %v1832 = vunpack.c.l.b16 %v1660
    %v1833 = vunpack.c.h.b16 %v1660
    %v1834 = vunpack.c.l.b16 %v1661
    %v1835 = vunpack.c.h.b16 %v1661
    %v1836 = vunpack.c.l.b16 %v1662
    %v1837 = vunpack.c.h.b16 %v1662
    %v1838 = vunpack.c.l.b16 %v1663
    %v1839 = vunpack.c.h.b16 %v1663
    %v1840 = vunpack.c.l.b16 %v1664
    %v1841 = vunpack.c.h.b16 %v1664
    %v1842 = vunpack.c.l.b16 %v1665
    %v1843 = vunpack.c.h.b16 %v1665
    %v1844 = vunpack.c.l.b16 %v1666
    %v1845 = vunpack.c.h.b16 %v1666
    %v1846 = vunpack.c.l.b16 %v1667
    %v1847 = vunpack.c.h.b16 %v1667
    %v1848 = vunpack.c.l.b16 %v1668
    %v1849 = vunpack.c.h.b16 %v1668
    %v1850 = vunpack.c.l.b16 %v1669
    %v1851 = vunpack.c.h.b16 %v1669
    %v1852 = vunpack.c.l.b16 %v1670
    %v1853 = vunpack.c.h.b16 %v1670
    %v1854 = vunpack.c.l.b16 %v1671
    %v1855 = vunpack.c.h.b16 %v1671
    %v1856 = vunpack.c.l.b16 %v1672
    %v1857 = vunpack.c.h.b16 %v1672
    %v1858 = vunpack.c.l.b16 %v1673
    %v1859 = vunpack.c.h.b16 %v1673
    %v1860 = vunpack.c.l.b16 %v1674
    %v1861 = vunpack.c.h.b16 %v1674
    %v1862 = vunpack.c.l.b16 %v1675
    %v1863 = vunpack.c.h.b16 %v1675
    %v1864 = vunpack.c.l.b16 %v1676
    %v1865 = vunpack.c.h.b16 %v1676
    %v1866 = vunpack.c.l.b16 %v1677
    %v1867 = vunpack.c.h.b16 %v1677
    %v1868 = vunpack.c.l.b16 %v1678
    %v1869 = vunpack.c.h.b16 %v1678
    %v1870 = vunpack.c.l.b16 %v1679
    %v1871 = vunpack.c.h.b16 %v1679
    %v1872 = vunpack.c.l.b16 %v1680
    %v1873 = vunpack.c.h.b16 %v1680
    %v1874 = vunpack.c.l.b16 %v1681
    %v1875 = vunpack.c.h.b16 %v1681
    %v1876 = vunpack.c.l.b16 %v1682
    %v1877 = vunpack.c.h.b16 %v1682
    %v1878 = vunpack.c.l.b16 %v1683
    %v1879 = vunpack.c.h.b16 %v1683
    %v1880 = vunpack.c.l.b16 %v1684
    %v1881 = vunpack.c.h.b16 %v1684
    %v1882 = vunpack.c.l.b16 %v1685
    %v1883 = vunpack.c.h.b16 %v1685
    %v1884 = vunpack.c.l.b16 %v1686
    %v1885 = vunpack.c.h.b16 %v1686
    %v1886 = vunpack.c.l.b16 %v1687
    %v1887 = vunpack.c.h.b16 %v1687
    %v1888 = vunpack.c.l.b16 %v1688
    %v1889 = vunpack.c.h.b16 %v1688
    %v1890 = vunpack.c.l.b16 %v1689
    %v1891 = vunpack.c.h.b16 %v1689
    %v1892 = vunpack.c.l.b16 %v1690
    %v1893 = vunpack.c.h.b16 %v1690
    %v1894 = vunpack.c.l.b16 %v1691
    %v1895 = vunpack.c.h.b16 %v1691
    %v1896 = vunpack.c.l.b16 %v1692
    %v1897 = vunpack.c.h.b16 %v1692
    %v1898 = vunpack.c.l.b16 %v1693
    %v1899 = vunpack.c.h.b16 %v1693
    %v1900 = vunpack.c.l.b16 %v1694
    %v1901 = vunpack.c.h.b16 %v1694
    %v1902 = vunpack.c.l.b16 %v1695
    %v1903 = vunpack.c.h.b16 %v1695
    %v1904 = vunpack.c.l.b16 %v1696
    %v1905 = vunpack.c.h.b16 %v1696
    %v1906 = vunpack.c.l.b16 %v1697
    %v1907 = vunpack.c.h.b16 %v1697
    %v1908 = vunpack.c.l.b16 %v1698
    %v1909 = vunpack.c.h.b16 %v1698
    %v1910 = vunpack.c.l.b16 %v1699
    %v1911 = vunpack.c.h.b16 %v1699
    %v1912 = vunpack.c.l.b16 %v1700
    %v1913 = vunpack.c.h.b16 %v1700
    %v1914 = vunpack.c.l.b16 %v1701
    %v1915 = vunpack.c.h.b16 %v1701
    %v1916 = vunpack.c.l.b16 %v1702
    %v1917 = vunpack.c.h.b16 %v1702
    %v1918 = vunpack.c.l.b16 %v1703
    %v1919 = vunpack.c.h.b16 %v1703
    %v1920 = vpack.c.b16 %v1794, %v1776
    %v1921 = vpack.c.b16 %v1795, %v1777
    %v1922 = vpack.c.b16 %v1796, %v1778
    %v1923 = vpack.c.b16 %v1797, %v1779
    %v1924 = vpack.c.b16 %v1798, %v1780
    %v1925 = vpack.c.b16 %v1799, %v1781
    %v1926 = vpack.c.b16 %v1800, %v1782
    %v1927 = vpack.c.b16 %v1801, %v1783
    %v1928 = vpack.c.b16 %v1802, %v1784
    %v1929 = vpack.c.b16 %v1803, %v1785
    %v1930 = vpack.c.b16 %v1804, %v1786
    %v1931 = vpack.c.b16 %v1805, %v1787
    %v1932 = vpack.c.b16 %v1806, %v1788
    %v1933 = vpack.c.b16 %v1807, %v1789
    %v1934 = vpack.c.b16 %v1808, %v1790
    %v1935 = vpack.c.b16 %v1809, %v1791
    %v1936 = vpack.c.b16 %v1810, %v1792
    %v1937 = vpack.c.b16 %v1811, %v1793
    %v1938 = vpack.c.b16 %v1830, %v1812
    %v1939 = vpack.c.b16 %v1831, %v1813
    %v1940 = vpack.c.b16 %v1832, %v1814
    %v1941 = vpack.c.b16 %v1833, %v1815
    %v1942 = vpack.c.b16 %v1834, %v1816
    %v1943 = vpack.c.b16 %v1835, %v1817
    %v1944 = vpack.c.b16 %v1836, %v1818
    %v1945 = vpack.c.b16 %v1837, %v1819
    %v1946 = vpack.c.b16 %v1838, %v1820
    %v1947 = vpack.c.b16 %v1839, %v1821
    %v1948 = vpack.c.b16 %v1840, %v1822
    %v1949 = vpack.c.b16 %v1841, %v1823
    %v1950 = vpack.c.b16 %v1842, %v1824
    %v1951 = vpack.c.b16 %v1843, %v1825
    %v1952 = vpack.c.b16 %v1844, %v1826
    %v1953 = vpack.c.b16 %v1845, %v1827
    %v1954 = vpack.c.b16 %v1846, %v1828
    %v1955 = vpack.c.b16 %v1847, %v1829
    %v1956 = vpack.c.b16 %v1866, %v1848
    %v1957 = vpack.c.b16 %v1867, %v1849
    %v1958 = vpack.c.b16 %v1868, %v1850
    %v1959 = vpack.c.b16 %v1869, %v1851
    %v1960 = vpack.c.b16 %v1870, %v1852
    %v1961 = vpack.c.b16 %v1871, %v1853
    %v1962 = vpack.c.b16 %v1872, %v1854
    %v1963 = vpack.c.b16 %v1873, %v1855
    %v1964 = vpack.c.b16 %v1874, %v1856
    %v1965 = vpack.c.b16 %v1875, %v1857
    %v1966 = vpack.c.b16 %v1876, %v1858
    %v1967 = vpack.c.b16 %v1877, %v1859
    %v1968 = vpack.c.b16 %v1878, %v1860
    %v1969 = vpack.c.b16 %v1879, %v1861
    %v1970 = vpack.c.b16 %v1880, %v1862
    %v1971 = vpack.c.b16 %v1881, %v1863
    %v1972 = vpack.c.b16 %v1882, %v1864
    %v1973 = vpack.c.b16 %v1883, %v1865
    %v1974 = vpack.c.b16 %v1902, %v1884
    %v1975 = vpack.c.b16 %v1903, %v1885
    %v1976 = vpack.c.b16 %v1904, %v1886
    %v1977 = vpack.c.b16 %v1905, %v1887
    %v1978 = vpack.c.b16 %v1906, %v1888
    %v1979 = vpack.c.b16 %v1907, %v1889
    %v1980 = vpack.c.b16 %v1908, %v1890
    %v1981 = vpack.c.b16 %v1909, %v1891
    %v1982 = vpack.c.b16 %v1910, %v1892
    %v1983 = vpack.c.b16 %v1911, %v1893
    %v1984 = vpack.c.b16 %v1912, %v1894
    %v1985 = vpack.c.b16 %v1913, %v1895
    %v1986 = vpack.c.b16 %v1914, %v1896
    %v1987 = vpack.c.b16 %v1915, %v1897
    %v1988 = vpack.c.b16 %v1916, %v1898
    %v1989 = vpack.c.b16 %v1917, %v1899
    %v1990 = vpack.c.b16 %v1918, %v1900
    %v1991 = vpack.c.b16 %v1919, %v1901
    %v2065 = vsel %vm533, %v1631, 0
    %2067 = vmatprep.subr.bf16.mxu0 %v1921
    %2068 = vmatpush1.bf16.msra.mxu0 %v1920
    %2069 = vmatprep.subr.bf16.mxu0 %v1939
    %2070 = vmatpush1.bf16.msra.mxu0 %v1938
    %2071 = vmatprep.subr.bf16.mxu0 %v1957
    %2072 = vmatpush1.bf16.msra.mxu0 %v1956
    %2073 = vmatprep.subr.bf16.mxu0 %v1975
    %2074 = vmatpush1.bf16.msra.mxu0 %v1974
    %2075 = vmatprep.subr.bf16.mxu0 0
    %2076 = vmatpush1.bf16.msra.mxu0 0
    %2077 = vmatprep.subr.bf16.mxu0 0
    %2078 = vmatpush1.bf16.msra.mxu0 0
    %2079 = vmatprep.subr.bf16.mxu0 0
    %2080 = vmatpush1.bf16.msra.mxu0 0
    %2081 = vmatprep.subr.bf16.mxu0 0
    %2082 = vmatpush1.bf16.msra.mxu0 0
    %2083 = vmatprep.subr.bf16.mxu0 0
    %2084 = vmatpush1.bf16.msra.mxu0 0
    %2085 = vmatprep.subr.bf16.mxu0 0
    %2086 = vmatpush1.bf16.msra.mxu0 0
    %2087 = vmatprep.subr.bf16.mxu0 0
    %2088 = vmatpush1.bf16.msra.mxu0 0
    %2089 = vmatprep.subr.bf16.mxu0 0
    %2090 = vmatpush1.bf16.msra.mxu0 0
    %2091 = vmatprep.subr.bf16.mxu0 0
    %2092 = vmatpush1.bf16.msra.mxu0 0
    %2093 = vmatprep.subr.bf16.mxu0 0
    %2094 = vmatpush1.bf16.msra.mxu0 0
    %2095 = vmatprep.subr.bf16.mxu0 0
    %2096 = vmatpush1.bf16.msra.mxu0 0
    %2097 = vmatprep.subr.bf16.mxu0 0
    %2098 = vmatpush1.bf16.msra.mxu0 0
    %2099 = vmatprep.mubr.bf16.mxu0 0
    %2100 = vmatmul.mubr.bf16.gmra.mrb[0].mxu0 %v2065
    %v2101 = vpop.f32.mrb[0].mxu0
    %v2102 = vadd.f32 0.0, %v2101
    %v2103 = vpop.f32.mrb[0].mxu0
    %v2104 = vadd.f32 0.0, %v2103
    %v2105 = vpop.f32.mrb[0].mxu0
    %v2106 = vpop.f32.mrb[0].mxu0
    %2107 = vdwg.mxu0
    %2108 = vmatprep.subr.bf16.mxu0 %v1923
    %2109 = vmatpush1.bf16.msra.mxu0 %v1922
    %2110 = vmatprep.subr.bf16.mxu0 %v1941
    %2111 = vmatpush1.bf16.msra.mxu0 %v1940
    %2112 = vmatprep.subr.bf16.mxu0 %v1959
    %2113 = vmatpush1.bf16.msra.mxu0 %v1958
    %2114 = vmatprep.subr.bf16.mxu0 %v1977
    %2115 = vmatpush1.bf16.msra.mxu0 %v1976
    %2116 = vmatprep.subr.bf16.mxu0 0
    %2117 = vmatpush1.bf16.msra.mxu0 0
    %2118 = vmatprep.subr.bf16.mxu0 0
    %2119 = vmatpush1.bf16.msra.mxu0 0
    %2120 = vmatprep.subr.bf16.mxu0 0
    %2121 = vmatpush1.bf16.msra.mxu0 0
    %2122 = vmatprep.subr.bf16.mxu0 0
    %2123 = vmatpush1.bf16.msra.mxu0 0
    %2124 = vmatprep.subr.bf16.mxu0 0
    %2125 = vmatpush1.bf16.msra.mxu0 0
    %2126 = vmatprep.subr.bf16.mxu0 0
    %2127 = vmatpush1.bf16.msra.mxu0 0
    %2128 = vmatprep.subr.bf16.mxu0 0
    %2129 = vmatpush1.bf16.msra.mxu0 0
    %2130 = vmatprep.subr.bf16.mxu0 0
    %2131 = vmatpush1.bf16.msra.mxu0 0
    %2132 = vmatprep.subr.bf16.mxu0 0
    %2133 = vmatpush1.bf16.msra.mxu0 0
    %2134 = vmatprep.subr.bf16.mxu0 0
    %2135 = vmatpush1.bf16.msra.mxu0 0
    %2136 = vmatprep.subr.bf16.mxu0 0
    %2137 = vmatpush1.bf16.msra.mxu0 0
    %2138 = vmatprep.subr.bf16.mxu0 0
    %2139 = vmatpush1.bf16.msra.mxu0 0
    %2140 = vmatprep.mubr.bf16.mxu0 0
    %2141 = vmatmul.mubr.bf16.gmra.mrb[0].mxu0 %v2065
    %v2142 = vpop.f32.mrb[0].mxu0
    %v2143 = vadd.f32 0.0, %v2142
    %v2144 = vpop.f32.mrb[0].mxu0
    %v2145 = vadd.f32 0.0, %v2144
    %v2146 = vpop.f32.mrb[0].mxu0
    %v2147 = vpop.f32.mrb[0].mxu0
    %2148 = vdwg.mxu0
    %2149 = vmatprep.subr.bf16.mxu0 %v1925
    %2150 = vmatpush1.bf16.msra.mxu0 %v1924
    %2151 = vmatprep.subr.bf16.mxu0 %v1943
    %2152 = vmatpush1.bf16.msra.mxu0 %v1942
    %2153 = vmatprep.subr.bf16.mxu0 %v1961
    %2154 = vmatpush1.bf16.msra.mxu0 %v1960
    %2155 = vmatprep.subr.bf16.mxu0 %v1979
    %2156 = vmatpush1.bf16.msra.mxu0 %v1978
    %2157 = vmatprep.subr.bf16.mxu0 0
    %2158 = vmatpush1.bf16.msra.mxu0 0
    %2159 = vmatprep.subr.bf16.mxu0 0
    %2160 = vmatpush1.bf16.msra.mxu0 0
    %2161 = vmatprep.subr.bf16.mxu0 0
    %2162 = vmatpush1.bf16.msra.mxu0 0
    %2163 = vmatprep.subr.bf16.mxu0 0
    %2164 = vmatpush1.bf16.msra.mxu0 0
    %2165 = vmatprep.subr.bf16.mxu0 0
    %2166 = vmatpush1.bf16.msra.mxu0 0
    %2167 = vmatprep.subr.bf16.mxu0 0
    %2168 = vmatpush1.bf16.msra.mxu0 0
    %2169 = vmatprep.subr.bf16.mxu0 0
    %2170 = vmatpush1.bf16.msra.mxu0 0
    %2171 = vmatprep.subr.bf16.mxu0 0
    %2172 = vmatpush1.bf16.msra.mxu0 0
    %2173 = vmatprep.subr.bf16.mxu0 0
    %2174 = vmatpush1.bf16.msra.mxu0 0
    %2175 = vmatprep.subr.bf16.mxu0 0
    %2176 = vmatpush1.bf16.msra.mxu0 0
    %2177 = vmatprep.subr.bf16.mxu0 0
    %2178 = vmatpush1.bf16.msra.mxu0 0
    %2179 = vmatprep.subr.bf16.mxu0 0
    %2180 = vmatpush1.bf16.msra.mxu0 0
    %2181 = vmatprep.mubr.bf16.mxu0 0
    %2182 = vmatmul.mubr.bf16.gmra.mrb[0].mxu0 %v2065
    %v2183 = vpop.f32.mrb[0].mxu0
    %v2184 = vadd.f32 0.0, %v2183
    %v2185 = vpop.f32.mrb[0].mxu0
    %v2186 = vadd.f32 0.0, %v2185
    %v2187 = vpop.f32.mrb[0].mxu0
    %v2188 = vpop.f32.mrb[0].mxu0
    %2189 = vdwg.mxu0
    %2190 = vmatprep.subr.bf16.mxu0 %v1927
    %2191 = vmatpush1.bf16.msra.mxu0 %v1926
    %2192 = vmatprep.subr.bf16.mxu0 %v1945
    %2193 = vmatpush1.bf16.msra.mxu0 %v1944
    %2194 = vmatprep.subr.bf16.mxu0 %v1963
    %2195 = vmatpush1.bf16.msra.mxu0 %v1962
    %2196 = vmatprep.subr.bf16.mxu0 %v1981
    %2197 = vmatpush1.bf16.msra.mxu0 %v1980
    %2198 = vmatprep.subr.bf16.mxu0 0
    %2199 = vmatpush1.bf16.msra.mxu0 0
    %2200 = vmatprep.subr.bf16.mxu0 0
    %2201 = vmatpush1.bf16.msra.mxu0 0
    %2202 = vmatprep.subr.bf16.mxu0 0
    %2203 = vmatpush1.bf16.msra.mxu0 0
    %2204 = vmatprep.subr.bf16.mxu0 0
    %2205 = vmatpush1.bf16.msra.mxu0 0
    %2206 = vmatprep.subr.bf16.mxu0 0
    %2207 = vmatpush1.bf16.msra.mxu0 0
    %2208 = vmatprep.subr.bf16.mxu0 0
    %2209 = vmatpush1.bf16.msra.mxu0 0
    %2210 = vmatprep.subr.bf16.mxu0 0
    %2211 = vmatpush1.bf16.msra.mxu0 0
    %2212 = vmatprep.subr.bf16.mxu0 0
    %2213 = vmatpush1.bf16.msra.mxu0 0
    %2214 = vmatprep.subr.bf16.mxu0 0
    %2215 = vmatpush1.bf16.msra.mxu0 0
    %2216 = vmatprep.subr.bf16.mxu0 0
    %2217 = vmatpush1.bf16.msra.mxu0 0
    %2218 = vmatprep.subr.bf16.mxu0 0
    %2219 = vmatpush1.bf16.msra.mxu0 0
    %2220 = vmatprep.subr.bf16.mxu0 0
    %2221 = vmatpush1.bf16.msra.mxu0 0
    %2222 = vmatprep.mubr.bf16.mxu0 0
    %2223 = vmatmul.mubr.bf16.gmra.mrb[0].mxu0 %v2065
    %v2224 = vpop.f32.mrb[0].mxu0
    %v2225 = vadd.f32 0.0, %v2224
    %v2226 = vpop.f32.mrb[0].mxu0
    %v2227 = vadd.f32 0.0, %v2226
    %v2228 = vpop.f32.mrb[0].mxu0
    %v2229 = vpop.f32.mrb[0].mxu0
    %2230 = vdwg.mxu0
    %2231 = vmatprep.subr.bf16.mxu0 %v1929
    %2232 = vmatpush1.bf16.msra.mxu0 %v1928
    %2233 = vmatprep.subr.bf16.mxu0 %v1947
    %2234 = vmatpush1.bf16.msra.mxu0 %v1946
    %2235 = vmatprep.subr.bf16.mxu0 %v1965
    %2236 = vmatpush1.bf16.msra.mxu0 %v1964
    %2237 = vmatprep.subr.bf16.mxu0 %v1983
    %2238 = vmatpush1.bf16.msra.mxu0 %v1982
    %2239 = vmatprep.subr.bf16.mxu0 0
    %2240 = vmatpush1.bf16.msra.mxu0 0
    %2241 = vmatprep.subr.bf16.mxu0 0
    %2242 = vmatpush1.bf16.msra.mxu0 0
    %2243 = vmatprep.subr.bf16.mxu0 0
    %2244 = vmatpush1.bf16.msra.mxu0 0
    %2245 = vmatprep.subr.bf16.mxu0 0
    %2246 = vmatpush1.bf16.msra.mxu0 0
    %2247 = vmatprep.subr.bf16.mxu0 0
    %2248 = vmatpush1.bf16.msra.mxu0 0
    %2249 = vmatprep.subr.bf16.mxu0 0
    %2250 = vmatpush1.bf16.msra.mxu0 0
    %2251 = vmatprep.subr.bf16.mxu0 0
    %2252 = vmatpush1.bf16.msra.mxu0 0
    %2253 = vmatprep.subr.bf16.mxu0 0
    %2254 = vmatpush1.bf16.msra.mxu0 0
    %2255 = vmatprep.subr.bf16.mxu0 0
    %2256 = vmatpush1.bf16.msra.mxu0 0
    %2257 = vmatprep.subr.bf16.mxu0 0
    %2258 = vmatpush1.bf16.msra.mxu0 0
    %2259 = vmatprep.subr.bf16.mxu0 0
    %2260 = vmatpush1.bf16.msra.mxu0 0
    %2261 = vmatprep.subr.bf16.mxu0 0
    %2262 = vmatpush1.bf16.msra.mxu0 0
    %2263 = vmatprep.mubr.bf16.mxu0 0
    %2264 = vmatmul.mubr.bf16.gmra.mrb[0].mxu0 %v2065
    %v2265 = vpop.f32.mrb[0].mxu0
    %v2266 = vadd.f32 0.0, %v2265
    %v2267 = vpop.f32.mrb[0].mxu0
    %v2268 = vadd.f32 0.0, %v2267
    %v2269 = vpop.f32.mrb[0].mxu0
    %v2270 = vpop.f32.mrb[0].mxu0
    %2271 = vdwg.mxu0
    %2272 = vmatprep.subr.bf16.mxu0 %v1931
    %2273 = vmatpush1.bf16.msra.mxu0 %v1930
    %2274 = vmatprep.subr.bf16.mxu0 %v1949
    %2275 = vmatpush1.bf16.msra.mxu0 %v1948
    %2276 = vmatprep.subr.bf16.mxu0 %v1967
    %2277 = vmatpush1.bf16.msra.mxu0 %v1966
    %2278 = vmatprep.subr.bf16.mxu0 %v1985
    %2279 = vmatpush1.bf16.msra.mxu0 %v1984
    %2280 = vmatprep.subr.bf16.mxu0 0
    %2281 = vmatpush1.bf16.msra.mxu0 0
    %2282 = vmatprep.subr.bf16.mxu0 0
    %2283 = vmatpush1.bf16.msra.mxu0 0
    %2284 = vmatprep.subr.bf16.mxu0 0
    %2285 = vmatpush1.bf16.msra.mxu0 0
    %2286 = vmatprep.subr.bf16.mxu0 0
    %2287 = vmatpush1.bf16.msra.mxu0 0
    %2288 = vmatprep.subr.bf16.mxu0 0
    %2289 = vmatpush1.bf16.msra.mxu0 0
    %2290 = vmatprep.subr.bf16.mxu0 0
    %2291 = vmatpush1.bf16.msra.mxu0 0
    %2292 = vmatprep.subr.bf16.mxu0 0
    %2293 = vmatpush1.bf16.msra.mxu0 0
    %2294 = vmatprep.subr.bf16.mxu0 0
    %2295 = vmatpush1.bf16.msra.mxu0 0
    %2296 = vmatprep.subr.bf16.mxu0 0
    %2297 = vmatpush1.bf16.msra.mxu0 0
    %2298 = vmatprep.subr.bf16.mxu0 0
    %2299 = vmatpush1.bf16.msra.mxu0 0
    %2300 = vmatprep.subr.bf16.mxu0 0
    %2301 = vmatpush1.bf16.msra.mxu0 0
    %2302 = vmatprep.subr.bf16.mxu0 0
    %2303 = vmatpush1.bf16.msra.mxu0 0
    %2304 = vmatprep.mubr.bf16.mxu0 0
    %2305 = vmatmul.mubr.bf16.gmra.mrb[0].mxu0 %v2065
    %v2306 = vpop.f32.mrb[0].mxu0
    %v2307 = vadd.f32 0.0, %v2306
    %v2308 = vpop.f32.mrb[0].mxu0
    %v2309 = vadd.f32 0.0, %v2308
    %v2310 = vpop.f32.mrb[0].mxu0
    %v2311 = vpop.f32.mrb[0].mxu0
    %2312 = vdwg.mxu0
    %2313 = vmatprep.subr.bf16.mxu0 %v1933
    %2314 = vmatpush1.bf16.msra.mxu0 %v1932
    %2315 = vmatprep.subr.bf16.mxu0 %v1951
    %2316 = vmatpush1.bf16.msra.mxu0 %v1950
    %2317 = vmatprep.subr.bf16.mxu0 %v1969
    %2318 = vmatpush1.bf16.msra.mxu0 %v1968
    %2319 = vmatprep.subr.bf16.mxu0 %v1987
    %2320 = vmatpush1.bf16.msra.mxu0 %v1986
    %2321 = vmatprep.subr.bf16.mxu0 0
    %2322 = vmatpush1.bf16.msra.mxu0 0
    %2323 = vmatprep.subr.bf16.mxu0 0
    %2324 = vmatpush1.bf16.msra.mxu0 0
    %2325 = vmatprep.subr.bf16.mxu0 0
    %2326 = vmatpush1.bf16.msra.mxu0 0
    %2327 = vmatprep.subr.bf16.mxu0 0
    %2328 = vmatpush1.bf16.msra.mxu0 0
    %2329 = vmatprep.subr.bf16.mxu0 0
    %2330 = vmatpush1.bf16.msra.mxu0 0
    %2331 = vmatprep.subr.bf16.mxu0 0
    %2332 = vmatpush1.bf16.msra.mxu0 0
    %2333 = vmatprep.subr.bf16.mxu0 0
    %2334 = vmatpush1.bf16.msra.mxu0 0
    %2335 = vmatprep.subr.bf16.mxu0 0
    %2336 = vmatpush1.bf16.msra.mxu0 0
    %2337 = vmatprep.subr.bf16.mxu0 0
    %2338 = vmatpush1.bf16.msra.mxu0 0
    %2339 = vmatprep.subr.bf16.mxu0 0
    %2340 = vmatpush1.bf16.msra.mxu0 0
    %2341 = vmatprep.subr.bf16.mxu0 0
    %2342 = vmatpush1.bf16.msra.mxu0 0
    %2343 = vmatprep.subr.bf16.mxu0 0
    %2344 = vmatpush1.bf16.msra.mxu0 0
    %2345 = vmatprep.mubr.bf16.mxu0 0
    %2346 = vmatmul.mubr.bf16.gmra.mrb[0].mxu0 %v2065
    %v2347 = vpop.f32.mrb[0].mxu0
    %v2348 = vadd.f32 0.0, %v2347
    %v2349 = vpop.f32.mrb[0].mxu0
    %v2350 = vadd.f32 0.0, %v2349
    %v2351 = vpop.f32.mrb[0].mxu0
    %v2352 = vpop.f32.mrb[0].mxu0
    %2353 = vdwg.mxu0
    %2354 = vmatprep.subr.bf16.mxu0 %v1935
    %2355 = vmatpush1.bf16.msra.mxu0 %v1934
    %2356 = vmatprep.subr.bf16.mxu0 %v1953
    %2357 = vmatpush1.bf16.msra.mxu0 %v1952
    %2358 = vmatprep.subr.bf16.mxu0 %v1971
    %2359 = vmatpush1.bf16.msra.mxu0 %v1970
    %2360 = vmatprep.subr.bf16.mxu0 %v1989
    %2361 = vmatpush1.bf16.msra.mxu0 %v1988
    %2362 = vmatprep.subr.bf16.mxu0 0
    %2363 = vmatpush1.bf16.msra.mxu0 0
    %2364 = vmatprep.subr.bf16.mxu0 0
    %2365 = vmatpush1.bf16.msra.mxu0 0
    %2366 = vmatprep.subr.bf16.mxu0 0
    %2367 = vmatpush1.bf16.msra.mxu0 0
    %2368 = vmatprep.subr.bf16.mxu0 0
    %2369 = vmatpush1.bf16.msra.mxu0 0
    %2370 = vmatprep.subr.bf16.mxu0 0
    %2371 = vmatpush1.bf16.msra.mxu0 0
    %2372 = vmatprep.subr.bf16.mxu0 0
    %2373 = vmatpush1.bf16.msra.mxu0 0
    %2374 = vmatprep.subr.bf16.mxu0 0
    %2375 = vmatpush1.bf16.msra.mxu0 0
    %2376 = vmatprep.subr.bf16.mxu0 0
    %2377 = vmatpush1.bf16.msra.mxu0 0
    %2378 = vmatprep.subr.bf16.mxu0 0
    %2379 = vmatpush1.bf16.msra.mxu0 0
    %2380 = vmatprep.subr.bf16.mxu0 0
    %2381 = vmatpush1.bf16.msra.mxu0 0
    %2382 = vmatprep.subr.bf16.mxu0 0
    %2383 = vmatpush1.bf16.msra.mxu0 0
    %2384 = vmatprep.subr.bf16.mxu0 0
    %2385 = vmatpush1.bf16.msra.mxu0 0
    %2386 = vmatprep.mubr.bf16.mxu0 0
    %2387 = vmatmul.mubr.bf16.gmra.mrb[0].mxu0 %v2065
    %v2388 = vpop.f32.mrb[0].mxu0
    %v2389 = vadd.f32 0.0, %v2388
    %v2390 = vpop.f32.mrb[0].mxu0
    %v2391 = vadd.f32 0.0, %v2390
    %v2392 = vpop.f32.mrb[0].mxu0
    %v2393 = vpop.f32.mrb[0].mxu0
    %2394 = vdwg.mxu0
    %2395 = vmatprep.subr.bf16.mxu0 %v1937
    %2396 = vmatpush1.bf16.msra.mxu0 %v1936
    %2397 = vmatprep.subr.bf16.mxu0 %v1955
    %2398 = vmatpush1.bf16.msra.mxu0 %v1954
    %2399 = vmatprep.subr.bf16.mxu0 %v1973
    %2400 = vmatpush1.bf16.msra.mxu0 %v1972
    %2401 = vmatprep.subr.bf16.mxu0 %v1991
    %2402 = vmatpush1.bf16.msra.mxu0 %v1990
    %2403 = vmatprep.subr.bf16.mxu0 0
    %2404 = vmatpush1.bf16.msra.mxu0 0
    %2405 = vmatprep.subr.bf16.mxu0 0
    %2406 = vmatpush1.bf16.msra.mxu0 0
    %2407 = vmatprep.subr.bf16.mxu0 0
    %2408 = vmatpush1.bf16.msra.mxu0 0
    %2409 = vmatprep.subr.bf16.mxu0 0
    %2410 = vmatpush1.bf16.msra.mxu0 0
    %2411 = vmatprep.subr.bf16.mxu0 0
    %2412 = vmatpush1.bf16.msra.mxu0 0
    %2413 = vmatprep.subr.bf16.mxu0 0
    %2414 = vmatpush1.bf16.msra.mxu0 0
    %2415 = vmatprep.subr.bf16.mxu0 0
    %2416 = vmatpush1.bf16.msra.mxu0 0
    %2417 = vmatprep.subr.bf16.mxu0 0
    %2418 = vmatpush1.bf16.msra.mxu0 0
    %2419 = vmatprep.subr.bf16.mxu0 0
    %2420 = vmatpush1.bf16.msra.mxu0 0
    %2421 = vmatprep.subr.bf16.mxu0 0
    %2422 = vmatpush1.bf16.msra.mxu0 0
    %2423 = vmatprep.subr.bf16.mxu0 0
    %2424 = vmatpush1.bf16.msra.mxu0 0
    %2425 = vmatprep.subr.bf16.mxu0 0
    %2426 = vmatpush1.bf16.msra.mxu0 0
    %2427 = vmatprep.mubr.bf16.mxu0 0
    %2428 = vmatmul.mubr.bf16.gmra.mrb[0].mxu0 %v2065
    %v2429 = vpop.f32.mrb[0].mxu0
    %v2430 = vadd.f32 0.0, %v2429
    %v2431 = vpop.f32.mrb[0].mxu0
    %v2432 = vadd.f32 0.0, %v2431
    %v2433 = vpop.f32.mrb[0].mxu0
    %v2434 = vpop.f32.mrb[0].mxu0
    %2435 = vdwg.mxu0
    %v2436 = vmax.f32 %v2102, %v2225
    %v2437 = vmax.f32 %v2104, %v2227
    %v2438 = vmax.f32 %v2143, %v2266
    %v2439 = vmax.f32 %v2145, %v2268
    %v2440 = vmax.f32 %v2184, %v2307
    %v2441 = vmax.f32 %v2186, %v2309
    %v2442 = vmax.f32 %v2436, %v2348
    %v2443 = vmax.f32 %v2437, %v2350
    %v2444 = vmax.f32 %v2438, %v2389
    %v2445 = vmax.f32 %v2439, %v2391
    %v2446 = vmax.f32 %v2440, %v2430
    %v2447 = vmax.f32 %v2441, %v2432
    %v2448 = vld [vmem:[#allocation18] sm:$0x3f]
    %v2450 = vlaneseq
    %v2451 = vshrl.u32 %v2450, 7
    %v2452 = vsub.s32 0, %v2451
    %v2453 = vrot.slane %v2448, %v2452
    %v2454 = vlaneseq
    %v2455 = vshrl.u32 %v2454, 7
    %v2456 = vsub.s32 1, %v2455
    %v2457 = vrot.slane %v2448, %v2456
    %v2458 = vlaneseq
    %v2459 = vshrl.u32 %v2458, 7
    %v2460 = vsub.s32 2, %v2459
    %v2461 = vrot.slane %v2448, %v2460
    %v2462 = vlaneseq
    %v2463 = vshrl.u32 %v2462, 7
    %v2464 = vsub.s32 3, %v2463
    %v2465 = vrot.slane %v2448, %v2464
    %v2466 = vlaneseq
    %v2467 = vshrl.u32 %v2466, 7
    %v2468 = vsub.s32 4, %v2467
    %v2469 = vrot.slane %v2448, %v2468
    %v2470 = vlaneseq
    %v2471 = vshrl.u32 %v2470, 7
    %v2472 = vsub.s32 5, %v2471
    %v2473 = vrot.slane %v2448, %v2472
    %v2480 = vadd.f32 %v2442, %v2453
    %v2481 = vadd.f32 %v2443, %v2457
    %v2482 = vadd.f32 %v2444, %v2461
    %v2483 = vadd.f32 %v2445, %v2465
    %v2484 = vadd.f32 %v2446, %v2469
    %v2485 = vadd.f32 %v2447, %v2473
    %v2486 = vmax.f32 %v2480, 0.0
    %v2487 = vmax.f32 %v2481, 0.0
    %v2488 = vmax.f32 %v2482, 0.0
    %v2489 = vmax.f32 %v2483, 0.0
    %v2490 = vmax.f32 %v2484, 0.0
    %v2491 = vmax.f32 %v2485, 0.0
    %v2492 = vpack.c.bf16 %v2486, %v2486
    %v2493 = vpack.c.bf16 %v2487, %v2487
    %v2494 = vpack.c.bf16 %v2488, %v2488
    %v2495 = vpack.c.bf16 %v2489, %v2489
    %v2496 = vpack.c.bf16 %v2490, %v2490
    %v2497 = vpack.c.bf16 %v2491, %v2491
    %v2498 = vld [vmem:[#allocation19] sm:$0xff]
    %v2499 = vld [vmem:[#allocation19 + $0x8] sm:$0xff]
    %v2500 = vld [vmem:[#allocation19 + $0x10] sm:$0xff]
    %v2501 = vld [vmem:[#allocation19 + $0x18] sm:$0xff]
    %v2502 = vld [vmem:[#allocation19 + $0x20] sm:$0xff]
    %v2503 = vld [vmem:[#allocation19 + $0x28] sm:$0xff]
    %v2504 = vld [vmem:[#allocation19 + $0x30] sm:$0xff]
    %v2505 = vld [vmem:[#allocation19 + $0x38] sm:$0xff]
    %v2506 = vld [vmem:[#allocation19 + $0x40] sm:$0xff]
    %v2507 = vld [vmem:[#allocation19 + $0x48] sm:$0xff]
    %v2508 = vld [vmem:[#allocation19 + $0x50] sm:$0xff]
    %v2509 = vld [vmem:[#allocation19 + $0x58] sm:$0xff]
    %v2510 = vld [vmem:[#allocation19 + $0x60] sm:$0xff]
    %v2511 = vld [vmem:[#allocation19 + $0x68] sm:$0xff]
    %v2512 = vld [vmem:[#allocation19 + $0x70] sm:$0xff]
    %v2513 = vld [vmem:[#allocation19 + $0x78] sm:$0xff]
    %v2514 = vld [vmem:[#allocation19 + $0x80] sm:$0xff]
    %v2515 = vld [vmem:[#allocation19 + $0x88] sm:$0xff]
    %v2516 = vld [vmem:[#allocation19 + $0x90] sm:$0xff]
    %v2517 = vld [vmem:[#allocation19 + $0x98] sm:$0xff]
    %v2518 = vld [vmem:[#allocation19 + $0xa0] sm:$0xff]
    %v2519 = vld [vmem:[#allocation19 + $0xa8] sm:$0xff]
    %v2520 = vld [vmem:[#allocation19 + $0xb0] sm:$0xff]
    %v2521 = vld [vmem:[#allocation19 + $0xb8] sm:$0xff]
    %v2522 = vld [vmem:[#allocation19 + $0xc0] sm:$0xff]
    %v2523 = vld [vmem:[#allocation19 + $0xc8] sm:$0xff]
    %v2524 = vld [vmem:[#allocation19 + $0xd0] sm:$0xff]
    %v2525 = vld [vmem:[#allocation19 + $0xd8] sm:$0xff]
    %v2526 = vld [vmem:[#allocation19 + $0xe0] sm:$0xff]
    %v2527 = vld [vmem:[#allocation19 + $0xe8] sm:$0xff]
    %v2528 = vld [vmem:[#allocation19 + $0xf0] sm:$0xff]
    %v2529 = vld [vmem:[#allocation19 + $0xf8] sm:$0xff]
    %v2530 = vld [vmem:[#allocation19 + $0x100] sm:$0xff]
    %v2531 = vld [vmem:[#allocation19 + $0x108] sm:$0xff]
    %v2532 = vld [vmem:[#allocation19 + $0x110] sm:$0xff]
    %v2533 = vld [vmem:[#allocation19 + $0x118] sm:$0xff]
    %v2534 = vld [vmem:[#allocation19 + $0x120] sm:$0xff]
    %v2535 = vld [vmem:[#allocation19 + $0x128] sm:$0xff]
    %v2536 = vld [vmem:[#allocation19 + $0x130] sm:$0xff]
    %v2537 = vld [vmem:[#allocation19 + $0x138] sm:$0xff]
    %v2538 = vld [vmem:[#allocation19 + $0x140] sm:$0xff]
    %v2539 = vld [vmem:[#allocation19 + $0x148] sm:$0xff]
    %v2540 = vld [vmem:[#allocation19 + $0x150] sm:$0xff]
    %v2541 = vld [vmem:[#allocation19 + $0x158] sm:$0xff]
    %v2542 = vld [vmem:[#allocation19 + $0x160] sm:$0xff]
    %v2543 = vld [vmem:[#allocation19 + $0x168] sm:$0xff]
    %v2544 = vld [vmem:[#allocation19 + $0x170] sm:$0xff]
    %v2545 = vld [vmem:[#allocation19 + $0x178] sm:$0xff]
    %v2546 = vld [vmem:[#allocation19 + $0x180] sm:$0xff]
    %v2547 = vld [vmem:[#allocation19 + $0x188] sm:$0xff]
    %v2548 = vld [vmem:[#allocation19 + $0x190] sm:$0xff]
    %v2549 = vld [vmem:[#allocation19 + $0x198] sm:$0xff]
    %v2550 = vld [vmem:[#allocation19 + $0x1a0] sm:$0xff]
    %v2551 = vld [vmem:[#allocation19 + $0x1a8] sm:$0xff]
    %v2552 = vld [vmem:[#allocation19 + $0x1b0] sm:$0xff]
    %v2553 = vld [vmem:[#allocation19 + $0x1b8] sm:$0xff]
    %v2554 = vld [vmem:[#allocation19 + $0x1c0] sm:$0xff]
    %v2555 = vld [vmem:[#allocation19 + $0x1c8] sm:$0xff]
    %v2556 = vld [vmem:[#allocation19 + $0x1d0] sm:$0xff]
    %v2557 = vld [vmem:[#allocation19 + $0x1d8] sm:$0xff]
    %v2558 = vld [vmem:[#allocation19 + $0x1e0] sm:$0xff]
    %v2559 = vld [vmem:[#allocation19 + $0x1e8] sm:$0xff]
    %v2560 = vld [vmem:[#allocation19 + $0x1f0] sm:$0xff]
    %v2561 = vld [vmem:[#allocation19 + $0x1f8] sm:$0xff]
    %v2562 = vld [vmem:[#allocation19 + $0x200] sm:$0xff]
    %v2563 = vld [vmem:[#allocation19 + $0x208] sm:$0xff]
    %v2564 = vld [vmem:[#allocation19 + $0x210] sm:$0xff]
    %v2565 = vld [vmem:[#allocation19 + $0x218] sm:$0xff]
    %v2566 = vld [vmem:[#allocation19 + $0x220] sm:$0xff]
    %v2567 = vld [vmem:[#allocation19 + $0x228] sm:$0xff]
    %v2568 = vld [vmem:[#allocation19 + $0x230] sm:$0xff]
    %v2569 = vld [vmem:[#allocation19 + $0x238] sm:$0xff]
    %v2570 = vld [vmem:[#allocation19 + $0x240] sm:$0xff]
    %v2571 = vld [vmem:[#allocation19 + $0x248] sm:$0xff]
    %v2572 = vld [vmem:[#allocation19 + $0x250] sm:$0xff]
    %v2573 = vld [vmem:[#allocation19 + $0x258] sm:$0xff]
    %v2574 = vld [vmem:[#allocation19 + $0x260] sm:$0xff]
    %v2575 = vld [vmem:[#allocation19 + $0x268] sm:$0xff]
    %v2576 = vld [vmem:[#allocation19 + $0x270] sm:$0xff]
    %v2577 = vld [vmem:[#allocation19 + $0x278] sm:$0xff]
    %v2578 = vld [vmem:[#allocation19 + $0x280] sm:$0xff]
    %v2579 = vld [vmem:[#allocation19 + $0x288] sm:$0xff]
    %v2580 = vld [vmem:[#allocation19 + $0x290] sm:$0xff]
    %v2581 = vld [vmem:[#allocation19 + $0x298] sm:$0xff]
    %v2582 = vld [vmem:[#allocation19 + $0x2a0] sm:$0xff]
    %v2583 = vld [vmem:[#allocation19 + $0x2a8] sm:$0xff]
    %v2584 = vld [vmem:[#allocation19 + $0x2b0] sm:$0xff]
    %v2585 = vld [vmem:[#allocation19 + $0x2b8] sm:$0xff]
    %v2586 = vld [vmem:[#allocation19 + $0x2c0] sm:$0xff]
    %v2587 = vld [vmem:[#allocation19 + $0x2c8] sm:$0xff]
    %v2588 = vld [vmem:[#allocation19 + $0x2d0] sm:$0xff]
    %v2589 = vld [vmem:[#allocation19 + $0x2d8] sm:$0xff]
    %v2590 = vld [vmem:[#allocation19 + $0x2e0] sm:$0xff]
    %v2591 = vld [vmem:[#allocation19 + $0x2e8] sm:$0xff]
    %v2592 = vld [vmem:[#allocation19 + $0x2f0] sm:$0xff]
    %v2593 = vld [vmem:[#allocation19 + $0x2f8] sm:$0xff]
    %v2594 = vld [vmem:[#allocation19 + $0x300] sm:$0xff]
    %v2595 = vld [vmem:[#allocation19 + $0x308] sm:$0xff]
    %v2596 = vld [vmem:[#allocation19 + $0x310] sm:$0xff]
    %v2597 = vld [vmem:[#allocation19 + $0x318] sm:$0xff]
    %v2598 = vld [vmem:[#allocation19 + $0x320] sm:$0xff]
    %v2599 = vld [vmem:[#allocation19 + $0x328] sm:$0xff]
    %v2600 = vld [vmem:[#allocation19 + $0x330] sm:$0xff]
    %v2601 = vld [vmem:[#allocation19 + $0x338] sm:$0xff]
    %v2602 = vld [vmem:[#allocation19 + $0x340] sm:$0xff]
    %v2603 = vld [vmem:[#allocation19 + $0x348] sm:$0xff]
    %v2604 = vld [vmem:[#allocation19 + $0x350] sm:$0xff]
    %v2605 = vld [vmem:[#allocation19 + $0x358] sm:$0xff]
    %v2606 = vld [vmem:[#allocation19 + $0x360] sm:$0xff]
    %v2607 = vld [vmem:[#allocation19 + $0x368] sm:$0xff]
    %v2608 = vld [vmem:[#allocation19 + $0x370] sm:$0xff]
    %v2609 = vld [vmem:[#allocation19 + $0x378] sm:$0xff]
    %v2610 = vld [vmem:[#allocation19 + $0x380] sm:$0xff]
    %v2611 = vld [vmem:[#allocation19 + $0x388] sm:$0xff]
    %v2612 = vld [vmem:[#allocation19 + $0x390] sm:$0xff]
    %v2613 = vld [vmem:[#allocation19 + $0x398] sm:$0xff]
    %v2614 = vld [vmem:[#allocation19 + $0x3a0] sm:$0xff]
    %v2615 = vld [vmem:[#allocation19 + $0x3a8] sm:$0xff]
    %v2616 = vld [vmem:[#allocation19 + $0x3b0] sm:$0xff]
    %v2617 = vld [vmem:[#allocation19 + $0x3b8] sm:$0xff]
    %v2618 = vld [vmem:[#allocation19 + $0x3c0] sm:$0xff]
    %v2619 = vld [vmem:[#allocation19 + $0x3c8] sm:$0xff]
    %v2620 = vld [vmem:[#allocation19 + $0x3d0] sm:$0xff]
    %v2621 = vld [vmem:[#allocation19 + $0x3d8] sm:$0xff]
    %v2622 = vld [vmem:[#allocation19 + $0x3e0] sm:$0xff]
    %v2623 = vld [vmem:[#allocation19 + $0x3e8] sm:$0xff]
    %v2624 = vld [vmem:[#allocation19 + $0x3f0] sm:$0xff]
    %v2625 = vld [vmem:[#allocation19 + $0x3f8] sm:$0xff]
    %v2626 = vld [vmem:[#allocation19 + $0x400] sm:$0xff]
    %v2627 = vld [vmem:[#allocation19 + $0x408] sm:$0xff]
    %v2628 = vld [vmem:[#allocation19 + $0x410] sm:$0xff]
    %v2629 = vld [vmem:[#allocation19 + $0x418] sm:$0xff]
    %v2630 = vld [vmem:[#allocation19 + $0x420] sm:$0xff]
    %v2631 = vld [vmem:[#allocation19 + $0x428] sm:$0xff]
    %v2632 = vld [vmem:[#allocation19 + $0x430] sm:$0xff]
    %v2633 = vld [vmem:[#allocation19 + $0x438] sm:$0xff]
    %v2634 = vld [vmem:[#allocation19 + $0x440] sm:$0xff]
    %v2635 = vld [vmem:[#allocation19 + $0x448] sm:$0xff]
    %v2636 = vld [vmem:[#allocation19 + $0x450] sm:$0xff]
    %v2637 = vld [vmem:[#allocation19 + $0x458] sm:$0xff]
    %v2638 = vld [vmem:[#allocation19 + $0x460] sm:$0xff]
    %v2639 = vld [vmem:[#allocation19 + $0x468] sm:$0xff]
    %v2640 = vld [vmem:[#allocation19 + $0x470] sm:$0xff]
    %v2641 = vld [vmem:[#allocation19 + $0x478] sm:$0xff]
    %v2642 = vld [vmem:[#allocation19 + $0x480] sm:$0xff]
    %v2643 = vld [vmem:[#allocation19 + $0x488] sm:$0xff]
    %v2644 = vld [vmem:[#allocation19 + $0x490] sm:$0xff]
    %v2645 = vld [vmem:[#allocation19 + $0x498] sm:$0xff]
    %v2646 = vld [vmem:[#allocation19 + $0x4a0] sm:$0xff]
    %v2647 = vld [vmem:[#allocation19 + $0x4a8] sm:$0xff]
    %v2648 = vld [vmem:[#allocation19 + $0x4b0] sm:$0xff]
    %v2649 = vld [vmem:[#allocation19 + $0x4b8] sm:$0xff]
    %v2650 = vld [vmem:[#allocation19 + $0x4c0] sm:$0xff]
    %v2651 = vld [vmem:[#allocation19 + $0x4c8] sm:$0xff]
    %v2652 = vld [vmem:[#allocation19 + $0x4d0] sm:$0xff]
    %v2653 = vld [vmem:[#allocation19 + $0x4d8] sm:$0xff]
    %v2654 = vld [vmem:[#allocation19 + $0x4e0] sm:$0xff]
    %v2655 = vld [vmem:[#allocation19 + $0x4e8] sm:$0xff]
    %v2656 = vld [vmem:[#allocation19 + $0x4f0] sm:$0xff]
    %v2657 = vld [vmem:[#allocation19 + $0x4f8] sm:$0xff]
    %v2658 = vld [vmem:[#allocation19 + $0x500] sm:$0xff]
    %v2659 = vld [vmem:[#allocation19 + $0x508] sm:$0xff]
    %v2660 = vld [vmem:[#allocation19 + $0x510] sm:$0xff]
    %v2661 = vld [vmem:[#allocation19 + $0x518] sm:$0xff]
    %v2662 = vld [vmem:[#allocation19 + $0x520] sm:$0xff]
    %v2663 = vld [vmem:[#allocation19 + $0x528] sm:$0xff]
    %v2664 = vld [vmem:[#allocation19 + $0x530] sm:$0xff]
    %v2665 = vld [vmem:[#allocation19 + $0x538] sm:$0xff]
    %v2666 = vld [vmem:[#allocation19 + $0x540] sm:$0xff]
    %v2667 = vld [vmem:[#allocation19 + $0x548] sm:$0xff]
    %v2668 = vld [vmem:[#allocation19 + $0x550] sm:$0xff]
    %v2669 = vld [vmem:[#allocation19 + $0x558] sm:$0xff]
    %v2670 = vld [vmem:[#allocation19 + $0x560] sm:$0xff]
    %v2671 = vld [vmem:[#allocation19 + $0x568] sm:$0xff]
    %v2672 = vld [vmem:[#allocation19 + $0x570] sm:$0xff]
    %v2673 = vld [vmem:[#allocation19 + $0x578] sm:$0xff]
    %v2674 = vld [vmem:[#allocation19 + $0x580] sm:$0xff]
    %v2675 = vld [vmem:[#allocation19 + $0x588] sm:$0xff]
    %v2676 = vld [vmem:[#allocation19 + $0x590] sm:$0xff]
    %v2677 = vld [vmem:[#allocation19 + $0x598] sm:$0xff]
    %v2678 = vld [vmem:[#allocation19 + $0x5a0] sm:$0xff]
    %v2679 = vld [vmem:[#allocation19 + $0x5a8] sm:$0xff]
    %v2680 = vld [vmem:[#allocation19 + $0x5b0] sm:$0xff]
    %v2681 = vld [vmem:[#allocation19 + $0x5b8] sm:$0xff]
    %v2682 = vld [vmem:[#allocation19 + $0x5c0] sm:$0xff]
    %v2683 = vld [vmem:[#allocation19 + $0x5c8] sm:$0xff]
    %v2684 = vld [vmem:[#allocation19 + $0x5d0] sm:$0xff]
    %v2685 = vld [vmem:[#allocation19 + $0x5d8] sm:$0xff]
    %v2686 = vld [vmem:[#allocation19 + $0x5e0] sm:$0xff]
    %v2687 = vld [vmem:[#allocation19 + $0x5e8] sm:$0xff]
    %v2688 = vld [vmem:[#allocation19 + $0x5f0] sm:$0xff]
    %v2689 = vld [vmem:[#allocation19 + $0x5f8] sm:$0xff]
    %v2690 = vld [vmem:[#allocation19 + $0x600] sm:$0xff]
    %v2691 = vld [vmem:[#allocation19 + $0x608] sm:$0xff]
    %v2692 = vld [vmem:[#allocation19 + $0x610] sm:$0xff]
    %v2693 = vld [vmem:[#allocation19 + $0x618] sm:$0xff]
    %v2694 = vld [vmem:[#allocation19 + $0x620] sm:$0xff]
    %v2695 = vld [vmem:[#allocation19 + $0x628] sm:$0xff]
    %v2696 = vld [vmem:[#allocation19 + $0x630] sm:$0xff]
    %v2697 = vld [vmem:[#allocation19 + $0x638] sm:$0xff]
    %v2698 = vld [vmem:[#allocation19 + $0x640] sm:$0xff]
    %v2699 = vld [vmem:[#allocation19 + $0x648] sm:$0xff]
    %v2700 = vld [vmem:[#allocation19 + $0x650] sm:$0xff]
    %v2701 = vld [vmem:[#allocation19 + $0x658] sm:$0xff]
    %v2702 = vld [vmem:[#allocation19 + $0x660] sm:$0xff]
    %v2703 = vld [vmem:[#allocation19 + $0x668] sm:$0xff]
    %v2704 = vld [vmem:[#allocation19 + $0x670] sm:$0xff]
    %v2705 = vld [vmem:[#allocation19 + $0x678] sm:$0xff]
    %v2706 = vld [vmem:[#allocation19 + $0x680] sm:$0xff]
    %v2707 = vld [vmem:[#allocation19 + $0x688] sm:$0xff]
    %v2708 = vld [vmem:[#allocation19 + $0x690] sm:$0xff]
    %v2709 = vld [vmem:[#allocation19 + $0x698] sm:$0xff]
    %v2710 = vld [vmem:[#allocation19 + $0x6a0] sm:$0xff]
    %v2711 = vld [vmem:[#allocation19 + $0x6a8] sm:$0xff]
    %v2712 = vld [vmem:[#allocation19 + $0x6b0] sm:$0xff]
    %v2713 = vld [vmem:[#allocation19 + $0x6b8] sm:$0xff]
    %v2714 = vld [vmem:[#allocation19 + $0x6c0] sm:$0xff]
    %v2715 = vld [vmem:[#allocation19 + $0x6c8] sm:$0xff]
    %v2716 = vld [vmem:[#allocation19 + $0x6d0] sm:$0xff]
    %v2717 = vld [vmem:[#allocation19 + $0x6d8] sm:$0xff]
    %v2718 = vld [vmem:[#allocation19 + $0x6e0] sm:$0xff]
    %v2719 = vld [vmem:[#allocation19 + $0x6e8] sm:$0xff]
    %v2720 = vld [vmem:[#allocation19 + $0x6f0] sm:$0xff]
    %v2721 = vld [vmem:[#allocation19 + $0x6f8] sm:$0xff]
    %v2722 = vld [vmem:[#allocation19 + $0x700] sm:$0xff]
    %v2723 = vld [vmem:[#allocation19 + $0x708] sm:$0xff]
    %v2724 = vld [vmem:[#allocation19 + $0x710] sm:$0xff]
    %v2725 = vld [vmem:[#allocation19 + $0x718] sm:$0xff]
    %v2726 = vld [vmem:[#allocation19 + $0x720] sm:$0xff]
    %v2727 = vld [vmem:[#allocation19 + $0x728] sm:$0xff]
    %v2728 = vld [vmem:[#allocation19 + $0x730] sm:$0xff]
    %v2729 = vld [vmem:[#allocation19 + $0x738] sm:$0xff]
    %v2730 = vld [vmem:[#allocation19 + $0x740] sm:$0xff]
    %v2731 = vld [vmem:[#allocation19 + $0x748] sm:$0xff]
    %v2732 = vld [vmem:[#allocation19 + $0x750] sm:$0xff]
    %v2733 = vld [vmem:[#allocation19 + $0x758] sm:$0xff]
    %v2734 = vld [vmem:[#allocation19 + $0x760] sm:$0xff]
    %v2735 = vld [vmem:[#allocation19 + $0x768] sm:$0xff]
    %v2736 = vld [vmem:[#allocation19 + $0x770] sm:$0xff]
    %v2737 = vld [vmem:[#allocation19 + $0x778] sm:$0xff]
    %v2738 = vld [vmem:[#allocation19 + $0x780] sm:$0xff]
    %v2739 = vld [vmem:[#allocation19 + $0x788] sm:$0xff]
    %v2740 = vld [vmem:[#allocation19 + $0x790] sm:$0xff]
    %v2741 = vld [vmem:[#allocation19 + $0x798] sm:$0xff]
    %v2742 = vld [vmem:[#allocation19 + $0x7a0] sm:$0xff]
    %v2743 = vld [vmem:[#allocation19 + $0x7a8] sm:$0xff]
    %v2744 = vld [vmem:[#allocation19 + $0x7b0] sm:$0xff]
    %v2745 = vld [vmem:[#allocation19 + $0x7b8] sm:$0xff]
    %v2746 = vld [vmem:[#allocation19 + $0x7c0] sm:$0xff]
    %v2747 = vld [vmem:[#allocation19 + $0x7c8] sm:$0xff]
    %v2748 = vld [vmem:[#allocation19 + $0x7d0] sm:$0xff]
    %v2749 = vld [vmem:[#allocation19 + $0x7d8] sm:$0xff]
    %v2750 = vld [vmem:[#allocation19 + $0x7e0] sm:$0xff]
    %v2751 = vld [vmem:[#allocation19 + $0x7e8] sm:$0xff]
    %v2752 = vld [vmem:[#allocation19 + $0x7f0] sm:$0xff]
    %v2753 = vld [vmem:[#allocation19 + $0x7f8] sm:$0xff]
    %v2754 = vld [vmem:[#allocation19 + $0x800] sm:$0xff]
    %v2755 = vld [vmem:[#allocation19 + $0x808] sm:$0xff]
    %v2756 = vld [vmem:[#allocation19 + $0x810] sm:$0xff]
    %v2757 = vld [vmem:[#allocation19 + $0x818] sm:$0xff]
    %v2758 = vld [vmem:[#allocation19 + $0x820] sm:$0xff]
    %v2759 = vld [vmem:[#allocation19 + $0x828] sm:$0xff]
    %v2760 = vld [vmem:[#allocation19 + $0x830] sm:$0xff]
    %v2761 = vld [vmem:[#allocation19 + $0x838] sm:$0xff]
    %v2762 = vld [vmem:[#allocation19 + $0x840] sm:$0xff]
    %v2763 = vld [vmem:[#allocation19 + $0x848] sm:$0xff]
    %v2764 = vld [vmem:[#allocation19 + $0x850] sm:$0xff]
    %v2765 = vld [vmem:[#allocation19 + $0x858] sm:$0xff]
    %v2766 = vld [vmem:[#allocation19 + $0x860] sm:$0xff]
    %v2767 = vld [vmem:[#allocation19 + $0x868] sm:$0xff]
    %v2768 = vld [vmem:[#allocation19 + $0x870] sm:$0xff]
    %v2769 = vld [vmem:[#allocation19 + $0x878] sm:$0xff]
    %v2770 = vld [vmem:[#allocation19 + $0x880] sm:$0xff]
    %v2771 = vld [vmem:[#allocation19 + $0x888] sm:$0xff]
    %v2772 = vld [vmem:[#allocation19 + $0x890] sm:$0xff]
    %v2773 = vld [vmem:[#allocation19 + $0x898] sm:$0xff]
    %v2774 = vld [vmem:[#allocation19 + $0x8a0] sm:$0xff]
    %v2775 = vld [vmem:[#allocation19 + $0x8a8] sm:$0xff]
    %v2776 = vld [vmem:[#allocation19 + $0x8b0] sm:$0xff]
    %v2777 = vld [vmem:[#allocation19 + $0x8b8] sm:$0xff]
    %v2778 = vld [vmem:[#allocation19 + $0x8c0] sm:$0xff]
    %v2779 = vld [vmem:[#allocation19 + $0x8c8] sm:$0xff]
    %v2780 = vld [vmem:[#allocation19 + $0x8d0] sm:$0xff]
    %v2781 = vld [vmem:[#allocation19 + $0x8d8] sm:$0xff]
    %v2782 = vld [vmem:[#allocation19 + $0x8e0] sm:$0xff]
    %v2783 = vld [vmem:[#allocation19 + $0x8e8] sm:$0xff]
    %v2784 = vld [vmem:[#allocation19 + $0x8f0] sm:$0xff]
    %v2785 = vld [vmem:[#allocation19 + $0x8f8] sm:$0xff]
    %v3074 = vunpack.c.l.b16 %v2498
    %v3075 = vunpack.c.h.b16 %v2498
    %v3076 = vunpack.c.l.b16 %v2499
    %v3077 = vunpack.c.h.b16 %v2499
    %v3078 = vunpack.c.l.b16 %v2500
    %v3079 = vunpack.c.h.b16 %v2500
    %v3080 = vunpack.c.l.b16 %v2501
    %v3081 = vunpack.c.h.b16 %v2501
    %v3082 = vunpack.c.l.b16 %v2502
    %v3083 = vunpack.c.h.b16 %v2502
    %v3084 = vunpack.c.l.b16 %v2503
    %v3085 = vunpack.c.h.b16 %v2503
    %v3086 = vunpack.c.l.b16 %v2504
    %v3087 = vunpack.c.h.b16 %v2504
    %v3088 = vunpack.c.l.b16 %v2505
    %v3089 = vunpack.c.h.b16 %v2505
    %v3090 = vunpack.c.l.b16 %v2506
    %v3091 = vunpack.c.h.b16 %v2506
    %v3092 = vunpack.c.l.b16 %v2507
    %v3093 = vunpack.c.h.b16 %v2507
    %v3094 = vunpack.c.l.b16 %v2508
    %v3095 = vunpack.c.h.b16 %v2508
    %v3096 = vunpack.c.l.b16 %v2509
    %v3097 = vunpack.c.h.b16 %v2509
    %v3098 = vunpack.c.l.b16 %v2510
    %v3099 = vunpack.c.h.b16 %v2510
    %v3100 = vunpack.c.l.b16 %v2511
    %v3101 = vunpack.c.h.b16 %v2511
    %v3102 = vunpack.c.l.b16 %v2512
    %v3103 = vunpack.c.h.b16 %v2512
    %v3104 = vunpack.c.l.b16 %v2513
    %v3105 = vunpack.c.h.b16 %v2513
    %v3106 = vunpack.c.l.b16 %v2514
    %v3107 = vunpack.c.h.b16 %v2514
    %v3108 = vunpack.c.l.b16 %v2515
    %v3109 = vunpack.c.h.b16 %v2515
    %v3110 = vunpack.c.l.b16 %v2516
    %v3111 = vunpack.c.h.b16 %v2516
    %v3112 = vunpack.c.l.b16 %v2517
    %v3113 = vunpack.c.h.b16 %v2517
    %v3114 = vunpack.c.l.b16 %v2518
    %v3115 = vunpack.c.h.b16 %v2518
    %v3116 = vunpack.c.l.b16 %v2519
    %v3117 = vunpack.c.h.b16 %v2519
    %v3118 = vunpack.c.l.b16 %v2520
    %v3119 = vunpack.c.h.b16 %v2520
    %v3120 = vunpack.c.l.b16 %v2521
    %v3121 = vunpack.c.h.b16 %v2521
    %v3122 = vunpack.c.l.b16 %v2522
    %v3123 = vunpack.c.h.b16 %v2522
    %v3124 = vunpack.c.l.b16 %v2523
    %v3125 = vunpack.c.h.b16 %v2523
    %v3126 = vunpack.c.l.b16 %v2524
    %v3127 = vunpack.c.h.b16 %v2524
    %v3128 = vunpack.c.l.b16 %v2525
    %v3129 = vunpack.c.h.b16 %v2525
    %v3130 = vunpack.c.l.b16 %v2526
    %v3131 = vunpack.c.h.b16 %v2526
    %v3132 = vunpack.c.l.b16 %v2527
    %v3133 = vunpack.c.h.b16 %v2527
    %v3134 = vunpack.c.l.b16 %v2528
    %v3135 = vunpack.c.h.b16 %v2528
    %v3136 = vunpack.c.l.b16 %v2529
    %v3137 = vunpack.c.h.b16 %v2529
    %v3138 = vunpack.c.l.b16 %v2530
    %v3139 = vunpack.c.h.b16 %v2530
    %v3140 = vunpack.c.l.b16 %v2531
    %v3141 = vunpack.c.h.b16 %v2531
    %v3142 = vunpack.c.l.b16 %v2532
    %v3143 = vunpack.c.h.b16 %v2532
    %v3144 = vunpack.c.l.b16 %v2533
    %v3145 = vunpack.c.h.b16 %v2533
    %v3146 = vunpack.c.l.b16 %v2534
    %v3147 = vunpack.c.h.b16 %v2534
    %v3148 = vunpack.c.l.b16 %v2535
    %v3149 = vunpack.c.h.b16 %v2535
    %v3150 = vunpack.c.l.b16 %v2536
    %v3151 = vunpack.c.h.b16 %v2536
    %v3152 = vunpack.c.l.b16 %v2537
    %v3153 = vunpack.c.h.b16 %v2537
    %v3154 = vunpack.c.l.b16 %v2538
    %v3155 = vunpack.c.h.b16 %v2538
    %v3156 = vunpack.c.l.b16 %v2539
    %v3157 = vunpack.c.h.b16 %v2539
    %v3158 = vunpack.c.l.b16 %v2540
    %v3159 = vunpack.c.h.b16 %v2540
    %v3160 = vunpack.c.l.b16 %v2541
    %v3161 = vunpack.c.h.b16 %v2541
    %v3162 = vunpack.c.l.b16 %v2542
    %v3163 = vunpack.c.h.b16 %v2542
    %v3164 = vunpack.c.l.b16 %v2543
    %v3165 = vunpack.c.h.b16 %v2543
    %v3166 = vunpack.c.l.b16 %v2544
    %v3167 = vunpack.c.h.b16 %v2544
    %v3168 = vunpack.c.l.b16 %v2545
    %v3169 = vunpack.c.h.b16 %v2545
    %v3170 = vunpack.c.l.b16 %v2546
    %v3171 = vunpack.c.h.b16 %v2546
    %v3172 = vunpack.c.l.b16 %v2547
    %v3173 = vunpack.c.h.b16 %v2547
    %v3174 = vunpack.c.l.b16 %v2548
    %v3175 = vunpack.c.h.b16 %v2548
    %v3176 = vunpack.c.l.b16 %v2549
    %v3177 = vunpack.c.h.b16 %v2549
    %v3178 = vunpack.c.l.b16 %v2550
    %v3179 = vunpack.c.h.b16 %v2550
    %v3180 = vunpack.c.l.b16 %v2551
    %v3181 = vunpack.c.h.b16 %v2551
    %v3182 = vunpack.c.l.b16 %v2552
    %v3183 = vunpack.c.h.b16 %v2552
    %v3184 = vunpack.c.l.b16 %v2553
    %v3185 = vunpack.c.h.b16 %v2553
    %v3186 = vunpack.c.l.b16 %v2554
    %v3187 = vunpack.c.h.b16 %v2554
    %v3188 = vunpack.c.l.b16 %v2555
    %v3189 = vunpack.c.h.b16 %v2555
    %v3190 = vunpack.c.l.b16 %v2556
    %v3191 = vunpack.c.h.b16 %v2556
    %v3192 = vunpack.c.l.b16 %v2557
    %v3193 = vunpack.c.h.b16 %v2557
    %v3194 = vunpack.c.l.b16 %v2558
    %v3195 = vunpack.c.h.b16 %v2558
    %v3196 = vunpack.c.l.b16 %v2559
    %v3197 = vunpack.c.h.b16 %v2559
    %v3198 = vunpack.c.l.b16 %v2560
    %v3199 = vunpack.c.h.b16 %v2560
    %v3200 = vunpack.c.l.b16 %v2561
    %v3201 = vunpack.c.h.b16 %v2561
    %v3202 = vunpack.c.l.b16 %v2562
    %v3203 = vunpack.c.h.b16 %v2562
    %v3204 = vunpack.c.l.b16 %v2563
    %v3205 = vunpack.c.h.b16 %v2563
    %v3206 = vunpack.c.l.b16 %v2564
    %v3207 = vunpack.c.h.b16 %v2564
    %v3208 = vunpack.c.l.b16 %v2565
    %v3209 = vunpack.c.h.b16 %v2565
    %v3210 = vunpack.c.l.b16 %v2566
    %v3211 = vunpack.c.h.b16 %v2566
    %v3212 = vunpack.c.l.b16 %v2567
    %v3213 = vunpack.c.h.b16 %v2567
    %v3214 = vunpack.c.l.b16 %v2568
    %v3215 = vunpack.c.h.b16 %v2568
    %v3216 = vunpack.c.l.b16 %v2569
    %v3217 = vunpack.c.h.b16 %v2569
    %v3218 = vunpack.c.l.b16 %v2570
    %v3219 = vunpack.c.h.b16 %v2570
    %v3220 = vunpack.c.l.b16 %v2571
    %v3221 = vunpack.c.h.b16 %v2571
    %v3222 = vunpack.c.l.b16 %v2572
    %v3223 = vunpack.c.h.b16 %v2572
    %v3224 = vunpack.c.l.b16 %v2573
    %v3225 = vunpack.c.h.b16 %v2573
    %v3226 = vunpack.c.l.b16 %v2574
    %v3227 = vunpack.c.h.b16 %v2574
    %v3228 = vunpack.c.l.b16 %v2575
    %v3229 = vunpack.c.h.b16 %v2575
    %v3230 = vunpack.c.l.b16 %v2576
    %v3231 = vunpack.c.h.b16 %v2576
    %v3232 = vunpack.c.l.b16 %v2577
    %v3233 = vunpack.c.h.b16 %v2577
    %v3234 = vunpack.c.l.b16 %v2578
    %v3235 = vunpack.c.h.b16 %v2578
    %v3236 = vunpack.c.l.b16 %v2579
    %v3237 = vunpack.c.h.b16 %v2579
    %v3238 = vunpack.c.l.b16 %v2580
    %v3239 = vunpack.c.h.b16 %v2580
    %v3240 = vunpack.c.l.b16 %v2581
    %v3241 = vunpack.c.h.b16 %v2581
    %v3242 = vunpack.c.l.b16 %v2582
    %v3243 = vunpack.c.h.b16 %v2582
    %v3244 = vunpack.c.l.b16 %v2583
    %v3245 = vunpack.c.h.b16 %v2583
    %v3246 = vunpack.c.l.b16 %v2584
    %v3247 = vunpack.c.h.b16 %v2584
    %v3248 = vunpack.c.l.b16 %v2585
    %v3249 = vunpack.c.h.b16 %v2585
    %v3250 = vunpack.c.l.b16 %v2586
    %v3251 = vunpack.c.h.b16 %v2586
    %v3252 = vunpack.c.l.b16 %v2587
    %v3253 = vunpack.c.h.b16 %v2587
    %v3254 = vunpack.c.l.b16 %v2588
    %v3255 = vunpack.c.h.b16 %v2588
    %v3256 = vunpack.c.l.b16 %v2589
    %v3257 = vunpack.c.h.b16 %v2589
    %v3258 = vunpack.c.l.b16 %v2590
    %v3259 = vunpack.c.h.b16 %v2590
    %v3260 = vunpack.c.l.b16 %v2591
    %v3261 = vunpack.c.h.b16 %v2591
    %v3262 = vunpack.c.l.b16 %v2592
    %v3263 = vunpack.c.h.b16 %v2592
    %v3264 = vunpack.c.l.b16 %v2593
    %v3265 = vunpack.c.h.b16 %v2593
    %v3266 = vunpack.c.l.b16 %v2594
    %v3267 = vunpack.c.h.b16 %v2594
    %v3268 = vunpack.c.l.b16 %v2595
    %v3269 = vunpack.c.h.b16 %v2595
    %v3270 = vunpack.c.l.b16 %v2596
    %v3271 = vunpack.c.h.b16 %v2596
    %v3272 = vunpack.c.l.b16 %v2597
    %v3273 = vunpack.c.h.b16 %v2597
    %v3274 = vunpack.c.l.b16 %v2598
    %v3275 = vunpack.c.h.b16 %v2598
    %v3276 = vunpack.c.l.b16 %v2599
    %v3277 = vunpack.c.h.b16 %v2599
    %v3278 = vunpack.c.l.b16 %v2600
    %v3279 = vunpack.c.h.b16 %v2600
    %v3280 = vunpack.c.l.b16 %v2601
    %v3281 = vunpack.c.h.b16 %v2601
    %v3282 = vunpack.c.l.b16 %v2602
    %v3283 = vunpack.c.h.b16 %v2602
    %v3284 = vunpack.c.l.b16 %v2603
    %v3285 = vunpack.c.h.b16 %v2603
    %v3286 = vunpack.c.l.b16 %v2604
    %v3287 = vunpack.c.h.b16 %v2604
    %v3288 = vunpack.c.l.b16 %v2605
    %v3289 = vunpack.c.h.b16 %v2605
    %v3290 = vunpack.c.l.b16 %v2606
    %v3291 = vunpack.c.h.b16 %v2606
    %v3292 = vunpack.c.l.b16 %v2607
    %v3293 = vunpack.c.h.b16 %v2607
    %v3294 = vunpack.c.l.b16 %v2608
    %v3295 = vunpack.c.h.b16 %v2608
    %v3296 = vunpack.c.l.b16 %v2609
    %v3297 = vunpack.c.h.b16 %v2609
    %v3298 = vunpack.c.l.b16 %v2610
    %v3299 = vunpack.c.h.b16 %v2610
    %v3300 = vunpack.c.l.b16 %v2611
    %v3301 = vunpack.c.h.b16 %v2611
    %v3302 = vunpack.c.l.b16 %v2612
    %v3303 = vunpack.c.h.b16 %v2612
    %v3304 = vunpack.c.l.b16 %v2613
    %v3305 = vunpack.c.h.b16 %v2613
    %v3306 = vunpack.c.l.b16 %v2614
    %v3307 = vunpack.c.h.b16 %v2614
    %v3308 = vunpack.c.l.b16 %v2615
    %v3309 = vunpack.c.h.b16 %v2615
    %v3310 = vunpack.c.l.b16 %v2616
    %v3311 = vunpack.c.h.b16 %v2616
    %v3312 = vunpack.c.l.b16 %v2617
    %v3313 = vunpack.c.h.b16 %v2617
    %v3314 = vunpack.c.l.b16 %v2618
    %v3315 = vunpack.c.h.b16 %v2618
    %v3316 = vunpack.c.l.b16 %v2619
    %v3317 = vunpack.c.h.b16 %v2619
    %v3318 = vunpack.c.l.b16 %v2620
    %v3319 = vunpack.c.h.b16 %v2620
    %v3320 = vunpack.c.l.b16 %v2621
    %v3321 = vunpack.c.h.b16 %v2621
    %v3322 = vunpack.c.l.b16 %v2622
    %v3323 = vunpack.c.h.b16 %v2622
    %v3324 = vunpack.c.l.b16 %v2623
    %v3325 = vunpack.c.h.b16 %v2623
    %v3326 = vunpack.c.l.b16 %v2624
    %v3327 = vunpack.c.h.b16 %v2624
    %v3328 = vunpack.c.l.b16 %v2625
    %v3329 = vunpack.c.h.b16 %v2625
    %v3330 = vunpack.c.l.b16 %v2626
    %v3331 = vunpack.c.h.b16 %v2626
    %v3332 = vunpack.c.l.b16 %v2627
    %v3333 = vunpack.c.h.b16 %v2627
    %v3334 = vunpack.c.l.b16 %v2628
    %v3335 = vunpack.c.h.b16 %v2628
    %v3336 = vunpack.c.l.b16 %v2629
    %v3337 = vunpack.c.h.b16 %v2629
    %v3338 = vunpack.c.l.b16 %v2630
    %v3339 = vunpack.c.h.b16 %v2630
    %v3340 = vunpack.c.l.b16 %v2631
    %v3341 = vunpack.c.h.b16 %v2631
    %v3342 = vunpack.c.l.b16 %v2632
    %v3343 = vunpack.c.h.b16 %v2632
    %v3344 = vunpack.c.l.b16 %v2633
    %v3345 = vunpack.c.h.b16 %v2633
    %v3346 = vunpack.c.l.b16 %v2634
    %v3347 = vunpack.c.h.b16 %v2634
    %v3348 = vunpack.c.l.b16 %v2635
    %v3349 = vunpack.c.h.b16 %v2635
    %v3350 = vunpack.c.l.b16 %v2636
    %v3351 = vunpack.c.h.b16 %v2636
    %v3352 = vunpack.c.l.b16 %v2637
    %v3353 = vunpack.c.h.b16 %v2637
    %v3354 = vunpack.c.l.b16 %v2638
    %v3355 = vunpack.c.h.b16 %v2638
    %v3356 = vunpack.c.l.b16 %v2639
    %v3357 = vunpack.c.h.b16 %v2639
    %v3358 = vunpack.c.l.b16 %v2640
    %v3359 = vunpack.c.h.b16 %v2640
    %v3360 = vunpack.c.l.b16 %v2641
    %v3361 = vunpack.c.h.b16 %v2641
    %v3362 = vunpack.c.l.b16 %v2642
    %v3363 = vunpack.c.h.b16 %v2642
    %v3364 = vunpack.c.l.b16 %v2643
    %v3365 = vunpack.c.h.b16 %v2643
    %v3366 = vunpack.c.l.b16 %v2644
    %v3367 = vunpack.c.h.b16 %v2644
    %v3368 = vunpack.c.l.b16 %v2645
    %v3369 = vunpack.c.h.b16 %v2645
    %v3370 = vunpack.c.l.b16 %v2646
    %v3371 = vunpack.c.h.b16 %v2646
    %v3372 = vunpack.c.l.b16 %v2647
    %v3373 = vunpack.c.h.b16 %v2647
    %v3374 = vunpack.c.l.b16 %v2648
    %v3375 = vunpack.c.h.b16 %v2648
    %v3376 = vunpack.c.l.b16 %v2649
    %v3377 = vunpack.c.h.b16 %v2649
    %v3378 = vunpack.c.l.b16 %v2650
    %v3379 = vunpack.c.h.b16 %v2650
    %v3380 = vunpack.c.l.b16 %v2651
    %v3381 = vunpack.c.h.b16 %v2651
    %v3382 = vunpack.c.l.b16 %v2652
    %v3383 = vunpack.c.h.b16 %v2652
    %v3384 = vunpack.c.l.b16 %v2653
    %v3385 = vunpack.c.h.b16 %v2653
    %v3386 = vunpack.c.l.b16 %v2654
    %v3387 = vunpack.c.h.b16 %v2654
    %v3388 = vunpack.c.l.b16 %v2655
    %v3389 = vunpack.c.h.b16 %v2655
    %v3390 = vunpack.c.l.b16 %v2656
    %v3391 = vunpack.c.h.b16 %v2656
    %v3392 = vunpack.c.l.b16 %v2657
    %v3393 = vunpack.c.h.b16 %v2657
    %v3394 = vunpack.c.l.b16 %v2658
    %v3395 = vunpack.c.h.b16 %v2658
    %v3396 = vunpack.c.l.b16 %v2659
    %v3397 = vunpack.c.h.b16 %v2659
    %v3398 = vunpack.c.l.b16 %v2660
    %v3399 = vunpack.c.h.b16 %v2660
    %v3400 = vunpack.c.l.b16 %v2661
    %v3401 = vunpack.c.h.b16 %v2661
    %v3402 = vunpack.c.l.b16 %v2662
    %v3403 = vunpack.c.h.b16 %v2662
    %v3404 = vunpack.c.l.b16 %v2663
    %v3405 = vunpack.c.h.b16 %v2663
    %v3406 = vunpack.c.l.b16 %v2664
    %v3407 = vunpack.c.h.b16 %v2664
    %v3408 = vunpack.c.l.b16 %v2665
    %v3409 = vunpack.c.h.b16 %v2665
    %v3410 = vunpack.c.l.b16 %v2666
    %v3411 = vunpack.c.h.b16 %v2666
    %v3412 = vunpack.c.l.b16 %v2667
    %v3413 = vunpack.c.h.b16 %v2667
    %v3414 = vunpack.c.l.b16 %v2668
    %v3415 = vunpack.c.h.b16 %v2668
    %v3416 = vunpack.c.l.b16 %v2669
    %v3417 = vunpack.c.h.b16 %v2669
    %v3418 = vunpack.c.l.b16 %v2670
    %v3419 = vunpack.c.h.b16 %v2670
    %v3420 = vunpack.c.l.b16 %v2671
    %v3421 = vunpack.c.h.b16 %v2671
    %v3422 = vunpack.c.l.b16 %v2672
    %v3423 = vunpack.c.h.b16 %v2672
    %v3424 = vunpack.c.l.b16 %v2673
    %v3425 = vunpack.c.h.b16 %v2673
    %v3426 = vunpack.c.l.b16 %v2674
    %v3427 = vunpack.c.h.b16 %v2674
    %v3428 = vunpack.c.l.b16 %v2675
    %v3429 = vunpack.c.h.b16 %v2675
    %v3430 = vunpack.c.l.b16 %v2676
    %v3431 = vunpack.c.h.b16 %v2676
    %v3432 = vunpack.c.l.b16 %v2677
    %v3433 = vunpack.c.h.b16 %v2677
    %v3434 = vunpack.c.l.b16 %v2678
    %v3435 = vunpack.c.h.b16 %v2678
    %v3436 = vunpack.c.l.b16 %v2679
    %v3437 = vunpack.c.h.b16 %v2679
    %v3438 = vunpack.c.l.b16 %v2680
    %v3439 = vunpack.c.h.b16 %v2680
    %v3440 = vunpack.c.l.b16 %v2681
    %v3441 = vunpack.c.h.b16 %v2681
    %v3442 = vunpack.c.l.b16 %v2682
    %v3443 = vunpack.c.h.b16 %v2682
    %v3444 = vunpack.c.l.b16 %v2683
    %v3445 = vunpack.c.h.b16 %v2683
    %v3446 = vunpack.c.l.b16 %v2684
    %v3447 = vunpack.c.h.b16 %v2684
    %v3448 = vunpack.c.l.b16 %v2685
    %v3449 = vunpack.c.h.b16 %v2685
    %v3450 = vunpack.c.l.b16 %v2686
    %v3451 = vunpack.c.h.b16 %v2686
    %v3452 = vunpack.c.l.b16 %v2687
    %v3453 = vunpack.c.h.b16 %v2687
    %v3454 = vunpack.c.l.b16 %v2688
    %v3455 = vunpack.c.h.b16 %v2688
    %v3456 = vunpack.c.l.b16 %v2689
    %v3457 = vunpack.c.h.b16 %v2689
    %v3458 = vunpack.c.l.b16 %v2690
    %v3459 = vunpack.c.h.b16 %v2690
    %v3460 = vunpack.c.l.b16 %v2691
    %v3461 = vunpack.c.h.b16 %v2691
    %v3462 = vunpack.c.l.b16 %v2692
    %v3463 = vunpack.c.h.b16 %v2692
    %v3464 = vunpack.c.l.b16 %v2693
    %v3465 = vunpack.c.h.b16 %v2693
    %v3466 = vunpack.c.l.b16 %v2694
    %v3467 = vunpack.c.h.b16 %v2694
    %v3468 = vunpack.c.l.b16 %v2695
    %v3469 = vunpack.c.h.b16 %v2695
    %v3470 = vunpack.c.l.b16 %v2696
    %v3471 = vunpack.c.h.b16 %v2696
    %v3472 = vunpack.c.l.b16 %v2697
    %v3473 = vunpack.c.h.b16 %v2697
    %v3474 = vunpack.c.l.b16 %v2698
    %v3475 = vunpack.c.h.b16 %v2698
    %v3476 = vunpack.c.l.b16 %v2699
    %v3477 = vunpack.c.h.b16 %v2699
    %v3478 = vunpack.c.l.b16 %v2700
    %v3479 = vunpack.c.h.b16 %v2700
    %v3480 = vunpack.c.l.b16 %v2701
    %v3481 = vunpack.c.h.b16 %v2701
    %v3482 = vunpack.c.l.b16 %v2702
    %v3483 = vunpack.c.h.b16 %v2702
    %v3484 = vunpack.c.l.b16 %v2703
    %v3485 = vunpack.c.h.b16 %v2703
    %v3486 = vunpack.c.l.b16 %v2704
    %v3487 = vunpack.c.h.b16 %v2704
    %v3488 = vunpack.c.l.b16 %v2705
    %v3489 = vunpack.c.h.b16 %v2705
    %v3490 = vunpack.c.l.b16 %v2706
    %v3491 = vunpack.c.h.b16 %v2706
    %v3492 = vunpack.c.l.b16 %v2707
    %v3493 = vunpack.c.h.b16 %v2707
    %v3494 = vunpack.c.l.b16 %v2708
    %v3495 = vunpack.c.h.b16 %v2708
    %v3496 = vunpack.c.l.b16 %v2709
    %v3497 = vunpack.c.h.b16 %v2709
    %v3498 = vunpack.c.l.b16 %v2710
    %v3499 = vunpack.c.h.b16 %v2710
    %v3500 = vunpack.c.l.b16 %v2711
    %v3501 = vunpack.c.h.b16 %v2711
    %v3502 = vunpack.c.l.b16 %v2712
    %v3503 = vunpack.c.h.b16 %v2712
    %v3504 = vunpack.c.l.b16 %v2713
    %v3505 = vunpack.c.h.b16 %v2713
    %v3506 = vunpack.c.l.b16 %v2714
    %v3507 = vunpack.c.h.b16 %v2714
    %v3508 = vunpack.c.l.b16 %v2715
    %v3509 = vunpack.c.h.b16 %v2715
    %v3510 = vunpack.c.l.b16 %v2716
    %v3511 = vunpack.c.h.b16 %v2716
    %v3512 = vunpack.c.l.b16 %v2717
    %v3513 = vunpack.c.h.b16 %v2717
    %v3514 = vunpack.c.l.b16 %v2718
    %v3515 = vunpack.c.h.b16 %v2718
    %v3516 = vunpack.c.l.b16 %v2719
    %v3517 = vunpack.c.h.b16 %v2719
    %v3518 = vunpack.c.l.b16 %v2720
    %v3519 = vunpack.c.h.b16 %v2720
    %v3520 = vunpack.c.l.b16 %v2721
    %v3521 = vunpack.c.h.b16 %v2721
    %v3522 = vunpack.c.l.b16 %v2722
    %v3523 = vunpack.c.h.b16 %v2722
    %v3524 = vunpack.c.l.b16 %v2723
    %v3525 = vunpack.c.h.b16 %v2723
    %v3526 = vunpack.c.l.b16 %v2724
    %v3527 = vunpack.c.h.b16 %v2724
    %v3528 = vunpack.c.l.b16 %v2725
    %v3529 = vunpack.c.h.b16 %v2725
    %v3530 = vunpack.c.l.b16 %v2726
    %v3531 = vunpack.c.h.b16 %v2726
    %v3532 = vunpack.c.l.b16 %v2727
    %v3533 = vunpack.c.h.b16 %v2727
    %v3534 = vunpack.c.l.b16 %v2728
    %v3535 = vunpack.c.h.b16 %v2728
    %v3536 = vunpack.c.l.b16 %v2729
    %v3537 = vunpack.c.h.b16 %v2729
    %v3538 = vunpack.c.l.b16 %v2730
    %v3539 = vunpack.c.h.b16 %v2730
    %v3540 = vunpack.c.l.b16 %v2731
    %v3541 = vunpack.c.h.b16 %v2731
    %v3542 = vunpack.c.l.b16 %v2732
    %v3543 = vunpack.c.h.b16 %v2732
    %v3544 = vunpack.c.l.b16 %v2733
    %v3545 = vunpack.c.h.b16 %v2733
    %v3546 = vunpack.c.l.b16 %v2734
    %v3547 = vunpack.c.h.b16 %v2734
    %v3548 = vunpack.c.l.b16 %v2735
    %v3549 = vunpack.c.h.b16 %v2735
    %v3550 = vunpack.c.l.b16 %v2736
    %v3551 = vunpack.c.h.b16 %v2736
    %v3552 = vunpack.c.l.b16 %v2737
    %v3553 = vunpack.c.h.b16 %v2737
    %v3554 = vunpack.c.l.b16 %v2738
    %v3555 = vunpack.c.h.b16 %v2738
    %v3556 = vunpack.c.l.b16 %v2739
    %v3557 = vunpack.c.h.b16 %v2739
    %v3558 = vunpack.c.l.b16 %v2740
    %v3559 = vunpack.c.h.b16 %v2740
    %v3560 = vunpack.c.l.b16 %v2741
    %v3561 = vunpack.c.h.b16 %v2741
    %v3562 = vunpack.c.l.b16 %v2742
    %v3563 = vunpack.c.h.b16 %v2742
    %v3564 = vunpack.c.l.b16 %v2743
    %v3565 = vunpack.c.h.b16 %v2743
    %v3566 = vunpack.c.l.b16 %v2744
    %v3567 = vunpack.c.h.b16 %v2744
    %v3568 = vunpack.c.l.b16 %v2745
    %v3569 = vunpack.c.h.b16 %v2745
    %v3570 = vunpack.c.l.b16 %v2746
    %v3571 = vunpack.c.h.b16 %v2746
    %v3572 = vunpack.c.l.b16 %v2747
    %v3573 = vunpack.c.h.b16 %v2747
    %v3574 = vunpack.c.l.b16 %v2748
    %v3575 = vunpack.c.h.b16 %v2748
    %v3576 = vunpack.c.l.b16 %v2749
    %v3577 = vunpack.c.h.b16 %v2749
    %v3578 = vunpack.c.l.b16 %v2750
    %v3579 = vunpack.c.h.b16 %v2750
    %v3580 = vunpack.c.l.b16 %v2751
    %v3581 = vunpack.c.h.b16 %v2751
    %v3582 = vunpack.c.l.b16 %v2752
    %v3583 = vunpack.c.h.b16 %v2752
    %v3584 = vunpack.c.l.b16 %v2753
    %v3585 = vunpack.c.h.b16 %v2753
    %v3586 = vunpack.c.l.b16 %v2754
    %v3587 = vunpack.c.h.b16 %v2754
    %v3588 = vunpack.c.l.b16 %v2755
    %v3589 = vunpack.c.h.b16 %v2755
    %v3590 = vunpack.c.l.b16 %v2756
    %v3591 = vunpack.c.h.b16 %v2756
    %v3592 = vunpack.c.l.b16 %v2757
    %v3593 = vunpack.c.h.b16 %v2757
    %v3594 = vunpack.c.l.b16 %v2758
    %v3595 = vunpack.c.h.b16 %v2758
    %v3596 = vunpack.c.l.b16 %v2759
    %v3597 = vunpack.c.h.b16 %v2759
    %v3598 = vunpack.c.l.b16 %v2760
    %v3599 = vunpack.c.h.b16 %v2760
    %v3600 = vunpack.c.l.b16 %v2761
    %v3601 = vunpack.c.h.b16 %v2761
    %v3602 = vunpack.c.l.b16 %v2762
    %v3603 = vunpack.c.h.b16 %v2762
    %v3604 = vunpack.c.l.b16 %v2763
    %v3605 = vunpack.c.h.b16 %v2763
    %v3606 = vunpack.c.l.b16 %v2764
    %v3607 = vunpack.c.h.b16 %v2764
    %v3608 = vunpack.c.l.b16 %v2765
    %v3609 = vunpack.c.h.b16 %v2765
    %v3610 = vunpack.c.l.b16 %v2766
    %v3611 = vunpack.c.h.b16 %v2766
    %v3612 = vunpack.c.l.b16 %v2767
    %v3613 = vunpack.c.h.b16 %v2767
    %v3614 = vunpack.c.l.b16 %v2768
    %v3615 = vunpack.c.h.b16 %v2768
    %v3616 = vunpack.c.l.b16 %v2769
    %v3617 = vunpack.c.h.b16 %v2769
    %v3618 = vunpack.c.l.b16 %v2770
    %v3619 = vunpack.c.h.b16 %v2770
    %v3620 = vunpack.c.l.b16 %v2771
    %v3621 = vunpack.c.h.b16 %v2771
    %v3622 = vunpack.c.l.b16 %v2772
    %v3623 = vunpack.c.h.b16 %v2772
    %v3624 = vunpack.c.l.b16 %v2773
    %v3625 = vunpack.c.h.b16 %v2773
    %v3626 = vunpack.c.l.b16 %v2774
    %v3627 = vunpack.c.h.b16 %v2774
    %v3628 = vunpack.c.l.b16 %v2775
    %v3629 = vunpack.c.h.b16 %v2775
    %v3630 = vunpack.c.l.b16 %v2776
    %v3631 = vunpack.c.h.b16 %v2776
    %v3632 = vunpack.c.l.b16 %v2777
    %v3633 = vunpack.c.h.b16 %v2777
    %v3634 = vunpack.c.l.b16 %v2778
    %v3635 = vunpack.c.h.b16 %v2778
    %v3636 = vunpack.c.l.b16 %v2779
    %v3637 = vunpack.c.h.b16 %v2779
    %v3638 = vunpack.c.l.b16 %v2780
    %v3639 = vunpack.c.h.b16 %v2780
    %v3640 = vunpack.c.l.b16 %v2781
    %v3641 = vunpack.c.h.b16 %v2781
    %v3642 = vunpack.c.l.b16 %v2782
    %v3643 = vunpack.c.h.b16 %v2782
    %v3644 = vunpack.c.l.b16 %v2783
    %v3645 = vunpack.c.h.b16 %v2783
    %v3646 = vunpack.c.l.b16 %v2784
    %v3647 = vunpack.c.h.b16 %v2784
    %v3648 = vunpack.c.l.b16 %v2785
    %v3649 = vunpack.c.h.b16 %v2785
    %v3650 = vpack.c.b16 %v3080, %v3074
    %v3651 = vpack.c.b16 %v3081, %v3075
    %v3652 = vpack.c.b16 %v3082, %v3076
    %v3653 = vpack.c.b16 %v3083, %v3077
    %v3654 = vpack.c.b16 %v3084, %v3078
    %v3655 = vpack.c.b16 %v3085, %v3079
    %v3656 = vpack.c.b16 %v3092, %v3086
    %v3657 = vpack.c.b16 %v3093, %v3087
    %v3658 = vpack.c.b16 %v3094, %v3088
    %v3659 = vpack.c.b16 %v3095, %v3089
    %v3660 = vpack.c.b16 %v3096, %v3090
    %v3661 = vpack.c.b16 %v3097, %v3091
    %v3662 = vpack.c.b16 %v3104, %v3098
    %v3663 = vpack.c.b16 %v3105, %v3099
    %v3664 = vpack.c.b16 %v3106, %v3100
    %v3665 = vpack.c.b16 %v3107, %v3101
    %v3666 = vpack.c.b16 %v3108, %v3102
    %v3667 = vpack.c.b16 %v3109, %v3103
    %v3668 = vpack.c.b16 %v3116, %v3110
    %v3669 = vpack.c.b16 %v3117, %v3111
    %v3670 = vpack.c.b16 %v3118, %v3112
    %v3671 = vpack.c.b16 %v3119, %v3113
    %v3672 = vpack.c.b16 %v3120, %v3114
    %v3673 = vpack.c.b16 %v3121, %v3115
    %v3674 = vpack.c.b16 %v3128, %v3122
    %v3675 = vpack.c.b16 %v3129, %v3123
    %v3676 = vpack.c.b16 %v3130, %v3124
    %v3677 = vpack.c.b16 %v3131, %v3125
    %v3678 = vpack.c.b16 %v3132, %v3126
    %v3679 = vpack.c.b16 %v3133, %v3127
    %v3680 = vpack.c.b16 %v3140, %v3134
    %v3681 = vpack.c.b16 %v3141, %v3135
    %v3682 = vpack.c.b16 %v3142, %v3136
    %v3683 = vpack.c.b16 %v3143, %v3137
    %v3684 = vpack.c.b16 %v3144, %v3138
    %v3685 = vpack.c.b16 %v3145, %v3139
    %v3686 = vpack.c.b16 %v3152, %v3146
    %v3687 = vpack.c.b16 %v3153, %v3147
    %v3688 = vpack.c.b16 %v3154, %v3148
    %v3689 = vpack.c.b16 %v3155, %v3149
    %v3690 = vpack.c.b16 %v3156, %v3150
    %v3691 = vpack.c.b16 %v3157, %v3151
    %v3692 = vpack.c.b16 %v3164, %v3158
    %v3693 = vpack.c.b16 %v3165, %v3159
    %v3694 = vpack.c.b16 %v3166, %v3160
    %v3695 = vpack.c.b16 %v3167, %v3161
    %v3696 = vpack.c.b16 %v3168, %v3162
    %v3697 = vpack.c.b16 %v3169, %v3163
    %v3698 = vpack.c.b16 %v3176, %v3170
    %v3699 = vpack.c.b16 %v3177, %v3171
    %v3700 = vpack.c.b16 %v3178, %v3172
    %v3701 = vpack.c.b16 %v3179, %v3173
    %v3702 = vpack.c.b16 %v3180, %v3174
    %v3703 = vpack.c.b16 %v3181, %v3175
    %v3704 = vpack.c.b16 %v3188, %v3182
    %v3705 = vpack.c.b16 %v3189, %v3183
    %v3706 = vpack.c.b16 %v3190, %v3184
    %v3707 = vpack.c.b16 %v3191, %v3185
    %v3708 = vpack.c.b16 %v3192, %v3186
    %v3709 = vpack.c.b16 %v3193, %v3187
    %v3710 = vpack.c.b16 %v3200, %v3194
    %v3711 = vpack.c.b16 %v3201, %v3195
    %v3712 = vpack.c.b16 %v3202, %v3196
    %v3713 = vpack.c.b16 %v3203, %v3197
    %v3714 = vpack.c.b16 %v3204, %v3198
    %v3715 = vpack.c.b16 %v3205, %v3199
    %v3716 = vpack.c.b16 %v3212, %v3206
    %v3717 = vpack.c.b16 %v3213, %v3207
    %v3718 = vpack.c.b16 %v3214, %v3208
    %v3719 = vpack.c.b16 %v3215, %v3209
    %v3720 = vpack.c.b16 %v3216, %v3210
    %v3721 = vpack.c.b16 %v3217, %v3211
    %v3722 = vpack.c.b16 %v3224, %v3218
    %v3723 = vpack.c.b16 %v3225, %v3219
    %v3724 = vpack.c.b16 %v3226, %v3220
    %v3725 = vpack.c.b16 %v3227, %v3221
    %v3726 = vpack.c.b16 %v3228, %v3222
    %v3727 = vpack.c.b16 %v3229, %v3223
    %v3728 = vpack.c.b16 %v3236, %v3230
    %v3729 = vpack.c.b16 %v3237, %v3231
    %v3730 = vpack.c.b16 %v3238, %v3232
    %v3731 = vpack.c.b16 %v3239, %v3233
    %v3732 = vpack.c.b16 %v3240, %v3234
    %v3733 = vpack.c.b16 %v3241, %v3235
    %v3734 = vpack.c.b16 %v3248, %v3242
    %v3735 = vpack.c.b16 %v3249, %v3243
    %v3736 = vpack.c.b16 %v3250, %v3244
    %v3737 = vpack.c.b16 %v3251, %v3245
    %v3738 = vpack.c.b16 %v3252, %v3246
    %v3739 = vpack.c.b16 %v3253, %v3247
    %v3740 = vpack.c.b16 %v3260, %v3254
    %v3741 = vpack.c.b16 %v3261, %v3255
    %v3742 = vpack.c.b16 %v3262, %v3256
    %v3743 = vpack.c.b16 %v3263, %v3257
    %v3744 = vpack.c.b16 %v3264, %v3258
    %v3745 = vpack.c.b16 %v3265, %v3259
    %v3746 = vpack.c.b16 %v3272, %v3266
    %v3747 = vpack.c.b16 %v3273, %v3267
    %v3748 = vpack.c.b16 %v3274, %v3268
    %v3749 = vpack.c.b16 %v3275, %v3269
    %v3750 = vpack.c.b16 %v3276, %v3270
    %v3751 = vpack.c.b16 %v3277, %v3271
    %v3752 = vpack.c.b16 %v3284, %v3278
    %v3753 = vpack.c.b16 %v3285, %v3279
    %v3754 = vpack.c.b16 %v3286, %v3280
    %v3755 = vpack.c.b16 %v3287, %v3281
    %v3756 = vpack.c.b16 %v3288, %v3282
    %v3757 = vpack.c.b16 %v3289, %v3283
    %v3758 = vpack.c.b16 %v3296, %v3290
    %v3759 = vpack.c.b16 %v3297, %v3291
    %v3760 = vpack.c.b16 %v3298, %v3292
    %v3761 = vpack.c.b16 %v3299, %v3293
    %v3762 = vpack.c.b16 %v3300, %v3294
    %v3763 = vpack.c.b16 %v3301, %v3295
    %v3764 = vpack.c.b16 %v3308, %v3302
    %v3765 = vpack.c.b16 %v3309, %v3303
    %v3766 = vpack.c.b16 %v3310, %v3304
    %v3767 = vpack.c.b16 %v3311, %v3305
    %v3768 = vpack.c.b16 %v3312, %v3306
    %v3769 = vpack.c.b16 %v3313, %v3307
    %v3770 = vpack.c.b16 %v3320, %v3314
    %v3771 = vpack.c.b16 %v3321, %v3315
    %v3772 = vpack.c.b16 %v3322, %v3316
    %v3773 = vpack.c.b16 %v3323, %v3317
    %v3774 = vpack.c.b16 %v3324, %v3318
    %v3775 = vpack.c.b16 %v3325, %v3319
    %v3776 = vpack.c.b16 %v3332, %v3326
    %v3777 = vpack.c.b16 %v3333, %v3327
    %v3778 = vpack.c.b16 %v3334, %v3328
    %v3779 = vpack.c.b16 %v3335, %v3329
    %v3780 = vpack.c.b16 %v3336, %v3330
    %v3781 = vpack.c.b16 %v3337, %v3331
    %v3782 = vpack.c.b16 %v3344, %v3338
    %v3783 = vpack.c.b16 %v3345, %v3339
    %v3784 = vpack.c.b16 %v3346, %v3340
    %v3785 = vpack.c.b16 %v3347, %v3341
    %v3786 = vpack.c.b16 %v3348, %v3342
    %v3787 = vpack.c.b16 %v3349, %v3343
    %v3788 = vpack.c.b16 %v3356, %v3350
    %v3789 = vpack.c.b16 %v3357, %v3351
    %v3790 = vpack.c.b16 %v3358, %v3352
    %v3791 = vpack.c.b16 %v3359, %v3353
    %v3792 = vpack.c.b16 %v3360, %v3354
    %v3793 = vpack.c.b16 %v3361, %v3355
    %v3794 = vpack.c.b16 %v3368, %v3362
    %v3795 = vpack.c.b16 %v3369, %v3363
    %v3796 = vpack.c.b16 %v3370, %v3364
    %v3797 = vpack.c.b16 %v3371, %v3365
    %v3798 = vpack.c.b16 %v3372, %v3366
    %v3799 = vpack.c.b16 %v3373, %v3367
    %v3800 = vpack.c.b16 %v3380, %v3374
    %v3801 = vpack.c.b16 %v3381, %v3375
    %v3802 = vpack.c.b16 %v3382, %v3376
    %v3803 = vpack.c.b16 %v3383, %v3377
    %v3804 = vpack.c.b16 %v3384, %v3378
    %v3805 = vpack.c.b16 %v3385, %v3379
    %v3806 = vpack.c.b16 %v3392, %v3386
    %v3807 = vpack.c.b16 %v3393, %v3387
    %v3808 = vpack.c.b16 %v3394, %v3388
    %v3809 = vpack.c.b16 %v3395, %v3389
    %v3810 = vpack.c.b16 %v3396, %v3390
    %v3811 = vpack.c.b16 %v3397, %v3391
    %v3812 = vpack.c.b16 %v3404, %v3398
    %v3813 = vpack.c.b16 %v3405, %v3399
    %v3814 = vpack.c.b16 %v3406, %v3400
    %v3815 = vpack.c.b16 %v3407, %v3401
    %v3816 = vpack.c.b16 %v3408, %v3402
    %v3817 = vpack.c.b16 %v3409, %v3403
    %v3818 = vpack.c.b16 %v3416, %v3410
    %v3819 = vpack.c.b16 %v3417, %v3411
    %v3820 = vpack.c.b16 %v3418, %v3412
    %v3821 = vpack.c.b16 %v3419, %v3413
    %v3822 = vpack.c.b16 %v3420, %v3414
    %v3823 = vpack.c.b16 %v3421, %v3415
    %v3824 = vpack.c.b16 %v3428, %v3422
    %v3825 = vpack.c.b16 %v3429, %v3423
    %v3826 = vpack.c.b16 %v3430, %v3424
    %v3827 = vpack.c.b16 %v3431, %v3425
    %v3828 = vpack.c.b16 %v3432, %v3426
    %v3829 = vpack.c.b16 %v3433, %v3427
    %v3830 = vpack.c.b16 %v3440, %v3434
    %v3831 = vpack.c.b16 %v3441, %v3435
    %v3832 = vpack.c.b16 %v3442, %v3436
    %v3833 = vpack.c.b16 %v3443, %v3437
    %v3834 = vpack.c.b16 %v3444, %v3438
    %v3835 = vpack.c.b16 %v3445, %v3439
    %v3836 = vpack.c.b16 %v3452, %v3446
    %v3837 = vpack.c.b16 %v3453, %v3447
    %v3838 = vpack.c.b16 %v3454, %v3448
    %v3839 = vpack.c.b16 %v3455, %v3449
    %v3840 = vpack.c.b16 %v3456, %v3450
    %v3841 = vpack.c.b16 %v3457, %v3451
    %v3842 = vpack.c.b16 %v3464, %v3458
    %v3843 = vpack.c.b16 %v3465, %v3459
    %v3844 = vpack.c.b16 %v3466, %v3460
    %v3845 = vpack.c.b16 %v3467, %v3461
    %v3846 = vpack.c.b16 %v3468, %v3462
    %v3847 = vpack.c.b16 %v3469, %v3463
    %v3848 = vpack.c.b16 %v3476, %v3470
    %v3849 = vpack.c.b16 %v3477, %v3471
    %v3850 = vpack.c.b16 %v3478, %v3472
    %v3851 = vpack.c.b16 %v3479, %v3473
    %v3852 = vpack.c.b16 %v3480, %v3474
    %v3853 = vpack.c.b16 %v3481, %v3475
    %v3854 = vpack.c.b16 %v3488, %v3482
    %v3855 = vpack.c.b16 %v3489, %v3483
    %v3856 = vpack.c.b16 %v3490, %v3484
    %v3857 = vpack.c.b16 %v3491, %v3485
    %v3858 = vpack.c.b16 %v3492, %v3486
    %v3859 = vpack.c.b16 %v3493, %v3487
    %v3860 = vpack.c.b16 %v3500, %v3494
    %v3861 = vpack.c.b16 %v3501, %v3495
    %v3862 = vpack.c.b16 %v3502, %v3496
    %v3863 = vpack.c.b16 %v3503, %v3497
    %v3864 = vpack.c.b16 %v3504, %v3498
    %v3865 = vpack.c.b16 %v3505, %v3499
    %v3866 = vpack.c.b16 %v3512, %v3506
    %v3867 = vpack.c.b16 %v3513, %v3507
    %v3868 = vpack.c.b16 %v3514, %v3508
    %v3869 = vpack.c.b16 %v3515, %v3509
    %v3870 = vpack.c.b16 %v3516, %v3510
    %v3871 = vpack.c.b16 %v3517, %v3511
    %v3872 = vpack.c.b16 %v3524, %v3518
    %v3873 = vpack.c.b16 %v3525, %v3519
    %v3874 = vpack.c.b16 %v3526, %v3520
    %v3875 = vpack.c.b16 %v3527, %v3521
    %v3876 = vpack.c.b16 %v3528, %v3522
    %v3877 = vpack.c.b16 %v3529, %v3523
    %v3878 = vpack.c.b16 %v3536, %v3530
    %v3879 = vpack.c.b16 %v3537, %v3531
    %v3880 = vpack.c.b16 %v3538, %v3532
    %v3881 = vpack.c.b16 %v3539, %v3533
    %v3882 = vpack.c.b16 %v3540, %v3534
    %v3883 = vpack.c.b16 %v3541, %v3535
    %v3884 = vpack.c.b16 %v3548, %v3542
    %v3885 = vpack.c.b16 %v3549, %v3543
    %v3886 = vpack.c.b16 %v3550, %v3544
    %v3887 = vpack.c.b16 %v3551, %v3545
    %v3888 = vpack.c.b16 %v3552, %v3546
    %v3889 = vpack.c.b16 %v3553, %v3547
    %v3890 = vpack.c.b16 %v3560, %v3554
    %v3891 = vpack.c.b16 %v3561, %v3555
    %v3892 = vpack.c.b16 %v3562, %v3556
    %v3893 = vpack.c.b16 %v3563, %v3557
    %v3894 = vpack.c.b16 %v3564, %v3558
    %v3895 = vpack.c.b16 %v3565, %v3559
    %v3896 = vpack.c.b16 %v3572, %v3566
    %v3897 = vpack.c.b16 %v3573, %v3567
    %v3898 = vpack.c.b16 %v3574, %v3568
    %v3899 = vpack.c.b16 %v3575, %v3569
    %v3900 = vpack.c.b16 %v3576, %v3570
    %v3901 = vpack.c.b16 %v3577, %v3571
    %v3902 = vpack.c.b16 %v3584, %v3578
    %v3903 = vpack.c.b16 %v3585, %v3579
    %v3904 = vpack.c.b16 %v3586, %v3580
    %v3905 = vpack.c.b16 %v3587, %v3581
    %v3906 = vpack.c.b16 %v3588, %v3582
    %v3907 = vpack.c.b16 %v3589, %v3583
    %v3908 = vpack.c.b16 %v3596, %v3590
    %v3909 = vpack.c.b16 %v3597, %v3591
    %v3910 = vpack.c.b16 %v3598, %v3592
    %v3911 = vpack.c.b16 %v3599, %v3593
    %v3912 = vpack.c.b16 %v3600, %v3594
    %v3913 = vpack.c.b16 %v3601, %v3595
    %v3914 = vpack.c.b16 %v3608, %v3602
    %v3915 = vpack.c.b16 %v3609, %v3603
    %v3916 = vpack.c.b16 %v3610, %v3604
    %v3917 = vpack.c.b16 %v3611, %v3605
    %v3918 = vpack.c.b16 %v3612, %v3606
    %v3919 = vpack.c.b16 %v3613, %v3607
    %v3920 = vpack.c.b16 %v3620, %v3614
    %v3921 = vpack.c.b16 %v3621, %v3615
    %v3922 = vpack.c.b16 %v3622, %v3616
    %v3923 = vpack.c.b16 %v3623, %v3617
    %v3924 = vpack.c.b16 %v3624, %v3618
    %v3925 = vpack.c.b16 %v3625, %v3619
    %v3926 = vpack.c.b16 %v3632, %v3626
    %v3927 = vpack.c.b16 %v3633, %v3627
    %v3928 = vpack.c.b16 %v3634, %v3628
    %v3929 = vpack.c.b16 %v3635, %v3629
    %v3930 = vpack.c.b16 %v3636, %v3630
    %v3931 = vpack.c.b16 %v3637, %v3631
    %v3932 = vpack.c.b16 %v3644, %v3638
    %v3933 = vpack.c.b16 %v3645, %v3639
    %v3934 = vpack.c.b16 %v3646, %v3640
    %v3935 = vpack.c.b16 %v3647, %v3641
    %v3936 = vpack.c.b16 %v3648, %v3642
    %v3937 = vpack.c.b16 %v3649, %v3643
    %4226 = vmatprep.subr.bf16.mxu0 %v3651
    %4227 = vmatpush1.bf16.msra.mxu0 %v3650
    %4228 = vmatprep.subr.bf16.mxu0 %v3657
    %4229 = vmatpush1.bf16.msra.mxu0 %v3656
    %4230 = vmatprep.subr.bf16.mxu0 %v3663
    %4231 = vmatpush1.bf16.msra.mxu0 %v3662
    %4232 = vmatprep.subr.bf16.mxu0 %v3669
    %4233 = vmatpush1.bf16.msra.mxu0 %v3668
    %4234 = vmatprep.subr.bf16.mxu0 %v3675
    %4235 = vmatpush1.bf16.msra.mxu0 %v3674
    %4236 = vmatprep.subr.bf16.mxu0 %v3681
    %4237 = vmatpush1.bf16.msra.mxu0 %v3680
    %4238 = vmatprep.subr.bf16.mxu0 %v3687
    %4239 = vmatpush1.bf16.msra.mxu0 %v3686
    %4240 = vmatprep.subr.bf16.mxu0 %v3693
    %4241 = vmatpush1.bf16.msra.mxu0 %v3692
    %4242 = vmatprep.subr.bf16.mxu0 %v3699
    %4243 = vmatpush1.bf16.msra.mxu0 %v3698
    %4244 = vmatprep.subr.bf16.mxu0 %v3705
    %4245 = vmatpush1.bf16.msra.mxu0 %v3704
    %4246 = vmatprep.subr.bf16.mxu0 %v3711
    %4247 = vmatpush1.bf16.msra.mxu0 %v3710
    %4248 = vmatprep.subr.bf16.mxu0 %v3717
    %4249 = vmatpush1.bf16.msra.mxu0 %v3716
    %4250 = vmatprep.subr.bf16.mxu0 %v3723
    %4251 = vmatpush1.bf16.msra.mxu0 %v3722
    %4252 = vmatprep.subr.bf16.mxu0 %v3729
    %4253 = vmatpush1.bf16.msra.mxu0 %v3728
    %4254 = vmatprep.subr.bf16.mxu0 %v3735
    %4255 = vmatpush1.bf16.msra.mxu0 %v3734
    %4256 = vmatprep.subr.bf16.mxu0 %v3741
    %4257 = vmatpush1.bf16.msra.mxu0 %v3740
    %4258 = vmatprep.mubr.bf16.mxu0 %v2493
    %4259 = vmatmul.mubr.bf16.gmra.mrb[0].mxu0 %v2492
    %v4260 = vpop.f32.mrb[0].mxu0
    %v4261 = vadd.f32 0.0, %v4260
    %v4262 = vpop.f32.mrb[0].mxu0
    %v4263 = vadd.f32 0.0, %v4262
    %v4264 = vpop.f32.mrb[0].mxu0
    %v4265 = vpop.f32.mrb[0].mxu0
    %4266 = vdwg.mxu0
    %4267 = vmatprep.subr.bf16.mxu0 %v3747
    %4268 = vmatpush1.bf16.msra.mxu0 %v3746
    %4269 = vmatprep.subr.bf16.mxu0 %v3753
    %4270 = vmatpush1.bf16.msra.mxu0 %v3752
    %4271 = vmatprep.subr.bf16.mxu0 %v3759
    %4272 = vmatpush1.bf16.msra.mxu0 %v3758
    %4273 = vmatprep.subr.bf16.mxu0 %v3765
    %4274 = vmatpush1.bf16.msra.mxu0 %v3764
    %4275 = vmatprep.subr.bf16.mxu0 %v3771
    %4276 = vmatpush1.bf16.msra.mxu0 %v3770
    %4277 = vmatprep.subr.bf16.mxu0 %v3777
    %4278 = vmatpush1.bf16.msra.mxu0 %v3776
    %4279 = vmatprep.subr.bf16.mxu0 %v3783
    %4280 = vmatpush1.bf16.msra.mxu0 %v3782
    %4281 = vmatprep.subr.bf16.mxu0 %v3789
    %4282 = vmatpush1.bf16.msra.mxu0 %v3788
    %4283 = vmatprep.subr.bf16.mxu0 %v3795
    %4284 = vmatpush1.bf16.msra.mxu0 %v3794
    %4285 = vmatprep.subr.bf16.mxu0 %v3801
    %4286 = vmatpush1.bf16.msra.mxu0 %v3800
    %4287 = vmatprep.subr.bf16.mxu0 %v3807
    %4288 = vmatpush1.bf16.msra.mxu0 %v3806
    %4289 = vmatprep.subr.bf16.mxu0 %v3813
    %4290 = vmatpush1.bf16.msra.mxu0 %v3812
    %4291 = vmatprep.subr.bf16.mxu0 %v3819
    %4292 = vmatpush1.bf16.msra.mxu0 %v3818
    %4293 = vmatprep.subr.bf16.mxu0 %v3825
    %4294 = vmatpush1.bf16.msra.mxu0 %v3824
    %4295 = vmatprep.subr.bf16.mxu0 %v3831
    %4296 = vmatpush1.bf16.msra.mxu0 %v3830
    %4297 = vmatprep.subr.bf16.mxu0 %v3837
    %4298 = vmatpush1.bf16.msra.mxu0 %v3836
    %4299 = vmatprep.mubr.bf16.mxu0 %v2495
    %4300 = vmatmul.mubr.bf16.gmra.mrb[0].mxu0 %v2494
    %v4301 = vpop.f32.mrb[0].mxu0
    %v4302 = vadd.f32 %v4261, %v4301
    %v4303 = vpop.f32.mrb[0].mxu0
    %v4304 = vadd.f32 %v4263, %v4303
    %v4305 = vpop.f32.mrb[0].mxu0
    %v4306 = vpop.f32.mrb[0].mxu0
    %4307 = vdwg.mxu0
    %4308 = vmatprep.subr.bf16.mxu0 %v3843
    %4309 = vmatpush1.bf16.msra.mxu0 %v3842
    %4310 = vmatprep.subr.bf16.mxu0 %v3849
    %4311 = vmatpush1.bf16.msra.mxu0 %v3848
    %4312 = vmatprep.subr.bf16.mxu0 %v3855
    %4313 = vmatpush1.bf16.msra.mxu0 %v3854
    %4314 = vmatprep.subr.bf16.mxu0 %v3861
    %4315 = vmatpush1.bf16.msra.mxu0 %v3860
    %4316 = vmatprep.subr.bf16.mxu0 %v3867
    %4317 = vmatpush1.bf16.msra.mxu0 %v3866
    %4318 = vmatprep.subr.bf16.mxu0 %v3873
    %4319 = vmatpush1.bf16.msra.mxu0 %v3872
    %4320 = vmatprep.subr.bf16.mxu0 %v3879
    %4321 = vmatpush1.bf16.msra.mxu0 %v3878
    %4322 = vmatprep.subr.bf16.mxu0 %v3885
    %4323 = vmatpush1.bf16.msra.mxu0 %v3884
    %4324 = vmatprep.subr.bf16.mxu0 %v3891
    %4325 = vmatpush1.bf16.msra.mxu0 %v3890
    %4326 = vmatprep.subr.bf16.mxu0 %v3897
    %4327 = vmatpush1.bf16.msra.mxu0 %v3896
    %4328 = vmatprep.subr.bf16.mxu0 %v3903
    %4329 = vmatpush1.bf16.msra.mxu0 %v3902
    %4330 = vmatprep.subr.bf16.mxu0 %v3909
    %4331 = vmatpush1.bf16.msra.mxu0 %v3908
    %4332 = vmatprep.subr.bf16.mxu0 %v3915
    %4333 = vmatpush1.bf16.msra.mxu0 %v3914
    %4334 = vmatprep.subr.bf16.mxu0 %v3921
    %4335 = vmatpush1.bf16.msra.mxu0 %v3920
    %4336 = vmatprep.subr.bf16.mxu0 %v3927
    %4337 = vmatpush1.bf16.msra.mxu0 %v3926
    %4338 = vmatprep.subr.bf16.mxu0 %v3933
    %4339 = vmatpush1.bf16.msra.mxu0 %v3932
    %4340 = vmatprep.mubr.bf16.mxu0 %v2497
    %4341 = vmatmul.mubr.bf16.gmra.mrb[0].mxu0 %v2496
    %v4342 = vpop.f32.mrb[0].mxu0
    %v4343 = vadd.f32 %v4302, %v4342
    %v4344 = vpop.f32.mrb[0].mxu0
    %v4345 = vadd.f32 %v4304, %v4344
    %v4346 = vpop.f32.mrb[0].mxu0
    %v4347 = vpop.f32.mrb[0].mxu0
    %4348 = vdwg.mxu0
    %4349 = vmatprep.subr.bf16.mxu0 %v3653
    %4350 = vmatpush1.bf16.msra.mxu0 %v3652
    %4351 = vmatprep.subr.bf16.mxu0 %v3659
    %4352 = vmatpush1.bf16.msra.mxu0 %v3658
    %4353 = vmatprep.subr.bf16.mxu0 %v3665
    %4354 = vmatpush1.bf16.msra.mxu0 %v3664
    %4355 = vmatprep.subr.bf16.mxu0 %v3671
    %4356 = vmatpush1.bf16.msra.mxu0 %v3670
    %4357 = vmatprep.subr.bf16.mxu0 %v3677
    %4358 = vmatpush1.bf16.msra.mxu0 %v3676
    %4359 = vmatprep.subr.bf16.mxu0 %v3683
    %4360 = vmatpush1.bf16.msra.mxu0 %v3682
    %4361 = vmatprep.subr.bf16.mxu0 %v3689
    %4362 = vmatpush1.bf16.msra.mxu0 %v3688
    %4363 = vmatprep.subr.bf16.mxu0 %v3695
    %4364 = vmatpush1.bf16.msra.mxu0 %v3694
    %4365 = vmatprep.subr.bf16.mxu0 %v3701
    %4366 = vmatpush1.bf16.msra.mxu0 %v3700
    %4367 = vmatprep.subr.bf16.mxu0 %v3707
    %4368 = vmatpush1.bf16.msra.mxu0 %v3706
    %4369 = vmatprep.subr.bf16.mxu0 %v3713
    %4370 = vmatpush1.bf16.msra.mxu0 %v3712
    %4371 = vmatprep.subr.bf16.mxu0 %v3719
    %4372 = vmatpush1.bf16.msra.mxu0 %v3718
    %4373 = vmatprep.subr.bf16.mxu0 %v3725
    %4374 = vmatpush1.bf16.msra.mxu0 %v3724
    %4375 = vmatprep.subr.bf16.mxu0 %v3731
    %4376 = vmatpush1.bf16.msra.mxu0 %v3730
    %4377 = vmatprep.subr.bf16.mxu0 %v3737
    %4378 = vmatpush1.bf16.msra.mxu0 %v3736
    %4379 = vmatprep.subr.bf16.mxu0 %v3743
    %4380 = vmatpush1.bf16.msra.mxu0 %v3742
    %4381 = vmatprep.mubr.bf16.mxu0 %v2493
    %4382 = vmatmul.mubr.bf16.gmra.mrb[0].mxu0 %v2492
    %v4383 = vpop.f32.mrb[0].mxu0
    %v4384 = vadd.f32 0.0, %v4383
    %v4385 = vpop.f32.mrb[0].mxu0
    %v4386 = vadd.f32 0.0, %v4385
    %v4387 = vpop.f32.mrb[0].mxu0
    %v4388 = vpop.f32.mrb[0].mxu0
    %4389 = vdwg.mxu0
    %4390 = vmatprep.subr.bf16.mxu0 %v3749
    %4391 = vmatpush1.bf16.msra.mxu0 %v3748
    %4392 = vmatprep.subr.bf16.mxu0 %v3755
    %4393 = vmatpush1.bf16.msra.mxu0 %v3754
    %4394 = vmatprep.subr.bf16.mxu0 %v3761
    %4395 = vmatpush1.bf16.msra.mxu0 %v3760
    %4396 = vmatprep.subr.bf16.mxu0 %v3767
    %4397 = vmatpush1.bf16.msra.mxu0 %v3766
    %4398 = vmatprep.subr.bf16.mxu0 %v3773
    %4399 = vmatpush1.bf16.msra.mxu0 %v3772
    %4400 = vmatprep.subr.bf16.mxu0 %v3779
    %4401 = vmatpush1.bf16.msra.mxu0 %v3778
    %4402 = vmatprep.subr.bf16.mxu0 %v3785
    %4403 = vmatpush1.bf16.msra.mxu0 %v3784
    %4404 = vmatprep.subr.bf16.mxu0 %v3791
    %4405 = vmatpush1.bf16.msra.mxu0 %v3790
    %4406 = vmatprep.subr.bf16.mxu0 %v3797
    %4407 = vmatpush1.bf16.msra.mxu0 %v3796
    %4408 = vmatprep.subr.bf16.mxu0 %v3803
    %4409 = vmatpush1.bf16.msra.mxu0 %v3802
    %4410 = vmatprep.subr.bf16.mxu0 %v3809
    %4411 = vmatpush1.bf16.msra.mxu0 %v3808
    %4412 = vmatprep.subr.bf16.mxu0 %v3815
    %4413 = vmatpush1.bf16.msra.mxu0 %v3814
    %4414 = vmatprep.subr.bf16.mxu0 %v3821
    %4415 = vmatpush1.bf16.msra.mxu0 %v3820
    %4416 = vmatprep.subr.bf16.mxu0 %v3827
    %4417 = vmatpush1.bf16.msra.mxu0 %v3826
    %4418 = vmatprep.subr.bf16.mxu0 %v3833
    %4419 = vmatpush1.bf16.msra.mxu0 %v3832
    %4420 = vmatprep.subr.bf16.mxu0 %v3839
    %4421 = vmatpush1.bf16.msra.mxu0 %v3838
    %4422 = vmatprep.mubr.bf16.mxu0 %v2495
    %4423 = vmatmul.mubr.bf16.gmra.mrb[0].mxu0 %v2494
    %v4424 = vpop.f32.mrb[0].mxu0
    %v4425 = vadd.f32 %v4384, %v4424
    %v4426 = vpop.f32.mrb[0].mxu0
    %v4427 = vadd.f32 %v4386, %v4426
    %v4428 = vpop.f32.mrb[0].mxu0
    %v4429 = vpop.f32.mrb[0].mxu0
    %4430 = vdwg.mxu0
    %4431 = vmatprep.subr.bf16.mxu0 %v3845
    %4432 = vmatpush1.bf16.msra.mxu0 %v3844
    %4433 = vmatprep.subr.bf16.mxu0 %v3851
    %4434 = vmatpush1.bf16.msra.mxu0 %v3850
    %4435 = vmatprep.subr.bf16.mxu0 %v3857
    %4436 = vmatpush1.bf16.msra.mxu0 %v3856
    %4437 = vmatprep.subr.bf16.mxu0 %v3863
    %4438 = vmatpush1.bf16.msra.mxu0 %v3862
    %4439 = vmatprep.subr.bf16.mxu0 %v3869
    %4440 = vmatpush1.bf16.msra.mxu0 %v3868
    %4441 = vmatprep.subr.bf16.mxu0 %v3875
    %4442 = vmatpush1.bf16.msra.mxu0 %v3874
    %4443 = vmatprep.subr.bf16.mxu0 %v3881
    %4444 = vmatpush1.bf16.msra.mxu0 %v3880
    %4445 = vmatprep.subr.bf16.mxu0 %v3887
    %4446 = vmatpush1.bf16.msra.mxu0 %v3886
    %4447 = vmatprep.subr.bf16.mxu0 %v3893
    %4448 = vmatpush1.bf16.msra.mxu0 %v3892
    %4449 = vmatprep.subr.bf16.mxu0 %v3899
    %4450 = vmatpush1.bf16.msra.mxu0 %v3898
    %4451 = vmatprep.subr.bf16.mxu0 %v3905
    %4452 = vmatpush1.bf16.msra.mxu0 %v3904
    %4453 = vmatprep.subr.bf16.mxu0 %v3911
    %4454 = vmatpush1.bf16.msra.mxu0 %v3910
    %4455 = vmatprep.subr.bf16.mxu0 %v3917
    %4456 = vmatpush1.bf16.msra.mxu0 %v3916
    %4457 = vmatprep.subr.bf16.mxu0 %v3923
    %4458 = vmatpush1.bf16.msra.mxu0 %v3922
    %4459 = vmatprep.subr.bf16.mxu0 %v3929
    %4460 = vmatpush1.bf16.msra.mxu0 %v3928
    %4461 = vmatprep.subr.bf16.mxu0 %v3935
    %4462 = vmatpush1.bf16.msra.mxu0 %v3934
    %4463 = vmatprep.mubr.bf16.mxu0 %v2497
    %4464 = vmatmul.mubr.bf16.gmra.mrb[0].mxu0 %v2496
    %v4465 = vpop.f32.mrb[0].mxu0
    %v4466 = vadd.f32 %v4425, %v4465
    %v4467 = vpop.f32.mrb[0].mxu0
    %v4468 = vadd.f32 %v4427, %v4467
    %v4469 = vpop.f32.mrb[0].mxu0
    %v4470 = vpop.f32.mrb[0].mxu0
    %4471 = vdwg.mxu0
    %4472 = vmatprep.subr.bf16.mxu0 %v3655
    %4473 = vmatpush1.bf16.msra.mxu0 %v3654
    %4474 = vmatprep.subr.bf16.mxu0 %v3661
    %4475 = vmatpush1.bf16.msra.mxu0 %v3660
    %4476 = vmatprep.subr.bf16.mxu0 %v3667
    %4477 = vmatpush1.bf16.msra.mxu0 %v3666
    %4478 = vmatprep.subr.bf16.mxu0 %v3673
    %4479 = vmatpush1.bf16.msra.mxu0 %v3672
    %4480 = vmatprep.subr.bf16.mxu0 %v3679
    %4481 = vmatpush1.bf16.msra.mxu0 %v3678
    %4482 = vmatprep.subr.bf16.mxu0 %v3685
    %4483 = vmatpush1.bf16.msra.mxu0 %v3684
    %4484 = vmatprep.subr.bf16.mxu0 %v3691
    %4485 = vmatpush1.bf16.msra.mxu0 %v3690
    %4486 = vmatprep.subr.bf16.mxu0 %v3697
    %4487 = vmatpush1.bf16.msra.mxu0 %v3696
    %4488 = vmatprep.subr.bf16.mxu0 %v3703
    %4489 = vmatpush1.bf16.msra.mxu0 %v3702
    %4490 = vmatprep.subr.bf16.mxu0 %v3709
    %4491 = vmatpush1.bf16.msra.mxu0 %v3708
    %4492 = vmatprep.subr.bf16.mxu0 %v3715
    %4493 = vmatpush1.bf16.msra.mxu0 %v3714
    %4494 = vmatprep.subr.bf16.mxu0 %v3721
    %4495 = vmatpush1.bf16.msra.mxu0 %v3720
    %4496 = vmatprep.subr.bf16.mxu0 %v3727
    %4497 = vmatpush1.bf16.msra.mxu0 %v3726
    %4498 = vmatprep.subr.bf16.mxu0 %v3733
    %4499 = vmatpush1.bf16.msra.mxu0 %v3732
    %4500 = vmatprep.subr.bf16.mxu0 %v3739
    %4501 = vmatpush1.bf16.msra.mxu0 %v3738
    %4502 = vmatprep.subr.bf16.mxu0 %v3745
    %4503 = vmatpush1.bf16.msra.mxu0 %v3744
    %4504 = vmatprep.mubr.bf16.mxu0 %v2493
    %4505 = vmatmul.mubr.bf16.gmra.mrb[0].mxu0 %v2492
    %v4506 = vpop.f32.mrb[0].mxu0
    %v4507 = vadd.f32 0.0, %v4506
    %v4508 = vpop.f32.mrb[0].mxu0
    %v4509 = vadd.f32 0.0, %v4508
    %v4510 = vpop.f32.mrb[0].mxu0
    %v4511 = vpop.f32.mrb[0].mxu0
    %4512 = vdwg.mxu0
    %4513 = vmatprep.subr.bf16.mxu0 %v3751
    %4514 = vmatpush1.bf16.msra.mxu0 %v3750
    %4515 = vmatprep.subr.bf16.mxu0 %v3757
    %4516 = vmatpush1.bf16.msra.mxu0 %v3756
    %4517 = vmatprep.subr.bf16.mxu0 %v3763
    %4518 = vmatpush1.bf16.msra.mxu0 %v3762
    %4519 = vmatprep.subr.bf16.mxu0 %v3769
    %4520 = vmatpush1.bf16.msra.mxu0 %v3768
    %4521 = vmatprep.subr.bf16.mxu0 %v3775
    %4522 = vmatpush1.bf16.msra.mxu0 %v3774
    %4523 = vmatprep.subr.bf16.mxu0 %v3781
    %4524 = vmatpush1.bf16.msra.mxu0 %v3780
    %4525 = vmatprep.subr.bf16.mxu0 %v3787
    %4526 = vmatpush1.bf16.msra.mxu0 %v3786
    %4527 = vmatprep.subr.bf16.mxu0 %v3793
    %4528 = vmatpush1.bf16.msra.mxu0 %v3792
    %4529 = vmatprep.subr.bf16.mxu0 %v3799
    %4530 = vmatpush1.bf16.msra.mxu0 %v3798
    %4531 = vmatprep.subr.bf16.mxu0 %v3805
    %4532 = vmatpush1.bf16.msra.mxu0 %v3804
    %4533 = vmatprep.subr.bf16.mxu0 %v3811
    %4534 = vmatpush1.bf16.msra.mxu0 %v3810
    %4535 = vmatprep.subr.bf16.mxu0 %v3817
    %4536 = vmatpush1.bf16.msra.mxu0 %v3816
    %4537 = vmatprep.subr.bf16.mxu0 %v3823
    %4538 = vmatpush1.bf16.msra.mxu0 %v3822
    %4539 = vmatprep.subr.bf16.mxu0 %v3829
    %4540 = vmatpush1.bf16.msra.mxu0 %v3828
    %4541 = vmatprep.subr.bf16.mxu0 %v3835
    %4542 = vmatpush1.bf16.msra.mxu0 %v3834
    %4543 = vmatprep.subr.bf16.mxu0 %v3841
    %4544 = vmatpush1.bf16.msra.mxu0 %v3840
    %4545 = vmatprep.mubr.bf16.mxu0 %v2495
    %4546 = vmatmul.mubr.bf16.gmra.mrb[0].mxu0 %v2494
    %v4547 = vpop.f32.mrb[0].mxu0
    %v4548 = vadd.f32 %v4507, %v4547
    %v4549 = vpop.f32.mrb[0].mxu0
    %v4550 = vadd.f32 %v4509, %v4549
    %v4551 = vpop.f32.mrb[0].mxu0
    %v4552 = vpop.f32.mrb[0].mxu0
    %4553 = vdwg.mxu0
    %4554 = vmatprep.subr.bf16.mxu0 %v3847
    %4555 = vmatpush1.bf16.msra.mxu0 %v3846
    %4556 = vmatprep.subr.bf16.mxu0 %v3853
    %4557 = vmatpush1.bf16.msra.mxu0 %v3852
    %4558 = vmatprep.subr.bf16.mxu0 %v3859
    %4559 = vmatpush1.bf16.msra.mxu0 %v3858
    %4560 = vmatprep.subr.bf16.mxu0 %v3865
    %4561 = vmatpush1.bf16.msra.mxu0 %v3864
    %4562 = vmatprep.subr.bf16.mxu0 %v3871
    %4563 = vmatpush1.bf16.msra.mxu0 %v3870
    %4564 = vmatprep.subr.bf16.mxu0 %v3877
    %4565 = vmatpush1.bf16.msra.mxu0 %v3876
    %4566 = vmatprep.subr.bf16.mxu0 %v3883
    %4567 = vmatpush1.bf16.msra.mxu0 %v3882
    %4568 = vmatprep.subr.bf16.mxu0 %v3889
    %4569 = vmatpush1.bf16.msra.mxu0 %v3888
    %4570 = vmatprep.subr.bf16.mxu0 %v3895
    %4571 = vmatpush1.bf16.msra.mxu0 %v3894
    %4572 = vmatprep.subr.bf16.mxu0 %v3901
    %4573 = vmatpush1.bf16.msra.mxu0 %v3900
    %4574 = vmatprep.subr.bf16.mxu0 %v3907
    %4575 = vmatpush1.bf16.msra.mxu0 %v3906
    %4576 = vmatprep.subr.bf16.mxu0 %v3913
    %4577 = vmatpush1.bf16.msra.mxu0 %v3912
    %4578 = vmatprep.subr.bf16.mxu0 %v3919
    %4579 = vmatpush1.bf16.msra.mxu0 %v3918
    %4580 = vmatprep.subr.bf16.mxu0 %v3925
    %4581 = vmatpush1.bf16.msra.mxu0 %v3924
    %4582 = vmatprep.subr.bf16.mxu0 %v3931
    %4583 = vmatpush1.bf16.msra.mxu0 %v3930
    %4584 = vmatprep.subr.bf16.mxu0 %v3937
    %4585 = vmatpush1.bf16.msra.mxu0 %v3936
    %4586 = vmatprep.mubr.bf16.mxu0 %v2497
    %4587 = vmatmul.mubr.bf16.gmra.mrb[0].mxu0 %v2496
    %v4588 = vpop.f32.mrb[0].mxu0
    %v4589 = vadd.f32 %v4548, %v4588
    %v4590 = vpop.f32.mrb[0].mxu0
    %v4591 = vadd.f32 %v4550, %v4590
    %v4592 = vpop.f32.mrb[0].mxu0
    %v4593 = vpop.f32.mrb[0].mxu0
    %4594 = vdwg.mxu0
    %v4595 = vmax.f32 %v4343, %v4466
    %v4596 = vmax.f32 %v4345, %v4468
    %v4597 = vmax.f32 %v4595, %v4589
    %v4598 = vmax.f32 %v4596, %v4591
    %v4599 = vld [vmem:[#allocation21] sm:$0x3]
    %v4601 = vlaneseq
    %v4602 = vshrl.u32 %v4601, 7
    %v4603 = vsub.s32 0, %v4602
    %v4604 = vrot.slane %v4599, %v4603
    %v4605 = vlaneseq
    %v4606 = vshrl.u32 %v4605, 7
    %v4607 = vsub.s32 1, %v4606
    %v4608 = vrot.slane %v4599, %v4607
    %v4611 = vadd.f32 %v4597, %v4604
    %v4612 = vadd.f32 %v4598, %v4608
    %v4613 = vmax.f32 %v4611, 0.0
    %v4614 = vmax.f32 %v4612, 0.0
    %v4615 = vpack.c.bf16 %v4613, %v4613
    %v4616 = vpack.c.bf16 %v4614, %v4614
    %v4617 = vld [vmem:[#allocation22] sm:$0xff]
    %v4618 = vld [vmem:[#allocation22 + $0x8] sm:$0xff]
    %v4619 = vld [vmem:[#allocation22 + $0x10] sm:$0xff]
    %v4620 = vld [vmem:[#allocation22 + $0x18] sm:$0xff]
    %v4621 = vld [vmem:[#allocation22 + $0x20] sm:$0xff]
    %v4622 = vld [vmem:[#allocation22 + $0x28] sm:$0xff]
    %v4623 = vld [vmem:[#allocation22 + $0x30] sm:$0xff]
    %v4624 = vld [vmem:[#allocation22 + $0x38] sm:$0xff]
    %v4625 = vld [vmem:[#allocation22 + $0x40] sm:$0xff]
    %v4626 = vld [vmem:[#allocation22 + $0x48] sm:$0xff]
    %v4627 = vld [vmem:[#allocation22 + $0x50] sm:$0xff]
    %v4628 = vld [vmem:[#allocation22 + $0x58] sm:$0xff]
    %v4629 = vld [vmem:[#allocation22 + $0x60] sm:$0xff]
    %v4630 = vld [vmem:[#allocation22 + $0x68] sm:$0xff]
    %v4631 = vld [vmem:[#allocation22 + $0x70] sm:$0xff]
    %v4632 = vld [vmem:[#allocation22 + $0x78] sm:$0xff]
    %v4633 = vld [vmem:[#allocation22 + $0x80] sm:$0xff]
    %v4634 = vld [vmem:[#allocation22 + $0x88] sm:$0xff]
    %v4635 = vld [vmem:[#allocation22 + $0x90] sm:$0xff]
    %v4636 = vld [vmem:[#allocation22 + $0x98] sm:$0xff]
    %v4637 = vld [vmem:[#allocation22 + $0xa0] sm:$0xff]
    %v4638 = vld [vmem:[#allocation22 + $0xa8] sm:$0xff]
    %v4639 = vld [vmem:[#allocation22 + $0xb0] sm:$0xff]
    %v4640 = vld [vmem:[#allocation22 + $0xb8] sm:$0xff]
    %v4641 = vld [vmem:[#allocation22 + $0xc0] sm:$0xff]
    %v4642 = vld [vmem:[#allocation22 + $0xc8] sm:$0xff]
    %v4643 = vld [vmem:[#allocation22 + $0xd0] sm:$0xff]
    %v4644 = vld [vmem:[#allocation22 + $0xd8] sm:$0xff]
    %v4645 = vld [vmem:[#allocation22 + $0xe0] sm:$0xff]
    %v4646 = vld [vmem:[#allocation22 + $0xe8] sm:$0xff]
    %v4647 = vld [vmem:[#allocation22 + $0xf0] sm:$0xff]
    %v4648 = vld [vmem:[#allocation22 + $0xf8] sm:$0xff]
    %v4649 = vld [vmem:[#allocation22 + $0x100] sm:$0xff]
    %v4650 = vld [vmem:[#allocation22 + $0x108] sm:$0xff]
    %v4651 = vld [vmem:[#allocation22 + $0x110] sm:$0xff]
    %v4652 = vld [vmem:[#allocation22 + $0x118] sm:$0xff]
    %v4653 = vld [vmem:[#allocation22 + $0x120] sm:$0xff]
    %v4654 = vld [vmem:[#allocation22 + $0x128] sm:$0xff]
    %v4655 = vld [vmem:[#allocation22 + $0x130] sm:$0xff]
    %v4656 = vld [vmem:[#allocation22 + $0x138] sm:$0xff]
    %v4657 = vld [vmem:[#allocation22 + $0x140] sm:$0xff]
    %v4658 = vld [vmem:[#allocation22 + $0x148] sm:$0xff]
    %v4659 = vld [vmem:[#allocation22 + $0x150] sm:$0xff]
    %v4660 = vld [vmem:[#allocation22 + $0x158] sm:$0xff]
    %v4661 = vld [vmem:[#allocation22 + $0x160] sm:$0xff]
    %v4662 = vld [vmem:[#allocation22 + $0x168] sm:$0xff]
    %v4663 = vld [vmem:[#allocation22 + $0x170] sm:$0xff]
    %v4664 = vld [vmem:[#allocation22 + $0x178] sm:$0xff]
    %v4665 = vld [vmem:[#allocation22 + $0x180] sm:$0xff]
    %v4666 = vld [vmem:[#allocation22 + $0x188] sm:$0xff]
    %v4667 = vld [vmem:[#allocation22 + $0x190] sm:$0xff]
    %v4668 = vld [vmem:[#allocation22 + $0x198] sm:$0xff]
    %v4669 = vld [vmem:[#allocation22 + $0x1a0] sm:$0xff]
    %v4670 = vld [vmem:[#allocation22 + $0x1a8] sm:$0xff]
    %v4671 = vld [vmem:[#allocation22 + $0x1b0] sm:$0xff]
    %v4672 = vld [vmem:[#allocation22 + $0x1b8] sm:$0xff]
    %v4673 = vld [vmem:[#allocation22 + $0x1c0] sm:$0xff]
    %v4674 = vld [vmem:[#allocation22 + $0x1c8] sm:$0xff]
    %v4675 = vld [vmem:[#allocation22 + $0x1d0] sm:$0xff]
    %v4676 = vld [vmem:[#allocation22 + $0x1d8] sm:$0xff]
    %v4677 = vld [vmem:[#allocation22 + $0x1e0] sm:$0xff]
    %v4678 = vld [vmem:[#allocation22 + $0x1e8] sm:$0xff]
    %v4679 = vld [vmem:[#allocation22 + $0x1f0] sm:$0xff]
    %v4680 = vld [vmem:[#allocation22 + $0x1f8] sm:$0xff]
    %v4681 = vld [vmem:[#allocation22 + $0x200] sm:$0xff]
    %v4682 = vld [vmem:[#allocation22 + $0x208] sm:$0xff]
    %v4683 = vld [vmem:[#allocation22 + $0x210] sm:$0xff]
    %v4684 = vld [vmem:[#allocation22 + $0x218] sm:$0xff]
    %v4685 = vld [vmem:[#allocation22 + $0x220] sm:$0xff]
    %v4686 = vld [vmem:[#allocation22 + $0x228] sm:$0xff]
    %v4687 = vld [vmem:[#allocation22 + $0x230] sm:$0xff]
    %v4688 = vld [vmem:[#allocation22 + $0x238] sm:$0xff]
    %v4689 = vld [vmem:[#allocation22 + $0x240] sm:$0xff]
    %v4690 = vld [vmem:[#allocation22 + $0x248] sm:$0xff]
    %v4691 = vld [vmem:[#allocation22 + $0x250] sm:$0xff]
    %v4692 = vld [vmem:[#allocation22 + $0x258] sm:$0xff]
    %v4693 = vld [vmem:[#allocation22 + $0x260] sm:$0xff]
    %v4694 = vld [vmem:[#allocation22 + $0x268] sm:$0xff]
    %v4695 = vld [vmem:[#allocation22 + $0x270] sm:$0xff]
    %v4696 = vld [vmem:[#allocation22 + $0x278] sm:$0xff]
    %v4697 = vld [vmem:[#allocation22 + $0x280] sm:$0xff]
    %v4698 = vld [vmem:[#allocation22 + $0x288] sm:$0xff]
    %v4699 = vld [vmem:[#allocation22 + $0x290] sm:$0xff]
    %v4700 = vld [vmem:[#allocation22 + $0x298] sm:$0xff]
    %v4701 = vld [vmem:[#allocation22 + $0x2a0] sm:$0xff]
    %v4702 = vld [vmem:[#allocation22 + $0x2a8] sm:$0xff]
    %v4703 = vld [vmem:[#allocation22 + $0x2b0] sm:$0xff]
    %v4704 = vld [vmem:[#allocation22 + $0x2b8] sm:$0xff]
    %v4705 = vld [vmem:[#allocation22 + $0x2c0] sm:$0xff]
    %v4706 = vld [vmem:[#allocation22 + $0x2c8] sm:$0xff]
    %v4707 = vld [vmem:[#allocation22 + $0x2d0] sm:$0xff]
    %v4708 = vld [vmem:[#allocation22 + $0x2d8] sm:$0xff]
    %v4709 = vld [vmem:[#allocation22 + $0x2e0] sm:$0xff]
    %v4710 = vld [vmem:[#allocation22 + $0x2e8] sm:$0xff]
    %v4711 = vld [vmem:[#allocation22 + $0x2f0] sm:$0xff]
    %v4712 = vld [vmem:[#allocation22 + $0x2f8] sm:$0xff]
    %v4713 = vld [vmem:[#allocation24] sm:$0x3f]
    %v4715 = vlaneseq
    %v4716 = vshrl.u32 %v4715, 7
    %v4717 = vsub.s32 0, %v4716
    %v4718 = vrot.slane %v4713, %v4717
    %v4719 = vlaneseq
    %v4720 = vshrl.u32 %v4719, 7
    %v4721 = vsub.s32 1, %v4720
    %v4722 = vrot.slane %v4713, %v4721
    %v4723 = vlaneseq
    %v4724 = vshrl.u32 %v4723, 7
    %v4725 = vsub.s32 2, %v4724
    %v4726 = vrot.slane %v4713, %v4725
    %v4727 = vlaneseq
    %v4728 = vshrl.u32 %v4727, 7
    %v4729 = vsub.s32 3, %v4728
    %v4730 = vrot.slane %v4713, %v4729
    %v4731 = vlaneseq
    %v4732 = vshrl.u32 %v4731, 7
    %v4733 = vsub.s32 4, %v4732
    %v4734 = vrot.slane %v4713, %v4733
    %v4735 = vlaneseq
    %v4736 = vshrl.u32 %v4735, 7
    %v4737 = vsub.s32 5, %v4736
    %v4738 = vrot.slane %v4713, %v4737
    %v4841 = vunpack.c.l.b16 %v4617
    %v4842 = vunpack.c.h.b16 %v4617
    %v4843 = vunpack.c.l.b16 %v4618
    %v4844 = vunpack.c.h.b16 %v4618
    %v4845 = vunpack.c.l.b16 %v4619
    %v4846 = vunpack.c.h.b16 %v4619
    %v4847 = vunpack.c.l.b16 %v4620
    %v4848 = vunpack.c.h.b16 %v4620
    %v4849 = vunpack.c.l.b16 %v4621
    %v4850 = vunpack.c.h.b16 %v4621
    %v4851 = vunpack.c.l.b16 %v4622
    %v4852 = vunpack.c.h.b16 %v4622
    %v4853 = vunpack.c.l.b16 %v4623
    %v4854 = vunpack.c.h.b16 %v4623
    %v4855 = vunpack.c.l.b16 %v4624
    %v4856 = vunpack.c.h.b16 %v4624
    %v4857 = vunpack.c.l.b16 %v4625
    %v4858 = vunpack.c.h.b16 %v4625
    %v4859 = vunpack.c.l.b16 %v4626
    %v4860 = vunpack.c.h.b16 %v4626
    %v4861 = vunpack.c.l.b16 %v4627
    %v4862 = vunpack.c.h.b16 %v4627
    %v4863 = vunpack.c.l.b16 %v4628
    %v4864 = vunpack.c.h.b16 %v4628
    %v4865 = vunpack.c.l.b16 %v4629
    %v4866 = vunpack.c.h.b16 %v4629
    %v4867 = vunpack.c.l.b16 %v4630
    %v4868 = vunpack.c.h.b16 %v4630
    %v4869 = vunpack.c.l.b16 %v4631
    %v4870 = vunpack.c.h.b16 %v4631
    %v4871 = vunpack.c.l.b16 %v4632
    %v4872 = vunpack.c.h.b16 %v4632
    %v4873 = vunpack.c.l.b16 %v4633
    %v4874 = vunpack.c.h.b16 %v4633
    %v4875 = vunpack.c.l.b16 %v4634
    %v4876 = vunpack.c.h.b16 %v4634
    %v4877 = vunpack.c.l.b16 %v4635
    %v4878 = vunpack.c.h.b16 %v4635
    %v4879 = vunpack.c.l.b16 %v4636
    %v4880 = vunpack.c.h.b16 %v4636
    %v4881 = vunpack.c.l.b16 %v4637
    %v4882 = vunpack.c.h.b16 %v4637
    %v4883 = vunpack.c.l.b16 %v4638
    %v4884 = vunpack.c.h.b16 %v4638
    %v4885 = vunpack.c.l.b16 %v4639
    %v4886 = vunpack.c.h.b16 %v4639
    %v4887 = vunpack.c.l.b16 %v4640
    %v4888 = vunpack.c.h.b16 %v4640
    %v4889 = vunpack.c.l.b16 %v4641
    %v4890 = vunpack.c.h.b16 %v4641
    %v4891 = vunpack.c.l.b16 %v4642
    %v4892 = vunpack.c.h.b16 %v4642
    %v4893 = vunpack.c.l.b16 %v4643
    %v4894 = vunpack.c.h.b16 %v4643
    %v4895 = vunpack.c.l.b16 %v4644
    %v4896 = vunpack.c.h.b16 %v4644
    %v4897 = vunpack.c.l.b16 %v4645
    %v4898 = vunpack.c.h.b16 %v4645
    %v4899 = vunpack.c.l.b16 %v4646
    %v4900 = vunpack.c.h.b16 %v4646
    %v4901 = vunpack.c.l.b16 %v4647
    %v4902 = vunpack.c.h.b16 %v4647
    %v4903 = vunpack.c.l.b16 %v4648
    %v4904 = vunpack.c.h.b16 %v4648
    %v4905 = vunpack.c.l.b16 %v4649
    %v4906 = vunpack.c.h.b16 %v4649
    %v4907 = vunpack.c.l.b16 %v4650
    %v4908 = vunpack.c.h.b16 %v4650
    %v4909 = vunpack.c.l.b16 %v4651
    %v4910 = vunpack.c.h.b16 %v4651
    %v4911 = vunpack.c.l.b16 %v4652
    %v4912 = vunpack.c.h.b16 %v4652
    %v4913 = vunpack.c.l.b16 %v4653
    %v4914 = vunpack.c.h.b16 %v4653
    %v4915 = vunpack.c.l.b16 %v4654
    %v4916 = vunpack.c.h.b16 %v4654
    %v4917 = vunpack.c.l.b16 %v4655
    %v4918 = vunpack.c.h.b16 %v4655
    %v4919 = vunpack.c.l.b16 %v4656
    %v4920 = vunpack.c.h.b16 %v4656
    %v4921 = vunpack.c.l.b16 %v4657
    %v4922 = vunpack.c.h.b16 %v4657
    %v4923 = vunpack.c.l.b16 %v4658
    %v4924 = vunpack.c.h.b16 %v4658
    %v4925 = vunpack.c.l.b16 %v4659
    %v4926 = vunpack.c.h.b16 %v4659
    %v4927 = vunpack.c.l.b16 %v4660
    %v4928 = vunpack.c.h.b16 %v4660
    %v4929 = vunpack.c.l.b16 %v4661
    %v4930 = vunpack.c.h.b16 %v4661
    %v4931 = vunpack.c.l.b16 %v4662
    %v4932 = vunpack.c.h.b16 %v4662
    %v4933 = vunpack.c.l.b16 %v4663
    %v4934 = vunpack.c.h.b16 %v4663
    %v4935 = vunpack.c.l.b16 %v4664
    %v4936 = vunpack.c.h.b16 %v4664
    %v4937 = vunpack.c.l.b16 %v4665
    %v4938 = vunpack.c.h.b16 %v4665
    %v4939 = vunpack.c.l.b16 %v4666
    %v4940 = vunpack.c.h.b16 %v4666
    %v4941 = vunpack.c.l.b16 %v4667
    %v4942 = vunpack.c.h.b16 %v4667
    %v4943 = vunpack.c.l.b16 %v4668
    %v4944 = vunpack.c.h.b16 %v4668
    %v4945 = vunpack.c.l.b16 %v4669
    %v4946 = vunpack.c.h.b16 %v4669
    %v4947 = vunpack.c.l.b16 %v4670
    %v4948 = vunpack.c.h.b16 %v4670
    %v4949 = vunpack.c.l.b16 %v4671
    %v4950 = vunpack.c.h.b16 %v4671
    %v4951 = vunpack.c.l.b16 %v4672
    %v4952 = vunpack.c.h.b16 %v4672
    %v4953 = vunpack.c.l.b16 %v4673
    %v4954 = vunpack.c.h.b16 %v4673
    %v4955 = vunpack.c.l.b16 %v4674
    %v4956 = vunpack.c.h.b16 %v4674
    %v4957 = vunpack.c.l.b16 %v4675
    %v4958 = vunpack.c.h.b16 %v4675
    %v4959 = vunpack.c.l.b16 %v4676
    %v4960 = vunpack.c.h.b16 %v4676
    %v4961 = vunpack.c.l.b16 %v4677
    %v4962 = vunpack.c.h.b16 %v4677
    %v4963 = vunpack.c.l.b16 %v4678
    %v4964 = vunpack.c.h.b16 %v4678
    %v4965 = vunpack.c.l.b16 %v4679
    %v4966 = vunpack.c.h.b16 %v4679
    %v4967 = vunpack.c.l.b16 %v4680
    %v4968 = vunpack.c.h.b16 %v4680
    %v4969 = vunpack.c.l.b16 %v4681
    %v4970 = vunpack.c.h.b16 %v4681
    %v4971 = vunpack.c.l.b16 %v4682
    %v4972 = vunpack.c.h.b16 %v4682
    %v4973 = vunpack.c.l.b16 %v4683
    %v4974 = vunpack.c.h.b16 %v4683
    %v4975 = vunpack.c.l.b16 %v4684
    %v4976 = vunpack.c.h.b16 %v4684
    %v4977 = vunpack.c.l.b16 %v4685
    %v4978 = vunpack.c.h.b16 %v4685
    %v4979 = vunpack.c.l.b16 %v4686
    %v4980 = vunpack.c.h.b16 %v4686
    %v4981 = vunpack.c.l.b16 %v4687
    %v4982 = vunpack.c.h.b16 %v4687
    %v4983 = vunpack.c.l.b16 %v4688
    %v4984 = vunpack.c.h.b16 %v4688
    %v4985 = vunpack.c.l.b16 %v4689
    %v4986 = vunpack.c.h.b16 %v4689
    %v4987 = vunpack.c.l.b16 %v4690
    %v4988 = vunpack.c.h.b16 %v4690
    %v4989 = vunpack.c.l.b16 %v4691
    %v4990 = vunpack.c.h.b16 %v4691
    %v4991 = vunpack.c.l.b16 %v4692
    %v4992 = vunpack.c.h.b16 %v4692
    %v4993 = vunpack.c.l.b16 %v4693
    %v4994 = vunpack.c.h.b16 %v4693
    %v4995 = vunpack.c.l.b16 %v4694
    %v4996 = vunpack.c.h.b16 %v4694
    %v4997 = vunpack.c.l.b16 %v4695
    %v4998 = vunpack.c.h.b16 %v4695
    %v4999 = vunpack.c.l.b16 %v4696
    %v5000 = vunpack.c.h.b16 %v4696
    %v5001 = vunpack.c.l.b16 %v4697
    %v5002 = vunpack.c.h.b16 %v4697
    %v5003 = vunpack.c.l.b16 %v4698
    %v5004 = vunpack.c.h.b16 %v4698
    %v5005 = vunpack.c.l.b16 %v4699
    %v5006 = vunpack.c.h.b16 %v4699
    %v5007 = vunpack.c.l.b16 %v4700
    %v5008 = vunpack.c.h.b16 %v4700
    %v5009 = vunpack.c.l.b16 %v4701
    %v5010 = vunpack.c.h.b16 %v4701
    %v5011 = vunpack.c.l.b16 %v4702
    %v5012 = vunpack.c.h.b16 %v4702
    %v5013 = vunpack.c.l.b16 %v4703
    %v5014 = vunpack.c.h.b16 %v4703
    %v5015 = vunpack.c.l.b16 %v4704
    %v5016 = vunpack.c.h.b16 %v4704
    %v5017 = vunpack.c.l.b16 %v4705
    %v5018 = vunpack.c.h.b16 %v4705
    %v5019 = vunpack.c.l.b16 %v4706
    %v5020 = vunpack.c.h.b16 %v4706
    %v5021 = vunpack.c.l.b16 %v4707
    %v5022 = vunpack.c.h.b16 %v4707
    %v5023 = vunpack.c.l.b16 %v4708
    %v5024 = vunpack.c.h.b16 %v4708
    %v5025 = vunpack.c.l.b16 %v4709
    %v5026 = vunpack.c.h.b16 %v4709
    %v5027 = vunpack.c.l.b16 %v4710
    %v5028 = vunpack.c.h.b16 %v4710
    %v5029 = vunpack.c.l.b16 %v4711
    %v5030 = vunpack.c.h.b16 %v4711
    %v5031 = vunpack.c.l.b16 %v4712
    %v5032 = vunpack.c.h.b16 %v4712
    %v5033 = vpack.c.b16 %v4847, %v4841
    %v5034 = vpack.c.b16 %v4848, %v4842
    %v5035 = vpack.c.b16 %v4849, %v4843
    %v5036 = vpack.c.b16 %v4850, %v4844
    %v5037 = vpack.c.b16 %v4851, %v4845
    %v5038 = vpack.c.b16 %v4852, %v4846
    %v5039 = vpack.c.b16 %v4859, %v4853
    %v5040 = vpack.c.b16 %v4860, %v4854
    %v5041 = vpack.c.b16 %v4861, %v4855
    %v5042 = vpack.c.b16 %v4862, %v4856
    %v5043 = vpack.c.b16 %v4863, %v4857
    %v5044 = vpack.c.b16 %v4864, %v4858
    %v5045 = vpack.c.b16 %v4871, %v4865
    %v5046 = vpack.c.b16 %v4872, %v4866
    %v5047 = vpack.c.b16 %v4873, %v4867
    %v5048 = vpack.c.b16 %v4874, %v4868
    %v5049 = vpack.c.b16 %v4875, %v4869
    %v5050 = vpack.c.b16 %v4876, %v4870
    %v5051 = vpack.c.b16 %v4883, %v4877
    %v5052 = vpack.c.b16 %v4884, %v4878
    %v5053 = vpack.c.b16 %v4885, %v4879
    %v5054 = vpack.c.b16 %v4886, %v4880
    %v5055 = vpack.c.b16 %v4887, %v4881
    %v5056 = vpack.c.b16 %v4888, %v4882
    %v5057 = vpack.c.b16 %v4895, %v4889
    %v5058 = vpack.c.b16 %v4896, %v4890
    %v5059 = vpack.c.b16 %v4897, %v4891
    %v5060 = vpack.c.b16 %v4898, %v4892
    %v5061 = vpack.c.b16 %v4899, %v4893
    %v5062 = vpack.c.b16 %v4900, %v4894
    %v5063 = vpack.c.b16 %v4907, %v4901
    %v5064 = vpack.c.b16 %v4908, %v4902
    %v5065 = vpack.c.b16 %v4909, %v4903
    %v5066 = vpack.c.b16 %v4910, %v4904
    %v5067 = vpack.c.b16 %v4911, %v4905
    %v5068 = vpack.c.b16 %v4912, %v4906
    %v5069 = vpack.c.b16 %v4919, %v4913
    %v5070 = vpack.c.b16 %v4920, %v4914
    %v5071 = vpack.c.b16 %v4921, %v4915
    %v5072 = vpack.c.b16 %v4922, %v4916
    %v5073 = vpack.c.b16 %v4923, %v4917
    %v5074 = vpack.c.b16 %v4924, %v4918
    %v5075 = vpack.c.b16 %v4931, %v4925
    %v5076 = vpack.c.b16 %v4932, %v4926
    %v5077 = vpack.c.b16 %v4933, %v4927
    %v5078 = vpack.c.b16 %v4934, %v4928
    %v5079 = vpack.c.b16 %v4935, %v4929
    %v5080 = vpack.c.b16 %v4936, %v4930
    %v5081 = vpack.c.b16 %v4943, %v4937
    %v5082 = vpack.c.b16 %v4944, %v4938
    %v5083 = vpack.c.b16 %v4945, %v4939
    %v5084 = vpack.c.b16 %v4946, %v4940
    %v5085 = vpack.c.b16 %v4947, %v4941
    %v5086 = vpack.c.b16 %v4948, %v4942
    %v5087 = vpack.c.b16 %v4955, %v4949
    %v5088 = vpack.c.b16 %v4956, %v4950
    %v5089 = vpack.c.b16 %v4957, %v4951
    %v5090 = vpack.c.b16 %v4958, %v4952
    %v5091 = vpack.c.b16 %v4959, %v4953
    %v5092 = vpack.c.b16 %v4960, %v4954
    %v5093 = vpack.c.b16 %v4967, %v4961
    %v5094 = vpack.c.b16 %v4968, %v4962
    %v5095 = vpack.c.b16 %v4969, %v4963
    %v5096 = vpack.c.b16 %v4970, %v4964
    %v5097 = vpack.c.b16 %v4971, %v4965
    %v5098 = vpack.c.b16 %v4972, %v4966
    %v5099 = vpack.c.b16 %v4979, %v4973
    %v5100 = vpack.c.b16 %v4980, %v4974
    %v5101 = vpack.c.b16 %v4981, %v4975
    %v5102 = vpack.c.b16 %v4982, %v4976
    %v5103 = vpack.c.b16 %v4983, %v4977
    %v5104 = vpack.c.b16 %v4984, %v4978
    %v5105 = vpack.c.b16 %v4991, %v4985
    %v5106 = vpack.c.b16 %v4992, %v4986
    %v5107 = vpack.c.b16 %v4993, %v4987
    %v5108 = vpack.c.b16 %v4994, %v4988
    %v5109 = vpack.c.b16 %v4995, %v4989
    %v5110 = vpack.c.b16 %v4996, %v4990
    %v5111 = vpack.c.b16 %v5003, %v4997
    %v5112 = vpack.c.b16 %v5004, %v4998
    %v5113 = vpack.c.b16 %v5005, %v4999
    %v5114 = vpack.c.b16 %v5006, %v5000
    %v5115 = vpack.c.b16 %v5007, %v5001
    %v5116 = vpack.c.b16 %v5008, %v5002
    %v5117 = vpack.c.b16 %v5015, %v5009
    %v5118 = vpack.c.b16 %v5016, %v5010
    %v5119 = vpack.c.b16 %v5017, %v5011
    %v5120 = vpack.c.b16 %v5018, %v5012
    %v5121 = vpack.c.b16 %v5019, %v5013
    %v5122 = vpack.c.b16 %v5020, %v5014
    %v5123 = vpack.c.b16 %v5027, %v5021
    %v5124 = vpack.c.b16 %v5028, %v5022
    %v5125 = vpack.c.b16 %v5029, %v5023
    %v5126 = vpack.c.b16 %v5030, %v5024
    %v5127 = vpack.c.b16 %v5031, %v5025
    %v5128 = vpack.c.b16 %v5032, %v5026
    %5225 = vmatprep.subr.bf16.mxu0 %v5034
    %5226 = vmatpush1.bf16.msra.mxu0 %v5033
    %5227 = vmatprep.subr.bf16.mxu0 %v5040
    %5228 = vmatpush1.bf16.msra.mxu0 %v5039
    %5229 = vmatprep.subr.bf16.mxu0 %v5046
    %5230 = vmatpush1.bf16.msra.mxu0 %v5045
    %5231 = vmatprep.subr.bf16.mxu0 %v5052
    %5232 = vmatpush1.bf16.msra.mxu0 %v5051
    %5233 = vmatprep.subr.bf16.mxu0 %v5058
    %5234 = vmatpush1.bf16.msra.mxu0 %v5057
    %5235 = vmatprep.subr.bf16.mxu0 %v5064
    %5236 = vmatpush1.bf16.msra.mxu0 %v5063
    %5237 = vmatprep.subr.bf16.mxu0 %v5070
    %5238 = vmatpush1.bf16.msra.mxu0 %v5069
    %5239 = vmatprep.subr.bf16.mxu0 %v5076
    %5240 = vmatpush1.bf16.msra.mxu0 %v5075
    %5241 = vmatprep.subr.bf16.mxu0 %v5082
    %5242 = vmatpush1.bf16.msra.mxu0 %v5081
    %5243 = vmatprep.subr.bf16.mxu0 %v5088
    %5244 = vmatpush1.bf16.msra.mxu0 %v5087
    %5245 = vmatprep.subr.bf16.mxu0 %v5094
    %5246 = vmatpush1.bf16.msra.mxu0 %v5093
    %5247 = vmatprep.subr.bf16.mxu0 %v5100
    %5248 = vmatpush1.bf16.msra.mxu0 %v5099
    %5249 = vmatprep.subr.bf16.mxu0 %v5106
    %5250 = vmatpush1.bf16.msra.mxu0 %v5105
    %5251 = vmatprep.subr.bf16.mxu0 %v5112
    %5252 = vmatpush1.bf16.msra.mxu0 %v5111
    %5253 = vmatprep.subr.bf16.mxu0 %v5118
    %5254 = vmatpush1.bf16.msra.mxu0 %v5117
    %5255 = vmatprep.subr.bf16.mxu0 %v5124
    %5256 = vmatpush1.bf16.msra.mxu0 %v5123
    %5257 = vmatprep.mubr.bf16.mxu0 %v4616
    %5258 = vmatmul.mubr.bf16.gmra.mrb[0].mxu0 %v4615
    %v5259 = vpop.f32.mrb[0].mxu0
    %v5260 = vadd.f32 %v4718, %v5259
    %v5261 = vpop.f32.mrb[0].mxu0
    %v5262 = vadd.f32 %v4722, %v5261
    %v5263 = vpop.f32.mrb[0].mxu0
    %v5264 = vpop.f32.mrb[0].mxu0
    %5265 = vdwg.mxu0
    %5266 = vmatprep.subr.bf16.mxu0 %v5036
    %5267 = vmatpush1.bf16.msra.mxu0 %v5035
    %5268 = vmatprep.subr.bf16.mxu0 %v5042
    %5269 = vmatpush1.bf16.msra.mxu0 %v5041
    %5270 = vmatprep.subr.bf16.mxu0 %v5048
    %5271 = vmatpush1.bf16.msra.mxu0 %v5047
    %5272 = vmatprep.subr.bf16.mxu0 %v5054
    %5273 = vmatpush1.bf16.msra.mxu0 %v5053
    %5274 = vmatprep.subr.bf16.mxu0 %v5060
    %5275 = vmatpush1.bf16.msra.mxu0 %v5059
    %5276 = vmatprep.subr.bf16.mxu0 %v5066
    %5277 = vmatpush1.bf16.msra.mxu0 %v5065
    %5278 = vmatprep.subr.bf16.mxu0 %v5072
    %5279 = vmatpush1.bf16.msra.mxu0 %v5071
    %5280 = vmatprep.subr.bf16.mxu0 %v5078
    %5281 = vmatpush1.bf16.msra.mxu0 %v5077
    %5282 = vmatprep.subr.bf16.mxu0 %v5084
    %5283 = vmatpush1.bf16.msra.mxu0 %v5083
    %5284 = vmatprep.subr.bf16.mxu0 %v5090
    %5285 = vmatpush1.bf16.msra.mxu0 %v5089
    %5286 = vmatprep.subr.bf16.mxu0 %v5096
    %5287 = vmatpush1.bf16.msra.mxu0 %v5095
    %5288 = vmatprep.subr.bf16.mxu0 %v5102
    %5289 = vmatpush1.bf16.msra.mxu0 %v5101
    %5290 = vmatprep.subr.bf16.mxu0 %v5108
    %5291 = vmatpush1.bf16.msra.mxu0 %v5107
    %5292 = vmatprep.subr.bf16.mxu0 %v5114
    %5293 = vmatpush1.bf16.msra.mxu0 %v5113
    %5294 = vmatprep.subr.bf16.mxu0 %v5120
    %5295 = vmatpush1.bf16.msra.mxu0 %v5119
    %5296 = vmatprep.subr.bf16.mxu0 %v5126
    %5297 = vmatpush1.bf16.msra.mxu0 %v5125
    %5298 = vmatprep.mubr.bf16.mxu0 %v4616
    %5299 = vmatmul.mubr.bf16.gmra.mrb[0].mxu0 %v4615
    %v5300 = vpop.f32.mrb[0].mxu0
    %v5301 = vadd.f32 %v4726, %v5300
    %v5302 = vpop.f32.mrb[0].mxu0
    %v5303 = vadd.f32 %v4730, %v5302
    %v5304 = vpop.f32.mrb[0].mxu0
    %v5305 = vpop.f32.mrb[0].mxu0
    %5306 = vdwg.mxu0
    %5307 = vmatprep.subr.bf16.mxu0 %v5038
    %5308 = vmatpush1.bf16.msra.mxu0 %v5037
    %5309 = vmatprep.subr.bf16.mxu0 %v5044
    %5310 = vmatpush1.bf16.msra.mxu0 %v5043
    %5311 = vmatprep.subr.bf16.mxu0 %v5050
    %5312 = vmatpush1.bf16.msra.mxu0 %v5049
    %5313 = vmatprep.subr.bf16.mxu0 %v5056
    %5314 = vmatpush1.bf16.msra.mxu0 %v5055
    %5315 = vmatprep.subr.bf16.mxu0 %v5062
    %5316 = vmatpush1.bf16.msra.mxu0 %v5061
    %5317 = vmatprep.subr.bf16.mxu0 %v5068
    %5318 = vmatpush1.bf16.msra.mxu0 %v5067
    %5319 = vmatprep.subr.bf16.mxu0 %v5074
    %5320 = vmatpush1.bf16.msra.mxu0 %v5073
    %5321 = vmatprep.subr.bf16.mxu0 %v5080
    %5322 = vmatpush1.bf16.msra.mxu0 %v5079
    %5323 = vmatprep.subr.bf16.mxu0 %v5086
    %5324 = vmatpush1.bf16.msra.mxu0 %v5085
    %5325 = vmatprep.subr.bf16.mxu0 %v5092
    %5326 = vmatpush1.bf16.msra.mxu0 %v5091
    %5327 = vmatprep.subr.bf16.mxu0 %v5098
    %5328 = vmatpush1.bf16.msra.mxu0 %v5097
    %5329 = vmatprep.subr.bf16.mxu0 %v5104
    %5330 = vmatpush1.bf16.msra.mxu0 %v5103
    %5331 = vmatprep.subr.bf16.mxu0 %v5110
    %5332 = vmatpush1.bf16.msra.mxu0 %v5109
    %5333 = vmatprep.subr.bf16.mxu0 %v5116
    %5334 = vmatpush1.bf16.msra.mxu0 %v5115
    %5335 = vmatprep.subr.bf16.mxu0 %v5122
    %5336 = vmatpush1.bf16.msra.mxu0 %v5121
    %5337 = vmatprep.subr.bf16.mxu0 %v5128
    %5338 = vmatpush1.bf16.msra.mxu0 %v5127
    %5339 = vmatprep.mubr.bf16.mxu0 %v4616
    %5340 = vmatmul.mubr.bf16.gmra.mrb[0].mxu0 %v4615
    %v5341 = vpop.f32.mrb[0].mxu0
    %v5342 = vadd.f32 %v4734, %v5341
    %v5343 = vpop.f32.mrb[0].mxu0
    %v5344 = vadd.f32 %v4738, %v5343
    %v5345 = vpop.f32.mrb[0].mxu0
    %v5346 = vpop.f32.mrb[0].mxu0
    %5347 = vdwg.mxu0
    %v5348 = vmax.f32 %v5260, 0.0
    %v5349 = vmax.f32 %v5262, 0.0
    %v5350 = vmax.f32 %v5301, 0.0
    %v5351 = vmax.f32 %v5303, 0.0
    %v5352 = vmax.f32 %v5342, 0.0
    %v5353 = vmax.f32 %v5344, 0.0
    %v5354 = vpack.c.bf16 %v5348, %v5348
    %v5355 = vpack.c.bf16 %v5349, %v5349
    %v5356 = vpack.c.bf16 %v5350, %v5350
    %v5357 = vpack.c.bf16 %v5351, %v5351
    %v5358 = vpack.c.bf16 %v5352, %v5352
    %v5359 = vpack.c.bf16 %v5353, %v5353
    %v5360 = vld [vmem:[#allocation25] sm:$0xff]
    %v5361 = vld [vmem:[#allocation25 + $0x8] sm:$0xff]
    %v5362 = vld [vmem:[#allocation25 + $0x10] sm:$0xff]
    %v5363 = vld [vmem:[#allocation25 + $0x18] sm:$0xff]
    %v5364 = vld [vmem:[#allocation25 + $0x20] sm:$0xff]
    %v5365 = vld [vmem:[#allocation25 + $0x28] sm:$0xff]
    %v5366 = vld [vmem:[#allocation25 + $0x30] sm:$0xff]
    %v5367 = vld [vmem:[#allocation25 + $0x38] sm:$0xff]
    %v5368 = vld [vmem:[#allocation25 + $0x40] sm:$0xff]
    %v5369 = vld [vmem:[#allocation25 + $0x48] sm:$0xff]
    %v5370 = vld [vmem:[#allocation25 + $0x50] sm:$0xff]
    %v5371 = vld [vmem:[#allocation25 + $0x58] sm:$0xff]
    %v5372 = vld [vmem:[#allocation25 + $0x60] sm:$0xff]
    %v5373 = vld [vmem:[#allocation25 + $0x68] sm:$0xff]
    %v5374 = vld [vmem:[#allocation25 + $0x70] sm:$0xff]
    %v5375 = vld [vmem:[#allocation25 + $0x78] sm:$0xff]
    %v5376 = vld [vmem:[#allocation25 + $0x80] sm:$0xff]
    %v5377 = vld [vmem:[#allocation25 + $0x88] sm:$0xff]
    %v5378 = vld [vmem:[#allocation25 + $0x90] sm:$0xff]
    %v5379 = vld [vmem:[#allocation25 + $0x98] sm:$0xff]
    %v5380 = vld [vmem:[#allocation25 + $0xa0] sm:$0xff]
    %v5381 = vld [vmem:[#allocation25 + $0xa8] sm:$0xff]
    %v5382 = vld [vmem:[#allocation25 + $0xb0] sm:$0xff]
    %v5383 = vld [vmem:[#allocation25 + $0xb8] sm:$0xff]
    %v5384 = vld [vmem:[#allocation25 + $0xc0] sm:$0xff]
    %v5385 = vld [vmem:[#allocation25 + $0xc8] sm:$0xff]
    %v5386 = vld [vmem:[#allocation25 + $0xd0] sm:$0xff]
    %v5387 = vld [vmem:[#allocation25 + $0xd8] sm:$0xff]
    %v5388 = vld [vmem:[#allocation25 + $0xe0] sm:$0xff]
    %v5389 = vld [vmem:[#allocation25 + $0xe8] sm:$0xff]
    %v5390 = vld [vmem:[#allocation25 + $0xf0] sm:$0xff]
    %v5391 = vld [vmem:[#allocation25 + $0xf8] sm:$0xff]
    %v5392 = vld [vmem:[#allocation25 + $0x100] sm:$0xff]
    %v5393 = vld [vmem:[#allocation25 + $0x108] sm:$0xff]
    %v5394 = vld [vmem:[#allocation25 + $0x110] sm:$0xff]
    %v5395 = vld [vmem:[#allocation25 + $0x118] sm:$0xff]
    %v5396 = vld [vmem:[#allocation25 + $0x120] sm:$0xff]
    %v5397 = vld [vmem:[#allocation25 + $0x128] sm:$0xff]
    %v5398 = vld [vmem:[#allocation25 + $0x130] sm:$0xff]
    %v5399 = vld [vmem:[#allocation25 + $0x138] sm:$0xff]
    %v5400 = vld [vmem:[#allocation25 + $0x140] sm:$0xff]
    %v5401 = vld [vmem:[#allocation25 + $0x148] sm:$0xff]
    %v5402 = vld [vmem:[#allocation25 + $0x150] sm:$0xff]
    %v5403 = vld [vmem:[#allocation25 + $0x158] sm:$0xff]
    %v5404 = vld [vmem:[#allocation25 + $0x160] sm:$0xff]
    %v5405 = vld [vmem:[#allocation25 + $0x168] sm:$0xff]
    %v5406 = vld [vmem:[#allocation25 + $0x170] sm:$0xff]
    %v5407 = vld [vmem:[#allocation25 + $0x178] sm:$0xff]
    %v5408 = vld [vmem:[#allocation25 + $0x180] sm:$0xff]
    %v5409 = vld [vmem:[#allocation25 + $0x188] sm:$0xff]
    %v5410 = vld [vmem:[#allocation25 + $0x190] sm:$0xff]
    %v5411 = vld [vmem:[#allocation25 + $0x198] sm:$0xff]
    %v5412 = vld [vmem:[#allocation25 + $0x1a0] sm:$0xff]
    %v5413 = vld [vmem:[#allocation25 + $0x1a8] sm:$0xff]
    %v5414 = vld [vmem:[#allocation25 + $0x1b0] sm:$0xff]
    %v5415 = vld [vmem:[#allocation25 + $0x1b8] sm:$0xff]
    %v5416 = vld [vmem:[#allocation25 + $0x1c0] sm:$0xff]
    %v5417 = vld [vmem:[#allocation25 + $0x1c8] sm:$0xff]
    %v5418 = vld [vmem:[#allocation25 + $0x1d0] sm:$0xff]
    %v5419 = vld [vmem:[#allocation25 + $0x1d8] sm:$0xff]
    %v5420 = vld [vmem:[#allocation25 + $0x1e0] sm:$0xff]
    %v5421 = vld [vmem:[#allocation25 + $0x1e8] sm:$0xff]
    %v5422 = vld [vmem:[#allocation25 + $0x1f0] sm:$0xff]
    %v5423 = vld [vmem:[#allocation25 + $0x1f8] sm:$0xff]
    %v5424 = vld [vmem:[#allocation25 + $0x200] sm:$0xff]
    %v5425 = vld [vmem:[#allocation25 + $0x208] sm:$0xff]
    %v5426 = vld [vmem:[#allocation25 + $0x210] sm:$0xff]
    %v5427 = vld [vmem:[#allocation25 + $0x218] sm:$0xff]
    %v5428 = vld [vmem:[#allocation25 + $0x220] sm:$0xff]
    %v5429 = vld [vmem:[#allocation25 + $0x228] sm:$0xff]
    %v5430 = vld [vmem:[#allocation25 + $0x230] sm:$0xff]
    %v5431 = vld [vmem:[#allocation25 + $0x238] sm:$0xff]
    %v5432 = vld [vmem:[#allocation25 + $0x240] sm:$0xff]
    %v5433 = vld [vmem:[#allocation25 + $0x248] sm:$0xff]
    %v5434 = vld [vmem:[#allocation25 + $0x250] sm:$0xff]
    %v5435 = vld [vmem:[#allocation25 + $0x258] sm:$0xff]
    %v5436 = vld [vmem:[#allocation25 + $0x260] sm:$0xff]
    %v5437 = vld [vmem:[#allocation25 + $0x268] sm:$0xff]
    %v5438 = vld [vmem:[#allocation25 + $0x270] sm:$0xff]
    %v5439 = vld [vmem:[#allocation25 + $0x278] sm:$0xff]
    %v5440 = vld [vmem:[#allocation25 + $0x280] sm:$0xff]
    %v5441 = vld [vmem:[#allocation25 + $0x288] sm:$0xff]
    %v5442 = vld [vmem:[#allocation25 + $0x290] sm:$0xff]
    %v5443 = vld [vmem:[#allocation25 + $0x298] sm:$0xff]
    %v5444 = vld [vmem:[#allocation25 + $0x2a0] sm:$0xff]
    %v5445 = vld [vmem:[#allocation25 + $0x2a8] sm:$0xff]
    %v5446 = vld [vmem:[#allocation25 + $0x2b0] sm:$0xff]
    %v5447 = vld [vmem:[#allocation25 + $0x2b8] sm:$0xff]
    %v5448 = vld [vmem:[#allocation25 + $0x2c0] sm:$0xff]
    %v5449 = vld [vmem:[#allocation25 + $0x2c8] sm:$0xff]
    %v5450 = vld [vmem:[#allocation25 + $0x2d0] sm:$0xff]
    %v5451 = vld [vmem:[#allocation25 + $0x2d8] sm:$0xff]
    %v5452 = vld [vmem:[#allocation25 + $0x2e0] sm:$0xff]
    %v5453 = vld [vmem:[#allocation25 + $0x2e8] sm:$0xff]
    %v5454 = vld [vmem:[#allocation25 + $0x2f0] sm:$0xff]
    %v5455 = vld [vmem:[#allocation25 + $0x2f8] sm:$0xff]
    %v5456 = vld [vmem:[#allocation25 + $0x300] sm:$0xff]
    %v5457 = vld [vmem:[#allocation25 + $0x308] sm:$0xff]
    %v5458 = vld [vmem:[#allocation25 + $0x310] sm:$0xff]
    %v5459 = vld [vmem:[#allocation25 + $0x318] sm:$0xff]
    %v5460 = vld [vmem:[#allocation25 + $0x320] sm:$0xff]
    %v5461 = vld [vmem:[#allocation25 + $0x328] sm:$0xff]
    %v5462 = vld [vmem:[#allocation25 + $0x330] sm:$0xff]
    %v5463 = vld [vmem:[#allocation25 + $0x338] sm:$0xff]
    %v5464 = vld [vmem:[#allocation25 + $0x340] sm:$0xff]
    %v5465 = vld [vmem:[#allocation25 + $0x348] sm:$0xff]
    %v5466 = vld [vmem:[#allocation25 + $0x350] sm:$0xff]
    %v5467 = vld [vmem:[#allocation25 + $0x358] sm:$0xff]
    %v5468 = vld [vmem:[#allocation25 + $0x360] sm:$0xff]
    %v5469 = vld [vmem:[#allocation25 + $0x368] sm:$0xff]
    %v5470 = vld [vmem:[#allocation25 + $0x370] sm:$0xff]
    %v5471 = vld [vmem:[#allocation25 + $0x378] sm:$0xff]
    %v5472 = vld [vmem:[#allocation25 + $0x380] sm:$0xff]
    %v5473 = vld [vmem:[#allocation25 + $0x388] sm:$0xff]
    %v5474 = vld [vmem:[#allocation25 + $0x390] sm:$0xff]
    %v5475 = vld [vmem:[#allocation25 + $0x398] sm:$0xff]
    %v5476 = vld [vmem:[#allocation25 + $0x3a0] sm:$0xff]
    %v5477 = vld [vmem:[#allocation25 + $0x3a8] sm:$0xff]
    %v5478 = vld [vmem:[#allocation25 + $0x3b0] sm:$0xff]
    %v5479 = vld [vmem:[#allocation25 + $0x3b8] sm:$0xff]
    %v5480 = vld [vmem:[#allocation25 + $0x3c0] sm:$0xff]
    %v5481 = vld [vmem:[#allocation25 + $0x3c8] sm:$0xff]
    %v5482 = vld [vmem:[#allocation25 + $0x3d0] sm:$0xff]
    %v5483 = vld [vmem:[#allocation25 + $0x3d8] sm:$0xff]
    %v5484 = vld [vmem:[#allocation25 + $0x3e0] sm:$0xff]
    %v5485 = vld [vmem:[#allocation25 + $0x3e8] sm:$0xff]
    %v5486 = vld [vmem:[#allocation25 + $0x3f0] sm:$0xff]
    %v5487 = vld [vmem:[#allocation25 + $0x3f8] sm:$0xff]
    %v5488 = vld [vmem:[#allocation25 + $0x400] sm:$0xff]
    %v5489 = vld [vmem:[#allocation25 + $0x408] sm:$0xff]
    %v5490 = vld [vmem:[#allocation25 + $0x410] sm:$0xff]
    %v5491 = vld [vmem:[#allocation25 + $0x418] sm:$0xff]
    %v5492 = vld [vmem:[#allocation25 + $0x420] sm:$0xff]
    %v5493 = vld [vmem:[#allocation25 + $0x428] sm:$0xff]
    %v5494 = vld [vmem:[#allocation25 + $0x430] sm:$0xff]
    %v5495 = vld [vmem:[#allocation25 + $0x438] sm:$0xff]
    %v5496 = vld [vmem:[#allocation25 + $0x440] sm:$0xff]
    %v5497 = vld [vmem:[#allocation25 + $0x448] sm:$0xff]
    %v5498 = vld [vmem:[#allocation25 + $0x450] sm:$0xff]
    %v5499 = vld [vmem:[#allocation25 + $0x458] sm:$0xff]
    %v5500 = vld [vmem:[#allocation25 + $0x460] sm:$0xff]
    %v5501 = vld [vmem:[#allocation25 + $0x468] sm:$0xff]
    %v5502 = vld [vmem:[#allocation25 + $0x470] sm:$0xff]
    %v5503 = vld [vmem:[#allocation25 + $0x478] sm:$0xff]
    %v5504 = vld [vmem:[#allocation25 + $0x480] sm:$0xff]
    %v5505 = vld [vmem:[#allocation25 + $0x488] sm:$0xff]
    %v5506 = vld [vmem:[#allocation25 + $0x490] sm:$0xff]
    %v5507 = vld [vmem:[#allocation25 + $0x498] sm:$0xff]
    %v5508 = vld [vmem:[#allocation25 + $0x4a0] sm:$0xff]
    %v5509 = vld [vmem:[#allocation25 + $0x4a8] sm:$0xff]
    %v5510 = vld [vmem:[#allocation25 + $0x4b0] sm:$0xff]
    %v5511 = vld [vmem:[#allocation25 + $0x4b8] sm:$0xff]
    %v5512 = vld [vmem:[#allocation25 + $0x4c0] sm:$0xff]
    %v5513 = vld [vmem:[#allocation25 + $0x4c8] sm:$0xff]
    %v5514 = vld [vmem:[#allocation25 + $0x4d0] sm:$0xff]
    %v5515 = vld [vmem:[#allocation25 + $0x4d8] sm:$0xff]
    %v5516 = vld [vmem:[#allocation25 + $0x4e0] sm:$0xff]
    %v5517 = vld [vmem:[#allocation25 + $0x4e8] sm:$0xff]
    %v5518 = vld [vmem:[#allocation25 + $0x4f0] sm:$0xff]
    %v5519 = vld [vmem:[#allocation25 + $0x4f8] sm:$0xff]
    %v5520 = vld [vmem:[#allocation25 + $0x500] sm:$0xff]
    %v5521 = vld [vmem:[#allocation25 + $0x508] sm:$0xff]
    %v5522 = vld [vmem:[#allocation25 + $0x510] sm:$0xff]
    %v5523 = vld [vmem:[#allocation25 + $0x518] sm:$0xff]
    %v5524 = vld [vmem:[#allocation25 + $0x520] sm:$0xff]
    %v5525 = vld [vmem:[#allocation25 + $0x528] sm:$0xff]
    %v5526 = vld [vmem:[#allocation25 + $0x530] sm:$0xff]
    %v5527 = vld [vmem:[#allocation25 + $0x538] sm:$0xff]
    %v5528 = vld [vmem:[#allocation25 + $0x540] sm:$0xff]
    %v5529 = vld [vmem:[#allocation25 + $0x548] sm:$0xff]
    %v5530 = vld [vmem:[#allocation25 + $0x550] sm:$0xff]
    %v5531 = vld [vmem:[#allocation25 + $0x558] sm:$0xff]
    %v5532 = vld [vmem:[#allocation25 + $0x560] sm:$0xff]
    %v5533 = vld [vmem:[#allocation25 + $0x568] sm:$0xff]
    %v5534 = vld [vmem:[#allocation25 + $0x570] sm:$0xff]
    %v5535 = vld [vmem:[#allocation25 + $0x578] sm:$0xff]
    %v5536 = vld [vmem:[#allocation25 + $0x580] sm:$0xff]
    %v5537 = vld [vmem:[#allocation25 + $0x588] sm:$0xff]
    %v5538 = vld [vmem:[#allocation25 + $0x590] sm:$0xff]
    %v5539 = vld [vmem:[#allocation25 + $0x598] sm:$0xff]
    %v5540 = vld [vmem:[#allocation25 + $0x5a0] sm:$0xff]
    %v5541 = vld [vmem:[#allocation25 + $0x5a8] sm:$0xff]
    %v5542 = vld [vmem:[#allocation25 + $0x5b0] sm:$0xff]
    %v5543 = vld [vmem:[#allocation25 + $0x5b8] sm:$0xff]
    %v5544 = vld [vmem:[#allocation25 + $0x5c0] sm:$0xff]
    %v5545 = vld [vmem:[#allocation25 + $0x5c8] sm:$0xff]
    %v5546 = vld [vmem:[#allocation25 + $0x5d0] sm:$0xff]
    %v5547 = vld [vmem:[#allocation25 + $0x5d8] sm:$0xff]
    %v5548 = vld [vmem:[#allocation25 + $0x5e0] sm:$0xff]
    %v5549 = vld [vmem:[#allocation25 + $0x5e8] sm:$0xff]
    %v5550 = vld [vmem:[#allocation25 + $0x5f0] sm:$0xff]
    %v5551 = vld [vmem:[#allocation25 + $0x5f8] sm:$0xff]
    %v5552 = vld [vmem:[#allocation25 + $0x600] sm:$0xff]
    %v5553 = vld [vmem:[#allocation25 + $0x608] sm:$0xff]
    %v5554 = vld [vmem:[#allocation25 + $0x610] sm:$0xff]
    %v5555 = vld [vmem:[#allocation25 + $0x618] sm:$0xff]
    %v5556 = vld [vmem:[#allocation25 + $0x620] sm:$0xff]
    %v5557 = vld [vmem:[#allocation25 + $0x628] sm:$0xff]
    %v5558 = vld [vmem:[#allocation25 + $0x630] sm:$0xff]
    %v5559 = vld [vmem:[#allocation25 + $0x638] sm:$0xff]
    %v5560 = vld [vmem:[#allocation25 + $0x640] sm:$0xff]
    %v5561 = vld [vmem:[#allocation25 + $0x648] sm:$0xff]
    %v5562 = vld [vmem:[#allocation25 + $0x650] sm:$0xff]
    %v5563 = vld [vmem:[#allocation25 + $0x658] sm:$0xff]
    %v5564 = vld [vmem:[#allocation25 + $0x660] sm:$0xff]
    %v5565 = vld [vmem:[#allocation25 + $0x668] sm:$0xff]
    %v5566 = vld [vmem:[#allocation25 + $0x670] sm:$0xff]
    %v5567 = vld [vmem:[#allocation25 + $0x678] sm:$0xff]
    %v5568 = vld [vmem:[#allocation25 + $0x680] sm:$0xff]
    %v5569 = vld [vmem:[#allocation25 + $0x688] sm:$0xff]
    %v5570 = vld [vmem:[#allocation25 + $0x690] sm:$0xff]
    %v5571 = vld [vmem:[#allocation25 + $0x698] sm:$0xff]
    %v5572 = vld [vmem:[#allocation25 + $0x6a0] sm:$0xff]
    %v5573 = vld [vmem:[#allocation25 + $0x6a8] sm:$0xff]
    %v5574 = vld [vmem:[#allocation25 + $0x6b0] sm:$0xff]
    %v5575 = vld [vmem:[#allocation25 + $0x6b8] sm:$0xff]
    %v5576 = vld [vmem:[#allocation25 + $0x6c0] sm:$0xff]
    %v5577 = vld [vmem:[#allocation25 + $0x6c8] sm:$0xff]
    %v5578 = vld [vmem:[#allocation25 + $0x6d0] sm:$0xff]
    %v5579 = vld [vmem:[#allocation25 + $0x6d8] sm:$0xff]
    %v5580 = vld [vmem:[#allocation25 + $0x6e0] sm:$0xff]
    %v5581 = vld [vmem:[#allocation25 + $0x6e8] sm:$0xff]
    %v5582 = vld [vmem:[#allocation25 + $0x6f0] sm:$0xff]
    %v5583 = vld [vmem:[#allocation25 + $0x6f8] sm:$0xff]
    %v5584 = vld [vmem:[#allocation25 + $0x700] sm:$0xff]
    %v5585 = vld [vmem:[#allocation25 + $0x708] sm:$0xff]
    %v5586 = vld [vmem:[#allocation25 + $0x710] sm:$0xff]
    %v5587 = vld [vmem:[#allocation25 + $0x718] sm:$0xff]
    %v5588 = vld [vmem:[#allocation25 + $0x720] sm:$0xff]
    %v5589 = vld [vmem:[#allocation25 + $0x728] sm:$0xff]
    %v5590 = vld [vmem:[#allocation25 + $0x730] sm:$0xff]
    %v5591 = vld [vmem:[#allocation25 + $0x738] sm:$0xff]
    %v5592 = vld [vmem:[#allocation25 + $0x740] sm:$0xff]
    %v5593 = vld [vmem:[#allocation25 + $0x748] sm:$0xff]
    %v5594 = vld [vmem:[#allocation25 + $0x750] sm:$0xff]
    %v5595 = vld [vmem:[#allocation25 + $0x758] sm:$0xff]
    %v5596 = vld [vmem:[#allocation25 + $0x760] sm:$0xff]
    %v5597 = vld [vmem:[#allocation25 + $0x768] sm:$0xff]
    %v5598 = vld [vmem:[#allocation25 + $0x770] sm:$0xff]
    %v5599 = vld [vmem:[#allocation25 + $0x778] sm:$0xff]
    %v5600 = vld [vmem:[#allocation25 + $0x780] sm:$0xff]
    %v5601 = vld [vmem:[#allocation25 + $0x788] sm:$0xff]
    %v5602 = vld [vmem:[#allocation25 + $0x790] sm:$0xff]
    %v5603 = vld [vmem:[#allocation25 + $0x798] sm:$0xff]
    %v5604 = vld [vmem:[#allocation25 + $0x7a0] sm:$0xff]
    %v5605 = vld [vmem:[#allocation25 + $0x7a8] sm:$0xff]
    %v5606 = vld [vmem:[#allocation25 + $0x7b0] sm:$0xff]
    %v5607 = vld [vmem:[#allocation25 + $0x7b8] sm:$0xff]
    %v5608 = vld [vmem:[#allocation25 + $0x7c0] sm:$0xff]
    %v5609 = vld [vmem:[#allocation25 + $0x7c8] sm:$0xff]
    %v5610 = vld [vmem:[#allocation25 + $0x7d0] sm:$0xff]
    %v5611 = vld [vmem:[#allocation25 + $0x7d8] sm:$0xff]
    %v5612 = vld [vmem:[#allocation25 + $0x7e0] sm:$0xff]
    %v5613 = vld [vmem:[#allocation25 + $0x7e8] sm:$0xff]
    %v5614 = vld [vmem:[#allocation25 + $0x7f0] sm:$0xff]
    %v5615 = vld [vmem:[#allocation25 + $0x7f8] sm:$0xff]
    %v5616 = vld [vmem:[#allocation25 + $0x800] sm:$0xff]
    %v5617 = vld [vmem:[#allocation25 + $0x808] sm:$0xff]
    %v5618 = vld [vmem:[#allocation25 + $0x810] sm:$0xff]
    %v5619 = vld [vmem:[#allocation25 + $0x818] sm:$0xff]
    %v5620 = vld [vmem:[#allocation25 + $0x820] sm:$0xff]
    %v5621 = vld [vmem:[#allocation25 + $0x828] sm:$0xff]
    %v5622 = vld [vmem:[#allocation25 + $0x830] sm:$0xff]
    %v5623 = vld [vmem:[#allocation25 + $0x838] sm:$0xff]
    %v5624 = vld [vmem:[#allocation25 + $0x840] sm:$0xff]
    %v5625 = vld [vmem:[#allocation25 + $0x848] sm:$0xff]
    %v5626 = vld [vmem:[#allocation25 + $0x850] sm:$0xff]
    %v5627 = vld [vmem:[#allocation25 + $0x858] sm:$0xff]
    %v5628 = vld [vmem:[#allocation25 + $0x860] sm:$0xff]
    %v5629 = vld [vmem:[#allocation25 + $0x868] sm:$0xff]
    %v5630 = vld [vmem:[#allocation25 + $0x870] sm:$0xff]
    %v5631 = vld [vmem:[#allocation25 + $0x878] sm:$0xff]
    %v5632 = vld [vmem:[#allocation25 + $0x880] sm:$0xff]
    %v5633 = vld [vmem:[#allocation25 + $0x888] sm:$0xff]
    %v5634 = vld [vmem:[#allocation25 + $0x890] sm:$0xff]
    %v5635 = vld [vmem:[#allocation25 + $0x898] sm:$0xff]
    %v5636 = vld [vmem:[#allocation25 + $0x8a0] sm:$0xff]
    %v5637 = vld [vmem:[#allocation25 + $0x8a8] sm:$0xff]
    %v5638 = vld [vmem:[#allocation25 + $0x8b0] sm:$0xff]
    %v5639 = vld [vmem:[#allocation25 + $0x8b8] sm:$0xff]
    %v5640 = vld [vmem:[#allocation25 + $0x8c0] sm:$0xff]
    %v5641 = vld [vmem:[#allocation25 + $0x8c8] sm:$0xff]
    %v5642 = vld [vmem:[#allocation25 + $0x8d0] sm:$0xff]
    %v5643 = vld [vmem:[#allocation25 + $0x8d8] sm:$0xff]
    %v5644 = vld [vmem:[#allocation25 + $0x8e0] sm:$0xff]
    %v5645 = vld [vmem:[#allocation25 + $0x8e8] sm:$0xff]
    %v5646 = vld [vmem:[#allocation25 + $0x8f0] sm:$0xff]
    %v5647 = vld [vmem:[#allocation25 + $0x8f8] sm:$0xff]
    %v5648 = vld [vmem:[#allocation27] sm:$0x3f]
    %v5650 = vlaneseq
    %v5651 = vshrl.u32 %v5650, 7
    %v5652 = vsub.s32 0, %v5651
    %v5653 = vrot.slane %v5648, %v5652
    %v5654 = vlaneseq
    %v5655 = vshrl.u32 %v5654, 7
    %v5656 = vsub.s32 1, %v5655
    %v5657 = vrot.slane %v5648, %v5656
    %v5658 = vlaneseq
    %v5659 = vshrl.u32 %v5658, 7
    %v5660 = vsub.s32 2, %v5659
    %v5661 = vrot.slane %v5648, %v5660
    %v5662 = vlaneseq
    %v5663 = vshrl.u32 %v5662, 7
    %v5664 = vsub.s32 3, %v5663
    %v5665 = vrot.slane %v5648, %v5664
    %v5666 = vlaneseq
    %v5667 = vshrl.u32 %v5666, 7
    %v5668 = vsub.s32 4, %v5667
    %v5669 = vrot.slane %v5648, %v5668
    %v5670 = vlaneseq
    %v5671 = vshrl.u32 %v5670, 7
    %v5672 = vsub.s32 5, %v5671
    %v5673 = vrot.slane %v5648, %v5672
    %v5968 = vunpack.c.l.b16 %v5360
    %v5969 = vunpack.c.h.b16 %v5360
    %v5970 = vunpack.c.l.b16 %v5361
    %v5971 = vunpack.c.h.b16 %v5361
    %v5972 = vunpack.c.l.b16 %v5362
    %v5973 = vunpack.c.h.b16 %v5362
    %v5974 = vunpack.c.l.b16 %v5363
    %v5975 = vunpack.c.h.b16 %v5363
    %v5976 = vunpack.c.l.b16 %v5364
    %v5977 = vunpack.c.h.b16 %v5364
    %v5978 = vunpack.c.l.b16 %v5365
    %v5979 = vunpack.c.h.b16 %v5365
    %v5980 = vunpack.c.l.b16 %v5366
    %v5981 = vunpack.c.h.b16 %v5366
    %v5982 = vunpack.c.l.b16 %v5367
    %v5983 = vunpack.c.h.b16 %v5367
    %v5984 = vunpack.c.l.b16 %v5368
    %v5985 = vunpack.c.h.b16 %v5368
    %v5986 = vunpack.c.l.b16 %v5369
    %v5987 = vunpack.c.h.b16 %v5369
    %v5988 = vunpack.c.l.b16 %v5370
    %v5989 = vunpack.c.h.b16 %v5370
    %v5990 = vunpack.c.l.b16 %v5371
    %v5991 = vunpack.c.h.b16 %v5371
    %v5992 = vunpack.c.l.b16 %v5372
    %v5993 = vunpack.c.h.b16 %v5372
    %v5994 = vunpack.c.l.b16 %v5373
    %v5995 = vunpack.c.h.b16 %v5373
    %v5996 = vunpack.c.l.b16 %v5374
    %v5997 = vunpack.c.h.b16 %v5374
    %v5998 = vunpack.c.l.b16 %v5375
    %v5999 = vunpack.c.h.b16 %v5375
    %v6000 = vunpack.c.l.b16 %v5376
    %v6001 = vunpack.c.h.b16 %v5376
    %v6002 = vunpack.c.l.b16 %v5377
    %v6003 = vunpack.c.h.b16 %v5377
    %v6004 = vunpack.c.l.b16 %v5378
    %v6005 = vunpack.c.h.b16 %v5378
    %v6006 = vunpack.c.l.b16 %v5379
    %v6007 = vunpack.c.h.b16 %v5379
    %v6008 = vunpack.c.l.b16 %v5380
    %v6009 = vunpack.c.h.b16 %v5380
    %v6010 = vunpack.c.l.b16 %v5381
    %v6011 = vunpack.c.h.b16 %v5381
    %v6012 = vunpack.c.l.b16 %v5382
    %v6013 = vunpack.c.h.b16 %v5382
    %v6014 = vunpack.c.l.b16 %v5383
    %v6015 = vunpack.c.h.b16 %v5383
    %v6016 = vunpack.c.l.b16 %v5384
    %v6017 = vunpack.c.h.b16 %v5384
    %v6018 = vunpack.c.l.b16 %v5385
    %v6019 = vunpack.c.h.b16 %v5385
    %v6020 = vunpack.c.l.b16 %v5386
    %v6021 = vunpack.c.h.b16 %v5386
    %v6022 = vunpack.c.l.b16 %v5387
    %v6023 = vunpack.c.h.b16 %v5387
    %v6024 = vunpack.c.l.b16 %v5388
    %v6025 = vunpack.c.h.b16 %v5388
    %v6026 = vunpack.c.l.b16 %v5389
    %v6027 = vunpack.c.h.b16 %v5389
    %v6028 = vunpack.c.l.b16 %v5390
    %v6029 = vunpack.c.h.b16 %v5390
    %v6030 = vunpack.c.l.b16 %v5391
    %v6031 = vunpack.c.h.b16 %v5391
    %v6032 = vunpack.c.l.b16 %v5392
    %v6033 = vunpack.c.h.b16 %v5392
    %v6034 = vunpack.c.l.b16 %v5393
    %v6035 = vunpack.c.h.b16 %v5393
    %v6036 = vunpack.c.l.b16 %v5394
    %v6037 = vunpack.c.h.b16 %v5394
    %v6038 = vunpack.c.l.b16 %v5395
    %v6039 = vunpack.c.h.b16 %v5395
    %v6040 = vunpack.c.l.b16 %v5396
    %v6041 = vunpack.c.h.b16 %v5396
    %v6042 = vunpack.c.l.b16 %v5397
    %v6043 = vunpack.c.h.b16 %v5397
    %v6044 = vunpack.c.l.b16 %v5398
    %v6045 = vunpack.c.h.b16 %v5398
    %v6046 = vunpack.c.l.b16 %v5399
    %v6047 = vunpack.c.h.b16 %v5399
    %v6048 = vunpack.c.l.b16 %v5400
    %v6049 = vunpack.c.h.b16 %v5400
    %v6050 = vunpack.c.l.b16 %v5401
    %v6051 = vunpack.c.h.b16 %v5401
    %v6052 = vunpack.c.l.b16 %v5402
    %v6053 = vunpack.c.h.b16 %v5402
    %v6054 = vunpack.c.l.b16 %v5403
    %v6055 = vunpack.c.h.b16 %v5403
    %v6056 = vunpack.c.l.b16 %v5404
    %v6057 = vunpack.c.h.b16 %v5404
    %v6058 = vunpack.c.l.b16 %v5405
    %v6059 = vunpack.c.h.b16 %v5405
    %v6060 = vunpack.c.l.b16 %v5406
    %v6061 = vunpack.c.h.b16 %v5406
    %v6062 = vunpack.c.l.b16 %v5407
    %v6063 = vunpack.c.h.b16 %v5407
    %v6064 = vunpack.c.l.b16 %v5408
    %v6065 = vunpack.c.h.b16 %v5408
    %v6066 = vunpack.c.l.b16 %v5409
    %v6067 = vunpack.c.h.b16 %v5409
    %v6068 = vunpack.c.l.b16 %v5410
    %v6069 = vunpack.c.h.b16 %v5410
    %v6070 = vunpack.c.l.b16 %v5411
    %v6071 = vunpack.c.h.b16 %v5411
    %v6072 = vunpack.c.l.b16 %v5412
    %v6073 = vunpack.c.h.b16 %v5412
    %v6074 = vunpack.c.l.b16 %v5413
    %v6075 = vunpack.c.h.b16 %v5413
    %v6076 = vunpack.c.l.b16 %v5414
    %v6077 = vunpack.c.h.b16 %v5414
    %v6078 = vunpack.c.l.b16 %v5415
    %v6079 = vunpack.c.h.b16 %v5415
    %v6080 = vunpack.c.l.b16 %v5416
    %v6081 = vunpack.c.h.b16 %v5416
    %v6082 = vunpack.c.l.b16 %v5417
    %v6083 = vunpack.c.h.b16 %v5417
    %v6084 = vunpack.c.l.b16 %v5418
    %v6085 = vunpack.c.h.b16 %v5418
    %v6086 = vunpack.c.l.b16 %v5419
    %v6087 = vunpack.c.h.b16 %v5419
    %v6088 = vunpack.c.l.b16 %v5420
    %v6089 = vunpack.c.h.b16 %v5420
    %v6090 = vunpack.c.l.b16 %v5421
    %v6091 = vunpack.c.h.b16 %v5421
    %v6092 = vunpack.c.l.b16 %v5422
    %v6093 = vunpack.c.h.b16 %v5422
    %v6094 = vunpack.c.l.b16 %v5423
    %v6095 = vunpack.c.h.b16 %v5423
    %v6096 = vunpack.c.l.b16 %v5424
    %v6097 = vunpack.c.h.b16 %v5424
    %v6098 = vunpack.c.l.b16 %v5425
    %v6099 = vunpack.c.h.b16 %v5425
    %v6100 = vunpack.c.l.b16 %v5426
    %v6101 = vunpack.c.h.b16 %v5426
    %v6102 = vunpack.c.l.b16 %v5427
    %v6103 = vunpack.c.h.b16 %v5427
    %v6104 = vunpack.c.l.b16 %v5428
    %v6105 = vunpack.c.h.b16 %v5428
    %v6106 = vunpack.c.l.b16 %v5429
    %v6107 = vunpack.c.h.b16 %v5429
    %v6108 = vunpack.c.l.b16 %v5430
    %v6109 = vunpack.c.h.b16 %v5430
    %v6110 = vunpack.c.l.b16 %v5431
    %v6111 = vunpack.c.h.b16 %v5431
    %v6112 = vunpack.c.l.b16 %v5432
    %v6113 = vunpack.c.h.b16 %v5432
    %v6114 = vunpack.c.l.b16 %v5433
    %v6115 = vunpack.c.h.b16 %v5433
    %v6116 = vunpack.c.l.b16 %v5434
    %v6117 = vunpack.c.h.b16 %v5434
    %v6118 = vunpack.c.l.b16 %v5435
    %v6119 = vunpack.c.h.b16 %v5435
    %v6120 = vunpack.c.l.b16 %v5436
    %v6121 = vunpack.c.h.b16 %v5436
    %v6122 = vunpack.c.l.b16 %v5437
    %v6123 = vunpack.c.h.b16 %v5437
    %v6124 = vunpack.c.l.b16 %v5438
    %v6125 = vunpack.c.h.b16 %v5438
    %v6126 = vunpack.c.l.b16 %v5439
    %v6127 = vunpack.c.h.b16 %v5439
    %v6128 = vunpack.c.l.b16 %v5440
    %v6129 = vunpack.c.h.b16 %v5440
    %v6130 = vunpack.c.l.b16 %v5441
    %v6131 = vunpack.c.h.b16 %v5441
    %v6132 = vunpack.c.l.b16 %v5442
    %v6133 = vunpack.c.h.b16 %v5442
    %v6134 = vunpack.c.l.b16 %v5443
    %v6135 = vunpack.c.h.b16 %v5443
    %v6136 = vunpack.c.l.b16 %v5444
    %v6137 = vunpack.c.h.b16 %v5444
    %v6138 = vunpack.c.l.b16 %v5445
    %v6139 = vunpack.c.h.b16 %v5445
    %v6140 = vunpack.c.l.b16 %v5446
    %v6141 = vunpack.c.h.b16 %v5446
    %v6142 = vunpack.c.l.b16 %v5447
    %v6143 = vunpack.c.h.b16 %v5447
    %v6144 = vunpack.c.l.b16 %v5448
    %v6145 = vunpack.c.h.b16 %v5448
    %v6146 = vunpack.c.l.b16 %v5449
    %v6147 = vunpack.c.h.b16 %v5449
    %v6148 = vunpack.c.l.b16 %v5450
    %v6149 = vunpack.c.h.b16 %v5450
    %v6150 = vunpack.c.l.b16 %v5451
    %v6151 = vunpack.c.h.b16 %v5451
    %v6152 = vunpack.c.l.b16 %v5452
    %v6153 = vunpack.c.h.b16 %v5452
    %v6154 = vunpack.c.l.b16 %v5453
    %v6155 = vunpack.c.h.b16 %v5453
    %v6156 = vunpack.c.l.b16 %v5454
    %v6157 = vunpack.c.h.b16 %v5454
    %v6158 = vunpack.c.l.b16 %v5455
    %v6159 = vunpack.c.h.b16 %v5455
    %v6160 = vunpack.c.l.b16 %v5456
    %v6161 = vunpack.c.h.b16 %v5456
    %v6162 = vunpack.c.l.b16 %v5457
    %v6163 = vunpack.c.h.b16 %v5457
    %v6164 = vunpack.c.l.b16 %v5458
    %v6165 = vunpack.c.h.b16 %v5458
    %v6166 = vunpack.c.l.b16 %v5459
    %v6167 = vunpack.c.h.b16 %v5459
    %v6168 = vunpack.c.l.b16 %v5460
    %v6169 = vunpack.c.h.b16 %v5460
    %v6170 = vunpack.c.l.b16 %v5461
    %v6171 = vunpack.c.h.b16 %v5461
    %v6172 = vunpack.c.l.b16 %v5462
    %v6173 = vunpack.c.h.b16 %v5462
    %v6174 = vunpack.c.l.b16 %v5463
    %v6175 = vunpack.c.h.b16 %v5463
    %v6176 = vunpack.c.l.b16 %v5464
    %v6177 = vunpack.c.h.b16 %v5464
    %v6178 = vunpack.c.l.b16 %v5465
    %v6179 = vunpack.c.h.b16 %v5465
    %v6180 = vunpack.c.l.b16 %v5466
    %v6181 = vunpack.c.h.b16 %v5466
    %v6182 = vunpack.c.l.b16 %v5467
    %v6183 = vunpack.c.h.b16 %v5467
    %v6184 = vunpack.c.l.b16 %v5468
    %v6185 = vunpack.c.h.b16 %v5468
    %v6186 = vunpack.c.l.b16 %v5469
    %v6187 = vunpack.c.h.b16 %v5469
    %v6188 = vunpack.c.l.b16 %v5470
    %v6189 = vunpack.c.h.b16 %v5470
    %v6190 = vunpack.c.l.b16 %v5471
    %v6191 = vunpack.c.h.b16 %v5471
    %v6192 = vunpack.c.l.b16 %v5472
    %v6193 = vunpack.c.h.b16 %v5472
    %v6194 = vunpack.c.l.b16 %v5473
    %v6195 = vunpack.c.h.b16 %v5473
    %v6196 = vunpack.c.l.b16 %v5474
    %v6197 = vunpack.c.h.b16 %v5474
    %v6198 = vunpack.c.l.b16 %v5475
    %v6199 = vunpack.c.h.b16 %v5475
    %v6200 = vunpack.c.l.b16 %v5476
    %v6201 = vunpack.c.h.b16 %v5476
    %v6202 = vunpack.c.l.b16 %v5477
    %v6203 = vunpack.c.h.b16 %v5477
    %v6204 = vunpack.c.l.b16 %v5478
    %v6205 = vunpack.c.h.b16 %v5478
    %v6206 = vunpack.c.l.b16 %v5479
    %v6207 = vunpack.c.h.b16 %v5479
    %v6208 = vunpack.c.l.b16 %v5480
    %v6209 = vunpack.c.h.b16 %v5480
    %v6210 = vunpack.c.l.b16 %v5481
    %v6211 = vunpack.c.h.b16 %v5481
    %v6212 = vunpack.c.l.b16 %v5482
    %v6213 = vunpack.c.h.b16 %v5482
    %v6214 = vunpack.c.l.b16 %v5483
    %v6215 = vunpack.c.h.b16 %v5483
    %v6216 = vunpack.c.l.b16 %v5484
    %v6217 = vunpack.c.h.b16 %v5484
    %v6218 = vunpack.c.l.b16 %v5485
    %v6219 = vunpack.c.h.b16 %v5485
    %v6220 = vunpack.c.l.b16 %v5486
    %v6221 = vunpack.c.h.b16 %v5486
    %v6222 = vunpack.c.l.b16 %v5487
    %v6223 = vunpack.c.h.b16 %v5487
    %v6224 = vunpack.c.l.b16 %v5488
    %v6225 = vunpack.c.h.b16 %v5488
    %v6226 = vunpack.c.l.b16 %v5489
    %v6227 = vunpack.c.h.b16 %v5489
    %v6228 = vunpack.c.l.b16 %v5490
    %v6229 = vunpack.c.h.b16 %v5490
    %v6230 = vunpack.c.l.b16 %v5491
    %v6231 = vunpack.c.h.b16 %v5491
    %v6232 = vunpack.c.l.b16 %v5492
    %v6233 = vunpack.c.h.b16 %v5492
    %v6234 = vunpack.c.l.b16 %v5493
    %v6235 = vunpack.c.h.b16 %v5493
    %v6236 = vunpack.c.l.b16 %v5494
    %v6237 = vunpack.c.h.b16 %v5494
    %v6238 = vunpack.c.l.b16 %v5495
    %v6239 = vunpack.c.h.b16 %v5495
    %v6240 = vunpack.c.l.b16 %v5496
    %v6241 = vunpack.c.h.b16 %v5496
    %v6242 = vunpack.c.l.b16 %v5497
    %v6243 = vunpack.c.h.b16 %v5497
    %v6244 = vunpack.c.l.b16 %v5498
    %v6245 = vunpack.c.h.b16 %v5498
    %v6246 = vunpack.c.l.b16 %v5499
    %v6247 = vunpack.c.h.b16 %v5499
    %v6248 = vunpack.c.l.b16 %v5500
    %v6249 = vunpack.c.h.b16 %v5500
    %v6250 = vunpack.c.l.b16 %v5501
    %v6251 = vunpack.c.h.b16 %v5501
    %v6252 = vunpack.c.l.b16 %v5502
    %v6253 = vunpack.c.h.b16 %v5502
    %v6254 = vunpack.c.l.b16 %v5503
    %v6255 = vunpack.c.h.b16 %v5503
    %v6256 = vunpack.c.l.b16 %v5504
    %v6257 = vunpack.c.h.b16 %v5504
    %v6258 = vunpack.c.l.b16 %v5505
    %v6259 = vunpack.c.h.b16 %v5505
    %v6260 = vunpack.c.l.b16 %v5506
    %v6261 = vunpack.c.h.b16 %v5506
    %v6262 = vunpack.c.l.b16 %v5507
    %v6263 = vunpack.c.h.b16 %v5507
    %v6264 = vunpack.c.l.b16 %v5508
    %v6265 = vunpack.c.h.b16 %v5508
    %v6266 = vunpack.c.l.b16 %v5509
    %v6267 = vunpack.c.h.b16 %v5509
    %v6268 = vunpack.c.l.b16 %v5510
    %v6269 = vunpack.c.h.b16 %v5510
    %v6270 = vunpack.c.l.b16 %v5511
    %v6271 = vunpack.c.h.b16 %v5511
    %v6272 = vunpack.c.l.b16 %v5512
    %v6273 = vunpack.c.h.b16 %v5512
    %v6274 = vunpack.c.l.b16 %v5513
    %v6275 = vunpack.c.h.b16 %v5513
    %v6276 = vunpack.c.l.b16 %v5514
    %v6277 = vunpack.c.h.b16 %v5514
    %v6278 = vunpack.c.l.b16 %v5515
    %v6279 = vunpack.c.h.b16 %v5515
    %v6280 = vunpack.c.l.b16 %v5516
    %v6281 = vunpack.c.h.b16 %v5516
    %v6282 = vunpack.c.l.b16 %v5517
    %v6283 = vunpack.c.h.b16 %v5517
    %v6284 = vunpack.c.l.b16 %v5518
    %v6285 = vunpack.c.h.b16 %v5518
    %v6286 = vunpack.c.l.b16 %v5519
    %v6287 = vunpack.c.h.b16 %v5519
    %v6288 = vunpack.c.l.b16 %v5520
    %v6289 = vunpack.c.h.b16 %v5520
    %v6290 = vunpack.c.l.b16 %v5521
    %v6291 = vunpack.c.h.b16 %v5521
    %v6292 = vunpack.c.l.b16 %v5522
    %v6293 = vunpack.c.h.b16 %v5522
    %v6294 = vunpack.c.l.b16 %v5523
    %v6295 = vunpack.c.h.b16 %v5523
    %v6296 = vunpack.c.l.b16 %v5524
    %v6297 = vunpack.c.h.b16 %v5524
    %v6298 = vunpack.c.l.b16 %v5525
    %v6299 = vunpack.c.h.b16 %v5525
    %v6300 = vunpack.c.l.b16 %v5526
    %v6301 = vunpack.c.h.b16 %v5526
    %v6302 = vunpack.c.l.b16 %v5527
    %v6303 = vunpack.c.h.b16 %v5527
    %v6304 = vunpack.c.l.b16 %v5528
    %v6305 = vunpack.c.h.b16 %v5528
    %v6306 = vunpack.c.l.b16 %v5529
    %v6307 = vunpack.c.h.b16 %v5529
    %v6308 = vunpack.c.l.b16 %v5530
    %v6309 = vunpack.c.h.b16 %v5530
    %v6310 = vunpack.c.l.b16 %v5531
    %v6311 = vunpack.c.h.b16 %v5531
    %v6312 = vunpack.c.l.b16 %v5532
    %v6313 = vunpack.c.h.b16 %v5532
    %v6314 = vunpack.c.l.b16 %v5533
    %v6315 = vunpack.c.h.b16 %v5533
    %v6316 = vunpack.c.l.b16 %v5534
    %v6317 = vunpack.c.h.b16 %v5534
    %v6318 = vunpack.c.l.b16 %v5535
    %v6319 = vunpack.c.h.b16 %v5535
    %v6320 = vunpack.c.l.b16 %v5536
    %v6321 = vunpack.c.h.b16 %v5536
    %v6322 = vunpack.c.l.b16 %v5537
    %v6323 = vunpack.c.h.b16 %v5537
    %v6324 = vunpack.c.l.b16 %v5538
    %v6325 = vunpack.c.h.b16 %v5538
    %v6326 = vunpack.c.l.b16 %v5539
    %v6327 = vunpack.c.h.b16 %v5539
    %v6328 = vunpack.c.l.b16 %v5540
    %v6329 = vunpack.c.h.b16 %v5540
    %v6330 = vunpack.c.l.b16 %v5541
    %v6331 = vunpack.c.h.b16 %v5541
    %v6332 = vunpack.c.l.b16 %v5542
    %v6333 = vunpack.c.h.b16 %v5542
    %v6334 = vunpack.c.l.b16 %v5543
    %v6335 = vunpack.c.h.b16 %v5543
    %v6336 = vunpack.c.l.b16 %v5544
    %v6337 = vunpack.c.h.b16 %v5544
    %v6338 = vunpack.c.l.b16 %v5545
    %v6339 = vunpack.c.h.b16 %v5545
    %v6340 = vunpack.c.l.b16 %v5546
    %v6341 = vunpack.c.h.b16 %v5546
    %v6342 = vunpack.c.l.b16 %v5547
    %v6343 = vunpack.c.h.b16 %v5547
    %v6344 = vunpack.c.l.b16 %v5548
    %v6345 = vunpack.c.h.b16 %v5548
    %v6346 = vunpack.c.l.b16 %v5549
    %v6347 = vunpack.c.h.b16 %v5549
    %v6348 = vunpack.c.l.b16 %v5550
    %v6349 = vunpack.c.h.b16 %v5550
    %v6350 = vunpack.c.l.b16 %v5551
    %v6351 = vunpack.c.h.b16 %v5551
    %v6352 = vunpack.c.l.b16 %v5552
    %v6353 = vunpack.c.h.b16 %v5552
    %v6354 = vunpack.c.l.b16 %v5553
    %v6355 = vunpack.c.h.b16 %v5553
    %v6356 = vunpack.c.l.b16 %v5554
    %v6357 = vunpack.c.h.b16 %v5554
    %v6358 = vunpack.c.l.b16 %v5555
    %v6359 = vunpack.c.h.b16 %v5555
    %v6360 = vunpack.c.l.b16 %v5556
    %v6361 = vunpack.c.h.b16 %v5556
    %v6362 = vunpack.c.l.b16 %v5557
    %v6363 = vunpack.c.h.b16 %v5557
    %v6364 = vunpack.c.l.b16 %v5558
    %v6365 = vunpack.c.h.b16 %v5558
    %v6366 = vunpack.c.l.b16 %v5559
    %v6367 = vunpack.c.h.b16 %v5559
    %v6368 = vunpack.c.l.b16 %v5560
    %v6369 = vunpack.c.h.b16 %v5560
    %v6370 = vunpack.c.l.b16 %v5561
    %v6371 = vunpack.c.h.b16 %v5561
    %v6372 = vunpack.c.l.b16 %v5562
    %v6373 = vunpack.c.h.b16 %v5562
    %v6374 = vunpack.c.l.b16 %v5563
    %v6375 = vunpack.c.h.b16 %v5563
    %v6376 = vunpack.c.l.b16 %v5564
    %v6377 = vunpack.c.h.b16 %v5564
    %v6378 = vunpack.c.l.b16 %v5565
    %v6379 = vunpack.c.h.b16 %v5565
    %v6380 = vunpack.c.l.b16 %v5566
    %v6381 = vunpack.c.h.b16 %v5566
    %v6382 = vunpack.c.l.b16 %v5567
    %v6383 = vunpack.c.h.b16 %v5567
    %v6384 = vunpack.c.l.b16 %v5568
    %v6385 = vunpack.c.h.b16 %v5568
    %v6386 = vunpack.c.l.b16 %v5569
    %v6387 = vunpack.c.h.b16 %v5569
    %v6388 = vunpack.c.l.b16 %v5570
    %v6389 = vunpack.c.h.b16 %v5570
    %v6390 = vunpack.c.l.b16 %v5571
    %v6391 = vunpack.c.h.b16 %v5571
    %v6392 = vunpack.c.l.b16 %v5572
    %v6393 = vunpack.c.h.b16 %v5572
    %v6394 = vunpack.c.l.b16 %v5573
    %v6395 = vunpack.c.h.b16 %v5573
    %v6396 = vunpack.c.l.b16 %v5574
    %v6397 = vunpack.c.h.b16 %v5574
    %v6398 = vunpack.c.l.b16 %v5575
    %v6399 = vunpack.c.h.b16 %v5575
    %v6400 = vunpack.c.l.b16 %v5576
    %v6401 = vunpack.c.h.b16 %v5576
    %v6402 = vunpack.c.l.b16 %v5577
    %v6403 = vunpack.c.h.b16 %v5577
    %v6404 = vunpack.c.l.b16 %v5578
    %v6405 = vunpack.c.h.b16 %v5578
    %v6406 = vunpack.c.l.b16 %v5579
    %v6407 = vunpack.c.h.b16 %v5579
    %v6408 = vunpack.c.l.b16 %v5580
    %v6409 = vunpack.c.h.b16 %v5580
    %v6410 = vunpack.c.l.b16 %v5581
    %v6411 = vunpack.c.h.b16 %v5581
    %v6412 = vunpack.c.l.b16 %v5582
    %v6413 = vunpack.c.h.b16 %v5582
    %v6414 = vunpack.c.l.b16 %v5583
    %v6415 = vunpack.c.h.b16 %v5583
    %v6416 = vunpack.c.l.b16 %v5584
    %v6417 = vunpack.c.h.b16 %v5584
    %v6418 = vunpack.c.l.b16 %v5585
    %v6419 = vunpack.c.h.b16 %v5585
    %v6420 = vunpack.c.l.b16 %v5586
    %v6421 = vunpack.c.h.b16 %v5586
    %v6422 = vunpack.c.l.b16 %v5587
    %v6423 = vunpack.c.h.b16 %v5587
    %v6424 = vunpack.c.l.b16 %v5588
    %v6425 = vunpack.c.h.b16 %v5588
    %v6426 = vunpack.c.l.b16 %v5589
    %v6427 = vunpack.c.h.b16 %v5589
    %v6428 = vunpack.c.l.b16 %v5590
    %v6429 = vunpack.c.h.b16 %v5590
    %v6430 = vunpack.c.l.b16 %v5591
    %v6431 = vunpack.c.h.b16 %v5591
    %v6432 = vunpack.c.l.b16 %v5592
    %v6433 = vunpack.c.h.b16 %v5592
    %v6434 = vunpack.c.l.b16 %v5593
    %v6435 = vunpack.c.h.b16 %v5593
    %v6436 = vunpack.c.l.b16 %v5594
    %v6437 = vunpack.c.h.b16 %v5594
    %v6438 = vunpack.c.l.b16 %v5595
    %v6439 = vunpack.c.h.b16 %v5595
    %v6440 = vunpack.c.l.b16 %v5596
    %v6441 = vunpack.c.h.b16 %v5596
    %v6442 = vunpack.c.l.b16 %v5597
    %v6443 = vunpack.c.h.b16 %v5597
    %v6444 = vunpack.c.l.b16 %v5598
    %v6445 = vunpack.c.h.b16 %v5598
    %v6446 = vunpack.c.l.b16 %v5599
    %v6447 = vunpack.c.h.b16 %v5599
    %v6448 = vunpack.c.l.b16 %v5600
    %v6449 = vunpack.c.h.b16 %v5600
    %v6450 = vunpack.c.l.b16 %v5601
    %v6451 = vunpack.c.h.b16 %v5601
    %v6452 = vunpack.c.l.b16 %v5602
    %v6453 = vunpack.c.h.b16 %v5602
    %v6454 = vunpack.c.l.b16 %v5603
    %v6455 = vunpack.c.h.b16 %v5603
    %v6456 = vunpack.c.l.b16 %v5604
    %v6457 = vunpack.c.h.b16 %v5604
    %v6458 = vunpack.c.l.b16 %v5605
    %v6459 = vunpack.c.h.b16 %v5605
    %v6460 = vunpack.c.l.b16 %v5606
    %v6461 = vunpack.c.h.b16 %v5606
    %v6462 = vunpack.c.l.b16 %v5607
    %v6463 = vunpack.c.h.b16 %v5607
    %v6464 = vunpack.c.l.b16 %v5608
    %v6465 = vunpack.c.h.b16 %v5608
    %v6466 = vunpack.c.l.b16 %v5609
    %v6467 = vunpack.c.h.b16 %v5609
    %v6468 = vunpack.c.l.b16 %v5610
    %v6469 = vunpack.c.h.b16 %v5610
    %v6470 = vunpack.c.l.b16 %v5611
    %v6471 = vunpack.c.h.b16 %v5611
    %v6472 = vunpack.c.l.b16 %v5612
    %v6473 = vunpack.c.h.b16 %v5612
    %v6474 = vunpack.c.l.b16 %v5613
    %v6475 = vunpack.c.h.b16 %v5613
    %v6476 = vunpack.c.l.b16 %v5614
    %v6477 = vunpack.c.h.b16 %v5614
    %v6478 = vunpack.c.l.b16 %v5615
    %v6479 = vunpack.c.h.b16 %v5615
    %v6480 = vunpack.c.l.b16 %v5616
    %v6481 = vunpack.c.h.b16 %v5616
    %v6482 = vunpack.c.l.b16 %v5617
    %v6483 = vunpack.c.h.b16 %v5617
    %v6484 = vunpack.c.l.b16 %v5618
    %v6485 = vunpack.c.h.b16 %v5618
    %v6486 = vunpack.c.l.b16 %v5619
    %v6487 = vunpack.c.h.b16 %v5619
    %v6488 = vunpack.c.l.b16 %v5620
    %v6489 = vunpack.c.h.b16 %v5620
    %v6490 = vunpack.c.l.b16 %v5621
    %v6491 = vunpack.c.h.b16 %v5621
    %v6492 = vunpack.c.l.b16 %v5622
    %v6493 = vunpack.c.h.b16 %v5622
    %v6494 = vunpack.c.l.b16 %v5623
    %v6495 = vunpack.c.h.b16 %v5623
    %v6496 = vunpack.c.l.b16 %v5624
    %v6497 = vunpack.c.h.b16 %v5624
    %v6498 = vunpack.c.l.b16 %v5625
    %v6499 = vunpack.c.h.b16 %v5625
    %v6500 = vunpack.c.l.b16 %v5626
    %v6501 = vunpack.c.h.b16 %v5626
    %v6502 = vunpack.c.l.b16 %v5627
    %v6503 = vunpack.c.h.b16 %v5627
    %v6504 = vunpack.c.l.b16 %v5628
    %v6505 = vunpack.c.h.b16 %v5628
    %v6506 = vunpack.c.l.b16 %v5629
    %v6507 = vunpack.c.h.b16 %v5629
    %v6508 = vunpack.c.l.b16 %v5630
    %v6509 = vunpack.c.h.b16 %v5630
    %v6510 = vunpack.c.l.b16 %v5631
    %v6511 = vunpack.c.h.b16 %v5631
    %v6512 = vunpack.c.l.b16 %v5632
    %v6513 = vunpack.c.h.b16 %v5632
    %v6514 = vunpack.c.l.b16 %v5633
    %v6515 = vunpack.c.h.b16 %v5633
    %v6516 = vunpack.c.l.b16 %v5634
    %v6517 = vunpack.c.h.b16 %v5634
    %v6518 = vunpack.c.l.b16 %v5635
    %v6519 = vunpack.c.h.b16 %v5635
    %v6520 = vunpack.c.l.b16 %v5636
    %v6521 = vunpack.c.h.b16 %v5636
    %v6522 = vunpack.c.l.b16 %v5637
    %v6523 = vunpack.c.h.b16 %v5637
    %v6524 = vunpack.c.l.b16 %v5638
    %v6525 = vunpack.c.h.b16 %v5638
    %v6526 = vunpack.c.l.b16 %v5639
    %v6527 = vunpack.c.h.b16 %v5639
    %v6528 = vunpack.c.l.b16 %v5640
    %v6529 = vunpack.c.h.b16 %v5640
    %v6530 = vunpack.c.l.b16 %v5641
    %v6531 = vunpack.c.h.b16 %v5641
    %v6532 = vunpack.c.l.b16 %v5642
    %v6533 = vunpack.c.h.b16 %v5642
    %v6534 = vunpack.c.l.b16 %v5643
    %v6535 = vunpack.c.h.b16 %v5643
    %v6536 = vunpack.c.l.b16 %v5644
    %v6537 = vunpack.c.h.b16 %v5644
    %v6538 = vunpack.c.l.b16 %v5645
    %v6539 = vunpack.c.h.b16 %v5645
    %v6540 = vunpack.c.l.b16 %v5646
    %v6541 = vunpack.c.h.b16 %v5646
    %v6542 = vunpack.c.l.b16 %v5647
    %v6543 = vunpack.c.h.b16 %v5647
    %v6544 = vpack.c.b16 %v5974, %v5968
    %v6545 = vpack.c.b16 %v5975, %v5969
    %v6546 = vpack.c.b16 %v5976, %v5970
    %v6547 = vpack.c.b16 %v5977, %v5971
    %v6548 = vpack.c.b16 %v5978, %v5972
    %v6549 = vpack.c.b16 %v5979, %v5973
    %v6550 = vpack.c.b16 %v5986, %v5980
    %v6551 = vpack.c.b16 %v5987, %v5981
    %v6552 = vpack.c.b16 %v5988, %v5982
    %v6553 = vpack.c.b16 %v5989, %v5983
    %v6554 = vpack.c.b16 %v5990, %v5984
    %v6555 = vpack.c.b16 %v5991, %v5985
    %v6556 = vpack.c.b16 %v5998, %v5992
    %v6557 = vpack.c.b16 %v5999, %v5993
    %v6558 = vpack.c.b16 %v6000, %v5994
    %v6559 = vpack.c.b16 %v6001, %v5995
    %v6560 = vpack.c.b16 %v6002, %v5996
    %v6561 = vpack.c.b16 %v6003, %v5997
    %v6562 = vpack.c.b16 %v6010, %v6004
    %v6563 = vpack.c.b16 %v6011, %v6005
    %v6564 = vpack.c.b16 %v6012, %v6006
    %v6565 = vpack.c.b16 %v6013, %v6007
    %v6566 = vpack.c.b16 %v6014, %v6008
    %v6567 = vpack.c.b16 %v6015, %v6009
    %v6568 = vpack.c.b16 %v6022, %v6016
    %v6569 = vpack.c.b16 %v6023, %v6017
    %v6570 = vpack.c.b16 %v6024, %v6018
    %v6571 = vpack.c.b16 %v6025, %v6019
    %v6572 = vpack.c.b16 %v6026, %v6020
    %v6573 = vpack.c.b16 %v6027, %v6021
    %v6574 = vpack.c.b16 %v6034, %v6028
    %v6575 = vpack.c.b16 %v6035, %v6029
    %v6576 = vpack.c.b16 %v6036, %v6030
    %v6577 = vpack.c.b16 %v6037, %v6031
    %v6578 = vpack.c.b16 %v6038, %v6032
    %v6579 = vpack.c.b16 %v6039, %v6033
    %v6580 = vpack.c.b16 %v6046, %v6040
    %v6581 = vpack.c.b16 %v6047, %v6041
    %v6582 = vpack.c.b16 %v6048, %v6042
    %v6583 = vpack.c.b16 %v6049, %v6043
    %v6584 = vpack.c.b16 %v6050, %v6044
    %v6585 = vpack.c.b16 %v6051, %v6045
    %v6586 = vpack.c.b16 %v6058, %v6052
    %v6587 = vpack.c.b16 %v6059, %v6053
    %v6588 = vpack.c.b16 %v6060, %v6054
    %v6589 = vpack.c.b16 %v6061, %v6055
    %v6590 = vpack.c.b16 %v6062, %v6056
    %v6591 = vpack.c.b16 %v6063, %v6057
    %v6592 = vpack.c.b16 %v6070, %v6064
    %v6593 = vpack.c.b16 %v6071, %v6065
    %v6594 = vpack.c.b16 %v6072, %v6066
    %v6595 = vpack.c.b16 %v6073, %v6067
    %v6596 = vpack.c.b16 %v6074, %v6068
    %v6597 = vpack.c.b16 %v6075, %v6069
    %v6598 = vpack.c.b16 %v6082, %v6076
    %v6599 = vpack.c.b16 %v6083, %v6077
    %v6600 = vpack.c.b16 %v6084, %v6078
    %v6601 = vpack.c.b16 %v6085, %v6079
    %v6602 = vpack.c.b16 %v6086, %v6080
    %v6603 = vpack.c.b16 %v6087, %v6081
    %v6604 = vpack.c.b16 %v6094, %v6088
    %v6605 = vpack.c.b16 %v6095, %v6089
    %v6606 = vpack.c.b16 %v6096, %v6090
    %v6607 = vpack.c.b16 %v6097, %v6091
    %v6608 = vpack.c.b16 %v6098, %v6092
    %v6609 = vpack.c.b16 %v6099, %v6093
    %v6610 = vpack.c.b16 %v6106, %v6100
    %v6611 = vpack.c.b16 %v6107, %v6101
    %v6612 = vpack.c.b16 %v6108, %v6102
    %v6613 = vpack.c.b16 %v6109, %v6103
    %v6614 = vpack.c.b16 %v6110, %v6104
    %v6615 = vpack.c.b16 %v6111, %v6105
    %v6616 = vpack.c.b16 %v6118, %v6112
    %v6617 = vpack.c.b16 %v6119, %v6113
    %v6618 = vpack.c.b16 %v6120, %v6114
    %v6619 = vpack.c.b16 %v6121, %v6115
    %v6620 = vpack.c.b16 %v6122, %v6116
    %v6621 = vpack.c.b16 %v6123, %v6117
    %v6622 = vpack.c.b16 %v6130, %v6124
    %v6623 = vpack.c.b16 %v6131, %v6125
    %v6624 = vpack.c.b16 %v6132, %v6126
    %v6625 = vpack.c.b16 %v6133, %v6127
    %v6626 = vpack.c.b16 %v6134, %v6128
    %v6627 = vpack.c.b16 %v6135, %v6129
    %v6628 = vpack.c.b16 %v6142, %v6136
    %v6629 = vpack.c.b16 %v6143, %v6137
    %v6630 = vpack.c.b16 %v6144, %v6138
    %v6631 = vpack.c.b16 %v6145, %v6139
    %v6632 = vpack.c.b16 %v6146, %v6140
    %v6633 = vpack.c.b16 %v6147, %v6141
    %v6634 = vpack.c.b16 %v6154, %v6148
    %v6635 = vpack.c.b16 %v6155, %v6149
    %v6636 = vpack.c.b16 %v6156, %v6150
    %v6637 = vpack.c.b16 %v6157, %v6151
    %v6638 = vpack.c.b16 %v6158, %v6152
    %v6639 = vpack.c.b16 %v6159, %v6153
    %v6640 = vpack.c.b16 %v6166, %v6160
    %v6641 = vpack.c.b16 %v6167, %v6161
    %v6642 = vpack.c.b16 %v6168, %v6162
    %v6643 = vpack.c.b16 %v6169, %v6163
    %v6644 = vpack.c.b16 %v6170, %v6164
    %v6645 = vpack.c.b16 %v6171, %v6165
    %v6646 = vpack.c.b16 %v6178, %v6172
    %v6647 = vpack.c.b16 %v6179, %v6173
    %v6648 = vpack.c.b16 %v6180, %v6174
    %v6649 = vpack.c.b16 %v6181, %v6175
    %v6650 = vpack.c.b16 %v6182, %v6176
    %v6651 = vpack.c.b16 %v6183, %v6177
    %v6652 = vpack.c.b16 %v6190, %v6184
    %v6653 = vpack.c.b16 %v6191, %v6185
    %v6654 = vpack.c.b16 %v6192, %v6186
    %v6655 = vpack.c.b16 %v6193, %v6187
    %v6656 = vpack.c.b16 %v6194, %v6188
    %v6657 = vpack.c.b16 %v6195, %v6189
    %v6658 = vpack.c.b16 %v6202, %v6196
    %v6659 = vpack.c.b16 %v6203, %v6197
    %v6660 = vpack.c.b16 %v6204, %v6198
    %v6661 = vpack.c.b16 %v6205, %v6199
    %v6662 = vpack.c.b16 %v6206, %v6200
    %v6663 = vpack.c.b16 %v6207, %v6201
    %v6664 = vpack.c.b16 %v6214, %v6208
    %v6665 = vpack.c.b16 %v6215, %v6209
    %v6666 = vpack.c.b16 %v6216, %v6210
    %v6667 = vpack.c.b16 %v6217, %v6211
    %v6668 = vpack.c.b16 %v6218, %v6212
    %v6669 = vpack.c.b16 %v6219, %v6213
    %v6670 = vpack.c.b16 %v6226, %v6220
    %v6671 = vpack.c.b16 %v6227, %v6221
    %v6672 = vpack.c.b16 %v6228, %v6222
    %v6673 = vpack.c.b16 %v6229, %v6223
    %v6674 = vpack.c.b16 %v6230, %v6224
    %v6675 = vpack.c.b16 %v6231, %v6225
    %v6676 = vpack.c.b16 %v6238, %v6232
    %v6677 = vpack.c.b16 %v6239, %v6233
    %v6678 = vpack.c.b16 %v6240, %v6234
    %v6679 = vpack.c.b16 %v6241, %v6235
    %v6680 = vpack.c.b16 %v6242, %v6236
    %v6681 = vpack.c.b16 %v6243, %v6237
    %v6682 = vpack.c.b16 %v6250, %v6244
    %v6683 = vpack.c.b16 %v6251, %v6245
    %v6684 = vpack.c.b16 %v6252, %v6246
    %v6685 = vpack.c.b16 %v6253, %v6247
    %v6686 = vpack.c.b16 %v6254, %v6248
    %v6687 = vpack.c.b16 %v6255, %v6249
    %v6688 = vpack.c.b16 %v6262, %v6256
    %v6689 = vpack.c.b16 %v6263, %v6257
    %v6690 = vpack.c.b16 %v6264, %v6258
    %v6691 = vpack.c.b16 %v6265, %v6259
    %v6692 = vpack.c.b16 %v6266, %v6260
    %v6693 = vpack.c.b16 %v6267, %v6261
    %v6694 = vpack.c.b16 %v6274, %v6268
    %v6695 = vpack.c.b16 %v6275, %v6269
    %v6696 = vpack.c.b16 %v6276, %v6270
    %v6697 = vpack.c.b16 %v6277, %v6271
    %v6698 = vpack.c.b16 %v6278, %v6272
    %v6699 = vpack.c.b16 %v6279, %v6273
    %v6700 = vpack.c.b16 %v6286, %v6280
    %v6701 = vpack.c.b16 %v6287, %v6281
    %v6702 = vpack.c.b16 %v6288, %v6282
    %v6703 = vpack.c.b16 %v6289, %v6283
    %v6704 = vpack.c.b16 %v6290, %v6284
    %v6705 = vpack.c.b16 %v6291, %v6285
    %v6706 = vpack.c.b16 %v6298, %v6292
    %v6707 = vpack.c.b16 %v6299, %v6293
    %v6708 = vpack.c.b16 %v6300, %v6294
    %v6709 = vpack.c.b16 %v6301, %v6295
    %v6710 = vpack.c.b16 %v6302, %v6296
    %v6711 = vpack.c.b16 %v6303, %v6297
    %v6712 = vpack.c.b16 %v6310, %v6304
    %v6713 = vpack.c.b16 %v6311, %v6305
    %v6714 = vpack.c.b16 %v6312, %v6306
    %v6715 = vpack.c.b16 %v6313, %v6307
    %v6716 = vpack.c.b16 %v6314, %v6308
    %v6717 = vpack.c.b16 %v6315, %v6309
    %v6718 = vpack.c.b16 %v6322, %v6316
    %v6719 = vpack.c.b16 %v6323, %v6317
    %v6720 = vpack.c.b16 %v6324, %v6318
    %v6721 = vpack.c.b16 %v6325, %v6319
    %v6722 = vpack.c.b16 %v6326, %v6320
    %v6723 = vpack.c.b16 %v6327, %v6321
    %v6724 = vpack.c.b16 %v6334, %v6328
    %v6725 = vpack.c.b16 %v6335, %v6329
    %v6726 = vpack.c.b16 %v6336, %v6330
    %v6727 = vpack.c.b16 %v6337, %v6331
    %v6728 = vpack.c.b16 %v6338, %v6332
    %v6729 = vpack.c.b16 %v6339, %v6333
    %v6730 = vpack.c.b16 %v6346, %v6340
    %v6731 = vpack.c.b16 %v6347, %v6341
    %v6732 = vpack.c.b16 %v6348, %v6342
    %v6733 = vpack.c.b16 %v6349, %v6343
    %v6734 = vpack.c.b16 %v6350, %v6344
    %v6735 = vpack.c.b16 %v6351, %v6345
    %v6736 = vpack.c.b16 %v6358, %v6352
    %v6737 = vpack.c.b16 %v6359, %v6353
    %v6738 = vpack.c.b16 %v6360, %v6354
    %v6739 = vpack.c.b16 %v6361, %v6355
    %v6740 = vpack.c.b16 %v6362, %v6356
    %v6741 = vpack.c.b16 %v6363, %v6357
    %v6742 = vpack.c.b16 %v6370, %v6364
    %v6743 = vpack.c.b16 %v6371, %v6365
    %v6744 = vpack.c.b16 %v6372, %v6366
    %v6745 = vpack.c.b16 %v6373, %v6367
    %v6746 = vpack.c.b16 %v6374, %v6368
    %v6747 = vpack.c.b16 %v6375, %v6369
    %v6748 = vpack.c.b16 %v6382, %v6376
    %v6749 = vpack.c.b16 %v6383, %v6377
    %v6750 = vpack.c.b16 %v6384, %v6378
    %v6751 = vpack.c.b16 %v6385, %v6379
    %v6752 = vpack.c.b16 %v6386, %v6380
    %v6753 = vpack.c.b16 %v6387, %v6381
    %v6754 = vpack.c.b16 %v6394, %v6388
    %v6755 = vpack.c.b16 %v6395, %v6389
    %v6756 = vpack.c.b16 %v6396, %v6390
    %v6757 = vpack.c.b16 %v6397, %v6391
    %v6758 = vpack.c.b16 %v6398, %v6392
    %v6759 = vpack.c.b16 %v6399, %v6393
    %v6760 = vpack.c.b16 %v6406, %v6400
    %v6761 = vpack.c.b16 %v6407, %v6401
    %v6762 = vpack.c.b16 %v6408, %v6402
    %v6763 = vpack.c.b16 %v6409, %v6403
    %v6764 = vpack.c.b16 %v6410, %v6404
    %v6765 = vpack.c.b16 %v6411, %v6405
    %v6766 = vpack.c.b16 %v6418, %v6412
    %v6767 = vpack.c.b16 %v6419, %v6413
    %v6768 = vpack.c.b16 %v6420, %v6414
    %v6769 = vpack.c.b16 %v6421, %v6415
    %v6770 = vpack.c.b16 %v6422, %v6416
    %v6771 = vpack.c.b16 %v6423, %v6417
    %v6772 = vpack.c.b16 %v6430, %v6424
    %v6773 = vpack.c.b16 %v6431, %v6425
    %v6774 = vpack.c.b16 %v6432, %v6426
    %v6775 = vpack.c.b16 %v6433, %v6427
    %v6776 = vpack.c.b16 %v6434, %v6428
    %v6777 = vpack.c.b16 %v6435, %v6429
    %v6778 = vpack.c.b16 %v6442, %v6436
    %v6779 = vpack.c.b16 %v6443, %v6437
    %v6780 = vpack.c.b16 %v6444, %v6438
    %v6781 = vpack.c.b16 %v6445, %v6439
    %v6782 = vpack.c.b16 %v6446, %v6440
    %v6783 = vpack.c.b16 %v6447, %v6441
    %v6784 = vpack.c.b16 %v6454, %v6448
    %v6785 = vpack.c.b16 %v6455, %v6449
    %v6786 = vpack.c.b16 %v6456, %v6450
    %v6787 = vpack.c.b16 %v6457, %v6451
    %v6788 = vpack.c.b16 %v6458, %v6452
    %v6789 = vpack.c.b16 %v6459, %v6453
    %v6790 = vpack.c.b16 %v6466, %v6460
    %v6791 = vpack.c.b16 %v6467, %v6461
    %v6792 = vpack.c.b16 %v6468, %v6462
    %v6793 = vpack.c.b16 %v6469, %v6463
    %v6794 = vpack.c.b16 %v6470, %v6464
    %v6795 = vpack.c.b16 %v6471, %v6465
    %v6796 = vpack.c.b16 %v6478, %v6472
    %v6797 = vpack.c.b16 %v6479, %v6473
    %v6798 = vpack.c.b16 %v6480, %v6474
    %v6799 = vpack.c.b16 %v6481, %v6475
    %v6800 = vpack.c.b16 %v6482, %v6476
    %v6801 = vpack.c.b16 %v6483, %v6477
    %v6802 = vpack.c.b16 %v6490, %v6484
    %v6803 = vpack.c.b16 %v6491, %v6485
    %v6804 = vpack.c.b16 %v6492, %v6486
    %v6805 = vpack.c.b16 %v6493, %v6487
    %v6806 = vpack.c.b16 %v6494, %v6488
    %v6807 = vpack.c.b16 %v6495, %v6489
    %v6808 = vpack.c.b16 %v6502, %v6496
    %v6809 = vpack.c.b16 %v6503, %v6497
    %v6810 = vpack.c.b16 %v6504, %v6498
    %v6811 = vpack.c.b16 %v6505, %v6499
    %v6812 = vpack.c.b16 %v6506, %v6500
    %v6813 = vpack.c.b16 %v6507, %v6501
    %v6814 = vpack.c.b16 %v6514, %v6508
    %v6815 = vpack.c.b16 %v6515, %v6509
    %v6816 = vpack.c.b16 %v6516, %v6510
    %v6817 = vpack.c.b16 %v6517, %v6511
    %v6818 = vpack.c.b16 %v6518, %v6512
    %v6819 = vpack.c.b16 %v6519, %v6513
    %v6820 = vpack.c.b16 %v6526, %v6520
    %v6821 = vpack.c.b16 %v6527, %v6521
    %v6822 = vpack.c.b16 %v6528, %v6522
    %v6823 = vpack.c.b16 %v6529, %v6523
    %v6824 = vpack.c.b16 %v6530, %v6524
    %v6825 = vpack.c.b16 %v6531, %v6525
    %v6826 = vpack.c.b16 %v6538, %v6532
    %v6827 = vpack.c.b16 %v6539, %v6533
    %v6828 = vpack.c.b16 %v6540, %v6534
    %v6829 = vpack.c.b16 %v6541, %v6535
    %v6830 = vpack.c.b16 %v6542, %v6536
    %v6831 = vpack.c.b16 %v6543, %v6537
    %7120 = vmatprep.subr.bf16.mxu0 %v6545
    %7121 = vmatpush1.bf16.msra.mxu0 %v6544
    %7122 = vmatprep.subr.bf16.mxu0 %v6551
    %7123 = vmatpush1.bf16.msra.mxu0 %v6550
    %7124 = vmatprep.subr.bf16.mxu0 %v6557
    %7125 = vmatpush1.bf16.msra.mxu0 %v6556
    %7126 = vmatprep.subr.bf16.mxu0 %v6563
    %7127 = vmatpush1.bf16.msra.mxu0 %v6562
    %7128 = vmatprep.subr.bf16.mxu0 %v6569
    %7129 = vmatpush1.bf16.msra.mxu0 %v6568
    %7130 = vmatprep.subr.bf16.mxu0 %v6575
    %7131 = vmatpush1.bf16.msra.mxu0 %v6574
    %7132 = vmatprep.subr.bf16.mxu0 %v6581
    %7133 = vmatpush1.bf16.msra.mxu0 %v6580
    %7134 = vmatprep.subr.bf16.mxu0 %v6587
    %7135 = vmatpush1.bf16.msra.mxu0 %v6586
    %7136 = vmatprep.subr.bf16.mxu0 %v6593
    %7137 = vmatpush1.bf16.msra.mxu0 %v6592
    %7138 = vmatprep.subr.bf16.mxu0 %v6599
    %7139 = vmatpush1.bf16.msra.mxu0 %v6598
    %7140 = vmatprep.subr.bf16.mxu0 %v6605
    %7141 = vmatpush1.bf16.msra.mxu0 %v6604
    %7142 = vmatprep.subr.bf16.mxu0 %v6611
    %7143 = vmatpush1.bf16.msra.mxu0 %v6610
    %7144 = vmatprep.subr.bf16.mxu0 %v6617
    %7145 = vmatpush1.bf16.msra.mxu0 %v6616
    %7146 = vmatprep.subr.bf16.mxu0 %v6623
    %7147 = vmatpush1.bf16.msra.mxu0 %v6622
    %7148 = vmatprep.subr.bf16.mxu0 %v6629
    %7149 = vmatpush1.bf16.msra.mxu0 %v6628
    %7150 = vmatprep.subr.bf16.mxu0 %v6635
    %7151 = vmatpush1.bf16.msra.mxu0 %v6634
    %7152 = vmatprep.mubr.bf16.mxu0 %v5355
    %7153 = vmatmul.mubr.bf16.gmra.mrb[0].mxu0 %v5354
    %v7154 = vpop.f32.mrb[0].mxu0
    %v7155 = vadd.f32 %v5653, %v7154
    %v7156 = vpop.f32.mrb[0].mxu0
    %v7157 = vadd.f32 %v5657, %v7156
    %v7158 = vpop.f32.mrb[0].mxu0
    %v7159 = vpop.f32.mrb[0].mxu0
    %7160 = vdwg.mxu0
    %7161 = vmatprep.subr.bf16.mxu0 %v6641
    %7162 = vmatpush1.bf16.msra.mxu0 %v6640
    %7163 = vmatprep.subr.bf16.mxu0 %v6647
    %7164 = vmatpush1.bf16.msra.mxu0 %v6646
    %7165 = vmatprep.subr.bf16.mxu0 %v6653
    %7166 = vmatpush1.bf16.msra.mxu0 %v6652
    %7167 = vmatprep.subr.bf16.mxu0 %v6659
    %7168 = vmatpush1.bf16.msra.mxu0 %v6658
    %7169 = vmatprep.subr.bf16.mxu0 %v6665
    %7170 = vmatpush1.bf16.msra.mxu0 %v6664
    %7171 = vmatprep.subr.bf16.mxu0 %v6671
    %7172 = vmatpush1.bf16.msra.mxu0 %v6670
    %7173 = vmatprep.subr.bf16.mxu0 %v6677
    %7174 = vmatpush1.bf16.msra.mxu0 %v6676
    %7175 = vmatprep.subr.bf16.mxu0 %v6683
    %7176 = vmatpush1.bf16.msra.mxu0 %v6682
    %7177 = vmatprep.subr.bf16.mxu0 %v6689
    %7178 = vmatpush1.bf16.msra.mxu0 %v6688
    %7179 = vmatprep.subr.bf16.mxu0 %v6695
    %7180 = vmatpush1.bf16.msra.mxu0 %v6694
    %7181 = vmatprep.subr.bf16.mxu0 %v6701
    %7182 = vmatpush1.bf16.msra.mxu0 %v6700
    %7183 = vmatprep.subr.bf16.mxu0 %v6707
    %7184 = vmatpush1.bf16.msra.mxu0 %v6706
    %7185 = vmatprep.subr.bf16.mxu0 %v6713
    %7186 = vmatpush1.bf16.msra.mxu0 %v6712
    %7187 = vmatprep.subr.bf16.mxu0 %v6719
    %7188 = vmatpush1.bf16.msra.mxu0 %v6718
    %7189 = vmatprep.subr.bf16.mxu0 %v6725
    %7190 = vmatpush1.bf16.msra.mxu0 %v6724
    %7191 = vmatprep.subr.bf16.mxu0 %v6731
    %7192 = vmatpush1.bf16.msra.mxu0 %v6730
    %7193 = vmatprep.mubr.bf16.mxu0 %v5357
    %7194 = vmatmul.mubr.bf16.gmra.mrb[0].mxu0 %v5356
    %v7195 = vpop.f32.mrb[0].mxu0
    %v7196 = vadd.f32 %v7155, %v7195
    %v7197 = vpop.f32.mrb[0].mxu0
    %v7198 = vadd.f32 %v7157, %v7197
    %v7199 = vpop.f32.mrb[0].mxu0
    %v7200 = vpop.f32.mrb[0].mxu0
    %7201 = vdwg.mxu0
    %7202 = vmatprep.subr.bf16.mxu0 %v6737
    %7203 = vmatpush1.bf16.msra.mxu0 %v6736
    %7204 = vmatprep.subr.bf16.mxu0 %v6743
    %7205 = vmatpush1.bf16.msra.mxu0 %v6742
    %7206 = vmatprep.subr.bf16.mxu0 %v6749
    %7207 = vmatpush1.bf16.msra.mxu0 %v6748
    %7208 = vmatprep.subr.bf16.mxu0 %v6755
    %7209 = vmatpush1.bf16.msra.mxu0 %v6754
    %7210 = vmatprep.subr.bf16.mxu0 %v6761
    %7211 = vmatpush1.bf16.msra.mxu0 %v6760
    %7212 = vmatprep.subr.bf16.mxu0 %v6767
    %7213 = vmatpush1.bf16.msra.mxu0 %v6766
    %7214 = vmatprep.subr.bf16.mxu0 %v6773
    %7215 = vmatpush1.bf16.msra.mxu0 %v6772
    %7216 = vmatprep.subr.bf16.mxu0 %v6779
    %7217 = vmatpush1.bf16.msra.mxu0 %v6778
    %7218 = vmatprep.subr.bf16.mxu0 %v6785
    %7219 = vmatpush1.bf16.msra.mxu0 %v6784
    %7220 = vmatprep.subr.bf16.mxu0 %v6791
    %7221 = vmatpush1.bf16.msra.mxu0 %v6790
    %7222 = vmatprep.subr.bf16.mxu0 %v6797
    %7223 = vmatpush1.bf16.msra.mxu0 %v6796
    %7224 = vmatprep.subr.bf16.mxu0 %v6803
    %7225 = vmatpush1.bf16.msra.mxu0 %v6802
    %7226 = vmatprep.subr.bf16.mxu0 %v6809
    %7227 = vmatpush1.bf16.msra.mxu0 %v6808
    %7228 = vmatprep.subr.bf16.mxu0 %v6815
    %7229 = vmatpush1.bf16.msra.mxu0 %v6814
    %7230 = vmatprep.subr.bf16.mxu0 %v6821
    %7231 = vmatpush1.bf16.msra.mxu0 %v6820
    %7232 = vmatprep.subr.bf16.mxu0 %v6827
    %7233 = vmatpush1.bf16.msra.mxu0 %v6826
    %7234 = vmatprep.mubr.bf16.mxu0 %v5359
    %7235 = vmatmul.mubr.bf16.gmra.mrb[0].mxu0 %v5358
    %v7236 = vpop.f32.mrb[0].mxu0
    %v7237 = vadd.f32 %v7196, %v7236
    %v7238 = vpop.f32.mrb[0].mxu0
    %v7239 = vadd.f32 %v7198, %v7238
    %v7240 = vpop.f32.mrb[0].mxu0
    %v7241 = vpop.f32.mrb[0].mxu0
    %7242 = vdwg.mxu0
    %7243 = vmatprep.subr.bf16.mxu0 %v6547
    %7244 = vmatpush1.bf16.msra.mxu0 %v6546
    %7245 = vmatprep.subr.bf16.mxu0 %v6553
    %7246 = vmatpush1.bf16.msra.mxu0 %v6552
    %7247 = vmatprep.subr.bf16.mxu0 %v6559
    %7248 = vmatpush1.bf16.msra.mxu0 %v6558
    %7249 = vmatprep.subr.bf16.mxu0 %v6565
    %7250 = vmatpush1.bf16.msra.mxu0 %v6564
    %7251 = vmatprep.subr.bf16.mxu0 %v6571
    %7252 = vmatpush1.bf16.msra.mxu0 %v6570
    %7253 = vmatprep.subr.bf16.mxu0 %v6577
    %7254 = vmatpush1.bf16.msra.mxu0 %v6576
    %7255 = vmatprep.subr.bf16.mxu0 %v6583
    %7256 = vmatpush1.bf16.msra.mxu0 %v6582
    %7257 = vmatprep.subr.bf16.mxu0 %v6589
    %7258 = vmatpush1.bf16.msra.mxu0 %v6588
    %7259 = vmatprep.subr.bf16.mxu0 %v6595
    %7260 = vmatpush1.bf16.msra.mxu0 %v6594
    %7261 = vmatprep.subr.bf16.mxu0 %v6601
    %7262 = vmatpush1.bf16.msra.mxu0 %v6600
    %7263 = vmatprep.subr.bf16.mxu0 %v6607
    %7264 = vmatpush1.bf16.msra.mxu0 %v6606
    %7265 = vmatprep.subr.bf16.mxu0 %v6613
    %7266 = vmatpush1.bf16.msra.mxu0 %v6612
    %7267 = vmatprep.subr.bf16.mxu0 %v6619
    %7268 = vmatpush1.bf16.msra.mxu0 %v6618
    %7269 = vmatprep.subr.bf16.mxu0 %v6625
    %7270 = vmatpush1.bf16.msra.mxu0 %v6624
    %7271 = vmatprep.subr.bf16.mxu0 %v6631
    %7272 = vmatpush1.bf16.msra.mxu0 %v6630
    %7273 = vmatprep.subr.bf16.mxu0 %v6637
    %7274 = vmatpush1.bf16.msra.mxu0 %v6636
    %7275 = vmatprep.mubr.bf16.mxu0 %v5355
    %7276 = vmatmul.mubr.bf16.gmra.mrb[0].mxu0 %v5354
    %v7277 = vpop.f32.mrb[0].mxu0
    %v7278 = vadd.f32 %v5661, %v7277
    %v7279 = vpop.f32.mrb[0].mxu0
    %v7280 = vadd.f32 %v5665, %v7279
    %v7281 = vpop.f32.mrb[0].mxu0
    %v7282 = vpop.f32.mrb[0].mxu0
    %7283 = vdwg.mxu0
    %7284 = vmatprep.subr.bf16.mxu0 %v6643
    %7285 = vmatpush1.bf16.msra.mxu0 %v6642
    %7286 = vmatprep.subr.bf16.mxu0 %v6649
    %7287 = vmatpush1.bf16.msra.mxu0 %v6648
    %7288 = vmatprep.subr.bf16.mxu0 %v6655
    %7289 = vmatpush1.bf16.msra.mxu0 %v6654
    %7290 = vmatprep.subr.bf16.mxu0 %v6661
    %7291 = vmatpush1.bf16.msra.mxu0 %v6660
    %7292 = vmatprep.subr.bf16.mxu0 %v6667
    %7293 = vmatpush1.bf16.msra.mxu0 %v6666
    %7294 = vmatprep.subr.bf16.mxu0 %v6673
    %7295 = vmatpush1.bf16.msra.mxu0 %v6672
    %7296 = vmatprep.subr.bf16.mxu0 %v6679
    %7297 = vmatpush1.bf16.msra.mxu0 %v6678
    %7298 = vmatprep.subr.bf16.mxu0 %v6685
    %7299 = vmatpush1.bf16.msra.mxu0 %v6684
    %7300 = vmatprep.subr.bf16.mxu0 %v6691
    %7301 = vmatpush1.bf16.msra.mxu0 %v6690
    %7302 = vmatprep.subr.bf16.mxu0 %v6697
    %7303 = vmatpush1.bf16.msra.mxu0 %v6696
    %7304 = vmatprep.subr.bf16.mxu0 %v6703
    %7305 = vmatpush1.bf16.msra.mxu0 %v6702
    %7306 = vmatprep.subr.bf16.mxu0 %v6709
    %7307 = vmatpush1.bf16.msra.mxu0 %v6708
    %7308 = vmatprep.subr.bf16.mxu0 %v6715
    %7309 = vmatpush1.bf16.msra.mxu0 %v6714
    %7310 = vmatprep.subr.bf16.mxu0 %v6721
    %7311 = vmatpush1.bf16.msra.mxu0 %v6720
    %7312 = vmatprep.subr.bf16.mxu0 %v6727
    %7313 = vmatpush1.bf16.msra.mxu0 %v6726
    %7314 = vmatprep.subr.bf16.mxu0 %v6733
    %7315 = vmatpush1.bf16.msra.mxu0 %v6732
    %7316 = vmatprep.mubr.bf16.mxu0 %v5357
    %7317 = vmatmul.mubr.bf16.gmra.mrb[0].mxu0 %v5356
    %v7318 = vpop.f32.mrb[0].mxu0
    %v7319 = vadd.f32 %v7278, %v7318
    %v7320 = vpop.f32.mrb[0].mxu0
    %v7321 = vadd.f32 %v7280, %v7320
    %v7322 = vpop.f32.mrb[0].mxu0
    %v7323 = vpop.f32.mrb[0].mxu0
    %7324 = vdwg.mxu0
    %7325 = vmatprep.subr.bf16.mxu0 %v6739
    %7326 = vmatpush1.bf16.msra.mxu0 %v6738
    %7327 = vmatprep.subr.bf16.mxu0 %v6745
    %7328 = vmatpush1.bf16.msra.mxu0 %v6744
    %7329 = vmatprep.subr.bf16.mxu0 %v6751
    %7330 = vmatpush1.bf16.msra.mxu0 %v6750
    %7331 = vmatprep.subr.bf16.mxu0 %v6757
    %7332 = vmatpush1.bf16.msra.mxu0 %v6756
    %7333 = vmatprep.subr.bf16.mxu0 %v6763
    %7334 = vmatpush1.bf16.msra.mxu0 %v6762
    %7335 = vmatprep.subr.bf16.mxu0 %v6769
    %7336 = vmatpush1.bf16.msra.mxu0 %v6768
    %7337 = vmatprep.subr.bf16.mxu0 %v6775
    %7338 = vmatpush1.bf16.msra.mxu0 %v6774
    %7339 = vmatprep.subr.bf16.mxu0 %v6781
    %7340 = vmatpush1.bf16.msra.mxu0 %v6780
    %7341 = vmatprep.subr.bf16.mxu0 %v6787
    %7342 = vmatpush1.bf16.msra.mxu0 %v6786
    %7343 = vmatprep.subr.bf16.mxu0 %v6793
    %7344 = vmatpush1.bf16.msra.mxu0 %v6792
    %7345 = vmatprep.subr.bf16.mxu0 %v6799
    %7346 = vmatpush1.bf16.msra.mxu0 %v6798
    %7347 = vmatprep.subr.bf16.mxu0 %v6805
    %7348 = vmatpush1.bf16.msra.mxu0 %v6804
    %7349 = vmatprep.subr.bf16.mxu0 %v6811
    %7350 = vmatpush1.bf16.msra.mxu0 %v6810
    %7351 = vmatprep.subr.bf16.mxu0 %v6817
    %7352 = vmatpush1.bf16.msra.mxu0 %v6816
    %7353 = vmatprep.subr.bf16.mxu0 %v6823
    %7354 = vmatpush1.bf16.msra.mxu0 %v6822
    %7355 = vmatprep.subr.bf16.mxu0 %v6829
    %7356 = vmatpush1.bf16.msra.mxu0 %v6828
    %7357 = vmatprep.mubr.bf16.mxu0 %v5359
    %7358 = vmatmul.mubr.bf16.gmra.mrb[0].mxu0 %v5358
    %v7359 = vpop.f32.mrb[0].mxu0
    %v7360 = vadd.f32 %v7319, %v7359
    %v7361 = vpop.f32.mrb[0].mxu0
    %v7362 = vadd.f32 %v7321, %v7361
    %v7363 = vpop.f32.mrb[0].mxu0
    %v7364 = vpop.f32.mrb[0].mxu0
    %7365 = vdwg.mxu0
    %7366 = vmatprep.subr.bf16.mxu0 %v6549
    %7367 = vmatpush1.bf16.msra.mxu0 %v6548
    %7368 = vmatprep.subr.bf16.mxu0 %v6555
    %7369 = vmatpush1.bf16.msra.mxu0 %v6554
    %7370 = vmatprep.subr.bf16.mxu0 %v6561
    %7371 = vmatpush1.bf16.msra.mxu0 %v6560
    %7372 = vmatprep.subr.bf16.mxu0 %v6567
    %7373 = vmatpush1.bf16.msra.mxu0 %v6566
    %7374 = vmatprep.subr.bf16.mxu0 %v6573
    %7375 = vmatpush1.bf16.msra.mxu0 %v6572
    %7376 = vmatprep.subr.bf16.mxu0 %v6579
    %7377 = vmatpush1.bf16.msra.mxu0 %v6578
    %7378 = vmatprep.subr.bf16.mxu0 %v6585
    %7379 = vmatpush1.bf16.msra.mxu0 %v6584
    %7380 = vmatprep.subr.bf16.mxu0 %v6591
    %7381 = vmatpush1.bf16.msra.mxu0 %v6590
    %7382 = vmatprep.subr.bf16.mxu0 %v6597
    %7383 = vmatpush1.bf16.msra.mxu0 %v6596
    %7384 = vmatprep.subr.bf16.mxu0 %v6603
    %7385 = vmatpush1.bf16.msra.mxu0 %v6602
    %7386 = vmatprep.subr.bf16.mxu0 %v6609
    %7387 = vmatpush1.bf16.msra.mxu0 %v6608
    %7388 = vmatprep.subr.bf16.mxu0 %v6615
    %7389 = vmatpush1.bf16.msra.mxu0 %v6614
    %7390 = vmatprep.subr.bf16.mxu0 %v6621
    %7391 = vmatpush1.bf16.msra.mxu0 %v6620
    %7392 = vmatprep.subr.bf16.mxu0 %v6627
    %7393 = vmatpush1.bf16.msra.mxu0 %v6626
    %7394 = vmatprep.subr.bf16.mxu0 %v6633
    %7395 = vmatpush1.bf16.msra.mxu0 %v6632
    %7396 = vmatprep.subr.bf16.mxu0 %v6639
    %7397 = vmatpush1.bf16.msra.mxu0 %v6638
    %7398 = vmatprep.mubr.bf16.mxu0 %v5355
    %7399 = vmatmul.mubr.bf16.gmra.mrb[0].mxu0 %v5354
    %v7400 = vpop.f32.mrb[0].mxu0
    %v7401 = vadd.f32 %v5669, %v7400
    %v7402 = vpop.f32.mrb[0].mxu0
    %v7403 = vadd.f32 %v5673, %v7402
    %v7404 = vpop.f32.mrb[0].mxu0
    %v7405 = vpop.f32.mrb[0].mxu0
    %7406 = vdwg.mxu0
    %7407 = vmatprep.subr.bf16.mxu0 %v6645
    %7408 = vmatpush1.bf16.msra.mxu0 %v6644
    %7409 = vmatprep.subr.bf16.mxu0 %v6651
    %7410 = vmatpush1.bf16.msra.mxu0 %v6650
    %7411 = vmatprep.subr.bf16.mxu0 %v6657
    %7412 = vmatpush1.bf16.msra.mxu0 %v6656
    %7413 = vmatprep.subr.bf16.mxu0 %v6663
    %7414 = vmatpush1.bf16.msra.mxu0 %v6662
    %7415 = vmatprep.subr.bf16.mxu0 %v6669
    %7416 = vmatpush1.bf16.msra.mxu0 %v6668
    %7417 = vmatprep.subr.bf16.mxu0 %v6675
    %7418 = vmatpush1.bf16.msra.mxu0 %v6674
    %7419 = vmatprep.subr.bf16.mxu0 %v6681
    %7420 = vmatpush1.bf16.msra.mxu0 %v6680
    %7421 = vmatprep.subr.bf16.mxu0 %v6687
    %7422 = vmatpush1.bf16.msra.mxu0 %v6686
    %7423 = vmatprep.subr.bf16.mxu0 %v6693
    %7424 = vmatpush1.bf16.msra.mxu0 %v6692
    %7425 = vmatprep.subr.bf16.mxu0 %v6699
    %7426 = vmatpush1.bf16.msra.mxu0 %v6698
    %7427 = vmatprep.subr.bf16.mxu0 %v6705
    %7428 = vmatpush1.bf16.msra.mxu0 %v6704
    %7429 = vmatprep.subr.bf16.mxu0 %v6711
    %7430 = vmatpush1.bf16.msra.mxu0 %v6710
    %7431 = vmatprep.subr.bf16.mxu0 %v6717
    %7432 = vmatpush1.bf16.msra.mxu0 %v6716
    %7433 = vmatprep.subr.bf16.mxu0 %v6723
    %7434 = vmatpush1.bf16.msra.mxu0 %v6722
    %7435 = vmatprep.subr.bf16.mxu0 %v6729
    %7436 = vmatpush1.bf16.msra.mxu0 %v6728
    %7437 = vmatprep.subr.bf16.mxu0 %v6735
    %7438 = vmatpush1.bf16.msra.mxu0 %v6734
    %7439 = vmatprep.mubr.bf16.mxu0 %v5357
    %7440 = vmatmul.mubr.bf16.gmra.mrb[0].mxu0 %v5356
    %v7441 = vpop.f32.mrb[0].mxu0
    %v7442 = vadd.f32 %v7401, %v7441
    %v7443 = vpop.f32.mrb[0].mxu0
    %v7444 = vadd.f32 %v7403, %v7443
    %v7445 = vpop.f32.mrb[0].mxu0
    %v7446 = vpop.f32.mrb[0].mxu0
    %7447 = vdwg.mxu0
    %7448 = vmatprep.subr.bf16.mxu0 %v6741
    %7449 = vmatpush1.bf16.msra.mxu0 %v6740
    %7450 = vmatprep.subr.bf16.mxu0 %v6747
    %7451 = vmatpush1.bf16.msra.mxu0 %v6746
    %7452 = vmatprep.subr.bf16.mxu0 %v6753
    %7453 = vmatpush1.bf16.msra.mxu0 %v6752
    %7454 = vmatprep.subr.bf16.mxu0 %v6759
    %7455 = vmatpush1.bf16.msra.mxu0 %v6758
    %7456 = vmatprep.subr.bf16.mxu0 %v6765
    %7457 = vmatpush1.bf16.msra.mxu0 %v6764
    %7458 = vmatprep.subr.bf16.mxu0 %v6771
    %7459 = vmatpush1.bf16.msra.mxu0 %v6770
    %7460 = vmatprep.subr.bf16.mxu0 %v6777
    %7461 = vmatpush1.bf16.msra.mxu0 %v6776
    %7462 = vmatprep.subr.bf16.mxu0 %v6783
    %7463 = vmatpush1.bf16.msra.mxu0 %v6782
    %7464 = vmatprep.subr.bf16.mxu0 %v6789
    %7465 = vmatpush1.bf16.msra.mxu0 %v6788
    %7466 = vmatprep.subr.bf16.mxu0 %v6795
    %7467 = vmatpush1.bf16.msra.mxu0 %v6794
    %7468 = vmatprep.subr.bf16.mxu0 %v6801
    %7469 = vmatpush1.bf16.msra.mxu0 %v6800
    %7470 = vmatprep.subr.bf16.mxu0 %v6807
    %7471 = vmatpush1.bf16.msra.mxu0 %v6806
    %7472 = vmatprep.subr.bf16.mxu0 %v6813
    %7473 = vmatpush1.bf16.msra.mxu0 %v6812
    %7474 = vmatprep.subr.bf16.mxu0 %v6819
    %7475 = vmatpush1.bf16.msra.mxu0 %v6818
    %7476 = vmatprep.subr.bf16.mxu0 %v6825
    %7477 = vmatpush1.bf16.msra.mxu0 %v6824
    %7478 = vmatprep.subr.bf16.mxu0 %v6831
    %7479 = vmatpush1.bf16.msra.mxu0 %v6830
    %7480 = vmatprep.mubr.bf16.mxu0 %v5359
    %7481 = vmatmul.mubr.bf16.gmra.mrb[0].mxu0 %v5358
    %v7482 = vpop.f32.mrb[0].mxu0
    %v7483 = vadd.f32 %v7442, %v7482
    %v7484 = vpop.f32.mrb[0].mxu0
    %v7485 = vadd.f32 %v7444, %v7484
    %v7486 = vpop.f32.mrb[0].mxu0
    %v7487 = vpop.f32.mrb[0].mxu0
    %7488 = vdwg.mxu0
    %v7489 = vmax.f32 %v7237, 0.0
    %v7490 = vmax.f32 %v7239, 0.0
    %v7491 = vmax.f32 %v7360, 0.0
    %v7492 = vmax.f32 %v7362, 0.0
    %v7493 = vmax.f32 %v7483, 0.0
    %v7494 = vmax.f32 %v7485, 0.0
    %v7495 = vpack.c.bf16 %v7489, %v7489
    %v7496 = vpack.c.bf16 %v7490, %v7490
    %v7497 = vpack.c.bf16 %v7491, %v7491
    %v7498 = vpack.c.bf16 %v7492, %v7492
    %v7499 = vpack.c.bf16 %v7493, %v7493
    %v7500 = vpack.c.bf16 %v7494, %v7494
    %v7501 = vld [vmem:[#allocation28] sm:$0xff]
    %v7502 = vld [vmem:[#allocation28 + $0x8] sm:$0xff]
    %v7503 = vld [vmem:[#allocation28 + $0x10] sm:$0xff]
    %v7504 = vld [vmem:[#allocation28 + $0x18] sm:$0xff]
    %v7505 = vld [vmem:[#allocation28 + $0x20] sm:$0xff]
    %v7506 = vld [vmem:[#allocation28 + $0x28] sm:$0xff]
    %v7507 = vld [vmem:[#allocation28 + $0x30] sm:$0xff]
    %v7508 = vld [vmem:[#allocation28 + $0x38] sm:$0xff]
    %v7509 = vld [vmem:[#allocation28 + $0x40] sm:$0xff]
    %v7510 = vld [vmem:[#allocation28 + $0x48] sm:$0xff]
    %v7511 = vld [vmem:[#allocation28 + $0x50] sm:$0xff]
    %v7512 = vld [vmem:[#allocation28 + $0x58] sm:$0xff]
    %v7513 = vld [vmem:[#allocation28 + $0x60] sm:$0xff]
    %v7514 = vld [vmem:[#allocation28 + $0x68] sm:$0xff]
    %v7515 = vld [vmem:[#allocation28 + $0x70] sm:$0xff]
    %v7516 = vld [vmem:[#allocation28 + $0x78] sm:$0xff]
    %v7517 = vld [vmem:[#allocation28 + $0x80] sm:$0xff]
    %v7518 = vld [vmem:[#allocation28 + $0x88] sm:$0xff]
    %v7519 = vld [vmem:[#allocation28 + $0x90] sm:$0xff]
    %v7520 = vld [vmem:[#allocation28 + $0x98] sm:$0xff]
    %v7521 = vld [vmem:[#allocation28 + $0xa0] sm:$0xff]
    %v7522 = vld [vmem:[#allocation28 + $0xa8] sm:$0xff]
    %v7523 = vld [vmem:[#allocation28 + $0xb0] sm:$0xff]
    %v7524 = vld [vmem:[#allocation28 + $0xb8] sm:$0xff]
    %v7525 = vld [vmem:[#allocation28 + $0xc0] sm:$0xff]
    %v7526 = vld [vmem:[#allocation28 + $0xc8] sm:$0xff]
    %v7527 = vld [vmem:[#allocation28 + $0xd0] sm:$0xff]
    %v7528 = vld [vmem:[#allocation28 + $0xd8] sm:$0xff]
    %v7529 = vld [vmem:[#allocation28 + $0xe0] sm:$0xff]
    %v7530 = vld [vmem:[#allocation28 + $0xe8] sm:$0xff]
    %v7531 = vld [vmem:[#allocation28 + $0xf0] sm:$0xff]
    %v7532 = vld [vmem:[#allocation28 + $0xf8] sm:$0xff]
    %v7533 = vld [vmem:[#allocation28 + $0x100] sm:$0xff]
    %v7534 = vld [vmem:[#allocation28 + $0x108] sm:$0xff]
    %v7535 = vld [vmem:[#allocation28 + $0x110] sm:$0xff]
    %v7536 = vld [vmem:[#allocation28 + $0x118] sm:$0xff]
    %v7537 = vld [vmem:[#allocation28 + $0x120] sm:$0xff]
    %v7538 = vld [vmem:[#allocation28 + $0x128] sm:$0xff]
    %v7539 = vld [vmem:[#allocation28 + $0x130] sm:$0xff]
    %v7540 = vld [vmem:[#allocation28 + $0x138] sm:$0xff]
    %v7541 = vld [vmem:[#allocation28 + $0x140] sm:$0xff]
    %v7542 = vld [vmem:[#allocation28 + $0x148] sm:$0xff]
    %v7543 = vld [vmem:[#allocation28 + $0x150] sm:$0xff]
    %v7544 = vld [vmem:[#allocation28 + $0x158] sm:$0xff]
    %v7545 = vld [vmem:[#allocation28 + $0x160] sm:$0xff]
    %v7546 = vld [vmem:[#allocation28 + $0x168] sm:$0xff]
    %v7547 = vld [vmem:[#allocation28 + $0x170] sm:$0xff]
    %v7548 = vld [vmem:[#allocation28 + $0x178] sm:$0xff]
    %v7549 = vld [vmem:[#allocation28 + $0x180] sm:$0xff]
    %v7550 = vld [vmem:[#allocation28 + $0x188] sm:$0xff]
    %v7551 = vld [vmem:[#allocation28 + $0x190] sm:$0xff]
    %v7552 = vld [vmem:[#allocation28 + $0x198] sm:$0xff]
    %v7553 = vld [vmem:[#allocation28 + $0x1a0] sm:$0xff]
    %v7554 = vld [vmem:[#allocation28 + $0x1a8] sm:$0xff]
    %v7555 = vld [vmem:[#allocation28 + $0x1b0] sm:$0xff]
    %v7556 = vld [vmem:[#allocation28 + $0x1b8] sm:$0xff]
    %v7557 = vld [vmem:[#allocation28 + $0x1c0] sm:$0xff]
    %v7558 = vld [vmem:[#allocation28 + $0x1c8] sm:$0xff]
    %v7559 = vld [vmem:[#allocation28 + $0x1d0] sm:$0xff]
    %v7560 = vld [vmem:[#allocation28 + $0x1d8] sm:$0xff]
    %v7561 = vld [vmem:[#allocation28 + $0x1e0] sm:$0xff]
    %v7562 = vld [vmem:[#allocation28 + $0x1e8] sm:$0xff]
    %v7563 = vld [vmem:[#allocation28 + $0x1f0] sm:$0xff]
    %v7564 = vld [vmem:[#allocation28 + $0x1f8] sm:$0xff]
    %v7565 = vld [vmem:[#allocation28 + $0x200] sm:$0xff]
    %v7566 = vld [vmem:[#allocation28 + $0x208] sm:$0xff]
    %v7567 = vld [vmem:[#allocation28 + $0x210] sm:$0xff]
    %v7568 = vld [vmem:[#allocation28 + $0x218] sm:$0xff]
    %v7569 = vld [vmem:[#allocation28 + $0x220] sm:$0xff]
    %v7570 = vld [vmem:[#allocation28 + $0x228] sm:$0xff]
    %v7571 = vld [vmem:[#allocation28 + $0x230] sm:$0xff]
    %v7572 = vld [vmem:[#allocation28 + $0x238] sm:$0xff]
    %v7573 = vld [vmem:[#allocation28 + $0x240] sm:$0xff]
    %v7574 = vld [vmem:[#allocation28 + $0x248] sm:$0xff]
    %v7575 = vld [vmem:[#allocation28 + $0x250] sm:$0xff]
    %v7576 = vld [vmem:[#allocation28 + $0x258] sm:$0xff]
    %v7577 = vld [vmem:[#allocation28 + $0x260] sm:$0xff]
    %v7578 = vld [vmem:[#allocation28 + $0x268] sm:$0xff]
    %v7579 = vld [vmem:[#allocation28 + $0x270] sm:$0xff]
    %v7580 = vld [vmem:[#allocation28 + $0x278] sm:$0xff]
    %v7581 = vld [vmem:[#allocation28 + $0x280] sm:$0xff]
    %v7582 = vld [vmem:[#allocation28 + $0x288] sm:$0xff]
    %v7583 = vld [vmem:[#allocation28 + $0x290] sm:$0xff]
    %v7584 = vld [vmem:[#allocation28 + $0x298] sm:$0xff]
    %v7585 = vld [vmem:[#allocation28 + $0x2a0] sm:$0xff]
    %v7586 = vld [vmem:[#allocation28 + $0x2a8] sm:$0xff]
    %v7587 = vld [vmem:[#allocation28 + $0x2b0] sm:$0xff]
    %v7588 = vld [vmem:[#allocation28 + $0x2b8] sm:$0xff]
    %v7589 = vld [vmem:[#allocation28 + $0x2c0] sm:$0xff]
    %v7590 = vld [vmem:[#allocation28 + $0x2c8] sm:$0xff]
    %v7591 = vld [vmem:[#allocation28 + $0x2d0] sm:$0xff]
    %v7592 = vld [vmem:[#allocation28 + $0x2d8] sm:$0xff]
    %v7593 = vld [vmem:[#allocation28 + $0x2e0] sm:$0xff]
    %v7594 = vld [vmem:[#allocation28 + $0x2e8] sm:$0xff]
    %v7595 = vld [vmem:[#allocation28 + $0x2f0] sm:$0xff]
    %v7596 = vld [vmem:[#allocation28 + $0x2f8] sm:$0xff]
    %v7597 = vld [vmem:[#allocation30] sm:$0x3]
    %v7599 = vlaneseq
    %v7600 = vshrl.u32 %v7599, 7
    %v7601 = vsub.s32 0, %v7600
    %v7602 = vrot.slane %v7597, %v7601
    %v7603 = vlaneseq
    %v7604 = vshrl.u32 %v7603, 7
    %v7605 = vsub.s32 1, %v7604
    %v7606 = vrot.slane %v7597, %v7605
    %v7705 = vunpack.c.l.b16 %v7501
    %v7706 = vunpack.c.h.b16 %v7501
    %v7707 = vunpack.c.l.b16 %v7502
    %v7708 = vunpack.c.h.b16 %v7502
    %v7709 = vunpack.c.l.b16 %v7503
    %v7710 = vunpack.c.h.b16 %v7503
    %v7711 = vunpack.c.l.b16 %v7504
    %v7712 = vunpack.c.h.b16 %v7504
    %v7713 = vunpack.c.l.b16 %v7505
    %v7714 = vunpack.c.h.b16 %v7505
    %v7715 = vunpack.c.l.b16 %v7506
    %v7716 = vunpack.c.h.b16 %v7506
    %v7717 = vunpack.c.l.b16 %v7507
    %v7718 = vunpack.c.h.b16 %v7507
    %v7719 = vunpack.c.l.b16 %v7508
    %v7720 = vunpack.c.h.b16 %v7508
    %v7721 = vunpack.c.l.b16 %v7509
    %v7722 = vunpack.c.h.b16 %v7509
    %v7723 = vunpack.c.l.b16 %v7510
    %v7724 = vunpack.c.h.b16 %v7510
    %v7725 = vunpack.c.l.b16 %v7511
    %v7726 = vunpack.c.h.b16 %v7511
    %v7727 = vunpack.c.l.b16 %v7512
    %v7728 = vunpack.c.h.b16 %v7512
    %v7729 = vunpack.c.l.b16 %v7513
    %v7730 = vunpack.c.h.b16 %v7513
    %v7731 = vunpack.c.l.b16 %v7514
    %v7732 = vunpack.c.h.b16 %v7514
    %v7733 = vunpack.c.l.b16 %v7515
    %v7734 = vunpack.c.h.b16 %v7515
    %v7735 = vunpack.c.l.b16 %v7516
    %v7736 = vunpack.c.h.b16 %v7516
    %v7737 = vunpack.c.l.b16 %v7517
    %v7738 = vunpack.c.h.b16 %v7517
    %v7739 = vunpack.c.l.b16 %v7518
    %v7740 = vunpack.c.h.b16 %v7518
    %v7741 = vunpack.c.l.b16 %v7519
    %v7742 = vunpack.c.h.b16 %v7519
    %v7743 = vunpack.c.l.b16 %v7520
    %v7744 = vunpack.c.h.b16 %v7520
    %v7745 = vunpack.c.l.b16 %v7521
    %v7746 = vunpack.c.h.b16 %v7521
    %v7747 = vunpack.c.l.b16 %v7522
    %v7748 = vunpack.c.h.b16 %v7522
    %v7749 = vunpack.c.l.b16 %v7523
    %v7750 = vunpack.c.h.b16 %v7523
    %v7751 = vunpack.c.l.b16 %v7524
    %v7752 = vunpack.c.h.b16 %v7524
    %v7753 = vunpack.c.l.b16 %v7525
    %v7754 = vunpack.c.h.b16 %v7525
    %v7755 = vunpack.c.l.b16 %v7526
    %v7756 = vunpack.c.h.b16 %v7526
    %v7757 = vunpack.c.l.b16 %v7527
    %v7758 = vunpack.c.h.b16 %v7527
    %v7759 = vunpack.c.l.b16 %v7528
    %v7760 = vunpack.c.h.b16 %v7528
    %v7761 = vunpack.c.l.b16 %v7529
    %v7762 = vunpack.c.h.b16 %v7529
    %v7763 = vunpack.c.l.b16 %v7530
    %v7764 = vunpack.c.h.b16 %v7530
    %v7765 = vunpack.c.l.b16 %v7531
    %v7766 = vunpack.c.h.b16 %v7531
    %v7767 = vunpack.c.l.b16 %v7532
    %v7768 = vunpack.c.h.b16 %v7532
    %v7769 = vunpack.c.l.b16 %v7533
    %v7770 = vunpack.c.h.b16 %v7533
    %v7771 = vunpack.c.l.b16 %v7534
    %v7772 = vunpack.c.h.b16 %v7534
    %v7773 = vunpack.c.l.b16 %v7535
    %v7774 = vunpack.c.h.b16 %v7535
    %v7775 = vunpack.c.l.b16 %v7536
    %v7776 = vunpack.c.h.b16 %v7536
    %v7777 = vunpack.c.l.b16 %v7537
    %v7778 = vunpack.c.h.b16 %v7537
    %v7779 = vunpack.c.l.b16 %v7538
    %v7780 = vunpack.c.h.b16 %v7538
    %v7781 = vunpack.c.l.b16 %v7539
    %v7782 = vunpack.c.h.b16 %v7539
    %v7783 = vunpack.c.l.b16 %v7540
    %v7784 = vunpack.c.h.b16 %v7540
    %v7785 = vunpack.c.l.b16 %v7541
    %v7786 = vunpack.c.h.b16 %v7541
    %v7787 = vunpack.c.l.b16 %v7542
    %v7788 = vunpack.c.h.b16 %v7542
    %v7789 = vunpack.c.l.b16 %v7543
    %v7790 = vunpack.c.h.b16 %v7543
    %v7791 = vunpack.c.l.b16 %v7544
    %v7792 = vunpack.c.h.b16 %v7544
    %v7793 = vunpack.c.l.b16 %v7545
    %v7794 = vunpack.c.h.b16 %v7545
    %v7795 = vunpack.c.l.b16 %v7546
    %v7796 = vunpack.c.h.b16 %v7546
    %v7797 = vunpack.c.l.b16 %v7547
    %v7798 = vunpack.c.h.b16 %v7547
    %v7799 = vunpack.c.l.b16 %v7548
    %v7800 = vunpack.c.h.b16 %v7548
    %v7801 = vunpack.c.l.b16 %v7549
    %v7802 = vunpack.c.h.b16 %v7549
    %v7803 = vunpack.c.l.b16 %v7550
    %v7804 = vunpack.c.h.b16 %v7550
    %v7805 = vunpack.c.l.b16 %v7551
    %v7806 = vunpack.c.h.b16 %v7551
    %v7807 = vunpack.c.l.b16 %v7552
    %v7808 = vunpack.c.h.b16 %v7552
    %v7809 = vunpack.c.l.b16 %v7553
    %v7810 = vunpack.c.h.b16 %v7553
    %v7811 = vunpack.c.l.b16 %v7554
    %v7812 = vunpack.c.h.b16 %v7554
    %v7813 = vunpack.c.l.b16 %v7555
    %v7814 = vunpack.c.h.b16 %v7555
    %v7815 = vunpack.c.l.b16 %v7556
    %v7816 = vunpack.c.h.b16 %v7556
    %v7817 = vunpack.c.l.b16 %v7557
    %v7818 = vunpack.c.h.b16 %v7557
    %v7819 = vunpack.c.l.b16 %v7558
    %v7820 = vunpack.c.h.b16 %v7558
    %v7821 = vunpack.c.l.b16 %v7559
    %v7822 = vunpack.c.h.b16 %v7559
    %v7823 = vunpack.c.l.b16 %v7560
    %v7824 = vunpack.c.h.b16 %v7560
    %v7825 = vunpack.c.l.b16 %v7561
    %v7826 = vunpack.c.h.b16 %v7561
    %v7827 = vunpack.c.l.b16 %v7562
    %v7828 = vunpack.c.h.b16 %v7562
    %v7829 = vunpack.c.l.b16 %v7563
    %v7830 = vunpack.c.h.b16 %v7563
    %v7831 = vunpack.c.l.b16 %v7564
    %v7832 = vunpack.c.h.b16 %v7564
    %v7833 = vunpack.c.l.b16 %v7565
    %v7834 = vunpack.c.h.b16 %v7565
    %v7835 = vunpack.c.l.b16 %v7566
    %v7836 = vunpack.c.h.b16 %v7566
    %v7837 = vunpack.c.l.b16 %v7567
    %v7838 = vunpack.c.h.b16 %v7567
    %v7839 = vunpack.c.l.b16 %v7568
    %v7840 = vunpack.c.h.b16 %v7568
    %v7841 = vunpack.c.l.b16 %v7569
    %v7842 = vunpack.c.h.b16 %v7569
    %v7843 = vunpack.c.l.b16 %v7570
    %v7844 = vunpack.c.h.b16 %v7570
    %v7845 = vunpack.c.l.b16 %v7571
    %v7846 = vunpack.c.h.b16 %v7571
    %v7847 = vunpack.c.l.b16 %v7572
    %v7848 = vunpack.c.h.b16 %v7572
    %v7849 = vunpack.c.l.b16 %v7573
    %v7850 = vunpack.c.h.b16 %v7573
    %v7851 = vunpack.c.l.b16 %v7574
    %v7852 = vunpack.c.h.b16 %v7574
    %v7853 = vunpack.c.l.b16 %v7575
    %v7854 = vunpack.c.h.b16 %v7575
    %v7855 = vunpack.c.l.b16 %v7576
    %v7856 = vunpack.c.h.b16 %v7576
    %v7857 = vunpack.c.l.b16 %v7577
    %v7858 = vunpack.c.h.b16 %v7577
    %v7859 = vunpack.c.l.b16 %v7578
    %v7860 = vunpack.c.h.b16 %v7578
    %v7861 = vunpack.c.l.b16 %v7579
    %v7862 = vunpack.c.h.b16 %v7579
    %v7863 = vunpack.c.l.b16 %v7580
    %v7864 = vunpack.c.h.b16 %v7580
    %v7865 = vunpack.c.l.b16 %v7581
    %v7866 = vunpack.c.h.b16 %v7581
    %v7867 = vunpack.c.l.b16 %v7582
    %v7868 = vunpack.c.h.b16 %v7582
    %v7869 = vunpack.c.l.b16 %v7583
    %v7870 = vunpack.c.h.b16 %v7583
    %v7871 = vunpack.c.l.b16 %v7584
    %v7872 = vunpack.c.h.b16 %v7584
    %v7873 = vunpack.c.l.b16 %v7585
    %v7874 = vunpack.c.h.b16 %v7585
    %v7875 = vunpack.c.l.b16 %v7586
    %v7876 = vunpack.c.h.b16 %v7586
    %v7877 = vunpack.c.l.b16 %v7587
    %v7878 = vunpack.c.h.b16 %v7587
    %v7879 = vunpack.c.l.b16 %v7588
    %v7880 = vunpack.c.h.b16 %v7588
    %v7881 = vunpack.c.l.b16 %v7589
    %v7882 = vunpack.c.h.b16 %v7589
    %v7883 = vunpack.c.l.b16 %v7590
    %v7884 = vunpack.c.h.b16 %v7590
    %v7885 = vunpack.c.l.b16 %v7591
    %v7886 = vunpack.c.h.b16 %v7591
    %v7887 = vunpack.c.l.b16 %v7592
    %v7888 = vunpack.c.h.b16 %v7592
    %v7889 = vunpack.c.l.b16 %v7593
    %v7890 = vunpack.c.h.b16 %v7593
    %v7891 = vunpack.c.l.b16 %v7594
    %v7892 = vunpack.c.h.b16 %v7594
    %v7893 = vunpack.c.l.b16 %v7595
    %v7894 = vunpack.c.h.b16 %v7595
    %v7895 = vunpack.c.l.b16 %v7596
    %v7896 = vunpack.c.h.b16 %v7596
    %v7897 = vpack.c.b16 %v7707, %v7705
    %v7898 = vpack.c.b16 %v7708, %v7706
    %v7899 = vpack.c.b16 %v7711, %v7709
    %v7900 = vpack.c.b16 %v7712, %v7710
    %v7901 = vpack.c.b16 %v7715, %v7713
    %v7902 = vpack.c.b16 %v7716, %v7714
    %v7903 = vpack.c.b16 %v7719, %v7717
    %v7904 = vpack.c.b16 %v7720, %v7718
    %v7905 = vpack.c.b16 %v7723, %v7721
    %v7906 = vpack.c.b16 %v7724, %v7722
    %v7907 = vpack.c.b16 %v7727, %v7725
    %v7908 = vpack.c.b16 %v7728, %v7726
    %v7909 = vpack.c.b16 %v7731, %v7729
    %v7910 = vpack.c.b16 %v7732, %v7730
    %v7911 = vpack.c.b16 %v7735, %v7733
    %v7912 = vpack.c.b16 %v7736, %v7734
    %v7913 = vpack.c.b16 %v7739, %v7737
    %v7914 = vpack.c.b16 %v7740, %v7738
    %v7915 = vpack.c.b16 %v7743, %v7741
    %v7916 = vpack.c.b16 %v7744, %v7742
    %v7917 = vpack.c.b16 %v7747, %v7745
    %v7918 = vpack.c.b16 %v7748, %v7746
    %v7919 = vpack.c.b16 %v7751, %v7749
    %v7920 = vpack.c.b16 %v7752, %v7750
    %v7921 = vpack.c.b16 %v7755, %v7753
    %v7922 = vpack.c.b16 %v7756, %v7754
    %v7923 = vpack.c.b16 %v7759, %v7757
    %v7924 = vpack.c.b16 %v7760, %v7758
    %v7925 = vpack.c.b16 %v7763, %v7761
    %v7926 = vpack.c.b16 %v7764, %v7762
    %v7927 = vpack.c.b16 %v7767, %v7765
    %v7928 = vpack.c.b16 %v7768, %v7766
    %v7929 = vpack.c.b16 %v7771, %v7769
    %v7930 = vpack.c.b16 %v7772, %v7770
    %v7931 = vpack.c.b16 %v7775, %v7773
    %v7932 = vpack.c.b16 %v7776, %v7774
    %v7933 = vpack.c.b16 %v7779, %v7777
    %v7934 = vpack.c.b16 %v7780, %v7778
    %v7935 = vpack.c.b16 %v7783, %v7781
    %v7936 = vpack.c.b16 %v7784, %v7782
    %v7937 = vpack.c.b16 %v7787, %v7785
    %v7938 = vpack.c.b16 %v7788, %v7786
    %v7939 = vpack.c.b16 %v7791, %v7789
    %v7940 = vpack.c.b16 %v7792, %v7790
    %v7941 = vpack.c.b16 %v7795, %v7793
    %v7942 = vpack.c.b16 %v7796, %v7794
    %v7943 = vpack.c.b16 %v7799, %v7797
    %v7944 = vpack.c.b16 %v7800, %v7798
    %v7945 = vpack.c.b16 %v7803, %v7801
    %v7946 = vpack.c.b16 %v7804, %v7802
    %v7947 = vpack.c.b16 %v7807, %v7805
    %v7948 = vpack.c.b16 %v7808, %v7806
    %v7949 = vpack.c.b16 %v7811, %v7809
    %v7950 = vpack.c.b16 %v7812, %v7810
    %v7951 = vpack.c.b16 %v7815, %v7813
    %v7952 = vpack.c.b16 %v7816, %v7814
    %v7953 = vpack.c.b16 %v7819, %v7817
    %v7954 = vpack.c.b16 %v7820, %v7818
    %v7955 = vpack.c.b16 %v7823, %v7821
    %v7956 = vpack.c.b16 %v7824, %v7822
    %v7957 = vpack.c.b16 %v7827, %v7825
    %v7958 = vpack.c.b16 %v7828, %v7826
    %v7959 = vpack.c.b16 %v7831, %v7829
    %v7960 = vpack.c.b16 %v7832, %v7830
    %v7961 = vpack.c.b16 %v7835, %v7833
    %v7962 = vpack.c.b16 %v7836, %v7834
    %v7963 = vpack.c.b16 %v7839, %v7837
    %v7964 = vpack.c.b16 %v7840, %v7838
    %v7965 = vpack.c.b16 %v7843, %v7841
    %v7966 = vpack.c.b16 %v7844, %v7842
    %v7967 = vpack.c.b16 %v7847, %v7845
    %v7968 = vpack.c.b16 %v7848, %v7846
    %v7969 = vpack.c.b16 %v7851, %v7849
    %v7970 = vpack.c.b16 %v7852, %v7850
    %v7971 = vpack.c.b16 %v7855, %v7853
    %v7972 = vpack.c.b16 %v7856, %v7854
    %v7973 = vpack.c.b16 %v7859, %v7857
    %v7974 = vpack.c.b16 %v7860, %v7858
    %v7975 = vpack.c.b16 %v7863, %v7861
    %v7976 = vpack.c.b16 %v7864, %v7862
    %v7977 = vpack.c.b16 %v7867, %v7865
    %v7978 = vpack.c.b16 %v7868, %v7866
    %v7979 = vpack.c.b16 %v7871, %v7869
    %v7980 = vpack.c.b16 %v7872, %v7870
    %v7981 = vpack.c.b16 %v7875, %v7873
    %v7982 = vpack.c.b16 %v7876, %v7874
    %v7983 = vpack.c.b16 %v7879, %v7877
    %v7984 = vpack.c.b16 %v7880, %v7878
    %v7985 = vpack.c.b16 %v7883, %v7881
    %v7986 = vpack.c.b16 %v7884, %v7882
    %v7987 = vpack.c.b16 %v7887, %v7885
    %v7988 = vpack.c.b16 %v7888, %v7886
    %v7989 = vpack.c.b16 %v7891, %v7889
    %v7990 = vpack.c.b16 %v7892, %v7890
    %v7991 = vpack.c.b16 %v7895, %v7893
    %v7992 = vpack.c.b16 %v7896, %v7894
    %8089 = vmatprep.subr.bf16.mxu0 %v7898
    %8090 = vmatpush1.bf16.msra.mxu0 %v7897
    %8091 = vmatprep.subr.bf16.mxu0 %v7900
    %8092 = vmatpush1.bf16.msra.mxu0 %v7899
    %8093 = vmatprep.subr.bf16.mxu0 %v7902
    %8094 = vmatpush1.bf16.msra.mxu0 %v7901
    %8095 = vmatprep.subr.bf16.mxu0 %v7904
    %8096 = vmatpush1.bf16.msra.mxu0 %v7903
    %8097 = vmatprep.subr.bf16.mxu0 %v7906
    %8098 = vmatpush1.bf16.msra.mxu0 %v7905
    %8099 = vmatprep.subr.bf16.mxu0 %v7908
    %8100 = vmatpush1.bf16.msra.mxu0 %v7907
    %8101 = vmatprep.subr.bf16.mxu0 %v7910
    %8102 = vmatpush1.bf16.msra.mxu0 %v7909
    %8103 = vmatprep.subr.bf16.mxu0 %v7912
    %8104 = vmatpush1.bf16.msra.mxu0 %v7911
    %8105 = vmatprep.subr.bf16.mxu0 %v7914
    %8106 = vmatpush1.bf16.msra.mxu0 %v7913
    %8107 = vmatprep.subr.bf16.mxu0 %v7916
    %8108 = vmatpush1.bf16.msra.mxu0 %v7915
    %8109 = vmatprep.subr.bf16.mxu0 %v7918
    %8110 = vmatpush1.bf16.msra.mxu0 %v7917
    %8111 = vmatprep.subr.bf16.mxu0 %v7920
    %8112 = vmatpush1.bf16.msra.mxu0 %v7919
    %8113 = vmatprep.subr.bf16.mxu0 %v7922
    %8114 = vmatpush1.bf16.msra.mxu0 %v7921
    %8115 = vmatprep.subr.bf16.mxu0 %v7924
    %8116 = vmatpush1.bf16.msra.mxu0 %v7923
    %8117 = vmatprep.subr.bf16.mxu0 %v7926
    %8118 = vmatpush1.bf16.msra.mxu0 %v7925
    %8119 = vmatprep.subr.bf16.mxu0 %v7928
    %8120 = vmatpush1.bf16.msra.mxu0 %v7927
    %8121 = vmatprep.mubr.bf16.mxu0 %v7496
    %8122 = vmatmul.mubr.bf16.gmra.mrb[0].mxu0 %v7495
    %v8123 = vpop.f32.mrb[0].mxu0
    %v8124 = vadd.f32 %v7602, %v8123
    %v8125 = vpop.f32.mrb[0].mxu0
    %v8126 = vadd.f32 %v7606, %v8125
    %v8127 = vpop.f32.mrb[0].mxu0
    %v8128 = vpop.f32.mrb[0].mxu0
    %8129 = vdwg.mxu0
    %8130 = vmatprep.subr.bf16.mxu0 %v7930
    %8131 = vmatpush1.bf16.msra.mxu0 %v7929
    %8132 = vmatprep.subr.bf16.mxu0 %v7932
    %8133 = vmatpush1.bf16.msra.mxu0 %v7931
    %8134 = vmatprep.subr.bf16.mxu0 %v7934
    %8135 = vmatpush1.bf16.msra.mxu0 %v7933
    %8136 = vmatprep.subr.bf16.mxu0 %v7936
    %8137 = vmatpush1.bf16.msra.mxu0 %v7935
    %8138 = vmatprep.subr.bf16.mxu0 %v7938
    %8139 = vmatpush1.bf16.msra.mxu0 %v7937
    %8140 = vmatprep.subr.bf16.mxu0 %v7940
    %8141 = vmatpush1.bf16.msra.mxu0 %v7939
    %8142 = vmatprep.subr.bf16.mxu0 %v7942
    %8143 = vmatpush1.bf16.msra.mxu0 %v7941
    %8144 = vmatprep.subr.bf16.mxu0 %v7944
    %8145 = vmatpush1.bf16.msra.mxu0 %v7943
    %8146 = vmatprep.subr.bf16.mxu0 %v7946
    %8147 = vmatpush1.bf16.msra.mxu0 %v7945
    %8148 = vmatprep.subr.bf16.mxu0 %v7948
    %8149 = vmatpush1.bf16.msra.mxu0 %v7947
    %8150 = vmatprep.subr.bf16.mxu0 %v7950
    %8151 = vmatpush1.bf16.msra.mxu0 %v7949
    %8152 = vmatprep.subr.bf16.mxu0 %v7952
    %8153 = vmatpush1.bf16.msra.mxu0 %v7951
    %8154 = vmatprep.subr.bf16.mxu0 %v7954
    %8155 = vmatpush1.bf16.msra.mxu0 %v7953
    %8156 = vmatprep.subr.bf16.mxu0 %v7956
    %8157 = vmatpush1.bf16.msra.mxu0 %v7955
    %8158 = vmatprep.subr.bf16.mxu0 %v7958
    %8159 = vmatpush1.bf16.msra.mxu0 %v7957
    %8160 = vmatprep.subr.bf16.mxu0 %v7960
    %8161 = vmatpush1.bf16.msra.mxu0 %v7959
    %8162 = vmatprep.mubr.bf16.mxu0 %v7498
    %8163 = vmatmul.mubr.bf16.gmra.mrb[0].mxu0 %v7497
    %v8164 = vpop.f32.mrb[0].mxu0
    %v8165 = vadd.f32 %v8124, %v8164
    %v8166 = vpop.f32.mrb[0].mxu0
    %v8167 = vadd.f32 %v8126, %v8166
    %v8168 = vpop.f32.mrb[0].mxu0
    %v8169 = vpop.f32.mrb[0].mxu0
    %8170 = vdwg.mxu0
    %8171 = vmatprep.subr.bf16.mxu0 %v7962
    %8172 = vmatpush1.bf16.msra.mxu0 %v7961
    %8173 = vmatprep.subr.bf16.mxu0 %v7964
    %8174 = vmatpush1.bf16.msra.mxu0 %v7963
    %8175 = vmatprep.subr.bf16.mxu0 %v7966
    %8176 = vmatpush1.bf16.msra.mxu0 %v7965
    %8177 = vmatprep.subr.bf16.mxu0 %v7968
    %8178 = vmatpush1.bf16.msra.mxu0 %v7967
    %8179 = vmatprep.subr.bf16.mxu0 %v7970
    %8180 = vmatpush1.bf16.msra.mxu0 %v7969
    %8181 = vmatprep.subr.bf16.mxu0 %v7972
    %8182 = vmatpush1.bf16.msra.mxu0 %v7971
    %8183 = vmatprep.subr.bf16.mxu0 %v7974
    %8184 = vmatpush1.bf16.msra.mxu0 %v7973
    %8185 = vmatprep.subr.bf16.mxu0 %v7976
    %8186 = vmatpush1.bf16.msra.mxu0 %v7975
    %8187 = vmatprep.subr.bf16.mxu0 %v7978
    %8188 = vmatpush1.bf16.msra.mxu0 %v7977
    %8189 = vmatprep.subr.bf16.mxu0 %v7980
    %8190 = vmatpush1.bf16.msra.mxu0 %v7979
    %8191 = vmatprep.subr.bf16.mxu0 %v7982
    %8192 = vmatpush1.bf16.msra.mxu0 %v7981
    %8193 = vmatprep.subr.bf16.mxu0 %v7984
    %8194 = vmatpush1.bf16.msra.mxu0 %v7983
    %8195 = vmatprep.subr.bf16.mxu0 %v7986
    %8196 = vmatpush1.bf16.msra.mxu0 %v7985
    %8197 = vmatprep.subr.bf16.mxu0 %v7988
    %8198 = vmatpush1.bf16.msra.mxu0 %v7987
    %8199 = vmatprep.subr.bf16.mxu0 %v7990
    %8200 = vmatpush1.bf16.msra.mxu0 %v7989
    %8201 = vmatprep.subr.bf16.mxu0 %v7992
    %8202 = vmatpush1.bf16.msra.mxu0 %v7991
    %8203 = vmatprep.mubr.bf16.mxu0 %v7500
    %8204 = vmatmul.mubr.bf16.gmra.mrb[0].mxu0 %v7499
    %v8205 = vpop.f32.mrb[0].mxu0
    %v8206 = vadd.f32 %v8165, %v8205
    %v8207 = vpop.f32.mrb[0].mxu0
    %v8208 = vadd.f32 %v8167, %v8207
    %v8209 = vpop.f32.mrb[0].mxu0
    %v8210 = vpop.f32.mrb[0].mxu0
    %8211 = vdwg.mxu0
    %v8212 = vmax.f32 %v8206, 0.0
    %v8213 = vmax.f32 %v8208, 0.0
    %v8214 = vmax.f32 %v8212, %v8213
    %v8215 = vld [vmem:[%s18] sm:$0xff]
    %v8216 = vld [vmem:[%s18 + $0x8] sm:$0xff]
    %v8217 = vld [vmem:[%s18 + $0x10] sm:$0xff]
    %v8218 = vld [vmem:[%s18 + $0x18] sm:$0xff]
    %v8219 = vld [vmem:[%s18 + $0x20] sm:$0xff]
    %v8220 = vld [vmem:[%s18 + $0x28] sm:$0xff]
    %v8221 = vld [vmem:[%s18 + $0x30] sm:$0xff]
    %v8222 = vld [vmem:[%s18 + $0x38] sm:$0xff]
    %v8223 = vld [vmem:[%s18 + $0x40] sm:$0xff]
    %v8224 = vld [vmem:[%s18 + $0x48] sm:$0xff]
    %v8225 = vld [vmem:[%s18 + $0x50] sm:$0xff]
    %v8226 = vld [vmem:[%s18 + $0x58] sm:$0xff]
    %v8227 = vld [vmem:[%s18 + $0x60] sm:$0xff]
    %v8228 = vld [vmem:[%s18 + $0x68] sm:$0xff]
    %v8229 = vld [vmem:[%s18 + $0x70] sm:$0xff]
    %v8230 = vld [vmem:[%s18 + $0x78] sm:$0xff]
    %v8231 = vld [vmem:[#allocation31] sm:$0x1]
    %v8233 = vlaneseq
    %v8234 = vshrl.u32 %v8233, 7
    %v8235 = vsub.s32 0, %v8234
    %v8236 = vrot.slane %v8231, %v8235
    %8238 = vmatprep.subr.mxu0 0.0
    %8239 = vmatpush1.msra.mxu0 %v8215
    %8240 = vmatprep.subr.mxu0 0.0
    %8241 = vmatpush1.msra.mxu0 %v8216
    %8242 = vmatprep.subr.mxu0 0.0
    %8243 = vmatpush1.msra.mxu0 %v8217
    %8244 = vmatprep.subr.mxu0 0.0
    %8245 = vmatpush1.msra.mxu0 %v8218
    %8246 = vmatprep.subr.mxu0 0.0
    %8247 = vmatpush1.msra.mxu0 %v8219
    %8248 = vmatprep.subr.mxu0 0.0
    %8249 = vmatpush1.msra.mxu0 %v8220
    %8250 = vmatprep.subr.mxu0 0.0
    %8251 = vmatpush1.msra.mxu0 %v8221
    %8252 = vmatprep.subr.mxu0 0.0
    %8253 = vmatpush1.msra.mxu0 %v8222
    %8254 = vmatprep.subr.mxu0 0.0
    %8255 = vmatpush1.msra.mxu0 %v8223
    %8256 = vmatprep.subr.mxu0 0.0
    %8257 = vmatpush1.msra.mxu0 %v8224
    %8258 = vmatprep.subr.mxu0 0.0
    %8259 = vmatpush1.msra.mxu0 %v8225
    %8260 = vmatprep.subr.mxu0 0.0
    %8261 = vmatpush1.msra.mxu0 %v8226
    %8262 = vmatprep.subr.mxu0 0.0
    %8263 = vmatpush1.msra.mxu0 %v8227
    %8264 = vmatprep.subr.mxu0 0.0
    %8265 = vmatpush1.msra.mxu0 %v8228
    %8266 = vmatprep.subr.mxu0 0.0
    %8267 = vmatpush1.msra.mxu0 %v8229
    %8268 = vmatprep.subr.mxu0 0.0
    %8269 = vmatpush1.msra.mxu0 %v8230
    %8270 = vmatprep.subr.mxu0 0.0
    %8271 = vmatpush1.msra.mxu0 0.0
    %8272 = vmatprep.subr.mxu0 0.0
    %8273 = vmatpush1.msra.mxu0 0.0
    %8274 = vmatprep.subr.mxu0 0.0
    %8275 = vmatpush1.msra.mxu0 0.0
    %8276 = vmatprep.subr.mxu0 0.0
    %8277 = vmatpush1.msra.mxu0 0.0
    %8278 = vmatprep.subr.mxu0 0.0
    %8279 = vmatpush1.msra.mxu0 0.0
    %8280 = vmatprep.subr.mxu0 0.0
    %8281 = vmatpush1.msra.mxu0 0.0
    %8282 = vmatprep.subr.mxu0 0.0
    %8283 = vmatpush1.msra.mxu0 0.0
    %8284 = vmatprep.subr.mxu0 0.0
    %8285 = vmatpush1.msra.mxu0 0.0
    %8286 = vmatprep.subr.mxu0 0.0
    %8287 = vmatpush1.msra.mxu0 0.0
    %8288 = vmatprep.subr.mxu0 0.0
    %8289 = vmatpush1.msra.mxu0 0.0
    %8290 = vmatprep.subr.mxu0 0.0
    %8291 = vmatpush1.msra.mxu0 0.0
    %8292 = vmatprep.subr.mxu0 0.0
    %8293 = vmatpush1.msra.mxu0 0.0
    %8294 = vmatprep.subr.mxu0 0.0
    %8295 = vmatpush1.msra.mxu0 0.0
    %8296 = vmatprep.subr.mxu0 0.0
    %8297 = vmatpush1.msra.mxu0 0.0
    %8298 = vmatprep.subr.mxu0 0.0
    %8299 = vmatpush1.msra.mxu0 0.0
    %8300 = vmatprep.subr.mxu0 0.0
    %8301 = vmatpush1.msra.mxu0 0.0
    %8302 = vmatprep.mubr.f32.mxu0 0.0
    %8303 = vmatmul.mubr.f32.gmra.mrb[0].mxu0 %v8214
    %v8304 = vpop.f32.mrb[0].mxu0
    %v8305 = vadd.f32 %v8236, %v8304
    %v8306 = vpop.f32.mrb[0].mxu0
    %8307 = vdwg.mxu0
    %vm8308 = vcmask 25600
    %8309 = vst.msk [vmem:[#allocation33] sm:$0x3] %vm8308, %v8305
    // Predicated region
    $region154: #{text_rcnn_forward.1} parent=1 // pred_check
      _
    $region155: #{text_rcnn_forward.1} parent=1 // pred_check_branch
      %8311 = sbr.rel (0) target = $region157
    $region156: #{text_rcnn_forward.1} parent=1 // pred_region
      %s8313 = ssub.s32 32, 32
      %8314 = vsyncadd [#allocation6], %s8313
      %s8316 = sshll.u32 [#allocation33], 4
      %s8317 = int_to_ptr.vmem [resolvable:$true] %s8316
      %8319 = dma.vmem_to_hbm [thread:$0]  %s8317, 32, %s20, [#allocation6]
    $region157: #{text_rcnn_forward.1} parent=1 // pred_fallthru
      _
    // Predicated region
    $region158: #{text_rcnn_forward.1} parent=1 // pred_check
      _
    $region159: #{text_rcnn_forward.1} parent=1 // pred_check_branch
      %8321 = sbr.rel (0) target = $region161
    $region160: #{text_rcnn_forward.1} parent=1 // pred_region
      %8322 = dma.done [#allocation6], 32
    $region161: #{text_rcnn_forward.1} parent=1 // pred_fallthru
      _
    %8323 = vsyncpa [#allocation5], 1
    %8324 = vsyncpa [#allocation8], 1
    %8325 = vsyncpa [#allocation11], 1
    %8326 = vsyncpa [#allocation14], 1
    %8327 = vsyncpa [#allocation17], 1
    %8328 = vsyncpa [#allocation20], 1
    %8329 = vsyncpa [#allocation23], 1
    %8330 = vsyncpa [#allocation26], 1
    %8331 = vsyncpa [#allocation29], 1
    %8332 = vsyncpa [#allocation32], 1
    %8333 = vsyncpa [#allocation6], 1

</llo_original>
